<compile_context>
chip_gen: v6e
topology: v6e:2x2x1
jax: 0.10.0
libtpu: 0.0.40
codegen_flags: <defaults>
</compile_context>

<pallas_src>
import functools

import jax
import jax.numpy as jnp
import numpy as np
from jax.experimental import pallas as pl
from jax.experimental.pallas import tpu as pltpu

LANE = 128


# --------------------------------------------------------------------------------------
# Pallas kernels
# --------------------------------------------------------------------------------------

def _conv_gemm_kernel(scale, a_ref, w_ref, b_ref, o_ref):
    # relu((a @ w) * scale + b) for one M-tile.  Full K and the exact Cout live in the
    # block: no K-reduction loop, no scratch accumulator.  For conv1, `scale` = 1/127.5
    # and the bias was pre-adjusted at init (b' = b - colsum(W_bf16)), which folds the
    # Atari pixel normalization into the GEMM epilogue; the wrapper pads the raw image
    # spatially with 127.5 so padded taps cancel exactly.
    acc = jnp.dot(a_ref[...], w_ref[...], preferred_element_type=jnp.float32)
    if scale != 1.0:
        acc = acc * jnp.float32(scale)
    o_ref[...] = jnp.maximum(acc + b_ref[...], 0.0).astype(o_ref.dtype)


def conv_gemm(a, w, b, *, scale=1.0, out_dtype=jnp.bfloat16):
    """relu((a @ w) * scale + b).  a: (M, K) bf16, w: (K, Cout) bf16, b: (1, Cout) f32.

    Single K block (no reduction axis) and exact Cout (no channel padding -> no
    post-kernel slice copy).  M is one full block for inference-size batches (no M pad,
    no [:M] slice); large batches tile M on a "parallel" axis so the double-buffered
    blocks stay inside every generation's scoped VMEM and both TCs engage on v7x.
    """
    M, K = a.shape
    Cout = w.shape[1]

    if M <= 1024:
        tm, grid_m = M, 1            # full-M single block (968 / 288 at B=2)
    else:
        tm = 512                      # batch-gated M tiling ("parallel" -> 2 TCs on v7x)
        grid_m = pl.cdiv(M, tm)
    Mp = tm * grid_m
    a_p = a if Mp == M else jnp.pad(a, ((0, Mp - M), (0, 0)))

    out = pl.pallas_call(
        functools.partial(_conv_gemm_kernel, scale),
        out_shape=jax.ShapeDtypeStruct((Mp, Cout), out_dtype),
        grid_spec=pltpu.PrefetchScalarGridSpec(
            num_scalar_prefetch=0,
            grid=(grid_m,),
            in_specs=[pl.BlockSpec((tm, K), lambda m: (m, 0)),
                      pl.BlockSpec((K, Cout), lambda m: (0, 0)),
                      pl.BlockSpec((1, Cout), lambda m: (0, 0))],
            out_specs=pl.BlockSpec((tm, Cout), lambda m: (m, 0))),
        compiler_params=pltpu.CompilerParams(
            dimension_semantics=("parallel",)),
    )(a_p, w, b)
    return out if Mp == M else out[:M]


def _fc1_head_kernel(action_dim, a_ref, w_ref, b_ref, hw_ref, hb_ref, o_ref, acc_ref):
    # fc1 (K-tiled reduction into a tiny (B,512) f32 accumulator) fused with the dueling
    # head on the last K step.  Column 0 of hw/hb is value_fc, columns 1..action_dim are
    # adv_fc, the rest is zero padding (sliced off by the wrapper).
    k = pl.program_id(0)

    @pl.when(k == 0)
    def _():
        acc_ref[...] = jnp.zeros_like(acc_ref)

    acc_ref[...] += jnp.dot(a_ref[...], w_ref[...],
                            preferred_element_type=jnp.float32)

    @pl.when(k == pl.num_programs(0) - 1)
    def _():
        feat = jnp.maximum(acc_ref[...] + b_ref[...], 0.0)                   # (B, 512) f32
        logits = jnp.dot(feat.astype(jnp.bfloat16), hw_ref[...],
                         preferred_element_type=jnp.float32) + hb_ref[...]   # (B, Np) f32
        col = jax.lax.broadcasted_iota(jnp.int32, logits.shape, 1)
        value = jnp.sum(jnp.where(col == 0, logits, 0.0), axis=-1, keepdims=True)
        adv_mean = jnp.sum(jnp.where((col >= 1) & (col <= action_dim), logits, 0.0),
                           axis=-1, keepdims=True) * (1.0 / action_dim)
        # For columns 1..action_dim this is value + adv - mean(adv); pads sliced off later.
        o_ref[...] = value + logits - adv_mean


_FC1_TK_CACHE = None


def _fc1_tk():
    # Generation-dependent fc1 K-tile.  v6e / v7x: 32 MiB scoped VMEM and fast HBM, so use
    # 2 K steps of 4608 (4.7 MB x2 weight buffers) to shave grid-step overhead.  v5e and
    # older: keep 2304 (2.36 MB x2) to stay well inside the 16 MiB default scoped VMEM;
    # at 820 GB/s the per-step DMA already hides all step overhead there.
    global _FC1_TK_CACHE
    if _FC1_TK_CACHE is None:
        try:
            kind = jax.devices()[0].device_kind.lower()
        except Exception:  # pragma: no cover - defensive, fall back to the safe tile
            kind = ""
        _FC1_TK_CACHE = 4608 if ("v6" in kind or "v7" in kind or "7x" in kind) else 2304
    return _FC1_TK_CACHE


def fc1_duel_head(feat, w_fc1, b_fc1, head_w, head_b, action_dim, *, tk=None):
    """q = duel(relu(feat @ w_fc1 + b_fc1) @ head_w + head_b).
    feat: (B, 9216) bf16, w_fc1: (9216, 512) bf16, head_w: (512, Np) bf16 (Np lane-padded),
    head_b: (1, Np) f32.  K is tiled (generation-dependent tile); accumulation is f32.
    """
    B, K = feat.shape
    N = w_fc1.shape[1]
    Np = head_w.shape[1]
    if tk is None:
        tk = _fc1_tk()

    Kp = pl.cdiv(K, tk) * tk
    if Kp != K:  # not hit at the module's native 9216 with tk in {2304, 4608}
        feat = jnp.pad(feat, ((0, 0), (0, Kp - K)))
        w_fc1 = jnp.pad(w_fc1, ((0, Kp - K), (0, 0)))

    out = pl.pallas_call(
        functools.partial(_fc1_head_kernel, action_dim),
        out_shape=jax.ShapeDtypeStruct((B, Np), jnp.float32),
        grid_spec=pltpu.PrefetchScalarGridSpec(
            num_scalar_prefetch=0,
            grid=(Kp // tk,),
            in_specs=[pl.BlockSpec((B, tk), lambda k: (0, k)),
                      pl.BlockSpec((tk, N), lambda k: (k, 0)),
                      pl.BlockSpec((1, N), lambda k: (0, 0)),
                      pl.BlockSpec((N, Np), lambda k: (0, 0)),
                      pl.BlockSpec((1, Np), lambda k: (0, 0))],
            out_specs=pl.BlockSpec((B, Np), lambda k: (0, 0)),
            scratch_shapes=[pltpu.VMEM((B, N), jnp.float32)]),
        compiler_params=pltpu.CompilerParams(
            dimension_semantics=("arbitrary",)),
    )(feat, w_fc1, b_fc1, head_w, head_b)
    # TODO(synk): for large batches, split the fc1 N=512 axis into two "parallel" tiles
    # (2-TC split on v7x) and do the duel head in a tiny follow-up step; at B=2 the single
    # fused call is HBM/dispatch-bound so the fusion wins.
    return out[:, 1:1 + action_dim]


# --------------------------------------------------------------------------------------
# JAX glue: im2col + forward
# --------------------------------------------------------------------------------------

def _im2col(x, ksize, stride, pad, pad_value=0.0):
    # x: (B, H, W, C) bf16.  pad_value=127.5 for the raw conv1 input (cancels exactly via
    # the folded normalization); 0.0 for the already-activated conv2/conv3 inputs.
    # TODO(synk): patch extraction stays in XLA glue; a fully in-kernel im2col needs
    # sublane-strided reads / in-kernel relayouts that do not lower robustly, so instead
    # the surrounding pad/slice copies were eliminated (exact-Cout conv outputs, tm = M).
    B, H, W, C = x.shape
    xp = jnp.pad(x, ((0, 0), (pad, pad), (pad, pad), (0, 0)), constant_values=pad_value)
    OH = (H + 2 * pad - ksize) // stride + 1
    OW = (W + 2 * pad - ksize) // stride + 1
    cols = []
    for i in range(ksize):
        for j in range(ksize):
            cols.append(xp[:, i:i + stride * OH:stride, j:j + stride * OW:stride, :])
    patches = jnp.concatenate(cols, axis=-1)          # (B, OH, OW, ksize*ksize*C)
    return patches.reshape(B * OH * OW, ksize * ksize * C), OH, OW


def atari_duel_q_forward(params, state_nchw, action=None):
    # state_nchw: (B, frame_stack, 84, 84) uint8 (raw 0..255 pixels).
    B = state_nchw.shape[0]
    # Transpose the raw uint8 frames (4x less traffic than f32), then cast to bf16
    # (0..255 and 127.5 are exact in bf16); normalization is folded into conv1.
    x = jnp.transpose(state_nchw, (0, 2, 3, 1)).astype(jnp.bfloat16)   # NCHW -> NHWC

    # conv1: 8x8 s4 p4, normalization folded into scale+bias     -> (B, 22, 22, 32)
    a, OH, OW = _im2col(x, 8, 4, 4, pad_value=127.5)
    x = conv_gemm(a, params['conv1_w'], params['conv1_b'],
                  scale=1.0 / 127.5).reshape(B, OH, OW, 32)
    # conv2: 4x4 s2 p2                                            -> (B, 12, 12, 64)
    a, OH, OW = _im2col(x, 4, 2, 2)
    x = conv_gemm(a, params['conv2_w'], params['conv2_b']).reshape(B, OH, OW, 64)
    # conv3: 3x3 s1 p1 (full K=576, single block)                 -> (B*144, 64)
    a, OH, OW = _im2col(x, 3, 1, 1)
    x = conv_gemm(a, params['conv3_w'], params['conv3_b'])

    # Flatten: (B*144, 64) -> (B, 9216) is a free row-major reshape (NHWC order; synthetic
    # fc1 weights use the same order.  Real PyTorch fc1 weights would need their rows
    # permuted from NCHW-flatten order before loading.)
    feat = x.reshape(B, 12 * 12 * 64)                                  # (B, 9216) bf16
    q = fc1_duel_head(feat, params['fc1_w'], params['fc1_b'],
                      params['head_w'], params['head_b'], params['action_dim'])
    if action is not None:
        # gather_q_values: q_values.gather(1, action.unsqueeze(1)).squeeze(1)
        q = jnp.take_along_axis(q, action[:, None], axis=1)[:, 0]
    return q


# --------------------------------------------------------------------------------------
# Deterministic synthetic parameters (shapes from the PyTorch module __init__)
# Kernel params are pre-cast / pre-folded ONCE here (no per-forward padding copies).
# --------------------------------------------------------------------------------------

def init_params(key, frame_stack, action_dim):
    def uniform(k, shape, fan_in):
        bound = 1.0 / float(fan_in) ** 0.5
        return jax.random.uniform(k, shape, jnp.float32, -bound, bound)

    ks = jax.random.split(key, 12)
    raw = {}
    raw['conv1_w'] = uniform(ks[0], (8 * 8 * frame_stack, 32), 8 * 8 * frame_stack)
    raw['conv1_b'] = uniform(ks[1], (32,), 8 * 8 * frame_stack)
    raw['conv2_w'] = uniform(ks[2], (4 * 4 * 32, 64), 4 * 4 * 32)
    raw['conv2_b'] = uniform(ks[3], (64,), 4 * 4 * 32)
    raw['conv3_w'] = uniform(ks[4], (3 * 3 * 64, 64), 3 * 3 * 64)
    raw['conv3_b'] = uniform(ks[5], (64,), 3 * 3 * 64)
    raw['fc1_w'] = uniform(ks[6], (12 * 12 * 64, 512), 12 * 12 * 64)
    raw['fc1_b'] = uniform(ks[7], (512,), 12 * 12 * 64)
    # head: column 0 = value_fc (512 -> 1), columns 1..action_dim = adv_fc (512 -> action_dim)
    vw = uniform(ks[8], (512, 1), 512)
    vb = uniform(ks[9], (1,), 512)
    aw = uniform(ks[10], (512, action_dim), 512)
    ab = uniform(ks[11], (action_dim,), 512)
    raw['head_w'] = jnp.concatenate([vw, aw], axis=1)
    raw['head_b'] = jnp.concatenate([vb, ab], axis=0)
    raw['action_dim'] = action_dim

    def pad_lane(w):  # zero-pad last dim up to a multiple of 128 (lane-dense head output)
        tgt = pl.cdiv(w.shape[-1], LANE) * LANE
        return jnp.pad(w, [(0, 0)] * (w.ndim - 1) + [(0, tgt - w.shape[-1])])

    conv1_w_bf16 = raw['conv1_w'].astype(jnp.bfloat16)
    # Normalization fold:
    #   relu(((x - 127.5)/127.5) @ W + b) == relu((x @ W) * (1/127.5) + (b - colsum(W)))
    # with x = raw pixels.  colsum uses the bf16 weights actually fed to the MXU, so the
    # 127.5-padded taps cancel exactly.  The spatial pad value MUST stay 127.5.
    conv1_b_eff = raw['conv1_b'] - jnp.sum(conv1_w_bf16.astype(jnp.float32), axis=0)

    params = {
        # GEMM weights in bf16 (f32 accumulation in-kernel); biases stay f32.
        'conv1_w': conv1_w_bf16,                                    # (256, 32)
        'conv1_b': conv1_b_eff.reshape(1, -1),                      # (1, 32) f32 (folded)
        'conv2_w': raw['conv2_w'].astype(jnp.bfloat16),             # (512, 64)
        'conv2_b': raw['conv2_b'].reshape(1, -1),
        'conv3_w': raw['conv3_w'].astype(jnp.bfloat16),             # (576, 64) full-K
        'conv3_b': raw['conv3_b'].reshape(1, -1),
        'fc1_w':  raw['fc1_w'].astype(jnp.bfloat16),                # (9216, 512) = 9 MB
        'fc1_b':  raw['fc1_b'].reshape(1, -1),                      # (1, 512) f32
        'head_w': pad_lane(raw['head_w']).astype(jnp.bfloat16),     # (512, 128) bf16
        'head_b': pad_lane(raw['head_b'].reshape(1, -1)),           # (1, 128) f32
        'action_dim': action_dim,
    }
    return params, raw


# --------------------------------------------------------------------------------------
# Pure-JAX f32 reference for the correctness check
# --------------------------------------------------------------------------------------

def reference_forward(raw, state_nchw, action=None):
    x = jnp.transpose(state_nchw.astype(jnp.float32), (0, 2, 3, 1))
    x = (x - 127.5) / 127.5

    def conv(x, w_mat, b, k, s, pad):
        cin, cout = x.shape[-1], w_mat.shape[1]
        w = w_mat.reshape(k, k, cin, cout)
        y = jax.lax.conv_general_dilated(
            x, w, (s, s), [(pad, pad), (pad, pad)],
            dimension_numbers=('NHWC', 'HWIO', 'NHWC'))
        return jax.nn.relu(y + b)

    x = conv(x, raw['conv1_w'], raw['conv1_b'], 8, 4, 4)
    x = conv(x, raw['conv2_w'], raw['conv2_b'], 4, 2, 2)
    x = conv(x, raw['conv3_w'], raw['conv3_b'], 3, 1, 1)
    feat = x.reshape(x.shape[0], -1)
    feat = jax.nn.relu(feat @ raw['fc1_w'] + raw['fc1_b'])
    logits = feat @ raw['head_w'] + raw['head_b']
    value, adv = logits[:, :1], logits[:, 1:]
    q = value + adv - jnp.mean(adv, axis=-1, keepdims=True)
    if action is not None:
        q = jnp.take_along_axis(q, action[:, None], axis=1)[:, 0]
    return q


# --------------------------------------------------------------------------------------

if __name__ == "__main__":
    key = jax.random.PRNGKey(0)
    pkey, skey, akey = jax.random.split(key, 3)

    frame_stack, action_dim = 4, 6
    B, H, W = 2, 84, 84  # 84x84 is required by the hardcoded 12*12*64 Linear in the module

    params, raw_params = init_params(pkey, frame_stack, action_dim)
    state = jax.random.randint(skey, (B, frame_stack, H, W), 0, 256,
                               dtype=jnp.int32).astype(jnp.uint8)

    # action=None path (full Q-values). params are closed over so action_dim stays static.
    fwd = jax.jit(lambda s: atari_duel_q_forward(params, s))
    q = jax.block_until_ready(fwd(state))
    assert q.shape == (B, action_dim)
    q_ref = jax.block_until_ready(reference_forward(raw_params, state))
    np.testing.assert_allclose(np.asarray(q), np.asarray(q_ref), rtol=5e-2, atol=5e-2)

    # gather_q_values path
    action = jax.random.randint(akey, (B,), 0, action_dim)
    fwd_a = jax.jit(lambda s, a: atari_duel_q_forward(params, s, a))
    q_a = jax.block_until_ready(fwd_a(state, action))
    assert q_a.shape == (B,)
    q_a_ref = jnp.take_along_axis(q_ref, action[:, None], axis=1)[:, 0]
    np.testing.assert_allclose(np.asarray(q_a), np.asarray(q_a_ref), rtol=5e-2, atol=5e-2)

    print("KERNEL_OK")
</pallas_src>

<mosaic_0001>
module attributes {stable_mosaic.version = 11 : i64} {
  func.func @_conv_gemm_kernel(%arg0: i32, %arg1: memref<968x256xbf16, #tpu.memory_space<vmem>>, %arg2: memref<256x32xbf16, #tpu.memory_space<vmem>>, %arg3: memref<1x32xf32, #tpu.memory_space<vmem>>, %arg4: memref<968x32xbf16, #tpu.memory_space<vmem>>) attributes {dimension_semantics = [#tpu.dimension_semantics<parallel>], iteration_bounds = array<i64: 1>, scalar_prefetch = 0 : i64, scratch_operands = 0 : i64, tpu.core_type = #tpu.core_type<tc>, window_params = [{transform_indices = @transform_0, window_bounds = array<i64: 968, 256>}, {pipeline_mode = #tpu.pipeline_mode<synchronous>, transform_indices = @transform_1, window_bounds = array<i64: 256, 32>}, {pipeline_mode = #tpu.pipeline_mode<synchronous>, transform_indices = @transform_2, window_bounds = array<i64: 1, 32>}, {transform_indices = @transform_3, window_bounds = array<i64: 968, 32>}]} {
    %c0 = arith.constant 0 : index
    %c0_0 = arith.constant 0 : index
    %0 = vector.load %arg1[%c0, %c0_0] : memref<968x256xbf16, #tpu.memory_space<vmem>>, vector<968x256xbf16>
    %c0_1 = arith.constant 0 : index
    %c0_2 = arith.constant 0 : index
    %1 = vector.load %arg2[%c0_1, %c0_2] : memref<256x32xbf16, #tpu.memory_space<vmem>>, vector<256x32xbf16>
    %cst = arith.constant dense<0.000000e+00> : vector<968x32xf32>
    %2 = tpu.matmul %0, %1, %cst {dimension_numbers = #tpu.dot_dimension_numbers<[1], [0], [0], [1], [0, 0, 1, 1], [], []>} : vector<968x256xbf16>, vector<256x32xbf16>, vector<968x32xf32> -> vector<968x32xf32>
    %cst_3 = arith.constant 0.00784313772 : f32
    %3 = vector.broadcast %cst_3 : f32 to vector<968x32xf32>
    %4 = arith.mulf %2, %3 : vector<968x32xf32>
    %c0_4 = arith.constant 0 : index
    %c0_5 = arith.constant 0 : index
    %5 = vector.load %arg3[%c0_4, %c0_5] : memref<1x32xf32, #tpu.memory_space<vmem>>, vector<1x32xf32>
    %6 = vector.broadcast %5 : vector<1x32xf32> to vector<968x32xf32>
    %7 = arith.addf %4, %6 : vector<968x32xf32>
    %cst_6 = arith.constant 0.000000e+00 : f32
    %8 = vector.broadcast %cst_6 : f32 to vector<968x32xf32>
    %9 = arith.maximumf %7, %8 : vector<968x32xf32>
    %10 = arith.truncf %9 : vector<968x32xf32> to vector<968x32xbf16>
    %c0_7 = arith.constant 0 : index
    %c0_8 = arith.constant 0 : index
    %11 = vector.load %arg4[%c0_7, %c0_8] : memref<968x32xbf16, #tpu.memory_space<vmem>>, vector<968x32xbf16>
    tpu.vector_store %arg4[%c0_7, %c0_8], %10 {strides = array<i32>} : memref<968x32xbf16, #tpu.memory_space<vmem>>, vector<968x32xbf16>,
    return
  }
  func.func @transform_0(%arg0: i32) -> (i32, i32) {
    %c0_i32 = arith.constant 0 : i32
    %c0_i32_0 = arith.constant 0 : i32
    return %arg0, %c0_i32 : i32, i32
  }
  func.func @transform_1(%arg0: i32) -> (i32, i32) {
    %c0_i32 = arith.constant 0 : i32
    %c0_i32_0 = arith.constant 0 : i32
    %c0_i32_1 = arith.constant 0 : i32
    return %c0_i32, %c0_i32_0 : i32, i32
  }
  func.func @transform_2(%arg0: i32) -> (i32, i32) {
    %c0_i32 = arith.constant 0 : i32
    %c0_i32_0 = arith.constant 0 : i32
    %c0_i32_1 = arith.constant 0 : i32
    return %c0_i32, %c0_i32_0 : i32, i32
  }
  func.func @transform_3(%arg0: i32) -> (i32, i32) {
    %c0_i32 = arith.constant 0 : i32
    %c0_i32_0 = arith.constant 0 : i32
    return %arg0, %c0_i32 : i32, i32
  }
}

module attributes {stable_mosaic.version = 11 : i64} {
  func.func @_conv_gemm_kernel(%arg0: i32, %arg1: memref<288x512xbf16, #tpu.memory_space<vmem>>, %arg2: memref<512x64xbf16, #tpu.memory_space<vmem>>, %arg3: memref<1x64xf32, #tpu.memory_space<vmem>>, %arg4: memref<288x64xbf16, #tpu.memory_space<vmem>>) attributes {dimension_semantics = [#tpu.dimension_semantics<parallel>], iteration_bounds = array<i64: 1>, scalar_prefetch = 0 : i64, scratch_operands = 0 : i64, tpu.core_type = #tpu.core_type<tc>, window_params = [{transform_indices = @transform_0, window_bounds = array<i64: 288, 512>}, {pipeline_mode = #tpu.pipeline_mode<synchronous>, transform_indices = @transform_1, window_bounds = array<i64: 512, 64>}, {pipeline_mode = #tpu.pipeline_mode<synchronous>, transform_indices = @transform_2, window_bounds = array<i64: 1, 64>}, {transform_indices = @transform_3, window_bounds = array<i64: 288, 64>}]} {
    %c0 = arith.constant 0 : index
    %c0_0 = arith.constant 0 : index
    %0 = vector.load %arg1[%c0, %c0_0] : memref<288x512xbf16, #tpu.memory_space<vmem>>, vector<288x512xbf16>
    %c0_1 = arith.constant 0 : index
    %c0_2 = arith.constant 0 : index
    %1 = vector.load %arg2[%c0_1, %c0_2] : memref<512x64xbf16, #tpu.memory_space<vmem>>, vector<512x64xbf16>
    %cst = arith.constant dense<0.000000e+00> : vector<288x64xf32>
    %2 = tpu.matmul %0, %1, %cst {dimension_numbers = #tpu.dot_dimension_numbers<[1], [0], [0], [1], [0, 0, 1, 1], [], []>} : vector<288x512xbf16>, vector<512x64xbf16>, vector<288x64xf32> -> vector<288x64xf32>
    %c0_3 = arith.constant 0 : index
    %c0_4 = arith.constant 0 : index
    %3 = vector.load %arg3[%c0_3, %c0_4] : memref<1x64xf32, #tpu.memory_space<vmem>>, vector<1x64xf32>
    %4 = vector.broadcast %3 : vector<1x64xf32> to vector<288x64xf32>
    %5 = arith.addf %2, %4 : vector<288x64xf32>
    %cst_5 = arith.constant 0.000000e+00 : f32
    %6 = vector.broadcast %cst_5 : f32 to vector<288x64xf32>
    %7 = arith.maximumf %5, %6 : vector<288x64xf32>
    %8 = arith.truncf %7 : vector<288x64xf32> to vector<288x64xbf16>
    %c0_6 = arith.constant 0 : index
    %c0_7 = arith.constant 0 : index
    %9 = vector.load %arg4[%c0_6, %c0_7] : memref<288x64xbf16, #tpu.memory_space<vmem>>, vector<288x64xbf16>
    tpu.vector_store %arg4[%c0_6, %c0_7], %8 {strides = array<i32>} : memref<288x64xbf16, #tpu.memory_space<vmem>>, vector<288x64xbf16>,
    return
  }
  func.func @transform_0(%arg0: i32) -> (i32, i32) {
    %c0_i32 = arith.constant 0 : i32
    %c0_i32_0 = arith.constant 0 : i32
    return %arg0, %c0_i32 : i32, i32
  }
  func.func @transform_1(%arg0: i32) -> (i32, i32) {
    %c0_i32 = arith.constant 0 : i32
    %c0_i32_0 = arith.constant 0 : i32
    %c0_i32_1 = arith.constant 0 : i32
    return %c0_i32, %c0_i32_0 : i32, i32
  }
  func.func @transform_2(%arg0: i32) -> (i32, i32) {
    %c0_i32 = arith.constant 0 : i32
    %c0_i32_0 = arith.constant 0 : i32
    %c0_i32_1 = arith.constant 0 : i32
    return %c0_i32, %c0_i32_0 : i32, i32
  }
  func.func @transform_3(%arg0: i32) -> (i32, i32) {
    %c0_i32 = arith.constant 0 : i32
    %c0_i32_0 = arith.constant 0 : i32
    return %arg0, %c0_i32 : i32, i32
  }
}

module attributes {stable_mosaic.version = 11 : i64} {
  func.func @_conv_gemm_kernel(%arg0: i32, %arg1: memref<288x576xbf16, #tpu.memory_space<vmem>>, %arg2: memref<576x64xbf16, #tpu.memory_space<vmem>>, %arg3: memref<1x64xf32, #tpu.memory_space<vmem>>, %arg4: memref<288x64xbf16, #tpu.memory_space<vmem>>) attributes {dimension_semantics = [#tpu.dimension_semantics<parallel>], iteration_bounds = array<i64: 1>, scalar_prefetch = 0 : i64, scratch_operands = 0 : i64, tpu.core_type = #tpu.core_type<tc>, window_params = [{transform_indices = @transform_0, window_bounds = array<i64: 288, 576>}, {pipeline_mode = #tpu.pipeline_mode<synchronous>, transform_indices = @transform_1, window_bounds = array<i64: 576, 64>}, {pipeline_mode = #tpu.pipeline_mode<synchronous>, transform_indices = @transform_2, window_bounds = array<i64: 1, 64>}, {transform_indices = @transform_3, window_bounds = array<i64: 288, 64>}]} {
    %c0 = arith.constant 0 : index
    %c0_0 = arith.constant 0 : index
    %0 = vector.load %arg1[%c0, %c0_0] : memref<288x576xbf16, #tpu.memory_space<vmem>>, vector<288x576xbf16>
    %c0_1 = arith.constant 0 : index
    %c0_2 = arith.constant 0 : index
    %1 = vector.load %arg2[%c0_1, %c0_2] : memref<576x64xbf16, #tpu.memory_space<vmem>>, vector<576x64xbf16>
    %cst = arith.constant dense<0.000000e+00> : vector<288x64xf32>
    %2 = tpu.matmul %0, %1, %cst {dimension_numbers = #tpu.dot_dimension_numbers<[1], [0], [0], [1], [0, 0, 1, 1], [], []>} : vector<288x576xbf16>, vector<576x64xbf16>, vector<288x64xf32> -> vector<288x64xf32>
    %c0_3 = arith.constant 0 : index
    %c0_4 = arith.constant 0 : index
    %3 = vector.load %arg3[%c0_3, %c0_4] : memref<1x64xf32, #tpu.memory_space<vmem>>, vector<1x64xf32>
    %4 = vector.broadcast %3 : vector<1x64xf32> to vector<288x64xf32>
    %5 = arith.addf %2, %4 : vector<288x64xf32>
    %cst_5 = arith.constant 0.000000e+00 : f32
    %6 = vector.broadcast %cst_5 : f32 to vector<288x64xf32>
    %7 = arith.maximumf %5, %6 : vector<288x64xf32>
    %8 = arith.truncf %7 : vector<288x64xf32> to vector<288x64xbf16>
    %c0_6 = arith.constant 0 : index
    %c0_7 = arith.constant 0 : index
    %9 = vector.load %arg4[%c0_6, %c0_7] : memref<288x64xbf16, #tpu.memory_space<vmem>>, vector<288x64xbf16>
    tpu.vector_store %arg4[%c0_6, %c0_7], %8 {strides = array<i32>} : memref<288x64xbf16, #tpu.memory_space<vmem>>, vector<288x64xbf16>,
    return
  }
  func.func @transform_0(%arg0: i32) -> (i32, i32) {
    %c0_i32 = arith.constant 0 : i32
    %c0_i32_0 = arith.constant 0 : i32
    return %arg0, %c0_i32 : i32, i32
  }
  func.func @transform_1(%arg0: i32) -> (i32, i32) {
    %c0_i32 = arith.constant 0 : i32
    %c0_i32_0 = arith.constant 0 : i32
    %c0_i32_1 = arith.constant 0 : i32
    return %c0_i32, %c0_i32_0 : i32, i32
  }
  func.func @transform_2(%arg0: i32) -> (i32, i32) {
    %c0_i32 = arith.constant 0 : i32
    %c0_i32_0 = arith.constant 0 : i32
    %c0_i32_1 = arith.constant 0 : i32
    return %c0_i32, %c0_i32_0 : i32, i32
  }
  func.func @transform_3(%arg0: i32) -> (i32, i32) {
    %c0_i32 = arith.constant 0 : i32
    %c0_i32_0 = arith.constant 0 : i32
    return %arg0, %c0_i32 : i32, i32
  }
}

module attributes {stable_mosaic.version = 11 : i64} {
  func.func @_fc1_head_kernel(%arg0: i32, %arg1: memref<2x2304xbf16, #tpu.memory_space<vmem>>, %arg2: memref<2304x512xbf16, #tpu.memory_space<vmem>>, %arg3: memref<1x512xf32, #tpu.memory_space<vmem>>, %arg4: memref<512x128xbf16, #tpu.memory_space<vmem>>, %arg5: memref<1x128xf32, #tpu.memory_space<vmem>>, %arg6: memref<2x128xf32, #tpu.memory_space<vmem>>, %arg7: memref<2x512xf32, #tpu.memory_space<vmem>>) attributes {dimension_semantics = [#tpu.dimension_semantics<arbitrary>], iteration_bounds = array<i64: 4>, scalar_prefetch = 0 : i64, scratch_operands = 1 : i64, tpu.core_type = #tpu.core_type<tc>, window_params = [{transform_indices = @transform_0, window_bounds = array<i64: 2, 2304>}, {transform_indices = @transform_1, window_bounds = array<i64: 2304, 512>}, {pipeline_mode = #tpu.pipeline_mode<synchronous>, transform_indices = @transform_2, window_bounds = array<i64: 1, 512>}, {pipeline_mode = #tpu.pipeline_mode<synchronous>, transform_indices = @transform_3, window_bounds = array<i64: 512, 128>}, {pipeline_mode = #tpu.pipeline_mode<synchronous>, transform_indices = @transform_4, window_bounds = array<i64: 1, 128>}, {pipeline_mode = #tpu.pipeline_mode<synchronous>, transform_indices = @transform_5, window_bounds = array<i64: 2, 128>}]} {
    %c0_i32 = arith.constant 0 : i32
    %0 = arith.cmpi eq, %arg0, %c0_i32 : i32
    %1 = arith.extui %0 : i1 to i32
    %c0_i32_0 = arith.constant 0 : i32
    %2 = arith.cmpi ne, %1, %c0_i32_0 : i32
    scf.if %2 {
      %cst_9 = arith.constant 0.000000e+00 : f32
      %12 = vector.broadcast %cst_9 : f32 to vector<2x512xf32>
      %c0_10 = arith.constant 0 : index
      %c0_11 = arith.constant 0 : index
      %13 = vector.load %arg7[%c0_10, %c0_11] : memref<2x512xf32, #tpu.memory_space<vmem>>, vector<2x512xf32>
      tpu.vector_store %arg7[%c0_10, %c0_11], %12 {strides = array<i32>} : memref<2x512xf32, #tpu.memory_space<vmem>>, vector<2x512xf32>,
    } else {
    }
    %c0 = arith.constant 0 : index
    %c0_1 = arith.constant 0 : index
    %3 = vector.load %arg7[%c0, %c0_1] : memref<2x512xf32, #tpu.memory_space<vmem>>, vector<2x512xf32>
    %c0_2 = arith.constant 0 : index
    %c0_3 = arith.constant 0 : index
    %4 = vector.load %arg1[%c0_2, %c0_3] : memref<2x2304xbf16, #tpu.memory_space<vmem>>, vector<2x2304xbf16>
    %c0_4 = arith.constant 0 : index
    %c0_5 = arith.constant 0 : index
    %5 = vector.load %arg2[%c0_4, %c0_5] : memref<2304x512xbf16, #tpu.memory_space<vmem>>, vector<2304x512xbf16>
    %cst = arith.constant dense<0.000000e+00> : vector<2x512xf32>
    %6 = tpu.matmul %4, %5, %cst {dimension_numbers = #tpu.dot_dimension_numbers<[1], [0], [0], [1], [0, 0, 1, 1], [], []>} : vector<2x2304xbf16>, vector<2304x512xbf16>, vector<2x512xf32> -> vector<2x512xf32>
    %7 = arith.addf %3, %6 : vector<2x512xf32>
    %c0_6 = arith.constant 0 : index
    %c0_7 = arith.constant 0 : index
    %8 = vector.load %arg7[%c0_6, %c0_7] : memref<2x512xf32, #tpu.memory_space<vmem>>, vector<2x512xf32>
    tpu.vector_store %arg7[%c0_6, %c0_7], %7 {strides = array<i32>} : memref<2x512xf32, #tpu.memory_space<vmem>>, vector<2x512xf32>,
    %c3_i32 = arith.constant 3 : i32
    %9 = arith.cmpi eq, %arg0, %c3_i32 : i32
    %10 = arith.extui %9 : i1 to i32
    %c0_i32_8 = arith.constant 0 : i32
    %11 = arith.cmpi ne, %10, %c0_i32_8 : i32
    scf.if %11 {
      %c0_9 = arith.constant 0 : index
      %c0_10 = arith.constant 0 : index
      %12 = vector.load %arg7[%c0_9, %c0_10] : memref<2x512xf32, #tpu.memory_space<vmem>>, vector<2x512xf32>
      %c0_11 = arith.constant 0 : index
      %c0_12 = arith.constant 0 : index
      %13 = vector.load %arg3[%c0_11, %c0_12] : memref<1x512xf32, #tpu.memory_space<vmem>>, vector<1x512xf32>
      %14 = vector.broadcast %13 : vector<1x512xf32> to vector<2x512xf32>
      %15 = arith.addf %12, %14 : vector<2x512xf32>
      %cst_13 = arith.constant 0.000000e+00 : f32
      %16 = vector.broadcast %cst_13 : f32 to vector<2x512xf32>
      %17 = arith.maximumf %15, %16 : vector<2x512xf32>
      %18 = arith.truncf %17 : vector<2x512xf32> to vector<2x512xbf16>
      %c0_14 = arith.constant 0 : index
      %c0_15 = arith.constant 0 : index
      %19 = vector.load %arg4[%c0_14, %c0_15] : memref<512x128xbf16, #tpu.memory_space<vmem>>, vector<512x128xbf16>
      %cst_16 = arith.constant dense<0.000000e+00> : vector<2x128xf32>
      %20 = tpu.matmul %18, %19, %cst_16 {dimension_numbers = #tpu.dot_dimension_numbers<[1], [0], [0], [1], [0, 0, 1, 1], [], []>} : vector<2x512xbf16>, vector<512x128xbf16>, vector<2x128xf32> -> vector<2x128xf32>
      %c0_17 = arith.constant 0 : index
      %c0_18 = arith.constant 0 : index
      %21 = vector.load %arg5[%c0_17, %c0_18] : memref<1x128xf32, #tpu.memory_space<vmem>>, vector<1x128xf32>
      %22 = vector.broadcast %21 : vector<1x128xf32> to vector<2x128xf32>
      %23 = arith.addf %20, %22 : vector<2x128xf32>
      %24 = tpu.iota {dimensions = array<i32: 1>} : vector<2x128xi32>
      %c0_i32_19 = arith.constant 0 : i32
      %25 = vector.broadcast %c0_i32_19 : i32 to vector<2x128xi32>
      %26 = arith.cmpi eq, %24, %25 : vector<2x128xi32>
      %cst_20 = arith.constant 0.000000e+00 : f32
      %27 = vector.broadcast %cst_20 : f32 to vector<2x128xf32>
      %28 = arith.select %26, %23, %27 : vector<2x128xi1>, vector<2x128xf32>
      %cst_21 = arith.constant dense<0.000000e+00> : vector<2xf32>
      %29 = vector.multi_reduction <add>, %28, %cst_21 [1] : vector<2x128xf32> to vector<2xf32>
      %30 = vector.shape_cast %29 : vector<2xf32> to vector<2x1xf32>
      %c1_i32 = arith.constant 1 : i32
      %31 = vector.broadcast %c1_i32 : i32 to vector<2x128xi32>
      %32 = arith.cmpi sge, %24, %31 : vector<2x128xi32>
      %c6_i32 = arith.constant 6 : i32
      %33 = vector.broadcast %c6_i32 : i32 to vector<2x128xi32>
      %34 = arith.cmpi sle, %24, %33 : vector<2x128xi32>
      %35 = arith.andi %32, %34 : vector<2x128xi1>
      %cst_22 = arith.constant 0.000000e+00 : f32
      %36 = vector.broadcast %cst_22 : f32 to vector<2x128xf32>
      %37 = arith.select %35, %23, %36 : vector<2x128xi1>, vector<2x128xf32>
      %cst_23 = arith.constant dense<0.000000e+00> : vector<2xf32>
      %38 = vector.multi_reduction <add>, %37, %cst_23 [1] : vector<2x128xf32> to vector<2xf32>
      %39 = vector.shape_cast %38 : vector<2xf32> to vector<2x1xf32>
      %cst_24 = arith.constant 0.166666672 : f32
      %40 = vector.broadcast %cst_24 : f32 to vector<2x1xf32>
      %41 = arith.mulf %39, %40 : vector<2x1xf32>
      %42 = vector.broadcast %30 : vector<2x1xf32> to vector<2x128xf32>
      %43 = arith.addf %42, %23 : vector<2x128xf32>
      %44 = vector.broadcast %41 : vector<2x1xf32> to vector<2x128xf32>
      %45 = arith.subf %43, %44 : vector<2x128xf32>
      %c0_25 = arith.constant 0 : index
      %c0_26 = arith.constant 0 : index
      %46 = vector.load %arg6[%c0_25, %c0_26] : memref<2x128xf32, #tpu.memory_space<vmem>>, vector<2x128xf32>
      tpu.vector_store %arg6[%c0_25, %c0_26], %45 {strides = array<i32>} : memref<2x128xf32, #tpu.memory_space<vmem>>, vector<2x128xf32>,
    } else {
    }
    return
  }
  func.func @transform_0(%arg0: i32) -> (i32, i32) {
    %c0_i32 = arith.constant 0 : i32
    %c0_i32_0 = arith.constant 0 : i32
    return %c0_i32, %arg0 : i32, i32
  }
  func.func @transform_1(%arg0: i32) -> (i32, i32) {
    %c0_i32 = arith.constant 0 : i32
    %c0_i32_0 = arith.constant 0 : i32
    return %arg0, %c0_i32 : i32, i32
  }
  func.func @transform_2(%arg0: i32) -> (i32, i32) {
    %c0_i32 = arith.constant 0 : i32
    %c0_i32_0 = arith.constant 0 : i32
    %c0_i32_1 = arith.constant 0 : i32
    return %c0_i32, %c0_i32_0 : i32, i32
  }
  func.func @transform_3(%arg0: i32) -> (i32, i32) {
    %c0_i32 = arith.constant 0 : i32
    %c0_i32_0 = arith.constant 0 : i32
    %c0_i32_1 = arith.constant 0 : i32
    return %c0_i32, %c0_i32_0 : i32, i32
  }
  func.func @transform_4(%arg0: i32) -> (i32, i32) {
    %c0_i32 = arith.constant 0 : i32
    %c0_i32_0 = arith.constant 0 : i32
    %c0_i32_1 = arith.constant 0 : i32
    return %c0_i32, %c0_i32_0 : i32, i32
  }
  func.func @transform_5(%arg0: i32) -> (i32, i32) {
    %c0_i32 = arith.constant 0 : i32
    %c0_i32_0 = arith.constant 0 : i32
    %c0_i32_1 = arith.constant 0 : i32
    return %c0_i32, %c0_i32_0 : i32, i32
  }
}

</mosaic_0001>

<llo_original>
// kernel: _lambda_.4
$region0: #{_lambda_.4}
  #allocation0 [shape = 'u32[]', space=smem, size = 0x4, offset = 0x4, fixed_abs, tag = 'smem constant byte address 0x4 - core index']
  #allocation1 [shape = 'u32[144,128]{1,0:T(1,128)}', space=vmem, size = 0x12000, scoped, tag = 'internal scratch']
  %s0 = inlined_call_operand.vmem [shape: bf16[968,256], index: 0, kind: input, shape index: {}]
  %s1 = inlined_call_operand.vmem [shape: bf16[256,32], index: 1, kind: input, shape index: {}]
  %s2 = inlined_call_operand.vmem [shape: f32[1,32], index: 2, kind: input, shape index: {}]
  %s3 = inlined_call_operand.vmem [shape: bf16[968,32], index: 3, kind: output, shape index: {}]
  %s4 = sld [smem:[#allocation0]]
  $region22: #{_lambda_.4} parent=0
    _
  %s6 = ssub.s32 1, %s4
  %s7 = scalar_select 0, %s6, %s4
  // Predicated region
  $region2: #{_lambda_.4} parent=0 // pred_check
    _
  $region3: #{_lambda_.4} parent=0 // pred_check_branch
    %9 = sbr.rel (0) target = $region5
  $region4: #{_lambda_.4} parent=0 // pred_region
    _
  $region5: #{_lambda_.4} parent=0 // pred_fallthru
    _
  // Predicated region
  $region6: #{_lambda_.4} parent=0 // pred_check
    _
  $region7: #{_lambda_.4} parent=0 // pred_check_branch
    %11 = sbr.rel (0) target = $region9
  $region8: #{_lambda_.4} parent=0 // pred_region
    _
  $region9: #{_lambda_.4} parent=0 // pred_fallthru
    _
  // Predicated region
  $region10: #{_lambda_.4} parent=0 // pred_check
    _
  $region11: #{_lambda_.4} parent=0 // pred_check_branch
    %13 = sbr.rel (0) target = $region13
  $region12: #{_lambda_.4} parent=0 // pred_region
    _
  $region13: #{_lambda_.4} parent=0 // pred_fallthru
    _
  %v15 = vld [vmem:[%s0] sm:$0xff]
  %v16 = vld [vmem:[%s0 + $0x8] sm:$0xff]
  %v17 = vld [vmem:[%s0 + $0x10] sm:$0xff]
  %v18 = vld [vmem:[%s0 + $0x18] sm:$0xff]
  %v19 = vld [vmem:[%s0 + $0x20] sm:$0xff]
  %v20 = vld [vmem:[%s0 + $0x28] sm:$0xff]
  %v21 = vld [vmem:[%s0 + $0x30] sm:$0xff]
  %v22 = vld [vmem:[%s0 + $0x38] sm:$0xff]
  %v23 = vld [vmem:[%s0 + $0x40] sm:$0xff]
  %v24 = vld [vmem:[%s0 + $0x48] sm:$0xff]
  %v25 = vld [vmem:[%s0 + $0x50] sm:$0xff]
  %v26 = vld [vmem:[%s0 + $0x58] sm:$0xff]
  %v27 = vld [vmem:[%s0 + $0x60] sm:$0xff]
  %v28 = vld [vmem:[%s0 + $0x68] sm:$0xff]
  %v29 = vld [vmem:[%s0 + $0x70] sm:$0xff]
  %v30 = vld [vmem:[%s0 + $0x78] sm:$0xff]
  %v31 = vld [vmem:[%s0 + $0x80] sm:$0xff]
  %v32 = vld [vmem:[%s0 + $0x88] sm:$0xff]
  %v33 = vld [vmem:[%s0 + $0x90] sm:$0xff]
  %v34 = vld [vmem:[%s0 + $0x98] sm:$0xff]
  %v35 = vld [vmem:[%s0 + $0xa0] sm:$0xff]
  %v36 = vld [vmem:[%s0 + $0xa8] sm:$0xff]
  %v37 = vld [vmem:[%s0 + $0xb0] sm:$0xff]
  %v38 = vld [vmem:[%s0 + $0xb8] sm:$0xff]
  %v39 = vld [vmem:[%s0 + $0xc0] sm:$0xff]
  %v40 = vld [vmem:[%s0 + $0xc8] sm:$0xff]
  %v41 = vld [vmem:[%s0 + $0xd0] sm:$0xff]
  %v42 = vld [vmem:[%s0 + $0xd8] sm:$0xff]
  %v43 = vld [vmem:[%s0 + $0xe0] sm:$0xff]
  %v44 = vld [vmem:[%s0 + $0xe8] sm:$0xff]
  %v45 = vld [vmem:[%s0 + $0xf0] sm:$0xff]
  %v46 = vld [vmem:[%s0 + $0xf8] sm:$0xff]
  %v47 = vld [vmem:[%s0 + $0x100] sm:$0xff]
  %v48 = vld [vmem:[%s0 + $0x108] sm:$0xff]
  %v49 = vld [vmem:[%s0 + $0x110] sm:$0xff]
  %v50 = vld [vmem:[%s0 + $0x118] sm:$0xff]
  %v51 = vld [vmem:[%s0 + $0x120] sm:$0xff]
  %v52 = vld [vmem:[%s0 + $0x128] sm:$0xff]
  %v53 = vld [vmem:[%s0 + $0x130] sm:$0xff]
  %v54 = vld [vmem:[%s0 + $0x138] sm:$0xff]
  %v55 = vld [vmem:[%s0 + $0x140] sm:$0xff]
  %v56 = vld [vmem:[%s0 + $0x148] sm:$0xff]
  %v57 = vld [vmem:[%s0 + $0x150] sm:$0xff]
  %v58 = vld [vmem:[%s0 + $0x158] sm:$0xff]
  %v59 = vld [vmem:[%s0 + $0x160] sm:$0xff]
  %v60 = vld [vmem:[%s0 + $0x168] sm:$0xff]
  %v61 = vld [vmem:[%s0 + $0x170] sm:$0xff]
  %v62 = vld [vmem:[%s0 + $0x178] sm:$0xff]
  %v63 = vld [vmem:[%s0 + $0x180] sm:$0xff]
  %v64 = vld [vmem:[%s0 + $0x188] sm:$0xff]
  %v65 = vld [vmem:[%s0 + $0x190] sm:$0xff]
  %v66 = vld [vmem:[%s0 + $0x198] sm:$0xff]
  %v67 = vld [vmem:[%s0 + $0x1a0] sm:$0xff]
  %v68 = vld [vmem:[%s0 + $0x1a8] sm:$0xff]
  %v69 = vld [vmem:[%s0 + $0x1b0] sm:$0xff]
  %v70 = vld [vmem:[%s0 + $0x1b8] sm:$0xff]
  %v71 = vld [vmem:[%s0 + $0x1c0] sm:$0xff]
  %v72 = vld [vmem:[%s0 + $0x1c8] sm:$0xff]
  %v73 = vld [vmem:[%s0 + $0x1d0] sm:$0xff]
  %v74 = vld [vmem:[%s0 + $0x1d8] sm:$0xff]
  %v75 = vld [vmem:[%s0 + $0x1e0] sm:$0xff]
  %v76 = vld [vmem:[%s0 + $0x1e8] sm:$0xff]
  %v77 = vld [vmem:[%s0 + $0x1f0] sm:$0xff]
  %v78 = vld [vmem:[%s0 + $0x1f8] sm:$0xff]
  %v79 = vld [vmem:[%s0 + $0x200] sm:$0xff]
  %v80 = vld [vmem:[%s0 + $0x208] sm:$0xff]
  %v81 = vld [vmem:[%s0 + $0x210] sm:$0xff]
  %v82 = vld [vmem:[%s0 + $0x218] sm:$0xff]
  %v83 = vld [vmem:[%s0 + $0x220] sm:$0xff]
  %v84 = vld [vmem:[%s0 + $0x228] sm:$0xff]
  %v85 = vld [vmem:[%s0 + $0x230] sm:$0xff]
  %v86 = vld [vmem:[%s0 + $0x238] sm:$0xff]
  %v87 = vld [vmem:[%s0 + $0x240] sm:$0xff]
  %v88 = vld [vmem:[%s0 + $0x248] sm:$0xff]
  %v89 = vld [vmem:[%s0 + $0x250] sm:$0xff]
  %v90 = vld [vmem:[%s0 + $0x258] sm:$0xff]
  %v91 = vld [vmem:[%s0 + $0x260] sm:$0xff]
  %v92 = vld [vmem:[%s0 + $0x268] sm:$0xff]
  %v93 = vld [vmem:[%s0 + $0x270] sm:$0xff]
  %v94 = vld [vmem:[%s0 + $0x278] sm:$0xff]
  %v95 = vld [vmem:[%s0 + $0x280] sm:$0xff]
  %v96 = vld [vmem:[%s0 + $0x288] sm:$0xff]
  %v97 = vld [vmem:[%s0 + $0x290] sm:$0xff]
  %v98 = vld [vmem:[%s0 + $0x298] sm:$0xff]
  %v99 = vld [vmem:[%s0 + $0x2a0] sm:$0xff]
  %v100 = vld [vmem:[%s0 + $0x2a8] sm:$0xff]
  %v101 = vld [vmem:[%s0 + $0x2b0] sm:$0xff]
  %v102 = vld [vmem:[%s0 + $0x2b8] sm:$0xff]
  %v103 = vld [vmem:[%s0 + $0x2c0] sm:$0xff]
  %v104 = vld [vmem:[%s0 + $0x2c8] sm:$0xff]
  %v105 = vld [vmem:[%s0 + $0x2d0] sm:$0xff]
  %v106 = vld [vmem:[%s0 + $0x2d8] sm:$0xff]
  %v107 = vld [vmem:[%s0 + $0x2e0] sm:$0xff]
  %v108 = vld [vmem:[%s0 + $0x2e8] sm:$0xff]
  %v109 = vld [vmem:[%s0 + $0x2f0] sm:$0xff]
  %v110 = vld [vmem:[%s0 + $0x2f8] sm:$0xff]
  %v111 = vld [vmem:[%s0 + $0x300] sm:$0xff]
  %v112 = vld [vmem:[%s0 + $0x308] sm:$0xff]
  %v113 = vld [vmem:[%s0 + $0x310] sm:$0xff]
  %v114 = vld [vmem:[%s0 + $0x318] sm:$0xff]
  %v115 = vld [vmem:[%s0 + $0x320] sm:$0xff]
  %v116 = vld [vmem:[%s0 + $0x328] sm:$0xff]
  %v117 = vld [vmem:[%s0 + $0x330] sm:$0xff]
  %v118 = vld [vmem:[%s0 + $0x338] sm:$0xff]
  %v119 = vld [vmem:[%s0 + $0x340] sm:$0xff]
  %v120 = vld [vmem:[%s0 + $0x348] sm:$0xff]
  %v121 = vld [vmem:[%s0 + $0x350] sm:$0xff]
  %v122 = vld [vmem:[%s0 + $0x358] sm:$0xff]
  %v123 = vld [vmem:[%s0 + $0x360] sm:$0xff]
  %v124 = vld [vmem:[%s0 + $0x368] sm:$0xff]
  %v125 = vld [vmem:[%s0 + $0x370] sm:$0xff]
  %v126 = vld [vmem:[%s0 + $0x378] sm:$0xff]
  %v127 = vld [vmem:[%s0 + $0x380] sm:$0xff]
  %v128 = vld [vmem:[%s0 + $0x388] sm:$0xff]
  %v129 = vld [vmem:[%s0 + $0x390] sm:$0xff]
  %v130 = vld [vmem:[%s0 + $0x398] sm:$0xff]
  %v131 = vld [vmem:[%s0 + $0x3a0] sm:$0xff]
  %v132 = vld [vmem:[%s0 + $0x3a8] sm:$0xff]
  %v133 = vld [vmem:[%s0 + $0x3b0] sm:$0xff]
  %v134 = vld [vmem:[%s0 + $0x3b8] sm:$0xff]
  %v135 = vld [vmem:[%s0 + $0x3c0] sm:$0xff]
  %v136 = vld [vmem:[%s1] sm:$0xf]
  %v137 = vld [vmem:[%s1 + $0x4] sm:$0xf]
  %v138 = vld [vmem:[%s1 + $0x8] sm:$0xf]
  %v139 = vld [vmem:[%s1 + $0xc] sm:$0xf]
  %v140 = vld [vmem:[%s1 + $0x10] sm:$0xf]
  %v141 = vld [vmem:[%s1 + $0x14] sm:$0xf]
  %v142 = vld [vmem:[%s1 + $0x18] sm:$0xf]
  %v143 = vld [vmem:[%s1 + $0x1c] sm:$0xf]
  %v144 = vld [vmem:[%s1 + $0x20] sm:$0xf]
  %v145 = vld [vmem:[%s1 + $0x24] sm:$0xf]
  %v146 = vld [vmem:[%s1 + $0x28] sm:$0xf]
  %v147 = vld [vmem:[%s1 + $0x2c] sm:$0xf]
  %v148 = vld [vmem:[%s1 + $0x30] sm:$0xf]
  %v149 = vld [vmem:[%s1 + $0x34] sm:$0xf]
  %v150 = vld [vmem:[%s1 + $0x38] sm:$0xf]
  %v151 = vld [vmem:[%s1 + $0x3c] sm:$0xf]
  %v152 = vld [vmem:[%s1 + $0x40] sm:$0xf]
  %v153 = vld [vmem:[%s1 + $0x44] sm:$0xf]
  %v154 = vld [vmem:[%s1 + $0x48] sm:$0xf]
  %v155 = vld [vmem:[%s1 + $0x4c] sm:$0xf]
  %v156 = vld [vmem:[%s1 + $0x50] sm:$0xf]
  %v157 = vld [vmem:[%s1 + $0x54] sm:$0xf]
  %v158 = vld [vmem:[%s1 + $0x58] sm:$0xf]
  %v159 = vld [vmem:[%s1 + $0x5c] sm:$0xf]
  %v160 = vld [vmem:[%s1 + $0x60] sm:$0xf]
  %v161 = vld [vmem:[%s1 + $0x64] sm:$0xf]
  %v162 = vld [vmem:[%s1 + $0x68] sm:$0xf]
  %v163 = vld [vmem:[%s1 + $0x6c] sm:$0xf]
  %v164 = vld [vmem:[%s1 + $0x70] sm:$0xf]
  %v165 = vld [vmem:[%s1 + $0x74] sm:$0xf]
  %v166 = vld [vmem:[%s1 + $0x78] sm:$0xf]
  %v167 = vld [vmem:[%s1 + $0x7c] sm:$0xf]
  %v289 = vunpack.c.l.b16 %v15
  %v290 = vunpack.c.h.b16 %v15
  %v291 = vunpack.c.l.b16 %v16
  %v292 = vunpack.c.h.b16 %v16
  %v293 = vunpack.c.l.b16 %v17
  %v294 = vunpack.c.h.b16 %v17
  %v295 = vunpack.c.l.b16 %v18
  %v296 = vunpack.c.h.b16 %v18
  %v297 = vunpack.c.l.b16 %v19
  %v298 = vunpack.c.h.b16 %v19
  %v299 = vunpack.c.l.b16 %v20
  %v300 = vunpack.c.h.b16 %v20
  %v301 = vunpack.c.l.b16 %v21
  %v302 = vunpack.c.h.b16 %v21
  %v303 = vunpack.c.l.b16 %v22
  %v304 = vunpack.c.h.b16 %v22
  %v305 = vunpack.c.l.b16 %v23
  %v306 = vunpack.c.h.b16 %v23
  %v307 = vunpack.c.l.b16 %v24
  %v308 = vunpack.c.h.b16 %v24
  %v309 = vunpack.c.l.b16 %v25
  %v310 = vunpack.c.h.b16 %v25
  %v311 = vunpack.c.l.b16 %v26
  %v312 = vunpack.c.h.b16 %v26
  %v313 = vunpack.c.l.b16 %v27
  %v314 = vunpack.c.h.b16 %v27
  %v315 = vunpack.c.l.b16 %v28
  %v316 = vunpack.c.h.b16 %v28
  %v317 = vunpack.c.l.b16 %v29
  %v318 = vunpack.c.h.b16 %v29
  %v319 = vunpack.c.l.b16 %v30
  %v320 = vunpack.c.h.b16 %v30
  %v321 = vunpack.c.l.b16 %v31
  %v322 = vunpack.c.h.b16 %v31
  %v323 = vunpack.c.l.b16 %v32
  %v324 = vunpack.c.h.b16 %v32
  %v325 = vunpack.c.l.b16 %v33
  %v326 = vunpack.c.h.b16 %v33
  %v327 = vunpack.c.l.b16 %v34
  %v328 = vunpack.c.h.b16 %v34
  %v329 = vunpack.c.l.b16 %v35
  %v330 = vunpack.c.h.b16 %v35
  %v331 = vunpack.c.l.b16 %v36
  %v332 = vunpack.c.h.b16 %v36
  %v333 = vunpack.c.l.b16 %v37
  %v334 = vunpack.c.h.b16 %v37
  %v335 = vunpack.c.l.b16 %v38
  %v336 = vunpack.c.h.b16 %v38
  %v337 = vunpack.c.l.b16 %v39
  %v338 = vunpack.c.h.b16 %v39
  %v339 = vunpack.c.l.b16 %v40
  %v340 = vunpack.c.h.b16 %v40
  %v341 = vunpack.c.l.b16 %v41
  %v342 = vunpack.c.h.b16 %v41
  %v343 = vunpack.c.l.b16 %v42
  %v344 = vunpack.c.h.b16 %v42
  %v345 = vunpack.c.l.b16 %v43
  %v346 = vunpack.c.h.b16 %v43
  %v347 = vunpack.c.l.b16 %v44
  %v348 = vunpack.c.h.b16 %v44
  %v349 = vunpack.c.l.b16 %v45
  %v350 = vunpack.c.h.b16 %v45
  %v351 = vunpack.c.l.b16 %v46
  %v352 = vunpack.c.h.b16 %v46
  %v353 = vunpack.c.l.b16 %v47
  %v354 = vunpack.c.h.b16 %v47
  %v355 = vunpack.c.l.b16 %v48
  %v356 = vunpack.c.h.b16 %v48
  %v357 = vunpack.c.l.b16 %v49
  %v358 = vunpack.c.h.b16 %v49
  %v359 = vunpack.c.l.b16 %v50
  %v360 = vunpack.c.h.b16 %v50
  %v361 = vunpack.c.l.b16 %v51
  %v362 = vunpack.c.h.b16 %v51
  %v363 = vunpack.c.l.b16 %v52
  %v364 = vunpack.c.h.b16 %v52
  %v365 = vunpack.c.l.b16 %v53
  %v366 = vunpack.c.h.b16 %v53
  %v367 = vunpack.c.l.b16 %v54
  %v368 = vunpack.c.h.b16 %v54
  %v369 = vunpack.c.l.b16 %v55
  %v370 = vunpack.c.h.b16 %v55
  %v371 = vunpack.c.l.b16 %v56
  %v372 = vunpack.c.h.b16 %v56
  %v373 = vunpack.c.l.b16 %v57
  %v374 = vunpack.c.h.b16 %v57
  %v375 = vunpack.c.l.b16 %v58
  %v376 = vunpack.c.h.b16 %v58
  %v377 = vunpack.c.l.b16 %v59
  %v378 = vunpack.c.h.b16 %v59
  %v379 = vunpack.c.l.b16 %v60
  %v380 = vunpack.c.h.b16 %v60
  %v381 = vunpack.c.l.b16 %v61
  %v382 = vunpack.c.h.b16 %v61
  %v383 = vunpack.c.l.b16 %v62
  %v384 = vunpack.c.h.b16 %v62
  %v385 = vunpack.c.l.b16 %v63
  %v386 = vunpack.c.h.b16 %v63
  %v387 = vunpack.c.l.b16 %v64
  %v388 = vunpack.c.h.b16 %v64
  %v389 = vunpack.c.l.b16 %v65
  %v390 = vunpack.c.h.b16 %v65
  %v391 = vunpack.c.l.b16 %v66
  %v392 = vunpack.c.h.b16 %v66
  %v393 = vunpack.c.l.b16 %v67
  %v394 = vunpack.c.h.b16 %v67
  %v395 = vunpack.c.l.b16 %v68
  %v396 = vunpack.c.h.b16 %v68
  %v397 = vunpack.c.l.b16 %v69
  %v398 = vunpack.c.h.b16 %v69
  %v399 = vunpack.c.l.b16 %v70
  %v400 = vunpack.c.h.b16 %v70
  %v401 = vunpack.c.l.b16 %v71
  %v402 = vunpack.c.h.b16 %v71
  %v403 = vunpack.c.l.b16 %v72
  %v404 = vunpack.c.h.b16 %v72
  %v405 = vunpack.c.l.b16 %v73
  %v406 = vunpack.c.h.b16 %v73
  %v407 = vunpack.c.l.b16 %v74
  %v408 = vunpack.c.h.b16 %v74
  %v409 = vunpack.c.l.b16 %v75
  %v410 = vunpack.c.h.b16 %v75
  %v411 = vunpack.c.l.b16 %v76
  %v412 = vunpack.c.h.b16 %v76
  %v413 = vunpack.c.l.b16 %v77
  %v414 = vunpack.c.h.b16 %v77
  %v415 = vunpack.c.l.b16 %v78
  %v416 = vunpack.c.h.b16 %v78
  %v417 = vunpack.c.l.b16 %v79
  %v418 = vunpack.c.h.b16 %v79
  %v419 = vunpack.c.l.b16 %v80
  %v420 = vunpack.c.h.b16 %v80
  %v421 = vunpack.c.l.b16 %v81
  %v422 = vunpack.c.h.b16 %v81
  %v423 = vunpack.c.l.b16 %v82
  %v424 = vunpack.c.h.b16 %v82
  %v425 = vunpack.c.l.b16 %v83
  %v426 = vunpack.c.h.b16 %v83
  %v427 = vunpack.c.l.b16 %v84
  %v428 = vunpack.c.h.b16 %v84
  %v429 = vunpack.c.l.b16 %v85
  %v430 = vunpack.c.h.b16 %v85
  %v431 = vunpack.c.l.b16 %v86
  %v432 = vunpack.c.h.b16 %v86
  %v433 = vunpack.c.l.b16 %v87
  %v434 = vunpack.c.h.b16 %v87
  %v435 = vunpack.c.l.b16 %v88
  %v436 = vunpack.c.h.b16 %v88
  %v437 = vunpack.c.l.b16 %v89
  %v438 = vunpack.c.h.b16 %v89
  %v439 = vunpack.c.l.b16 %v90
  %v440 = vunpack.c.h.b16 %v90
  %v441 = vunpack.c.l.b16 %v91
  %v442 = vunpack.c.h.b16 %v91
  %v443 = vunpack.c.l.b16 %v92
  %v444 = vunpack.c.h.b16 %v92
  %v445 = vunpack.c.l.b16 %v93
  %v446 = vunpack.c.h.b16 %v93
  %v447 = vunpack.c.l.b16 %v94
  %v448 = vunpack.c.h.b16 %v94
  %v449 = vunpack.c.l.b16 %v95
  %v450 = vunpack.c.h.b16 %v95
  %v451 = vunpack.c.l.b16 %v96
  %v452 = vunpack.c.h.b16 %v96
  %v453 = vunpack.c.l.b16 %v97
  %v454 = vunpack.c.h.b16 %v97
  %v455 = vunpack.c.l.b16 %v98
  %v456 = vunpack.c.h.b16 %v98
  %v457 = vunpack.c.l.b16 %v99
  %v458 = vunpack.c.h.b16 %v99
  %v459 = vunpack.c.l.b16 %v100
  %v460 = vunpack.c.h.b16 %v100
  %v461 = vunpack.c.l.b16 %v101
  %v462 = vunpack.c.h.b16 %v101
  %v463 = vunpack.c.l.b16 %v102
  %v464 = vunpack.c.h.b16 %v102
  %v465 = vunpack.c.l.b16 %v103
  %v466 = vunpack.c.h.b16 %v103
  %v467 = vunpack.c.l.b16 %v104
  %v468 = vunpack.c.h.b16 %v104
  %v469 = vunpack.c.l.b16 %v105
  %v470 = vunpack.c.h.b16 %v105
  %v471 = vunpack.c.l.b16 %v106
  %v472 = vunpack.c.h.b16 %v106
  %v473 = vunpack.c.l.b16 %v107
  %v474 = vunpack.c.h.b16 %v107
  %v475 = vunpack.c.l.b16 %v108
  %v476 = vunpack.c.h.b16 %v108
  %v477 = vunpack.c.l.b16 %v109
  %v478 = vunpack.c.h.b16 %v109
  %v479 = vunpack.c.l.b16 %v110
  %v480 = vunpack.c.h.b16 %v110
  %v481 = vunpack.c.l.b16 %v111
  %v482 = vunpack.c.h.b16 %v111
  %v483 = vunpack.c.l.b16 %v112
  %v484 = vunpack.c.h.b16 %v112
  %v485 = vunpack.c.l.b16 %v113
  %v486 = vunpack.c.h.b16 %v113
  %v487 = vunpack.c.l.b16 %v114
  %v488 = vunpack.c.h.b16 %v114
  %v489 = vunpack.c.l.b16 %v115
  %v490 = vunpack.c.h.b16 %v115
  %v491 = vunpack.c.l.b16 %v116
  %v492 = vunpack.c.h.b16 %v116
  %v493 = vunpack.c.l.b16 %v117
  %v494 = vunpack.c.h.b16 %v117
  %v495 = vunpack.c.l.b16 %v118
  %v496 = vunpack.c.h.b16 %v118
  %v497 = vunpack.c.l.b16 %v119
  %v498 = vunpack.c.h.b16 %v119
  %v499 = vunpack.c.l.b16 %v120
  %v500 = vunpack.c.h.b16 %v120
  %v501 = vunpack.c.l.b16 %v121
  %v502 = vunpack.c.h.b16 %v121
  %v503 = vunpack.c.l.b16 %v122
  %v504 = vunpack.c.h.b16 %v122
  %v505 = vunpack.c.l.b16 %v123
  %v506 = vunpack.c.h.b16 %v123
  %v507 = vunpack.c.l.b16 %v124
  %v508 = vunpack.c.h.b16 %v124
  %v509 = vunpack.c.l.b16 %v125
  %v510 = vunpack.c.h.b16 %v125
  %v511 = vunpack.c.l.b16 %v126
  %v512 = vunpack.c.h.b16 %v126
  %v513 = vunpack.c.l.b16 %v127
  %v514 = vunpack.c.h.b16 %v127
  %v515 = vunpack.c.l.b16 %v128
  %v516 = vunpack.c.h.b16 %v128
  %v517 = vunpack.c.l.b16 %v129
  %v518 = vunpack.c.h.b16 %v129
  %v519 = vunpack.c.l.b16 %v130
  %v520 = vunpack.c.h.b16 %v130
  %v521 = vunpack.c.l.b16 %v131
  %v522 = vunpack.c.h.b16 %v131
  %v523 = vunpack.c.l.b16 %v132
  %v524 = vunpack.c.h.b16 %v132
  %v525 = vunpack.c.l.b16 %v133
  %v526 = vunpack.c.h.b16 %v133
  %v527 = vunpack.c.l.b16 %v134
  %v528 = vunpack.c.h.b16 %v134
  %v529 = vunpack.c.l.b16 %v135
  %v530 = vunpack.c.h.b16 %v135
  %v531 = vpack.c.b16 %v291, %v289
  %v532 = vpack.c.b16 %v292, %v290
  %v533 = vpack.c.b16 %v295, %v293
  %v534 = vpack.c.b16 %v296, %v294
  %v535 = vpack.c.b16 %v299, %v297
  %v536 = vpack.c.b16 %v300, %v298
  %v537 = vpack.c.b16 %v303, %v301
  %v538 = vpack.c.b16 %v304, %v302
  %v539 = vpack.c.b16 %v307, %v305
  %v540 = vpack.c.b16 %v308, %v306
  %v541 = vpack.c.b16 %v311, %v309
  %v542 = vpack.c.b16 %v312, %v310
  %v543 = vpack.c.b16 %v315, %v313
  %v544 = vpack.c.b16 %v316, %v314
  %v545 = vpack.c.b16 %v319, %v317
  %v546 = vpack.c.b16 %v320, %v318
  %v547 = vpack.c.b16 %v323, %v321
  %v548 = vpack.c.b16 %v324, %v322
  %v549 = vpack.c.b16 %v327, %v325
  %v550 = vpack.c.b16 %v328, %v326
  %v551 = vpack.c.b16 %v331, %v329
  %v552 = vpack.c.b16 %v332, %v330
  %v553 = vpack.c.b16 %v335, %v333
  %v554 = vpack.c.b16 %v336, %v334
  %v555 = vpack.c.b16 %v339, %v337
  %v556 = vpack.c.b16 %v340, %v338
  %v557 = vpack.c.b16 %v343, %v341
  %v558 = vpack.c.b16 %v344, %v342
  %v559 = vpack.c.b16 %v347, %v345
  %v560 = vpack.c.b16 %v348, %v346
  %v561 = vpack.c.b16 %v351, %v349
  %v562 = vpack.c.b16 %v352, %v350
  %v563 = vpack.c.b16 %v355, %v353
  %v564 = vpack.c.b16 %v356, %v354
  %v565 = vpack.c.b16 %v359, %v357
  %v566 = vpack.c.b16 %v360, %v358
  %v567 = vpack.c.b16 %v363, %v361
  %v568 = vpack.c.b16 %v364, %v362
  %v569 = vpack.c.b16 %v367, %v365
  %v570 = vpack.c.b16 %v368, %v366
  %v571 = vpack.c.b16 %v371, %v369
  %v572 = vpack.c.b16 %v372, %v370
  %v573 = vpack.c.b16 %v375, %v373
  %v574 = vpack.c.b16 %v376, %v374
  %v575 = vpack.c.b16 %v379, %v377
  %v576 = vpack.c.b16 %v380, %v378
  %v577 = vpack.c.b16 %v383, %v381
  %v578 = vpack.c.b16 %v384, %v382
  %v579 = vpack.c.b16 %v387, %v385
  %v580 = vpack.c.b16 %v388, %v386
  %v581 = vpack.c.b16 %v391, %v389
  %v582 = vpack.c.b16 %v392, %v390
  %v583 = vpack.c.b16 %v395, %v393
  %v584 = vpack.c.b16 %v396, %v394
  %v585 = vpack.c.b16 %v399, %v397
  %v586 = vpack.c.b16 %v400, %v398
  %v587 = vpack.c.b16 %v403, %v401
  %v588 = vpack.c.b16 %v404, %v402
  %v589 = vpack.c.b16 %v407, %v405
  %v590 = vpack.c.b16 %v408, %v406
  %v591 = vpack.c.b16 %v411, %v409
  %v592 = vpack.c.b16 %v412, %v410
  %v593 = vpack.c.b16 %v415, %v413
  %v594 = vpack.c.b16 %v416, %v414
  %v595 = vpack.c.b16 %v419, %v417
  %v596 = vpack.c.b16 %v420, %v418
  %v597 = vpack.c.b16 %v423, %v421
  %v598 = vpack.c.b16 %v424, %v422
  %v599 = vpack.c.b16 %v427, %v425
  %v600 = vpack.c.b16 %v428, %v426
  %v601 = vpack.c.b16 %v431, %v429
  %v602 = vpack.c.b16 %v432, %v430
  %v603 = vpack.c.b16 %v435, %v433
  %v604 = vpack.c.b16 %v436, %v434
  %v605 = vpack.c.b16 %v439, %v437
  %v606 = vpack.c.b16 %v440, %v438
  %v607 = vpack.c.b16 %v443, %v441
  %v608 = vpack.c.b16 %v444, %v442
  %v609 = vpack.c.b16 %v447, %v445
  %v610 = vpack.c.b16 %v448, %v446
  %v611 = vpack.c.b16 %v451, %v449
  %v612 = vpack.c.b16 %v452, %v450
  %v613 = vpack.c.b16 %v455, %v453
  %v614 = vpack.c.b16 %v456, %v454
  %v615 = vpack.c.b16 %v459, %v457
  %v616 = vpack.c.b16 %v460, %v458
  %v617 = vpack.c.b16 %v463, %v461
  %v618 = vpack.c.b16 %v464, %v462
  %v619 = vpack.c.b16 %v467, %v465
  %v620 = vpack.c.b16 %v468, %v466
  %v621 = vpack.c.b16 %v471, %v469
  %v622 = vpack.c.b16 %v472, %v470
  %v623 = vpack.c.b16 %v475, %v473
  %v624 = vpack.c.b16 %v476, %v474
  %v625 = vpack.c.b16 %v479, %v477
  %v626 = vpack.c.b16 %v480, %v478
  %v627 = vpack.c.b16 %v483, %v481
  %v628 = vpack.c.b16 %v484, %v482
  %v629 = vpack.c.b16 %v487, %v485
  %v630 = vpack.c.b16 %v488, %v486
  %v631 = vpack.c.b16 %v491, %v489
  %v632 = vpack.c.b16 %v492, %v490
  %v633 = vpack.c.b16 %v495, %v493
  %v634 = vpack.c.b16 %v496, %v494
  %v635 = vpack.c.b16 %v499, %v497
  %v636 = vpack.c.b16 %v500, %v498
  %v637 = vpack.c.b16 %v503, %v501
  %v638 = vpack.c.b16 %v504, %v502
  %v639 = vpack.c.b16 %v507, %v505
  %v640 = vpack.c.b16 %v508, %v506
  %v641 = vpack.c.b16 %v511, %v509
  %v642 = vpack.c.b16 %v512, %v510
  %v643 = vpack.c.b16 %v515, %v513
  %v644 = vpack.c.b16 %v516, %v514
  %v645 = vpack.c.b16 %v519, %v517
  %v646 = vpack.c.b16 %v520, %v518
  %v647 = vpack.c.b16 %v523, %v521
  %v648 = vpack.c.b16 %v524, %v522
  %v649 = vpack.c.b16 %v527, %v525
  %v650 = vpack.c.b16 %v528, %v526
  %v651 = vpack.c.b16 %v529, %v529
  %v652 = vpack.c.b16 %v530, %v530
  %v807 = vunpack.c.l.b16 %v136
  %v808 = vunpack.c.l.b16 %v137
  %v809 = vunpack.c.l.b16 %v138
  %v810 = vunpack.c.l.b16 %v139
  %v811 = vunpack.c.l.b16 %v140
  %v812 = vunpack.c.l.b16 %v141
  %v813 = vunpack.c.l.b16 %v142
  %v814 = vunpack.c.l.b16 %v143
  %v815 = vunpack.c.l.b16 %v144
  %v816 = vunpack.c.l.b16 %v145
  %v817 = vunpack.c.l.b16 %v146
  %v818 = vunpack.c.l.b16 %v147
  %v819 = vunpack.c.l.b16 %v148
  %v820 = vunpack.c.l.b16 %v149
  %v821 = vunpack.c.l.b16 %v150
  %v822 = vunpack.c.l.b16 %v151
  %v823 = vunpack.c.l.b16 %v152
  %v824 = vunpack.c.l.b16 %v153
  %v825 = vunpack.c.l.b16 %v154
  %v826 = vunpack.c.l.b16 %v155
  %v827 = vunpack.c.l.b16 %v156
  %v828 = vunpack.c.l.b16 %v157
  %v829 = vunpack.c.l.b16 %v158
  %v830 = vunpack.c.l.b16 %v159
  %v831 = vunpack.c.l.b16 %v160
  %v832 = vunpack.c.l.b16 %v161
  %v833 = vunpack.c.l.b16 %v162
  %v834 = vunpack.c.l.b16 %v163
  %v835 = vunpack.c.l.b16 %v164
  %v836 = vunpack.c.l.b16 %v165
  %v837 = vunpack.c.l.b16 %v166
  %v838 = vunpack.c.l.b16 %v167
  %v839 = vpack.c.b16 %v808, %v807
  %v840 = vpack.c.b16 %v810, %v809
  %v841 = vpack.c.b16 %v812, %v811
  %v842 = vpack.c.b16 %v814, %v813
  %v843 = vpack.c.b16 %v816, %v815
  %v844 = vpack.c.b16 %v818, %v817
  %v845 = vpack.c.b16 %v820, %v819
  %v846 = vpack.c.b16 %v822, %v821
  %v847 = vpack.c.b16 %v824, %v823
  %v848 = vpack.c.b16 %v826, %v825
  %v849 = vpack.c.b16 %v828, %v827
  %v850 = vpack.c.b16 %v830, %v829
  %v851 = vpack.c.b16 %v832, %v831
  %v852 = vpack.c.b16 %v834, %v833
  %v853 = vpack.c.b16 %v836, %v835
  %v854 = vpack.c.b16 %v838, %v837
  %871 = vmatprep.subr.bf16.mxu0 0
  %872 = vmatpush1.bf16.msra.mxu0 %v846
  %873 = vmatprep.subr.bf16.mxu0 0
  %874 = vmatpush1.bf16.msra.mxu0 %v845
  %875 = vmatprep.subr.bf16.mxu0 0
  %876 = vmatpush1.bf16.msra.mxu0 %v844
  %877 = vmatprep.subr.bf16.mxu0 0
  %878 = vmatpush1.bf16.msra.mxu0 %v843
  %879 = vmatprep.subr.bf16.mxu0 0
  %880 = vmatpush1.bf16.msra.mxu0 %v842
  %881 = vmatprep.subr.bf16.mxu0 0
  %882 = vmatpush1.bf16.msra.mxu0 %v841
  %883 = vmatprep.subr.bf16.mxu0 0
  %884 = vmatpush1.bf16.msra.mxu0 %v840
  %885 = vmatprep.subr.bf16.mxu0 0
  %886 = vmatpush1.bf16.msra.mxu0 %v839
  %887 = vmatprep.subr.bf16.mxu0 0
  %888 = vmatpush2.bf16.msra.mxu0 %v854
  %889 = vmatprep.subr.bf16.mxu0 0
  %890 = vmatpush2.bf16.msra.mxu0 %v853
  %891 = vmatprep.subr.bf16.mxu0 0
  %892 = vmatpush2.bf16.msra.mxu0 %v852
  %893 = vmatprep.subr.bf16.mxu0 0
  %894 = vmatpush2.bf16.msra.mxu0 %v851
  %895 = vmatprep.subr.bf16.mxu0 0
  %896 = vmatpush2.bf16.msra.mxu0 %v850
  %897 = vmatprep.subr.bf16.mxu0 0
  %898 = vmatpush2.bf16.msra.mxu0 %v849
  %899 = vmatprep.subr.bf16.mxu0 0
  %900 = vmatpush2.bf16.msra.mxu0 %v848
  %901 = vmatprep.subr.bf16.mxu0 0
  %902 = vmatpush2.bf16.msra.mxu0 %v847
  %903 = vmatprep.mubr.bf16.mxu0 %v532
  %904 = vmatmul.mubr.bf16.gmra.mxu0 %v531
  %v905 = vpop.f32.mrf.mxu0
  %v906 = vadd.f32 0.0, %v905
  %v907 = vpop.f32.mrf.mxu0
  %v908 = vpop.f32.mrf.mxu0
  %v909 = vadd.f32 0.0, %v908
  %v910 = vpop.f32.mrf.mxu0
  %911 = vmatprep.mubr.bf16.mxu0 %v534
  %912 = vmatmul.mubr.bf16.gmra.mxu0 %v533
  %v913 = vpop.f32.mrf.mxu0
  %v914 = vadd.f32 0.0, %v913
  %v915 = vpop.f32.mrf.mxu0
  %v916 = vpop.f32.mrf.mxu0
  %v917 = vadd.f32 0.0, %v916
  %v918 = vpop.f32.mrf.mxu0
  %919 = vmatprep.mubr.bf16.mxu0 %v536
  %920 = vmatmul.mubr.bf16.gmra.mxu0 %v535
  %v921 = vpop.f32.mrf.mxu0
  %v922 = vadd.f32 0.0, %v921
  %v923 = vpop.f32.mrf.mxu0
  %v924 = vpop.f32.mrf.mxu0
  %v925 = vadd.f32 0.0, %v924
  %v926 = vpop.f32.mrf.mxu0
  %927 = vmatprep.mubr.bf16.mxu0 %v538
  %928 = vmatmul.mubr.bf16.gmra.mxu0 %v537
  %v929 = vpop.f32.mrf.mxu0
  %v930 = vadd.f32 0.0, %v929
  %v931 = vpop.f32.mrf.mxu0
  %v932 = vpop.f32.mrf.mxu0
  %v933 = vadd.f32 0.0, %v932
  %v934 = vpop.f32.mrf.mxu0
  %935 = vmatprep.mubr.bf16.mxu0 %v540
  %936 = vmatmul.mubr.bf16.gmra.mxu0 %v539
  %v937 = vpop.f32.mrf.mxu0
  %v938 = vadd.f32 0.0, %v937
  %v939 = vpop.f32.mrf.mxu0
  %v940 = vpop.f32.mrf.mxu0
  %v941 = vadd.f32 0.0, %v940
  %v942 = vpop.f32.mrf.mxu0
  %943 = vmatprep.mubr.bf16.mxu0 %v542
  %944 = vmatmul.mubr.bf16.gmra.mxu0 %v541
  %v945 = vpop.f32.mrf.mxu0
  %v946 = vadd.f32 0.0, %v945
  %v947 = vpop.f32.mrf.mxu0
  %v948 = vpop.f32.mrf.mxu0
  %v949 = vadd.f32 0.0, %v948
  %v950 = vpop.f32.mrf.mxu0
  %951 = vmatprep.mubr.bf16.mxu0 %v544
  %952 = vmatmul.mubr.bf16.gmra.mxu0 %v543
  %v953 = vpop.f32.mrf.mxu0
  %v954 = vadd.f32 0.0, %v953
  %v955 = vpop.f32.mrf.mxu0
  %v956 = vpop.f32.mrf.mxu0
  %v957 = vadd.f32 0.0, %v956
  %v958 = vpop.f32.mrf.mxu0
  %959 = vmatprep.mubr.bf16.mxu0 %v546
  %960 = vmatmul.mubr.bf16.gmra.mxu0 %v545
  %v961 = vpop.f32.mrf.mxu0
  %v962 = vadd.f32 0.0, %v961
  %v963 = vpop.f32.mrf.mxu0
  %v964 = vpop.f32.mrf.mxu0
  %v965 = vadd.f32 0.0, %v964
  %v966 = vpop.f32.mrf.mxu0
  %967 = vmatprep.mubr.bf16.mxu0 %v548
  %968 = vmatmul.mubr.bf16.gmra.mxu0 %v547
  %v969 = vpop.f32.mrf.mxu0
  %v970 = vadd.f32 0.0, %v969
  %v971 = vpop.f32.mrf.mxu0
  %v972 = vpop.f32.mrf.mxu0
  %v973 = vadd.f32 0.0, %v972
  %v974 = vpop.f32.mrf.mxu0
  %975 = vmatprep.mubr.bf16.mxu0 %v550
  %976 = vmatmul.mubr.bf16.gmra.mxu0 %v549
  %v977 = vpop.f32.mrf.mxu0
  %v978 = vadd.f32 0.0, %v977
  %v979 = vpop.f32.mrf.mxu0
  %v980 = vpop.f32.mrf.mxu0
  %v981 = vadd.f32 0.0, %v980
  %v982 = vpop.f32.mrf.mxu0
  %983 = vmatprep.mubr.bf16.mxu0 %v552
  %984 = vmatmul.mubr.bf16.gmra.mxu0 %v551
  %v985 = vpop.f32.mrf.mxu0
  %v986 = vadd.f32 0.0, %v985
  %v987 = vpop.f32.mrf.mxu0
  %v988 = vpop.f32.mrf.mxu0
  %v989 = vadd.f32 0.0, %v988
  %v990 = vpop.f32.mrf.mxu0
  %991 = vmatprep.mubr.bf16.mxu0 %v554
  %992 = vmatmul.mubr.bf16.gmra.mxu0 %v553
  %v993 = vpop.f32.mrf.mxu0
  %v994 = vadd.f32 0.0, %v993
  %v995 = vpop.f32.mrf.mxu0
  %v996 = vpop.f32.mrf.mxu0
  %v997 = vadd.f32 0.0, %v996
  %v998 = vpop.f32.mrf.mxu0
  %999 = vmatprep.mubr.bf16.mxu0 %v556
  %1000 = vmatmul.mubr.bf16.gmra.mxu0 %v555
  %v1001 = vpop.f32.mrf.mxu0
  %v1002 = vadd.f32 0.0, %v1001
  %v1003 = vpop.f32.mrf.mxu0
  %v1004 = vpop.f32.mrf.mxu0
  %v1005 = vadd.f32 0.0, %v1004
  %v1006 = vpop.f32.mrf.mxu0
  %1007 = vmatprep.mubr.bf16.mxu0 %v558
  %1008 = vmatmul.mubr.bf16.gmra.mxu0 %v557
  %v1009 = vpop.f32.mrf.mxu0
  %v1010 = vadd.f32 0.0, %v1009
  %v1011 = vpop.f32.mrf.mxu0
  %v1012 = vpop.f32.mrf.mxu0
  %v1013 = vadd.f32 0.0, %v1012
  %v1014 = vpop.f32.mrf.mxu0
  %1015 = vmatprep.mubr.bf16.mxu0 %v560
  %1016 = vmatmul.mubr.bf16.gmra.mxu0 %v559
  %v1017 = vpop.f32.mrf.mxu0
  %v1018 = vadd.f32 0.0, %v1017
  %v1019 = vpop.f32.mrf.mxu0
  %v1020 = vpop.f32.mrf.mxu0
  %v1021 = vadd.f32 0.0, %v1020
  %v1022 = vpop.f32.mrf.mxu0
  %1023 = vmatprep.mubr.bf16.mxu0 %v562
  %1024 = vmatmul.mubr.bf16.gmra.mxu0 %v561
  %v1025 = vpop.f32.mrf.mxu0
  %v1026 = vadd.f32 0.0, %v1025
  %v1027 = vpop.f32.mrf.mxu0
  %v1028 = vpop.f32.mrf.mxu0
  %v1029 = vadd.f32 0.0, %v1028
  %v1030 = vpop.f32.mrf.mxu0
  %1031 = vmatprep.mubr.bf16.mxu0 %v564
  %1032 = vmatmul.mubr.bf16.gmra.mxu0 %v563
  %v1033 = vpop.f32.mrf.mxu0
  %v1034 = vadd.f32 0.0, %v1033
  %v1035 = vpop.f32.mrf.mxu0
  %v1036 = vpop.f32.mrf.mxu0
  %v1037 = vadd.f32 0.0, %v1036
  %v1038 = vpop.f32.mrf.mxu0
  %1039 = vmatprep.mubr.bf16.mxu0 %v566
  %1040 = vmatmul.mubr.bf16.gmra.mxu0 %v565
  %v1041 = vpop.f32.mrf.mxu0
  %v1042 = vadd.f32 0.0, %v1041
  %v1043 = vpop.f32.mrf.mxu0
  %v1044 = vpop.f32.mrf.mxu0
  %v1045 = vadd.f32 0.0, %v1044
  %v1046 = vpop.f32.mrf.mxu0
  %1047 = vmatprep.mubr.bf16.mxu0 %v568
  %1048 = vmatmul.mubr.bf16.gmra.mxu0 %v567
  %v1049 = vpop.f32.mrf.mxu0
  %v1050 = vadd.f32 0.0, %v1049
  %v1051 = vpop.f32.mrf.mxu0
  %v1052 = vpop.f32.mrf.mxu0
  %v1053 = vadd.f32 0.0, %v1052
  %v1054 = vpop.f32.mrf.mxu0
  %1055 = vmatprep.mubr.bf16.mxu0 %v570
  %1056 = vmatmul.mubr.bf16.gmra.mxu0 %v569
  %v1057 = vpop.f32.mrf.mxu0
  %v1058 = vadd.f32 0.0, %v1057
  %v1059 = vpop.f32.mrf.mxu0
  %v1060 = vpop.f32.mrf.mxu0
  %v1061 = vadd.f32 0.0, %v1060
  %v1062 = vpop.f32.mrf.mxu0
  %1063 = vmatprep.mubr.bf16.mxu0 %v572
  %1064 = vmatmul.mubr.bf16.gmra.mxu0 %v571
  %v1065 = vpop.f32.mrf.mxu0
  %v1066 = vadd.f32 0.0, %v1065
  %v1067 = vpop.f32.mrf.mxu0
  %v1068 = vpop.f32.mrf.mxu0
  %v1069 = vadd.f32 0.0, %v1068
  %v1070 = vpop.f32.mrf.mxu0
  %1071 = vmatprep.mubr.bf16.mxu0 %v574
  %1072 = vmatmul.mubr.bf16.gmra.mxu0 %v573
  %v1073 = vpop.f32.mrf.mxu0
  %v1074 = vadd.f32 0.0, %v1073
  %v1075 = vpop.f32.mrf.mxu0
  %v1076 = vpop.f32.mrf.mxu0
  %v1077 = vadd.f32 0.0, %v1076
  %v1078 = vpop.f32.mrf.mxu0
  %1079 = vmatprep.mubr.bf16.mxu0 %v576
  %1080 = vmatmul.mubr.bf16.gmra.mxu0 %v575
  %v1081 = vpop.f32.mrf.mxu0
  %v1082 = vadd.f32 0.0, %v1081
  %v1083 = vpop.f32.mrf.mxu0
  %v1084 = vpop.f32.mrf.mxu0
  %v1085 = vadd.f32 0.0, %v1084
  %v1086 = vpop.f32.mrf.mxu0
  %1087 = vmatprep.mubr.bf16.mxu0 %v578
  %1088 = vmatmul.mubr.bf16.gmra.mxu0 %v577
  %v1089 = vpop.f32.mrf.mxu0
  %v1090 = vadd.f32 0.0, %v1089
  %v1091 = vpop.f32.mrf.mxu0
  %v1092 = vpop.f32.mrf.mxu0
  %v1093 = vadd.f32 0.0, %v1092
  %v1094 = vpop.f32.mrf.mxu0
  %1095 = vmatprep.mubr.bf16.mxu0 %v580
  %1096 = vmatmul.mubr.bf16.gmra.mxu0 %v579
  %v1097 = vpop.f32.mrf.mxu0
  %v1098 = vadd.f32 0.0, %v1097
  %v1099 = vpop.f32.mrf.mxu0
  %v1100 = vpop.f32.mrf.mxu0
  %v1101 = vadd.f32 0.0, %v1100
  %v1102 = vpop.f32.mrf.mxu0
  %1103 = vmatprep.mubr.bf16.mxu0 %v582
  %1104 = vmatmul.mubr.bf16.gmra.mxu0 %v581
  %v1105 = vpop.f32.mrf.mxu0
  %v1106 = vadd.f32 0.0, %v1105
  %v1107 = vpop.f32.mrf.mxu0
  %v1108 = vpop.f32.mrf.mxu0
  %v1109 = vadd.f32 0.0, %v1108
  %v1110 = vpop.f32.mrf.mxu0
  %1111 = vmatprep.mubr.bf16.mxu0 %v584
  %1112 = vmatmul.mubr.bf16.gmra.mxu0 %v583
  %v1113 = vpop.f32.mrf.mxu0
  %v1114 = vadd.f32 0.0, %v1113
  %v1115 = vpop.f32.mrf.mxu0
  %v1116 = vpop.f32.mrf.mxu0
  %v1117 = vadd.f32 0.0, %v1116
  %v1118 = vpop.f32.mrf.mxu0
  %1119 = vmatprep.mubr.bf16.mxu0 %v586
  %1120 = vmatmul.mubr.bf16.gmra.mxu0 %v585
  %v1121 = vpop.f32.mrf.mxu0
  %v1122 = vadd.f32 0.0, %v1121
  %v1123 = vpop.f32.mrf.mxu0
  %v1124 = vpop.f32.mrf.mxu0
  %v1125 = vadd.f32 0.0, %v1124
  %v1126 = vpop.f32.mrf.mxu0
  %1127 = vmatprep.mubr.bf16.mxu0 %v588
  %1128 = vmatmul.mubr.bf16.gmra.mxu0 %v587
  %v1129 = vpop.f32.mrf.mxu0
  %v1130 = vadd.f32 0.0, %v1129
  %v1131 = vpop.f32.mrf.mxu0
  %v1132 = vpop.f32.mrf.mxu0
  %v1133 = vadd.f32 0.0, %v1132
  %v1134 = vpop.f32.mrf.mxu0
  %1135 = vmatprep.mubr.bf16.mxu0 %v590
  %1136 = vmatmul.mubr.bf16.gmra.mxu0 %v589
  %v1137 = vpop.f32.mrf.mxu0
  %v1138 = vadd.f32 0.0, %v1137
  %v1139 = vpop.f32.mrf.mxu0
  %v1140 = vpop.f32.mrf.mxu0
  %v1141 = vadd.f32 0.0, %v1140
  %v1142 = vpop.f32.mrf.mxu0
  %1143 = vmatprep.mubr.bf16.mxu0 %v592
  %1144 = vmatmul.mubr.bf16.gmra.mxu0 %v591
  %v1145 = vpop.f32.mrf.mxu0
  %v1146 = vadd.f32 0.0, %v1145
  %v1147 = vpop.f32.mrf.mxu0
  %v1148 = vpop.f32.mrf.mxu0
  %v1149 = vadd.f32 0.0, %v1148
  %v1150 = vpop.f32.mrf.mxu0
  %1151 = vmatprep.mubr.bf16.mxu0 %v594
  %1152 = vmatmul.mubr.bf16.gmra.mxu0 %v593
  %v1153 = vpop.f32.mrf.mxu0
  %v1154 = vadd.f32 0.0, %v1153
  %v1155 = vpop.f32.mrf.mxu0
  %v1156 = vpop.f32.mrf.mxu0
  %v1157 = vadd.f32 0.0, %v1156
  %v1158 = vpop.f32.mrf.mxu0
  %1159 = vmatprep.mubr.bf16.mxu0 %v596
  %1160 = vmatmul.mubr.bf16.gmra.mxu0 %v595
  %v1161 = vpop.f32.mrf.mxu0
  %v1162 = vadd.f32 0.0, %v1161
  %v1163 = vpop.f32.mrf.mxu0
  %v1164 = vpop.f32.mrf.mxu0
  %v1165 = vadd.f32 0.0, %v1164
  %v1166 = vpop.f32.mrf.mxu0
  %1167 = vmatprep.mubr.bf16.mxu0 %v598
  %1168 = vmatmul.mubr.bf16.gmra.mxu0 %v597
  %v1169 = vpop.f32.mrf.mxu0
  %v1170 = vadd.f32 0.0, %v1169
  %v1171 = vpop.f32.mrf.mxu0
  %v1172 = vpop.f32.mrf.mxu0
  %v1173 = vadd.f32 0.0, %v1172
  %v1174 = vpop.f32.mrf.mxu0
  %1175 = vmatprep.mubr.bf16.mxu0 %v600
  %1176 = vmatmul.mubr.bf16.gmra.mxu0 %v599
  %v1177 = vpop.f32.mrf.mxu0
  %v1178 = vadd.f32 0.0, %v1177
  %v1179 = vpop.f32.mrf.mxu0
  %v1180 = vpop.f32.mrf.mxu0
  %v1181 = vadd.f32 0.0, %v1180
  %v1182 = vpop.f32.mrf.mxu0
  %1183 = vmatprep.mubr.bf16.mxu0 %v602
  %1184 = vmatmul.mubr.bf16.gmra.mxu0 %v601
  %v1185 = vpop.f32.mrf.mxu0
  %v1186 = vadd.f32 0.0, %v1185
  %v1187 = vpop.f32.mrf.mxu0
  %v1188 = vpop.f32.mrf.mxu0
  %v1189 = vadd.f32 0.0, %v1188
  %v1190 = vpop.f32.mrf.mxu0
  %1191 = vmatprep.mubr.bf16.mxu0 %v604
  %1192 = vmatmul.mubr.bf16.gmra.mxu0 %v603
  %v1193 = vpop.f32.mrf.mxu0
  %v1194 = vadd.f32 0.0, %v1193
  %v1195 = vpop.f32.mrf.mxu0
  %v1196 = vpop.f32.mrf.mxu0
  %v1197 = vadd.f32 0.0, %v1196
  %v1198 = vpop.f32.mrf.mxu0
  %1199 = vmatprep.mubr.bf16.mxu0 %v606
  %1200 = vmatmul.mubr.bf16.gmra.mxu0 %v605
  %v1201 = vpop.f32.mrf.mxu0
  %v1202 = vadd.f32 0.0, %v1201
  %v1203 = vpop.f32.mrf.mxu0
  %v1204 = vpop.f32.mrf.mxu0
  %v1205 = vadd.f32 0.0, %v1204
  %v1206 = vpop.f32.mrf.mxu0
  %1207 = vmatprep.mubr.bf16.mxu0 %v608
  %1208 = vmatmul.mubr.bf16.gmra.mxu0 %v607
  %v1209 = vpop.f32.mrf.mxu0
  %v1210 = vadd.f32 0.0, %v1209
  %v1211 = vpop.f32.mrf.mxu0
  %v1212 = vpop.f32.mrf.mxu0
  %v1213 = vadd.f32 0.0, %v1212
  %v1214 = vpop.f32.mrf.mxu0
  %1215 = vmatprep.mubr.bf16.mxu0 %v610
  %1216 = vmatmul.mubr.bf16.gmra.mxu0 %v609
  %v1217 = vpop.f32.mrf.mxu0
  %v1218 = vadd.f32 0.0, %v1217
  %v1219 = vpop.f32.mrf.mxu0
  %v1220 = vpop.f32.mrf.mxu0
  %v1221 = vadd.f32 0.0, %v1220
  %v1222 = vpop.f32.mrf.mxu0
  %1223 = vmatprep.mubr.bf16.mxu0 %v612
  %1224 = vmatmul.mubr.bf16.gmra.mxu0 %v611
  %v1225 = vpop.f32.mrf.mxu0
  %v1226 = vadd.f32 0.0, %v1225
  %v1227 = vpop.f32.mrf.mxu0
  %v1228 = vpop.f32.mrf.mxu0
  %v1229 = vadd.f32 0.0, %v1228
  %v1230 = vpop.f32.mrf.mxu0
  %1231 = vmatprep.mubr.bf16.mxu0 %v614
  %1232 = vmatmul.mubr.bf16.gmra.mxu0 %v613
  %v1233 = vpop.f32.mrf.mxu0
  %v1234 = vadd.f32 0.0, %v1233
  %v1235 = vpop.f32.mrf.mxu0
  %v1236 = vpop.f32.mrf.mxu0
  %v1237 = vadd.f32 0.0, %v1236
  %v1238 = vpop.f32.mrf.mxu0
  %1239 = vmatprep.mubr.bf16.mxu0 %v616
  %1240 = vmatmul.mubr.bf16.gmra.mxu0 %v615
  %v1241 = vpop.f32.mrf.mxu0
  %v1242 = vadd.f32 0.0, %v1241
  %v1243 = vpop.f32.mrf.mxu0
  %v1244 = vpop.f32.mrf.mxu0
  %v1245 = vadd.f32 0.0, %v1244
  %v1246 = vpop.f32.mrf.mxu0
  %1247 = vmatprep.mubr.bf16.mxu0 %v618
  %1248 = vmatmul.mubr.bf16.gmra.mxu0 %v617
  %v1249 = vpop.f32.mrf.mxu0
  %v1250 = vadd.f32 0.0, %v1249
  %v1251 = vpop.f32.mrf.mxu0
  %v1252 = vpop.f32.mrf.mxu0
  %v1253 = vadd.f32 0.0, %v1252
  %v1254 = vpop.f32.mrf.mxu0
  %1255 = vmatprep.mubr.bf16.mxu0 %v620
  %1256 = vmatmul.mubr.bf16.gmra.mxu0 %v619
  %v1257 = vpop.f32.mrf.mxu0
  %v1258 = vadd.f32 0.0, %v1257
  %v1259 = vpop.f32.mrf.mxu0
  %v1260 = vpop.f32.mrf.mxu0
  %v1261 = vadd.f32 0.0, %v1260
  %v1262 = vpop.f32.mrf.mxu0
  %1263 = vmatprep.mubr.bf16.mxu0 %v622
  %1264 = vmatmul.mubr.bf16.gmra.mxu0 %v621
  %v1265 = vpop.f32.mrf.mxu0
  %v1266 = vadd.f32 0.0, %v1265
  %v1267 = vpop.f32.mrf.mxu0
  %v1268 = vpop.f32.mrf.mxu0
  %v1269 = vadd.f32 0.0, %v1268
  %v1270 = vpop.f32.mrf.mxu0
  %1271 = vmatprep.mubr.bf16.mxu0 %v624
  %1272 = vmatmul.mubr.bf16.gmra.mxu0 %v623
  %v1273 = vpop.f32.mrf.mxu0
  %v1274 = vadd.f32 0.0, %v1273
  %v1275 = vpop.f32.mrf.mxu0
  %v1276 = vpop.f32.mrf.mxu0
  %v1277 = vadd.f32 0.0, %v1276
  %v1278 = vpop.f32.mrf.mxu0
  %1279 = vmatprep.mubr.bf16.mxu0 %v626
  %1280 = vmatmul.mubr.bf16.gmra.mxu0 %v625
  %v1281 = vpop.f32.mrf.mxu0
  %v1282 = vadd.f32 0.0, %v1281
  %v1283 = vpop.f32.mrf.mxu0
  %v1284 = vpop.f32.mrf.mxu0
  %v1285 = vadd.f32 0.0, %v1284
  %v1286 = vpop.f32.mrf.mxu0
  %1287 = vmatprep.mubr.bf16.mxu0 %v628
  %1288 = vmatmul.mubr.bf16.gmra.mxu0 %v627
  %v1289 = vpop.f32.mrf.mxu0
  %v1290 = vadd.f32 0.0, %v1289
  %v1291 = vpop.f32.mrf.mxu0
  %v1292 = vpop.f32.mrf.mxu0
  %v1293 = vadd.f32 0.0, %v1292
  %v1294 = vpop.f32.mrf.mxu0
  %1295 = vmatprep.mubr.bf16.mxu0 %v630
  %1296 = vmatmul.mubr.bf16.gmra.mxu0 %v629
  %v1297 = vpop.f32.mrf.mxu0
  %v1298 = vadd.f32 0.0, %v1297
  %v1299 = vpop.f32.mrf.mxu0
  %v1300 = vpop.f32.mrf.mxu0
  %v1301 = vadd.f32 0.0, %v1300
  %v1302 = vpop.f32.mrf.mxu0
  %1303 = vmatprep.mubr.bf16.mxu0 %v632
  %1304 = vmatmul.mubr.bf16.gmra.mxu0 %v631
  %v1305 = vpop.f32.mrf.mxu0
  %v1306 = vadd.f32 0.0, %v1305
  %v1307 = vpop.f32.mrf.mxu0
  %v1308 = vpop.f32.mrf.mxu0
  %v1309 = vadd.f32 0.0, %v1308
  %v1310 = vpop.f32.mrf.mxu0
  %1311 = vmatprep.mubr.bf16.mxu0 %v634
  %1312 = vmatmul.mubr.bf16.gmra.mxu0 %v633
  %v1313 = vpop.f32.mrf.mxu0
  %v1314 = vadd.f32 0.0, %v1313
  %v1315 = vpop.f32.mrf.mxu0
  %v1316 = vpop.f32.mrf.mxu0
  %v1317 = vadd.f32 0.0, %v1316
  %v1318 = vpop.f32.mrf.mxu0
  %1319 = vmatprep.mubr.bf16.mxu0 %v636
  %1320 = vmatmul.mubr.bf16.gmra.mxu0 %v635
  %v1321 = vpop.f32.mrf.mxu0
  %v1322 = vadd.f32 0.0, %v1321
  %v1323 = vpop.f32.mrf.mxu0
  %v1324 = vpop.f32.mrf.mxu0
  %v1325 = vadd.f32 0.0, %v1324
  %v1326 = vpop.f32.mrf.mxu0
  %1327 = vmatprep.mubr.bf16.mxu0 %v638
  %1328 = vmatmul.mubr.bf16.gmra.mxu0 %v637
  %v1329 = vpop.f32.mrf.mxu0
  %v1330 = vadd.f32 0.0, %v1329
  %v1331 = vpop.f32.mrf.mxu0
  %v1332 = vpop.f32.mrf.mxu0
  %v1333 = vadd.f32 0.0, %v1332
  %v1334 = vpop.f32.mrf.mxu0
  %1335 = vmatprep.mubr.bf16.mxu0 %v640
  %1336 = vmatmul.mubr.bf16.gmra.mxu0 %v639
  %v1337 = vpop.f32.mrf.mxu0
  %v1338 = vadd.f32 0.0, %v1337
  %v1339 = vpop.f32.mrf.mxu0
  %v1340 = vpop.f32.mrf.mxu0
  %v1341 = vadd.f32 0.0, %v1340
  %v1342 = vpop.f32.mrf.mxu0
  %1343 = vmatprep.mubr.bf16.mxu0 %v642
  %1344 = vmatmul.mubr.bf16.gmra.mxu0 %v641
  %v1345 = vpop.f32.mrf.mxu0
  %v1346 = vadd.f32 0.0, %v1345
  %v1347 = vpop.f32.mrf.mxu0
  %v1348 = vpop.f32.mrf.mxu0
  %v1349 = vadd.f32 0.0, %v1348
  %v1350 = vpop.f32.mrf.mxu0
  %1351 = vmatprep.mubr.bf16.mxu0 %v644
  %1352 = vmatmul.mubr.bf16.gmra.mxu0 %v643
  %v1353 = vpop.f32.mrf.mxu0
  %v1354 = vadd.f32 0.0, %v1353
  %v1355 = vpop.f32.mrf.mxu0
  %v1356 = vpop.f32.mrf.mxu0
  %v1357 = vadd.f32 0.0, %v1356
  %v1358 = vpop.f32.mrf.mxu0
  %1359 = vmatprep.mubr.bf16.mxu0 %v646
  %1360 = vmatmul.mubr.bf16.gmra.mxu0 %v645
  %v1361 = vpop.f32.mrf.mxu0
  %v1362 = vadd.f32 0.0, %v1361
  %v1363 = vpop.f32.mrf.mxu0
  %v1364 = vpop.f32.mrf.mxu0
  %v1365 = vadd.f32 0.0, %v1364
  %v1366 = vpop.f32.mrf.mxu0
  %1367 = vmatprep.mubr.bf16.mxu0 %v648
  %1368 = vmatmul.mubr.bf16.gmra.mxu0 %v647
  %v1369 = vpop.f32.mrf.mxu0
  %v1370 = vadd.f32 0.0, %v1369
  %v1371 = vpop.f32.mrf.mxu0
  %v1372 = vpop.f32.mrf.mxu0
  %v1373 = vadd.f32 0.0, %v1372
  %v1374 = vpop.f32.mrf.mxu0
  %1375 = vmatprep.mubr.bf16.mxu0 %v650
  %1376 = vmatmul.mubr.bf16.gmra.mxu0 %v649
  %v1377 = vpop.f32.mrf.mxu0
  %v1378 = vadd.f32 0.0, %v1377
  %v1379 = vpop.f32.mrf.mxu0
  %v1380 = vpop.f32.mrf.mxu0
  %v1381 = vadd.f32 0.0, %v1380
  %v1382 = vpop.f32.mrf.mxu0
  %1383 = vmatprep.mubr.bf16.mxu0 %v652
  %1384 = vmatmul.mubr.bf16.gmra.mxu0 %v651
  %v1385 = vpop.f32.mrf.mxu0
  %v1386 = vadd.f32 0.0, %v1385
  %v1387 = vpop.f32.mrf.mxu0
  %v1388 = vpop.f32.mrf.mxu0
  %v1389 = vpop.f32.mrf.mxu0
  %1390 = vdwg.mxu0
  %v1391 = vmul.f32 %v906, 0.007843138
  %v1392 = vmul.f32 %v909, 0.007843138
  %v1393 = vmul.f32 %v914, 0.007843138
  %v1394 = vmul.f32 %v917, 0.007843138
  %v1395 = vmul.f32 %v922, 0.007843138
  %v1396 = vmul.f32 %v925, 0.007843138
  %v1397 = vmul.f32 %v930, 0.007843138
  %v1398 = vmul.f32 %v933, 0.007843138
  %v1399 = vmul.f32 %v938, 0.007843138
  %v1400 = vmul.f32 %v941, 0.007843138
  %v1401 = vmul.f32 %v946, 0.007843138
  %v1402 = vmul.f32 %v949, 0.007843138
  %v1403 = vmul.f32 %v954, 0.007843138
  %v1404 = vmul.f32 %v957, 0.007843138
  %v1405 = vmul.f32 %v962, 0.007843138
  %v1406 = vmul.f32 %v965, 0.007843138
  %v1407 = vmul.f32 %v970, 0.007843138
  %v1408 = vmul.f32 %v973, 0.007843138
  %v1409 = vmul.f32 %v978, 0.007843138
  %v1410 = vmul.f32 %v981, 0.007843138
  %v1411 = vmul.f32 %v986, 0.007843138
  %v1412 = vmul.f32 %v989, 0.007843138
  %v1413 = vmul.f32 %v994, 0.007843138
  %v1414 = vmul.f32 %v997, 0.007843138
  %v1415 = vmul.f32 %v1002, 0.007843138
  %v1416 = vmul.f32 %v1005, 0.007843138
  %v1417 = vmul.f32 %v1010, 0.007843138
  %v1418 = vmul.f32 %v1013, 0.007843138
  %v1419 = vmul.f32 %v1018, 0.007843138
  %v1420 = vmul.f32 %v1021, 0.007843138
  %v1421 = vmul.f32 %v1026, 0.007843138
  %v1422 = vmul.f32 %v1029, 0.007843138
  %v1423 = vmul.f32 %v1034, 0.007843138
  %v1424 = vmul.f32 %v1037, 0.007843138
  %v1425 = vmul.f32 %v1042, 0.007843138
  %v1426 = vmul.f32 %v1045, 0.007843138
  %v1427 = vmul.f32 %v1050, 0.007843138
  %v1428 = vmul.f32 %v1053, 0.007843138
  %v1429 = vmul.f32 %v1058, 0.007843138
  %v1430 = vmul.f32 %v1061, 0.007843138
  %v1431 = vmul.f32 %v1066, 0.007843138
  %v1432 = vmul.f32 %v1069, 0.007843138
  %v1433 = vmul.f32 %v1074, 0.007843138
  %v1434 = vmul.f32 %v1077, 0.007843138
  %v1435 = vmul.f32 %v1082, 0.007843138
  %v1436 = vmul.f32 %v1085, 0.007843138
  %v1437 = vmul.f32 %v1090, 0.007843138
  %v1438 = vmul.f32 %v1093, 0.007843138
  %v1439 = vmul.f32 %v1098, 0.007843138
  %v1440 = vmul.f32 %v1101, 0.007843138
  %v1441 = vmul.f32 %v1106, 0.007843138
  %v1442 = vmul.f32 %v1109, 0.007843138
  %v1443 = vmul.f32 %v1114, 0.007843138
  %v1444 = vmul.f32 %v1117, 0.007843138
  %v1445 = vmul.f32 %v1122, 0.007843138
  %v1446 = vmul.f32 %v1125, 0.007843138
  %v1447 = vmul.f32 %v1130, 0.007843138
  %v1448 = vmul.f32 %v1133, 0.007843138
  %v1449 = vmul.f32 %v1138, 0.007843138
  %v1450 = vmul.f32 %v1141, 0.007843138
  %v1451 = vmul.f32 %v1146, 0.007843138
  %v1452 = vmul.f32 %v1149, 0.007843138
  %v1453 = vmul.f32 %v1154, 0.007843138
  %v1454 = vmul.f32 %v1157, 0.007843138
  %v1455 = vmul.f32 %v1162, 0.007843138
  %v1456 = vmul.f32 %v1165, 0.007843138
  %v1457 = vmul.f32 %v1170, 0.007843138
  %v1458 = vmul.f32 %v1173, 0.007843138
  %v1459 = vmul.f32 %v1178, 0.007843138
  %v1460 = vmul.f32 %v1181, 0.007843138
  %v1461 = vmul.f32 %v1186, 0.007843138
  %v1462 = vmul.f32 %v1189, 0.007843138
  %v1463 = vmul.f32 %v1194, 0.007843138
  %v1464 = vmul.f32 %v1197, 0.007843138
  %v1465 = vmul.f32 %v1202, 0.007843138
  %v1466 = vmul.f32 %v1205, 0.007843138
  %v1467 = vmul.f32 %v1210, 0.007843138
  %v1468 = vmul.f32 %v1213, 0.007843138
  %v1469 = vmul.f32 %v1218, 0.007843138
  %v1470 = vmul.f32 %v1221, 0.007843138
  %v1471 = vmul.f32 %v1226, 0.007843138
  %v1472 = vmul.f32 %v1229, 0.007843138
  %v1473 = vmul.f32 %v1234, 0.007843138
  %v1474 = vmul.f32 %v1237, 0.007843138
  %v1475 = vmul.f32 %v1242, 0.007843138
  %v1476 = vmul.f32 %v1245, 0.007843138
  %v1477 = vmul.f32 %v1250, 0.007843138
  %v1478 = vmul.f32 %v1253, 0.007843138
  %v1479 = vmul.f32 %v1258, 0.007843138
  %v1480 = vmul.f32 %v1261, 0.007843138
  %v1481 = vmul.f32 %v1266, 0.007843138
  %v1482 = vmul.f32 %v1269, 0.007843138
  %v1483 = vmul.f32 %v1274, 0.007843138
  %v1484 = vmul.f32 %v1277, 0.007843138
  %v1485 = vmul.f32 %v1282, 0.007843138
  %v1486 = vmul.f32 %v1285, 0.007843138
  %v1487 = vmul.f32 %v1290, 0.007843138
  %v1488 = vmul.f32 %v1293, 0.007843138
  %v1489 = vmul.f32 %v1298, 0.007843138
  %v1490 = vmul.f32 %v1301, 0.007843138
  %v1491 = vmul.f32 %v1306, 0.007843138
  %v1492 = vmul.f32 %v1309, 0.007843138
  %v1493 = vmul.f32 %v1314, 0.007843138
  %v1494 = vmul.f32 %v1317, 0.007843138
  %v1495 = vmul.f32 %v1322, 0.007843138
  %v1496 = vmul.f32 %v1325, 0.007843138
  %v1497 = vmul.f32 %v1330, 0.007843138
  %v1498 = vmul.f32 %v1333, 0.007843138
  %v1499 = vmul.f32 %v1338, 0.007843138
  %v1500 = vmul.f32 %v1341, 0.007843138
  %v1501 = vmul.f32 %v1346, 0.007843138
  %v1502 = vmul.f32 %v1349, 0.007843138
  %v1503 = vmul.f32 %v1354, 0.007843138
  %v1504 = vmul.f32 %v1357, 0.007843138
  %v1505 = vmul.f32 %v1362, 0.007843138
  %v1506 = vmul.f32 %v1365, 0.007843138
  %v1507 = vmul.f32 %v1370, 0.007843138
  %v1508 = vmul.f32 %v1373, 0.007843138
  %v1509 = vmul.f32 %v1378, 0.007843138
  %v1510 = vmul.f32 %v1381, 0.007843138
  %v1511 = vmul.f32 %v1386, 0.007843138
  %v1512 = vld [vmem:[%s2] sm:$0x1]
  %v1514 = vlaneseq
  %v1515 = vshrl.u32 %v1514, 7
  %v1516 = vsub.s32 0, %v1515
  %v1517 = vrot.slane %v1512, %v1516
  %v1519 = vadd.f32 %v1391, %v1517
  %v1520 = vadd.f32 %v1392, %v1517
  %v1521 = vadd.f32 %v1393, %v1517
  %v1522 = vadd.f32 %v1394, %v1517
  %v1523 = vadd.f32 %v1395, %v1517
  %v1524 = vadd.f32 %v1396, %v1517
  %v1525 = vadd.f32 %v1397, %v1517
  %v1526 = vadd.f32 %v1398, %v1517
  %v1527 = vadd.f32 %v1399, %v1517
  %v1528 = vadd.f32 %v1400, %v1517
  %v1529 = vadd.f32 %v1401, %v1517
  %v1530 = vadd.f32 %v1402, %v1517
  %v1531 = vadd.f32 %v1403, %v1517
  %v1532 = vadd.f32 %v1404, %v1517
  %v1533 = vadd.f32 %v1405, %v1517
  %v1534 = vadd.f32 %v1406, %v1517
  %v1535 = vadd.f32 %v1407, %v1517
  %v1536 = vadd.f32 %v1408, %v1517
  %v1537 = vadd.f32 %v1409, %v1517
  %v1538 = vadd.f32 %v1410, %v1517
  %v1539 = vadd.f32 %v1411, %v1517
  %v1540 = vadd.f32 %v1412, %v1517
  %v1541 = vadd.f32 %v1413, %v1517
  %v1542 = vadd.f32 %v1414, %v1517
  %v1543 = vadd.f32 %v1415, %v1517
  %v1544 = vadd.f32 %v1416, %v1517
  %v1545 = vadd.f32 %v1417, %v1517
  %v1546 = vadd.f32 %v1418, %v1517
  %v1547 = vadd.f32 %v1419, %v1517
  %v1548 = vadd.f32 %v1420, %v1517
  %v1549 = vadd.f32 %v1421, %v1517
  %v1550 = vadd.f32 %v1422, %v1517
  %v1551 = vadd.f32 %v1423, %v1517
  %v1552 = vadd.f32 %v1424, %v1517
  %v1553 = vadd.f32 %v1425, %v1517
  %v1554 = vadd.f32 %v1426, %v1517
  %v1555 = vadd.f32 %v1427, %v1517
  %v1556 = vadd.f32 %v1428, %v1517
  %v1557 = vadd.f32 %v1429, %v1517
  %v1558 = vadd.f32 %v1430, %v1517
  %v1559 = vadd.f32 %v1431, %v1517
  %v1560 = vadd.f32 %v1432, %v1517
  %v1561 = vadd.f32 %v1433, %v1517
  %v1562 = vadd.f32 %v1434, %v1517
  %v1563 = vadd.f32 %v1435, %v1517
  %v1564 = vadd.f32 %v1436, %v1517
  %v1565 = vadd.f32 %v1437, %v1517
  %v1566 = vadd.f32 %v1438, %v1517
  %v1567 = vadd.f32 %v1439, %v1517
  %v1568 = vadd.f32 %v1440, %v1517
  %v1569 = vadd.f32 %v1441, %v1517
  %v1570 = vadd.f32 %v1442, %v1517
  %v1571 = vadd.f32 %v1443, %v1517
  %v1572 = vadd.f32 %v1444, %v1517
  %v1573 = vadd.f32 %v1445, %v1517
  %v1574 = vadd.f32 %v1446, %v1517
  %v1575 = vadd.f32 %v1447, %v1517
  %v1576 = vadd.f32 %v1448, %v1517
  %v1577 = vadd.f32 %v1449, %v1517
  %v1578 = vadd.f32 %v1450, %v1517
  %v1579 = vadd.f32 %v1451, %v1517
  %v1580 = vadd.f32 %v1452, %v1517
  %v1581 = vadd.f32 %v1453, %v1517
  %v1582 = vadd.f32 %v1454, %v1517
  %v1583 = vadd.f32 %v1455, %v1517
  %v1584 = vadd.f32 %v1456, %v1517
  %v1585 = vadd.f32 %v1457, %v1517
  %v1586 = vadd.f32 %v1458, %v1517
  %v1587 = vadd.f32 %v1459, %v1517
  %v1588 = vadd.f32 %v1460, %v1517
  %v1589 = vadd.f32 %v1461, %v1517
  %v1590 = vadd.f32 %v1462, %v1517
  %v1591 = vadd.f32 %v1463, %v1517
  %v1592 = vadd.f32 %v1464, %v1517
  %v1593 = vadd.f32 %v1465, %v1517
  %v1594 = vadd.f32 %v1466, %v1517
  %v1595 = vadd.f32 %v1467, %v1517
  %v1596 = vadd.f32 %v1468, %v1517
  %v1597 = vadd.f32 %v1469, %v1517
  %v1598 = vadd.f32 %v1470, %v1517
  %v1599 = vadd.f32 %v1471, %v1517
  %v1600 = vadd.f32 %v1472, %v1517
  %v1601 = vadd.f32 %v1473, %v1517
  %v1602 = vadd.f32 %v1474, %v1517
  %v1603 = vadd.f32 %v1475, %v1517
  %v1604 = vadd.f32 %v1476, %v1517
  %v1605 = vadd.f32 %v1477, %v1517
  %v1606 = vadd.f32 %v1478, %v1517
  %v1607 = vadd.f32 %v1479, %v1517
  %v1608 = vadd.f32 %v1480, %v1517
  %v1609 = vadd.f32 %v1481, %v1517
  %v1610 = vadd.f32 %v1482, %v1517
  %v1611 = vadd.f32 %v1483, %v1517
  %v1612 = vadd.f32 %v1484, %v1517
  %v1613 = vadd.f32 %v1485, %v1517
  %v1614 = vadd.f32 %v1486, %v1517
  %v1615 = vadd.f32 %v1487, %v1517
  %v1616 = vadd.f32 %v1488, %v1517
  %v1617 = vadd.f32 %v1489, %v1517
  %v1618 = vadd.f32 %v1490, %v1517
  %v1619 = vadd.f32 %v1491, %v1517
  %v1620 = vadd.f32 %v1492, %v1517
  %v1621 = vadd.f32 %v1493, %v1517
  %v1622 = vadd.f32 %v1494, %v1517
  %v1623 = vadd.f32 %v1495, %v1517
  %v1624 = vadd.f32 %v1496, %v1517
  %v1625 = vadd.f32 %v1497, %v1517
  %v1626 = vadd.f32 %v1498, %v1517
  %v1627 = vadd.f32 %v1499, %v1517
  %v1628 = vadd.f32 %v1500, %v1517
  %v1629 = vadd.f32 %v1501, %v1517
  %v1630 = vadd.f32 %v1502, %v1517
  %v1631 = vadd.f32 %v1503, %v1517
  %v1632 = vadd.f32 %v1504, %v1517
  %v1633 = vadd.f32 %v1505, %v1517
  %v1634 = vadd.f32 %v1506, %v1517
  %v1635 = vadd.f32 %v1507, %v1517
  %v1636 = vadd.f32 %v1508, %v1517
  %v1637 = vadd.f32 %v1509, %v1517
  %v1638 = vadd.f32 %v1510, %v1517
  %v1639 = vadd.f32 %v1511, %v1517
  %v1640 = vmax.f32 %v1519, 0.0
  %v1641 = vmax.f32 %v1520, 0.0
  %v1642 = vmax.f32 %v1521, 0.0
  %v1643 = vmax.f32 %v1522, 0.0
  %v1644 = vmax.f32 %v1523, 0.0
  %v1645 = vmax.f32 %v1524, 0.0
  %v1646 = vmax.f32 %v1525, 0.0
  %v1647 = vmax.f32 %v1526, 0.0
  %v1648 = vmax.f32 %v1527, 0.0
  %v1649 = vmax.f32 %v1528, 0.0
  %v1650 = vmax.f32 %v1529, 0.0
  %v1651 = vmax.f32 %v1530, 0.0
  %v1652 = vmax.f32 %v1531, 0.0
  %v1653 = vmax.f32 %v1532, 0.0
  %v1654 = vmax.f32 %v1533, 0.0
  %v1655 = vmax.f32 %v1534, 0.0
  %v1656 = vmax.f32 %v1535, 0.0
  %v1657 = vmax.f32 %v1536, 0.0
  %v1658 = vmax.f32 %v1537, 0.0
  %v1659 = vmax.f32 %v1538, 0.0
  %v1660 = vmax.f32 %v1539, 0.0
  %v1661 = vmax.f32 %v1540, 0.0
  %v1662 = vmax.f32 %v1541, 0.0
  %v1663 = vmax.f32 %v1542, 0.0
  %v1664 = vmax.f32 %v1543, 0.0
  %v1665 = vmax.f32 %v1544, 0.0
  %v1666 = vmax.f32 %v1545, 0.0
  %v1667 = vmax.f32 %v1546, 0.0
  %v1668 = vmax.f32 %v1547, 0.0
  %v1669 = vmax.f32 %v1548, 0.0
  %v1670 = vmax.f32 %v1549, 0.0
  %v1671 = vmax.f32 %v1550, 0.0
  %v1672 = vmax.f32 %v1551, 0.0
  %v1673 = vmax.f32 %v1552, 0.0
  %v1674 = vmax.f32 %v1553, 0.0
  %v1675 = vmax.f32 %v1554, 0.0
  %v1676 = vmax.f32 %v1555, 0.0
  %v1677 = vmax.f32 %v1556, 0.0
  %v1678 = vmax.f32 %v1557, 0.0
  %v1679 = vmax.f32 %v1558, 0.0
  %v1680 = vmax.f32 %v1559, 0.0
  %v1681 = vmax.f32 %v1560, 0.0
  %v1682 = vmax.f32 %v1561, 0.0
  %v1683 = vmax.f32 %v1562, 0.0
  %v1684 = vmax.f32 %v1563, 0.0
  %v1685 = vmax.f32 %v1564, 0.0
  %v1686 = vmax.f32 %v1565, 0.0
  %v1687 = vmax.f32 %v1566, 0.0
  %v1688 = vmax.f32 %v1567, 0.0
  %v1689 = vmax.f32 %v1568, 0.0
  %v1690 = vmax.f32 %v1569, 0.0
  %v1691 = vmax.f32 %v1570, 0.0
  %v1692 = vmax.f32 %v1571, 0.0
  %v1693 = vmax.f32 %v1572, 0.0
  %v1694 = vmax.f32 %v1573, 0.0
  %v1695 = vmax.f32 %v1574, 0.0
  %v1696 = vmax.f32 %v1575, 0.0
  %v1697 = vmax.f32 %v1576, 0.0
  %v1698 = vmax.f32 %v1577, 0.0
  %v1699 = vmax.f32 %v1578, 0.0
  %v1700 = vmax.f32 %v1579, 0.0
  %v1701 = vmax.f32 %v1580, 0.0
  %v1702 = vmax.f32 %v1581, 0.0
  %v1703 = vmax.f32 %v1582, 0.0
  %v1704 = vmax.f32 %v1583, 0.0
  %v1705 = vmax.f32 %v1584, 0.0
  %v1706 = vmax.f32 %v1585, 0.0
  %v1707 = vmax.f32 %v1586, 0.0
  %v1708 = vmax.f32 %v1587, 0.0
  %v1709 = vmax.f32 %v1588, 0.0
  %v1710 = vmax.f32 %v1589, 0.0
  %v1711 = vmax.f32 %v1590, 0.0
  %v1712 = vmax.f32 %v1591, 0.0
  %v1713 = vmax.f32 %v1592, 0.0
  %v1714 = vmax.f32 %v1593, 0.0
  %v1715 = vmax.f32 %v1594, 0.0
  %v1716 = vmax.f32 %v1595, 0.0
  %v1717 = vmax.f32 %v1596, 0.0
  %v1718 = vmax.f32 %v1597, 0.0
  %v1719 = vmax.f32 %v1598, 0.0
  %v1720 = vmax.f32 %v1599, 0.0
  %v1721 = vmax.f32 %v1600, 0.0
  %v1722 = vmax.f32 %v1601, 0.0
  %v1723 = vmax.f32 %v1602, 0.0
  %v1724 = vmax.f32 %v1603, 0.0
  %v1725 = vmax.f32 %v1604, 0.0
  %v1726 = vmax.f32 %v1605, 0.0
  %v1727 = vmax.f32 %v1606, 0.0
  %v1728 = vmax.f32 %v1607, 0.0
  %v1729 = vmax.f32 %v1608, 0.0
  %v1730 = vmax.f32 %v1609, 0.0
  %v1731 = vmax.f32 %v1610, 0.0
  %v1732 = vmax.f32 %v1611, 0.0
  %v1733 = vmax.f32 %v1612, 0.0
  %v1734 = vmax.f32 %v1613, 0.0
  %v1735 = vmax.f32 %v1614, 0.0
  %v1736 = vmax.f32 %v1615, 0.0
  %v1737 = vmax.f32 %v1616, 0.0
  %v1738 = vmax.f32 %v1617, 0.0
  %v1739 = vmax.f32 %v1618, 0.0
  %v1740 = vmax.f32 %v1619, 0.0
  %v1741 = vmax.f32 %v1620, 0.0
  %v1742 = vmax.f32 %v1621, 0.0
  %v1743 = vmax.f32 %v1622, 0.0
  %v1744 = vmax.f32 %v1623, 0.0
  %v1745 = vmax.f32 %v1624, 0.0
  %v1746 = vmax.f32 %v1625, 0.0
  %v1747 = vmax.f32 %v1626, 0.0
  %v1748 = vmax.f32 %v1627, 0.0
  %v1749 = vmax.f32 %v1628, 0.0
  %v1750 = vmax.f32 %v1629, 0.0
  %v1751 = vmax.f32 %v1630, 0.0
  %v1752 = vmax.f32 %v1631, 0.0
  %v1753 = vmax.f32 %v1632, 0.0
  %v1754 = vmax.f32 %v1633, 0.0
  %v1755 = vmax.f32 %v1634, 0.0
  %v1756 = vmax.f32 %v1635, 0.0
  %v1757 = vmax.f32 %v1636, 0.0
  %v1758 = vmax.f32 %v1637, 0.0
  %v1759 = vmax.f32 %v1638, 0.0
  %v1760 = vmax.f32 %v1639, 0.0
  %v1761 = vpack.c.bf16 %v1641, %v1640
  %v1762 = vpack.c.bf16 %v1643, %v1642
  %v1763 = vpack.c.bf16 %v1645, %v1644
  %v1764 = vpack.c.bf16 %v1647, %v1646
  %v1765 = vpack.c.bf16 %v1649, %v1648
  %v1766 = vpack.c.bf16 %v1651, %v1650
  %v1767 = vpack.c.bf16 %v1653, %v1652
  %v1768 = vpack.c.bf16 %v1655, %v1654
  %v1769 = vpack.c.bf16 %v1657, %v1656
  %v1770 = vpack.c.bf16 %v1659, %v1658
  %v1771 = vpack.c.bf16 %v1661, %v1660
  %v1772 = vpack.c.bf16 %v1663, %v1662
  %v1773 = vpack.c.bf16 %v1665, %v1664
  %v1774 = vpack.c.bf16 %v1667, %v1666
  %v1775 = vpack.c.bf16 %v1669, %v1668
  %v1776 = vpack.c.bf16 %v1671, %v1670
  %v1777 = vpack.c.bf16 %v1673, %v1672
  %v1778 = vpack.c.bf16 %v1675, %v1674
  %v1779 = vpack.c.bf16 %v1677, %v1676
  %v1780 = vpack.c.bf16 %v1679, %v1678
  %v1781 = vpack.c.bf16 %v1681, %v1680
  %v1782 = vpack.c.bf16 %v1683, %v1682
  %v1783 = vpack.c.bf16 %v1685, %v1684
  %v1784 = vpack.c.bf16 %v1687, %v1686
  %v1785 = vpack.c.bf16 %v1689, %v1688
  %v1786 = vpack.c.bf16 %v1691, %v1690
  %v1787 = vpack.c.bf16 %v1693, %v1692
  %v1788 = vpack.c.bf16 %v1695, %v1694
  %v1789 = vpack.c.bf16 %v1697, %v1696
  %v1790 = vpack.c.bf16 %v1699, %v1698
  %v1791 = vpack.c.bf16 %v1701, %v1700
  %v1792 = vpack.c.bf16 %v1703, %v1702
  %v1793 = vpack.c.bf16 %v1705, %v1704
  %v1794 = vpack.c.bf16 %v1707, %v1706
  %v1795 = vpack.c.bf16 %v1709, %v1708
  %v1796 = vpack.c.bf16 %v1711, %v1710
  %v1797 = vpack.c.bf16 %v1713, %v1712
  %v1798 = vpack.c.bf16 %v1715, %v1714
  %v1799 = vpack.c.bf16 %v1717, %v1716
  %v1800 = vpack.c.bf16 %v1719, %v1718
  %v1801 = vpack.c.bf16 %v1721, %v1720
  %v1802 = vpack.c.bf16 %v1723, %v1722
  %v1803 = vpack.c.bf16 %v1725, %v1724
  %v1804 = vpack.c.bf16 %v1727, %v1726
  %v1805 = vpack.c.bf16 %v1729, %v1728
  %v1806 = vpack.c.bf16 %v1731, %v1730
  %v1807 = vpack.c.bf16 %v1733, %v1732
  %v1808 = vpack.c.bf16 %v1735, %v1734
  %v1809 = vpack.c.bf16 %v1737, %v1736
  %v1810 = vpack.c.bf16 %v1739, %v1738
  %v1811 = vpack.c.bf16 %v1741, %v1740
  %v1812 = vpack.c.bf16 %v1743, %v1742
  %v1813 = vpack.c.bf16 %v1745, %v1744
  %v1814 = vpack.c.bf16 %v1747, %v1746
  %v1815 = vpack.c.bf16 %v1749, %v1748
  %v1816 = vpack.c.bf16 %v1751, %v1750
  %v1817 = vpack.c.bf16 %v1753, %v1752
  %v1818 = vpack.c.bf16 %v1755, %v1754
  %v1819 = vpack.c.bf16 %v1757, %v1756
  %v1820 = vpack.c.bf16 %v1759, %v1758
  %v1821 = vpack.c.bf16 %v1760, %v1760
  %v1883 = vunpack.c.l.b16 %v1761
  %v1884 = vunpack.c.h.b16 %v1761
  %v1885 = vunpack.c.l.b16 %v1762
  %v1886 = vunpack.c.h.b16 %v1762
  %v1887 = vunpack.c.l.b16 %v1763
  %v1888 = vunpack.c.h.b16 %v1763
  %v1889 = vunpack.c.l.b16 %v1764
  %v1890 = vunpack.c.h.b16 %v1764
  %v1891 = vunpack.c.l.b16 %v1765
  %v1892 = vunpack.c.h.b16 %v1765
  %v1893 = vunpack.c.l.b16 %v1766
  %v1894 = vunpack.c.h.b16 %v1766
  %v1895 = vunpack.c.l.b16 %v1767
  %v1896 = vunpack.c.h.b16 %v1767
  %v1897 = vunpack.c.l.b16 %v1768
  %v1898 = vunpack.c.h.b16 %v1768
  %v1899 = vunpack.c.l.b16 %v1769
  %v1900 = vunpack.c.h.b16 %v1769
  %v1901 = vunpack.c.l.b16 %v1770
  %v1902 = vunpack.c.h.b16 %v1770
  %v1903 = vunpack.c.l.b16 %v1771
  %v1904 = vunpack.c.h.b16 %v1771
  %v1905 = vunpack.c.l.b16 %v1772
  %v1906 = vunpack.c.h.b16 %v1772
  %v1907 = vunpack.c.l.b16 %v1773
  %v1908 = vunpack.c.h.b16 %v1773
  %v1909 = vunpack.c.l.b16 %v1774
  %v1910 = vunpack.c.h.b16 %v1774
  %v1911 = vunpack.c.l.b16 %v1775
  %v1912 = vunpack.c.h.b16 %v1775
  %v1913 = vunpack.c.l.b16 %v1776
  %v1914 = vunpack.c.h.b16 %v1776
  %v1915 = vunpack.c.l.b16 %v1777
  %v1916 = vunpack.c.h.b16 %v1777
  %v1917 = vunpack.c.l.b16 %v1778
  %v1918 = vunpack.c.h.b16 %v1778
  %v1919 = vunpack.c.l.b16 %v1779
  %v1920 = vunpack.c.h.b16 %v1779
  %v1921 = vunpack.c.l.b16 %v1780
  %v1922 = vunpack.c.h.b16 %v1780
  %v1923 = vunpack.c.l.b16 %v1781
  %v1924 = vunpack.c.h.b16 %v1781
  %v1925 = vunpack.c.l.b16 %v1782
  %v1926 = vunpack.c.h.b16 %v1782
  %v1927 = vunpack.c.l.b16 %v1783
  %v1928 = vunpack.c.h.b16 %v1783
  %v1929 = vunpack.c.l.b16 %v1784
  %v1930 = vunpack.c.h.b16 %v1784
  %v1931 = vunpack.c.l.b16 %v1785
  %v1932 = vunpack.c.h.b16 %v1785
  %v1933 = vunpack.c.l.b16 %v1786
  %v1934 = vunpack.c.h.b16 %v1786
  %v1935 = vunpack.c.l.b16 %v1787
  %v1936 = vunpack.c.h.b16 %v1787
  %v1937 = vunpack.c.l.b16 %v1788
  %v1938 = vunpack.c.h.b16 %v1788
  %v1939 = vunpack.c.l.b16 %v1789
  %v1940 = vunpack.c.h.b16 %v1789
  %v1941 = vunpack.c.l.b16 %v1790
  %v1942 = vunpack.c.h.b16 %v1790
  %v1943 = vunpack.c.l.b16 %v1791
  %v1944 = vunpack.c.h.b16 %v1791
  %v1945 = vunpack.c.l.b16 %v1792
  %v1946 = vunpack.c.h.b16 %v1792
  %v1947 = vunpack.c.l.b16 %v1793
  %v1948 = vunpack.c.h.b16 %v1793
  %v1949 = vunpack.c.l.b16 %v1794
  %v1950 = vunpack.c.h.b16 %v1794
  %v1951 = vunpack.c.l.b16 %v1795
  %v1952 = vunpack.c.h.b16 %v1795
  %v1953 = vunpack.c.l.b16 %v1796
  %v1954 = vunpack.c.h.b16 %v1796
  %v1955 = vunpack.c.l.b16 %v1797
  %v1956 = vunpack.c.h.b16 %v1797
  %v1957 = vunpack.c.l.b16 %v1798
  %v1958 = vunpack.c.h.b16 %v1798
  %v1959 = vunpack.c.l.b16 %v1799
  %v1960 = vunpack.c.h.b16 %v1799
  %v1961 = vunpack.c.l.b16 %v1800
  %v1962 = vunpack.c.h.b16 %v1800
  %v1963 = vunpack.c.l.b16 %v1801
  %v1964 = vunpack.c.h.b16 %v1801
  %v1965 = vunpack.c.l.b16 %v1802
  %v1966 = vunpack.c.h.b16 %v1802
  %v1967 = vunpack.c.l.b16 %v1803
  %v1968 = vunpack.c.h.b16 %v1803
  %v1969 = vunpack.c.l.b16 %v1804
  %v1970 = vunpack.c.h.b16 %v1804
  %v1971 = vunpack.c.l.b16 %v1805
  %v1972 = vunpack.c.h.b16 %v1805
  %v1973 = vunpack.c.l.b16 %v1806
  %v1974 = vunpack.c.h.b16 %v1806
  %v1975 = vunpack.c.l.b16 %v1807
  %v1976 = vunpack.c.h.b16 %v1807
  %v1977 = vunpack.c.l.b16 %v1808
  %v1978 = vunpack.c.h.b16 %v1808
  %v1979 = vunpack.c.l.b16 %v1809
  %v1980 = vunpack.c.h.b16 %v1809
  %v1981 = vunpack.c.l.b16 %v1810
  %v1982 = vunpack.c.h.b16 %v1810
  %v1983 = vunpack.c.l.b16 %v1811
  %v1984 = vunpack.c.h.b16 %v1811
  %v1985 = vunpack.c.l.b16 %v1812
  %v1986 = vunpack.c.h.b16 %v1812
  %v1987 = vunpack.c.l.b16 %v1813
  %v1988 = vunpack.c.h.b16 %v1813
  %v1989 = vunpack.c.l.b16 %v1814
  %v1990 = vunpack.c.h.b16 %v1814
  %v1991 = vunpack.c.l.b16 %v1815
  %v1992 = vunpack.c.h.b16 %v1815
  %v1993 = vunpack.c.l.b16 %v1816
  %v1994 = vunpack.c.h.b16 %v1816
  %v1995 = vunpack.c.l.b16 %v1817
  %v1996 = vunpack.c.h.b16 %v1817
  %v1997 = vunpack.c.l.b16 %v1818
  %v1998 = vunpack.c.h.b16 %v1818
  %v1999 = vunpack.c.l.b16 %v1819
  %v2000 = vunpack.c.h.b16 %v1819
  %v2001 = vunpack.c.l.b16 %v1820
  %v2002 = vunpack.c.h.b16 %v1820
  %v2003 = vunpack.c.l.b16 %v1821
  %v2004 = vpack.c.b16 %v1883, %v1883
  %v2005 = vpack.c.b16 %v1884, %v1884
  %v2006 = vpack.c.b16 %v1885, %v1885
  %v2007 = vpack.c.b16 %v1886, %v1886
  %v2008 = vpack.c.b16 %v1887, %v1887
  %v2009 = vpack.c.b16 %v1888, %v1888
  %v2010 = vpack.c.b16 %v1889, %v1889
  %v2011 = vpack.c.b16 %v1890, %v1890
  %v2012 = vpack.c.b16 %v1891, %v1891
  %v2013 = vpack.c.b16 %v1892, %v1892
  %v2014 = vpack.c.b16 %v1893, %v1893
  %v2015 = vpack.c.b16 %v1894, %v1894
  %v2016 = vpack.c.b16 %v1895, %v1895
  %v2017 = vpack.c.b16 %v1896, %v1896
  %v2018 = vpack.c.b16 %v1897, %v1897
  %v2019 = vpack.c.b16 %v1898, %v1898
  %v2020 = vpack.c.b16 %v1899, %v1899
  %v2021 = vpack.c.b16 %v1900, %v1900
  %v2022 = vpack.c.b16 %v1901, %v1901
  %v2023 = vpack.c.b16 %v1902, %v1902
  %v2024 = vpack.c.b16 %v1903, %v1903
  %v2025 = vpack.c.b16 %v1904, %v1904
  %v2026 = vpack.c.b16 %v1905, %v1905
  %v2027 = vpack.c.b16 %v1906, %v1906
  %v2028 = vpack.c.b16 %v1907, %v1907
  %v2029 = vpack.c.b16 %v1908, %v1908
  %v2030 = vpack.c.b16 %v1909, %v1909
  %v2031 = vpack.c.b16 %v1910, %v1910
  %v2032 = vpack.c.b16 %v1911, %v1911
  %v2033 = vpack.c.b16 %v1912, %v1912
  %v2034 = vpack.c.b16 %v1913, %v1913
  %v2035 = vpack.c.b16 %v1914, %v1914
  %v2036 = vpack.c.b16 %v1915, %v1915
  %v2037 = vpack.c.b16 %v1916, %v1916
  %v2038 = vpack.c.b16 %v1917, %v1917
  %v2039 = vpack.c.b16 %v1918, %v1918
  %v2040 = vpack.c.b16 %v1919, %v1919
  %v2041 = vpack.c.b16 %v1920, %v1920
  %v2042 = vpack.c.b16 %v1921, %v1921
  %v2043 = vpack.c.b16 %v1922, %v1922
  %v2044 = vpack.c.b16 %v1923, %v1923
  %v2045 = vpack.c.b16 %v1924, %v1924
  %v2046 = vpack.c.b16 %v1925, %v1925
  %v2047 = vpack.c.b16 %v1926, %v1926
  %v2048 = vpack.c.b16 %v1927, %v1927
  %v2049 = vpack.c.b16 %v1928, %v1928
  %v2050 = vpack.c.b16 %v1929, %v1929
  %v2051 = vpack.c.b16 %v1930, %v1930
  %v2052 = vpack.c.b16 %v1931, %v1931
  %v2053 = vpack.c.b16 %v1932, %v1932
  %v2054 = vpack.c.b16 %v1933, %v1933
  %v2055 = vpack.c.b16 %v1934, %v1934
  %v2056 = vpack.c.b16 %v1935, %v1935
  %v2057 = vpack.c.b16 %v1936, %v1936
  %v2058 = vpack.c.b16 %v1937, %v1937
  %v2059 = vpack.c.b16 %v1938, %v1938
  %v2060 = vpack.c.b16 %v1939, %v1939
  %v2061 = vpack.c.b16 %v1940, %v1940
  %v2062 = vpack.c.b16 %v1941, %v1941
  %v2063 = vpack.c.b16 %v1942, %v1942
  %v2064 = vpack.c.b16 %v1943, %v1943
  %v2065 = vpack.c.b16 %v1944, %v1944
  %v2066 = vpack.c.b16 %v1945, %v1945
  %v2067 = vpack.c.b16 %v1946, %v1946
  %v2068 = vpack.c.b16 %v1947, %v1947
  %v2069 = vpack.c.b16 %v1948, %v1948
  %v2070 = vpack.c.b16 %v1949, %v1949
  %v2071 = vpack.c.b16 %v1950, %v1950
  %v2072 = vpack.c.b16 %v1951, %v1951
  %v2073 = vpack.c.b16 %v1952, %v1952
  %v2074 = vpack.c.b16 %v1953, %v1953
  %v2075 = vpack.c.b16 %v1954, %v1954
  %v2076 = vpack.c.b16 %v1955, %v1955
  %v2077 = vpack.c.b16 %v1956, %v1956
  %v2078 = vpack.c.b16 %v1957, %v1957
  %v2079 = vpack.c.b16 %v1958, %v1958
  %v2080 = vpack.c.b16 %v1959, %v1959
  %v2081 = vpack.c.b16 %v1960, %v1960
  %v2082 = vpack.c.b16 %v1961, %v1961
  %v2083 = vpack.c.b16 %v1962, %v1962
  %v2084 = vpack.c.b16 %v1963, %v1963
  %v2085 = vpack.c.b16 %v1964, %v1964
  %v2086 = vpack.c.b16 %v1965, %v1965
  %v2087 = vpack.c.b16 %v1966, %v1966
  %v2088 = vpack.c.b16 %v1967, %v1967
  %v2089 = vpack.c.b16 %v1968, %v1968
  %v2090 = vpack.c.b16 %v1969, %v1969
  %v2091 = vpack.c.b16 %v1970, %v1970
  %v2092 = vpack.c.b16 %v1971, %v1971
  %v2093 = vpack.c.b16 %v1972, %v1972
  %v2094 = vpack.c.b16 %v1973, %v1973
  %v2095 = vpack.c.b16 %v1974, %v1974
  %v2096 = vpack.c.b16 %v1975, %v1975
  %v2097 = vpack.c.b16 %v1976, %v1976
  %v2098 = vpack.c.b16 %v1977, %v1977
  %v2099 = vpack.c.b16 %v1978, %v1978
  %v2100 = vpack.c.b16 %v1979, %v1979
  %v2101 = vpack.c.b16 %v1980, %v1980
  %v2102 = vpack.c.b16 %v1981, %v1981
  %v2103 = vpack.c.b16 %v1982, %v1982
  %v2104 = vpack.c.b16 %v1983, %v1983
  %v2105 = vpack.c.b16 %v1984, %v1984
  %v2106 = vpack.c.b16 %v1985, %v1985
  %v2107 = vpack.c.b16 %v1986, %v1986
  %v2108 = vpack.c.b16 %v1987, %v1987
  %v2109 = vpack.c.b16 %v1988, %v1988
  %v2110 = vpack.c.b16 %v1989, %v1989
  %v2111 = vpack.c.b16 %v1990, %v1990
  %v2112 = vpack.c.b16 %v1991, %v1991
  %v2113 = vpack.c.b16 %v1992, %v1992
  %v2114 = vpack.c.b16 %v1993, %v1993
  %v2115 = vpack.c.b16 %v1994, %v1994
  %v2116 = vpack.c.b16 %v1995, %v1995
  %v2117 = vpack.c.b16 %v1996, %v1996
  %v2118 = vpack.c.b16 %v1997, %v1997
  %v2119 = vpack.c.b16 %v1998, %v1998
  %v2120 = vpack.c.b16 %v1999, %v1999
  %v2121 = vpack.c.b16 %v2000, %v2000
  %v2122 = vpack.c.b16 %v2001, %v2001
  %v2123 = vpack.c.b16 %v2002, %v2002
  %v2124 = vpack.c.b16 %v2003, %v2003
  %vm2246 = vcmask 257024
  %2247 = vst.msk [vmem:[%s3] sm:$0xf] %vm2246, %v2004
  %2248 = vst.msk [vmem:[%s3 + $0x4] sm:$0xf] %vm2246, %v2005
  %2249 = vst.msk [vmem:[%s3 + $0x8] sm:$0xf] %vm2246, %v2006
  %2250 = vst.msk [vmem:[%s3 + $0xc] sm:$0xf] %vm2246, %v2007
  %2251 = vst.msk [vmem:[%s3 + $0x10] sm:$0xf] %vm2246, %v2008
  %2252 = vst.msk [vmem:[%s3 + $0x14] sm:$0xf] %vm2246, %v2009
  %2253 = vst.msk [vmem:[%s3 + $0x18] sm:$0xf] %vm2246, %v2010
  %2254 = vst.msk [vmem:[%s3 + $0x1c] sm:$0xf] %vm2246, %v2011
  %2255 = vst.msk [vmem:[%s3 + $0x20] sm:$0xf] %vm2246, %v2012
  %2256 = vst.msk [vmem:[%s3 + $0x24] sm:$0xf] %vm2246, %v2013
  %2257 = vst.msk [vmem:[%s3 + $0x28] sm:$0xf] %vm2246, %v2014
  %2258 = vst.msk [vmem:[%s3 + $0x2c] sm:$0xf] %vm2246, %v2015
  %2259 = vst.msk [vmem:[%s3 + $0x30] sm:$0xf] %vm2246, %v2016
  %2260 = vst.msk [vmem:[%s3 + $0x34] sm:$0xf] %vm2246, %v2017
  %2261 = vst.msk [vmem:[%s3 + $0x38] sm:$0xf] %vm2246, %v2018
  %2262 = vst.msk [vmem:[%s3 + $0x3c] sm:$0xf] %vm2246, %v2019
  %2263 = vst.msk [vmem:[%s3 + $0x40] sm:$0xf] %vm2246, %v2020
  %2264 = vst.msk [vmem:[%s3 + $0x44] sm:$0xf] %vm2246, %v2021
  %2265 = vst.msk [vmem:[%s3 + $0x48] sm:$0xf] %vm2246, %v2022
  %2266 = vst.msk [vmem:[%s3 + $0x4c] sm:$0xf] %vm2246, %v2023
  %2267 = vst.msk [vmem:[%s3 + $0x50] sm:$0xf] %vm2246, %v2024
  %2268 = vst.msk [vmem:[%s3 + $0x54] sm:$0xf] %vm2246, %v2025
  %2269 = vst.msk [vmem:[%s3 + $0x58] sm:$0xf] %vm2246, %v2026
  %2270 = vst.msk [vmem:[%s3 + $0x5c] sm:$0xf] %vm2246, %v2027
  %2271 = vst.msk [vmem:[%s3 + $0x60] sm:$0xf] %vm2246, %v2028
  %2272 = vst.msk [vmem:[%s3 + $0x64] sm:$0xf] %vm2246, %v2029
  %2273 = vst.msk [vmem:[%s3 + $0x68] sm:$0xf] %vm2246, %v2030
  %2274 = vst.msk [vmem:[%s3 + $0x6c] sm:$0xf] %vm2246, %v2031
  %2275 = vst.msk [vmem:[%s3 + $0x70] sm:$0xf] %vm2246, %v2032
  %2276 = vst.msk [vmem:[%s3 + $0x74] sm:$0xf] %vm2246, %v2033
  %2277 = vst.msk [vmem:[%s3 + $0x78] sm:$0xf] %vm2246, %v2034
  %2278 = vst.msk [vmem:[%s3 + $0x7c] sm:$0xf] %vm2246, %v2035
  %2279 = vst.msk [vmem:[%s3 + $0x80] sm:$0xf] %vm2246, %v2036
  %2280 = vst.msk [vmem:[%s3 + $0x84] sm:$0xf] %vm2246, %v2037
  %2281 = vst.msk [vmem:[%s3 + $0x88] sm:$0xf] %vm2246, %v2038
  %2282 = vst.msk [vmem:[%s3 + $0x8c] sm:$0xf] %vm2246, %v2039
  %2283 = vst.msk [vmem:[%s3 + $0x90] sm:$0xf] %vm2246, %v2040
  %2284 = vst.msk [vmem:[%s3 + $0x94] sm:$0xf] %vm2246, %v2041
  %2285 = vst.msk [vmem:[%s3 + $0x98] sm:$0xf] %vm2246, %v2042
  %2286 = vst.msk [vmem:[%s3 + $0x9c] sm:$0xf] %vm2246, %v2043
  %2287 = vst.msk [vmem:[%s3 + $0xa0] sm:$0xf] %vm2246, %v2044
  %2288 = vst.msk [vmem:[%s3 + $0xa4] sm:$0xf] %vm2246, %v2045
  %2289 = vst.msk [vmem:[%s3 + $0xa8] sm:$0xf] %vm2246, %v2046
  %2290 = vst.msk [vmem:[%s3 + $0xac] sm:$0xf] %vm2246, %v2047
  %2291 = vst.msk [vmem:[%s3 + $0xb0] sm:$0xf] %vm2246, %v2048
  %2292 = vst.msk [vmem:[%s3 + $0xb4] sm:$0xf] %vm2246, %v2049
  %2293 = vst.msk [vmem:[%s3 + $0xb8] sm:$0xf] %vm2246, %v2050
  %2294 = vst.msk [vmem:[%s3 + $0xbc] sm:$0xf] %vm2246, %v2051
  %2295 = vst.msk [vmem:[%s3 + $0xc0] sm:$0xf] %vm2246, %v2052
  %2296 = vst.msk [vmem:[%s3 + $0xc4] sm:$0xf] %vm2246, %v2053
  %2297 = vst.msk [vmem:[%s3 + $0xc8] sm:$0xf] %vm2246, %v2054
  %2298 = vst.msk [vmem:[%s3 + $0xcc] sm:$0xf] %vm2246, %v2055
  %2299 = vst.msk [vmem:[%s3 + $0xd0] sm:$0xf] %vm2246, %v2056
  %2300 = vst.msk [vmem:[%s3 + $0xd4] sm:$0xf] %vm2246, %v2057
  %2301 = vst.msk [vmem:[%s3 + $0xd8] sm:$0xf] %vm2246, %v2058
  %2302 = vst.msk [vmem:[%s3 + $0xdc] sm:$0xf] %vm2246, %v2059
  %2303 = vst.msk [vmem:[%s3 + $0xe0] sm:$0xf] %vm2246, %v2060
  %2304 = vst.msk [vmem:[%s3 + $0xe4] sm:$0xf] %vm2246, %v2061
  %2305 = vst.msk [vmem:[%s3 + $0xe8] sm:$0xf] %vm2246, %v2062
  %2306 = vst.msk [vmem:[%s3 + $0xec] sm:$0xf] %vm2246, %v2063
  %2307 = vst.msk [vmem:[%s3 + $0xf0] sm:$0xf] %vm2246, %v2064
  %2308 = vst.msk [vmem:[%s3 + $0xf4] sm:$0xf] %vm2246, %v2065
  %2309 = vst.msk [vmem:[%s3 + $0xf8] sm:$0xf] %vm2246, %v2066
  %2310 = vst.msk [vmem:[%s3 + $0xfc] sm:$0xf] %vm2246, %v2067
  %2311 = vst.msk [vmem:[%s3 + $0x100] sm:$0xf] %vm2246, %v2068
  %2312 = vst.msk [vmem:[%s3 + $0x104] sm:$0xf] %vm2246, %v2069
  %2313 = vst.msk [vmem:[%s3 + $0x108] sm:$0xf] %vm2246, %v2070
  %2314 = vst.msk [vmem:[%s3 + $0x10c] sm:$0xf] %vm2246, %v2071
  %2315 = vst.msk [vmem:[%s3 + $0x110] sm:$0xf] %vm2246, %v2072
  %2316 = vst.msk [vmem:[%s3 + $0x114] sm:$0xf] %vm2246, %v2073
  %2317 = vst.msk [vmem:[%s3 + $0x118] sm:$0xf] %vm2246, %v2074
  %2318 = vst.msk [vmem:[%s3 + $0x11c] sm:$0xf] %vm2246, %v2075
  %2319 = vst.msk [vmem:[%s3 + $0x120] sm:$0xf] %vm2246, %v2076
  %2320 = vst.msk [vmem:[%s3 + $0x124] sm:$0xf] %vm2246, %v2077
  %2321 = vst.msk [vmem:[%s3 + $0x128] sm:$0xf] %vm2246, %v2078
  %2322 = vst.msk [vmem:[%s3 + $0x12c] sm:$0xf] %vm2246, %v2079
  %2323 = vst.msk [vmem:[%s3 + $0x130] sm:$0xf] %vm2246, %v2080
  %2324 = vst.msk [vmem:[%s3 + $0x134] sm:$0xf] %vm2246, %v2081
  %2325 = vst.msk [vmem:[%s3 + $0x138] sm:$0xf] %vm2246, %v2082
  %2326 = vst.msk [vmem:[%s3 + $0x13c] sm:$0xf] %vm2246, %v2083
  %2327 = vst.msk [vmem:[%s3 + $0x140] sm:$0xf] %vm2246, %v2084
  %2328 = vst.msk [vmem:[%s3 + $0x144] sm:$0xf] %vm2246, %v2085
  %2329 = vst.msk [vmem:[%s3 + $0x148] sm:$0xf] %vm2246, %v2086
  %2330 = vst.msk [vmem:[%s3 + $0x14c] sm:$0xf] %vm2246, %v2087
  %2331 = vst.msk [vmem:[%s3 + $0x150] sm:$0xf] %vm2246, %v2088
  %2332 = vst.msk [vmem:[%s3 + $0x154] sm:$0xf] %vm2246, %v2089
  %2333 = vst.msk [vmem:[%s3 + $0x158] sm:$0xf] %vm2246, %v2090
  %2334 = vst.msk [vmem:[%s3 + $0x15c] sm:$0xf] %vm2246, %v2091
  %2335 = vst.msk [vmem:[%s3 + $0x160] sm:$0xf] %vm2246, %v2092
  %2336 = vst.msk [vmem:[%s3 + $0x164] sm:$0xf] %vm2246, %v2093
  %2337 = vst.msk [vmem:[%s3 + $0x168] sm:$0xf] %vm2246, %v2094
  %2338 = vst.msk [vmem:[%s3 + $0x16c] sm:$0xf] %vm2246, %v2095
  %2339 = vst.msk [vmem:[%s3 + $0x170] sm:$0xf] %vm2246, %v2096
  %2340 = vst.msk [vmem:[%s3 + $0x174] sm:$0xf] %vm2246, %v2097
  %2341 = vst.msk [vmem:[%s3 + $0x178] sm:$0xf] %vm2246, %v2098
  %2342 = vst.msk [vmem:[%s3 + $0x17c] sm:$0xf] %vm2246, %v2099
  %2343 = vst.msk [vmem:[%s3 + $0x180] sm:$0xf] %vm2246, %v2100
  %2344 = vst.msk [vmem:[%s3 + $0x184] sm:$0xf] %vm2246, %v2101
  %2345 = vst.msk [vmem:[%s3 + $0x188] sm:$0xf] %vm2246, %v2102
  %2346 = vst.msk [vmem:[%s3 + $0x18c] sm:$0xf] %vm2246, %v2103
  %2347 = vst.msk [vmem:[%s3 + $0x190] sm:$0xf] %vm2246, %v2104
  %2348 = vst.msk [vmem:[%s3 + $0x194] sm:$0xf] %vm2246, %v2105
  %2349 = vst.msk [vmem:[%s3 + $0x198] sm:$0xf] %vm2246, %v2106
  %2350 = vst.msk [vmem:[%s3 + $0x19c] sm:$0xf] %vm2246, %v2107
  %2351 = vst.msk [vmem:[%s3 + $0x1a0] sm:$0xf] %vm2246, %v2108
  %2352 = vst.msk [vmem:[%s3 + $0x1a4] sm:$0xf] %vm2246, %v2109
  %2353 = vst.msk [vmem:[%s3 + $0x1a8] sm:$0xf] %vm2246, %v2110
  %2354 = vst.msk [vmem:[%s3 + $0x1ac] sm:$0xf] %vm2246, %v2111
  %2355 = vst.msk [vmem:[%s3 + $0x1b0] sm:$0xf] %vm2246, %v2112
  %2356 = vst.msk [vmem:[%s3 + $0x1b4] sm:$0xf] %vm2246, %v2113
  %2357 = vst.msk [vmem:[%s3 + $0x1b8] sm:$0xf] %vm2246, %v2114
  %2358 = vst.msk [vmem:[%s3 + $0x1bc] sm:$0xf] %vm2246, %v2115
  %2359 = vst.msk [vmem:[%s3 + $0x1c0] sm:$0xf] %vm2246, %v2116
  %2360 = vst.msk [vmem:[%s3 + $0x1c4] sm:$0xf] %vm2246, %v2117
  %2361 = vst.msk [vmem:[%s3 + $0x1c8] sm:$0xf] %vm2246, %v2118
  %2362 = vst.msk [vmem:[%s3 + $0x1cc] sm:$0xf] %vm2246, %v2119
  %2363 = vst.msk [vmem:[%s3 + $0x1d0] sm:$0xf] %vm2246, %v2120
  %2364 = vst.msk [vmem:[%s3 + $0x1d4] sm:$0xf] %vm2246, %v2121
  %2365 = vst.msk [vmem:[%s3 + $0x1d8] sm:$0xf] %vm2246, %v2122
  %2366 = vst.msk [vmem:[%s3 + $0x1dc] sm:$0xf] %vm2246, %v2123
  %2367 = vst.msk [vmem:[%s3 + $0x1e0] sm:$0xf] %vm2246, %v2124
  // Predicated region
  $region14: #{_lambda_.4} parent=0 // pred_check
    _
  $region15: #{_lambda_.4} parent=0 // pred_check_branch
    %2369 = sbr.rel (0) target = $region17
  $region16: #{_lambda_.4} parent=0 // pred_region
    _
  $region17: #{_lambda_.4} parent=0 // pred_fallthru
    _
  // Predicated region
  $region18: #{_lambda_.4} parent=0 // pred_check
    _
  $region19: #{_lambda_.4} parent=0 // pred_check_branch
    %2371 = sbr.rel (0) target = $region21
  $region20: #{_lambda_.4} parent=0 // pred_region
    _
  $region21: #{_lambda_.4} parent=0 // pred_fallthru
    _

// kernel: _lambda_.5
$region0: #{_lambda_.5}
  #allocation0 [shape = 'u32[]', space=smem, size = 0x4, offset = 0x4, fixed_abs, tag = 'smem constant byte address 0x4 - core index']
  #allocation1 [shape = 'u32[144,128]{1,0:T(1,128)}', space=vmem, size = 0x12000, scoped, tag = 'internal scratch']
  %s0 = inlined_call_operand.vmem [shape: bf16[288,512], index: 0, kind: input, shape index: {}]
  %s1 = inlined_call_operand.vmem [shape: bf16[512,64], index: 1, kind: input, shape index: {}]
  %s2 = inlined_call_operand.vmem [shape: f32[1,64], index: 2, kind: input, shape index: {}]
  %s3 = inlined_call_operand.vmem [shape: bf16[288,64], index: 3, kind: output, shape index: {}]
  %s4 = sld [smem:[#allocation0]]
  $region22: #{_lambda_.5} parent=0
    _
  %s6 = ssub.s32 1, %s4
  %s7 = scalar_select 0, %s6, %s4
  // Predicated region
  $region2: #{_lambda_.5} parent=0 // pred_check
    _
  $region3: #{_lambda_.5} parent=0 // pred_check_branch
    %9 = sbr.rel (0) target = $region5
  $region4: #{_lambda_.5} parent=0 // pred_region
    _
  $region5: #{_lambda_.5} parent=0 // pred_fallthru
    _
  // Predicated region
  $region6: #{_lambda_.5} parent=0 // pred_check
    _
  $region7: #{_lambda_.5} parent=0 // pred_check_branch
    %11 = sbr.rel (0) target = $region9
  $region8: #{_lambda_.5} parent=0 // pred_region
    _
  $region9: #{_lambda_.5} parent=0 // pred_fallthru
    _
  // Predicated region
  $region10: #{_lambda_.5} parent=0 // pred_check
    _
  $region11: #{_lambda_.5} parent=0 // pred_check_branch
    %13 = sbr.rel (0) target = $region13
  $region12: #{_lambda_.5} parent=0 // pred_region
    _
  $region13: #{_lambda_.5} parent=0 // pred_fallthru
    _
  %v15 = vld [vmem:[%s0] sm:$0xff]
  %v16 = vld [vmem:[%s0 + $0x8] sm:$0xff]
  %v17 = vld [vmem:[%s0 + $0x10] sm:$0xff]
  %v18 = vld [vmem:[%s0 + $0x18] sm:$0xff]
  %v19 = vld [vmem:[%s0 + $0x20] sm:$0xff]
  %v20 = vld [vmem:[%s0 + $0x28] sm:$0xff]
  %v21 = vld [vmem:[%s0 + $0x30] sm:$0xff]
  %v22 = vld [vmem:[%s0 + $0x38] sm:$0xff]
  %v23 = vld [vmem:[%s0 + $0x40] sm:$0xff]
  %v24 = vld [vmem:[%s0 + $0x48] sm:$0xff]
  %v25 = vld [vmem:[%s0 + $0x50] sm:$0xff]
  %v26 = vld [vmem:[%s0 + $0x58] sm:$0xff]
  %v27 = vld [vmem:[%s0 + $0x60] sm:$0xff]
  %v28 = vld [vmem:[%s0 + $0x68] sm:$0xff]
  %v29 = vld [vmem:[%s0 + $0x70] sm:$0xff]
  %v30 = vld [vmem:[%s0 + $0x78] sm:$0xff]
  %v31 = vld [vmem:[%s0 + $0x80] sm:$0xff]
  %v32 = vld [vmem:[%s0 + $0x88] sm:$0xff]
  %v33 = vld [vmem:[%s0 + $0x90] sm:$0xff]
  %v34 = vld [vmem:[%s0 + $0x98] sm:$0xff]
  %v35 = vld [vmem:[%s0 + $0xa0] sm:$0xff]
  %v36 = vld [vmem:[%s0 + $0xa8] sm:$0xff]
  %v37 = vld [vmem:[%s0 + $0xb0] sm:$0xff]
  %v38 = vld [vmem:[%s0 + $0xb8] sm:$0xff]
  %v39 = vld [vmem:[%s0 + $0xc0] sm:$0xff]
  %v40 = vld [vmem:[%s0 + $0xc8] sm:$0xff]
  %v41 = vld [vmem:[%s0 + $0xd0] sm:$0xff]
  %v42 = vld [vmem:[%s0 + $0xd8] sm:$0xff]
  %v43 = vld [vmem:[%s0 + $0xe0] sm:$0xff]
  %v44 = vld [vmem:[%s0 + $0xe8] sm:$0xff]
  %v45 = vld [vmem:[%s0 + $0xf0] sm:$0xff]
  %v46 = vld [vmem:[%s0 + $0xf8] sm:$0xff]
  %v47 = vld [vmem:[%s0 + $0x100] sm:$0xff]
  %v48 = vld [vmem:[%s0 + $0x108] sm:$0xff]
  %v49 = vld [vmem:[%s0 + $0x110] sm:$0xff]
  %v50 = vld [vmem:[%s0 + $0x118] sm:$0xff]
  %v51 = vld [vmem:[%s0 + $0x120] sm:$0xff]
  %v52 = vld [vmem:[%s0 + $0x128] sm:$0xff]
  %v53 = vld [vmem:[%s0 + $0x130] sm:$0xff]
  %v54 = vld [vmem:[%s0 + $0x138] sm:$0xff]
  %v55 = vld [vmem:[%s0 + $0x140] sm:$0xff]
  %v56 = vld [vmem:[%s0 + $0x148] sm:$0xff]
  %v57 = vld [vmem:[%s0 + $0x150] sm:$0xff]
  %v58 = vld [vmem:[%s0 + $0x158] sm:$0xff]
  %v59 = vld [vmem:[%s0 + $0x160] sm:$0xff]
  %v60 = vld [vmem:[%s0 + $0x168] sm:$0xff]
  %v61 = vld [vmem:[%s0 + $0x170] sm:$0xff]
  %v62 = vld [vmem:[%s0 + $0x178] sm:$0xff]
  %v63 = vld [vmem:[%s0 + $0x180] sm:$0xff]
  %v64 = vld [vmem:[%s0 + $0x188] sm:$0xff]
  %v65 = vld [vmem:[%s0 + $0x190] sm:$0xff]
  %v66 = vld [vmem:[%s0 + $0x198] sm:$0xff]
  %v67 = vld [vmem:[%s0 + $0x1a0] sm:$0xff]
  %v68 = vld [vmem:[%s0 + $0x1a8] sm:$0xff]
  %v69 = vld [vmem:[%s0 + $0x1b0] sm:$0xff]
  %v70 = vld [vmem:[%s0 + $0x1b8] sm:$0xff]
  %v71 = vld [vmem:[%s0 + $0x1c0] sm:$0xff]
  %v72 = vld [vmem:[%s0 + $0x1c8] sm:$0xff]
  %v73 = vld [vmem:[%s0 + $0x1d0] sm:$0xff]
  %v74 = vld [vmem:[%s0 + $0x1d8] sm:$0xff]
  %v75 = vld [vmem:[%s0 + $0x1e0] sm:$0xff]
  %v76 = vld [vmem:[%s0 + $0x1e8] sm:$0xff]
  %v77 = vld [vmem:[%s0 + $0x1f0] sm:$0xff]
  %v78 = vld [vmem:[%s0 + $0x1f8] sm:$0xff]
  %v79 = vld [vmem:[%s0 + $0x200] sm:$0xff]
  %v80 = vld [vmem:[%s0 + $0x208] sm:$0xff]
  %v81 = vld [vmem:[%s0 + $0x210] sm:$0xff]
  %v82 = vld [vmem:[%s0 + $0x218] sm:$0xff]
  %v83 = vld [vmem:[%s0 + $0x220] sm:$0xff]
  %v84 = vld [vmem:[%s0 + $0x228] sm:$0xff]
  %v85 = vld [vmem:[%s0 + $0x230] sm:$0xff]
  %v86 = vld [vmem:[%s0 + $0x238] sm:$0xff]
  %v87 = vld [vmem:[%s1] sm:$0xf]
  %v88 = vld [vmem:[%s1 + $0x4] sm:$0xf]
  %v89 = vld [vmem:[%s1 + $0x8] sm:$0xf]
  %v90 = vld [vmem:[%s1 + $0xc] sm:$0xf]
  %v91 = vld [vmem:[%s1 + $0x10] sm:$0xf]
  %v92 = vld [vmem:[%s1 + $0x14] sm:$0xf]
  %v93 = vld [vmem:[%s1 + $0x18] sm:$0xf]
  %v94 = vld [vmem:[%s1 + $0x1c] sm:$0xf]
  %v95 = vld [vmem:[%s1 + $0x20] sm:$0xf]
  %v96 = vld [vmem:[%s1 + $0x24] sm:$0xf]
  %v97 = vld [vmem:[%s1 + $0x28] sm:$0xf]
  %v98 = vld [vmem:[%s1 + $0x2c] sm:$0xf]
  %v99 = vld [vmem:[%s1 + $0x30] sm:$0xf]
  %v100 = vld [vmem:[%s1 + $0x34] sm:$0xf]
  %v101 = vld [vmem:[%s1 + $0x38] sm:$0xf]
  %v102 = vld [vmem:[%s1 + $0x3c] sm:$0xf]
  %v103 = vld [vmem:[%s1 + $0x40] sm:$0xf]
  %v104 = vld [vmem:[%s1 + $0x44] sm:$0xf]
  %v105 = vld [vmem:[%s1 + $0x48] sm:$0xf]
  %v106 = vld [vmem:[%s1 + $0x4c] sm:$0xf]
  %v107 = vld [vmem:[%s1 + $0x50] sm:$0xf]
  %v108 = vld [vmem:[%s1 + $0x54] sm:$0xf]
  %v109 = vld [vmem:[%s1 + $0x58] sm:$0xf]
  %v110 = vld [vmem:[%s1 + $0x5c] sm:$0xf]
  %v111 = vld [vmem:[%s1 + $0x60] sm:$0xf]
  %v112 = vld [vmem:[%s1 + $0x64] sm:$0xf]
  %v113 = vld [vmem:[%s1 + $0x68] sm:$0xf]
  %v114 = vld [vmem:[%s1 + $0x6c] sm:$0xf]
  %v115 = vld [vmem:[%s1 + $0x70] sm:$0xf]
  %v116 = vld [vmem:[%s1 + $0x74] sm:$0xf]
  %v117 = vld [vmem:[%s1 + $0x78] sm:$0xf]
  %v118 = vld [vmem:[%s1 + $0x7c] sm:$0xf]
  %v119 = vld [vmem:[%s1 + $0x80] sm:$0xf]
  %v120 = vld [vmem:[%s1 + $0x84] sm:$0xf]
  %v121 = vld [vmem:[%s1 + $0x88] sm:$0xf]
  %v122 = vld [vmem:[%s1 + $0x8c] sm:$0xf]
  %v123 = vld [vmem:[%s1 + $0x90] sm:$0xf]
  %v124 = vld [vmem:[%s1 + $0x94] sm:$0xf]
  %v125 = vld [vmem:[%s1 + $0x98] sm:$0xf]
  %v126 = vld [vmem:[%s1 + $0x9c] sm:$0xf]
  %v127 = vld [vmem:[%s1 + $0xa0] sm:$0xf]
  %v128 = vld [vmem:[%s1 + $0xa4] sm:$0xf]
  %v129 = vld [vmem:[%s1 + $0xa8] sm:$0xf]
  %v130 = vld [vmem:[%s1 + $0xac] sm:$0xf]
  %v131 = vld [vmem:[%s1 + $0xb0] sm:$0xf]
  %v132 = vld [vmem:[%s1 + $0xb4] sm:$0xf]
  %v133 = vld [vmem:[%s1 + $0xb8] sm:$0xf]
  %v134 = vld [vmem:[%s1 + $0xbc] sm:$0xf]
  %v135 = vld [vmem:[%s1 + $0xc0] sm:$0xf]
  %v136 = vld [vmem:[%s1 + $0xc4] sm:$0xf]
  %v137 = vld [vmem:[%s1 + $0xc8] sm:$0xf]
  %v138 = vld [vmem:[%s1 + $0xcc] sm:$0xf]
  %v139 = vld [vmem:[%s1 + $0xd0] sm:$0xf]
  %v140 = vld [vmem:[%s1 + $0xd4] sm:$0xf]
  %v141 = vld [vmem:[%s1 + $0xd8] sm:$0xf]
  %v142 = vld [vmem:[%s1 + $0xdc] sm:$0xf]
  %v143 = vld [vmem:[%s1 + $0xe0] sm:$0xf]
  %v144 = vld [vmem:[%s1 + $0xe4] sm:$0xf]
  %v145 = vld [vmem:[%s1 + $0xe8] sm:$0xf]
  %v146 = vld [vmem:[%s1 + $0xec] sm:$0xf]
  %v147 = vld [vmem:[%s1 + $0xf0] sm:$0xf]
  %v148 = vld [vmem:[%s1 + $0xf4] sm:$0xf]
  %v149 = vld [vmem:[%s1 + $0xf8] sm:$0xf]
  %v150 = vld [vmem:[%s1 + $0xfc] sm:$0xf]
  %v151 = vld [vmem:[%s2] sm:$0x1]
  %v153 = vlaneseq
  %v154 = vshrl.u32 %v153, 7
  %v155 = vsub.s32 0, %v154
  %v156 = vrot.slane %v151, %v155
  %v230 = vunpack.c.l.b16 %v15
  %v231 = vunpack.c.h.b16 %v15
  %v232 = vunpack.c.l.b16 %v16
  %v233 = vunpack.c.h.b16 %v16
  %v234 = vunpack.c.l.b16 %v17
  %v235 = vunpack.c.h.b16 %v17
  %v236 = vunpack.c.l.b16 %v18
  %v237 = vunpack.c.h.b16 %v18
  %v238 = vunpack.c.l.b16 %v19
  %v239 = vunpack.c.h.b16 %v19
  %v240 = vunpack.c.l.b16 %v20
  %v241 = vunpack.c.h.b16 %v20
  %v242 = vunpack.c.l.b16 %v21
  %v243 = vunpack.c.h.b16 %v21
  %v244 = vunpack.c.l.b16 %v22
  %v245 = vunpack.c.h.b16 %v22
  %v246 = vunpack.c.l.b16 %v23
  %v247 = vunpack.c.h.b16 %v23
  %v248 = vunpack.c.l.b16 %v24
  %v249 = vunpack.c.h.b16 %v24
  %v250 = vunpack.c.l.b16 %v25
  %v251 = vunpack.c.h.b16 %v25
  %v252 = vunpack.c.l.b16 %v26
  %v253 = vunpack.c.h.b16 %v26
  %v254 = vunpack.c.l.b16 %v27
  %v255 = vunpack.c.h.b16 %v27
  %v256 = vunpack.c.l.b16 %v28
  %v257 = vunpack.c.h.b16 %v28
  %v258 = vunpack.c.l.b16 %v29
  %v259 = vunpack.c.h.b16 %v29
  %v260 = vunpack.c.l.b16 %v30
  %v261 = vunpack.c.h.b16 %v30
  %v262 = vunpack.c.l.b16 %v31
  %v263 = vunpack.c.h.b16 %v31
  %v264 = vunpack.c.l.b16 %v32
  %v265 = vunpack.c.h.b16 %v32
  %v266 = vunpack.c.l.b16 %v33
  %v267 = vunpack.c.h.b16 %v33
  %v268 = vunpack.c.l.b16 %v34
  %v269 = vunpack.c.h.b16 %v34
  %v270 = vunpack.c.l.b16 %v35
  %v271 = vunpack.c.h.b16 %v35
  %v272 = vunpack.c.l.b16 %v36
  %v273 = vunpack.c.h.b16 %v36
  %v274 = vunpack.c.l.b16 %v37
  %v275 = vunpack.c.h.b16 %v37
  %v276 = vunpack.c.l.b16 %v38
  %v277 = vunpack.c.h.b16 %v38
  %v278 = vunpack.c.l.b16 %v39
  %v279 = vunpack.c.h.b16 %v39
  %v280 = vunpack.c.l.b16 %v40
  %v281 = vunpack.c.h.b16 %v40
  %v282 = vunpack.c.l.b16 %v41
  %v283 = vunpack.c.h.b16 %v41
  %v284 = vunpack.c.l.b16 %v42
  %v285 = vunpack.c.h.b16 %v42
  %v286 = vunpack.c.l.b16 %v43
  %v287 = vunpack.c.h.b16 %v43
  %v288 = vunpack.c.l.b16 %v44
  %v289 = vunpack.c.h.b16 %v44
  %v290 = vunpack.c.l.b16 %v45
  %v291 = vunpack.c.h.b16 %v45
  %v292 = vunpack.c.l.b16 %v46
  %v293 = vunpack.c.h.b16 %v46
  %v294 = vunpack.c.l.b16 %v47
  %v295 = vunpack.c.h.b16 %v47
  %v296 = vunpack.c.l.b16 %v48
  %v297 = vunpack.c.h.b16 %v48
  %v298 = vunpack.c.l.b16 %v49
  %v299 = vunpack.c.h.b16 %v49
  %v300 = vunpack.c.l.b16 %v50
  %v301 = vunpack.c.h.b16 %v50
  %v302 = vunpack.c.l.b16 %v51
  %v303 = vunpack.c.h.b16 %v51
  %v304 = vunpack.c.l.b16 %v52
  %v305 = vunpack.c.h.b16 %v52
  %v306 = vunpack.c.l.b16 %v53
  %v307 = vunpack.c.h.b16 %v53
  %v308 = vunpack.c.l.b16 %v54
  %v309 = vunpack.c.h.b16 %v54
  %v310 = vunpack.c.l.b16 %v55
  %v311 = vunpack.c.h.b16 %v55
  %v312 = vunpack.c.l.b16 %v56
  %v313 = vunpack.c.h.b16 %v56
  %v314 = vunpack.c.l.b16 %v57
  %v315 = vunpack.c.h.b16 %v57
  %v316 = vunpack.c.l.b16 %v58
  %v317 = vunpack.c.h.b16 %v58
  %v318 = vunpack.c.l.b16 %v59
  %v319 = vunpack.c.h.b16 %v59
  %v320 = vunpack.c.l.b16 %v60
  %v321 = vunpack.c.h.b16 %v60
  %v322 = vunpack.c.l.b16 %v61
  %v323 = vunpack.c.h.b16 %v61
  %v324 = vunpack.c.l.b16 %v62
  %v325 = vunpack.c.h.b16 %v62
  %v326 = vunpack.c.l.b16 %v63
  %v327 = vunpack.c.h.b16 %v63
  %v328 = vunpack.c.l.b16 %v64
  %v329 = vunpack.c.h.b16 %v64
  %v330 = vunpack.c.l.b16 %v65
  %v331 = vunpack.c.h.b16 %v65
  %v332 = vunpack.c.l.b16 %v66
  %v333 = vunpack.c.h.b16 %v66
  %v334 = vunpack.c.l.b16 %v67
  %v335 = vunpack.c.h.b16 %v67
  %v336 = vunpack.c.l.b16 %v68
  %v337 = vunpack.c.h.b16 %v68
  %v338 = vunpack.c.l.b16 %v69
  %v339 = vunpack.c.h.b16 %v69
  %v340 = vunpack.c.l.b16 %v70
  %v341 = vunpack.c.h.b16 %v70
  %v342 = vunpack.c.l.b16 %v71
  %v343 = vunpack.c.h.b16 %v71
  %v344 = vunpack.c.l.b16 %v72
  %v345 = vunpack.c.h.b16 %v72
  %v346 = vunpack.c.l.b16 %v73
  %v347 = vunpack.c.h.b16 %v73
  %v348 = vunpack.c.l.b16 %v74
  %v349 = vunpack.c.h.b16 %v74
  %v350 = vunpack.c.l.b16 %v75
  %v351 = vunpack.c.h.b16 %v75
  %v352 = vunpack.c.l.b16 %v76
  %v353 = vunpack.c.h.b16 %v76
  %v354 = vunpack.c.l.b16 %v77
  %v355 = vunpack.c.h.b16 %v77
  %v356 = vunpack.c.l.b16 %v78
  %v357 = vunpack.c.h.b16 %v78
  %v358 = vunpack.c.l.b16 %v79
  %v359 = vunpack.c.h.b16 %v79
  %v360 = vunpack.c.l.b16 %v80
  %v361 = vunpack.c.h.b16 %v80
  %v362 = vunpack.c.l.b16 %v81
  %v363 = vunpack.c.h.b16 %v81
  %v364 = vunpack.c.l.b16 %v82
  %v365 = vunpack.c.h.b16 %v82
  %v366 = vunpack.c.l.b16 %v83
  %v367 = vunpack.c.h.b16 %v83
  %v368 = vunpack.c.l.b16 %v84
  %v369 = vunpack.c.h.b16 %v84
  %v370 = vunpack.c.l.b16 %v85
  %v371 = vunpack.c.h.b16 %v85
  %v372 = vunpack.c.l.b16 %v86
  %v373 = vunpack.c.h.b16 %v86
  %v374 = vpack.c.b16 %v234, %v230
  %v375 = vpack.c.b16 %v235, %v231
  %v376 = vpack.c.b16 %v236, %v232
  %v377 = vpack.c.b16 %v237, %v233
  %v378 = vpack.c.b16 %v242, %v238
  %v379 = vpack.c.b16 %v243, %v239
  %v380 = vpack.c.b16 %v244, %v240
  %v381 = vpack.c.b16 %v245, %v241
  %v382 = vpack.c.b16 %v250, %v246
  %v383 = vpack.c.b16 %v251, %v247
  %v384 = vpack.c.b16 %v252, %v248
  %v385 = vpack.c.b16 %v253, %v249
  %v386 = vpack.c.b16 %v258, %v254
  %v387 = vpack.c.b16 %v259, %v255
  %v388 = vpack.c.b16 %v260, %v256
  %v389 = vpack.c.b16 %v261, %v257
  %v390 = vpack.c.b16 %v266, %v262
  %v391 = vpack.c.b16 %v267, %v263
  %v392 = vpack.c.b16 %v268, %v264
  %v393 = vpack.c.b16 %v269, %v265
  %v394 = vpack.c.b16 %v274, %v270
  %v395 = vpack.c.b16 %v275, %v271
  %v396 = vpack.c.b16 %v276, %v272
  %v397 = vpack.c.b16 %v277, %v273
  %v398 = vpack.c.b16 %v282, %v278
  %v399 = vpack.c.b16 %v283, %v279
  %v400 = vpack.c.b16 %v284, %v280
  %v401 = vpack.c.b16 %v285, %v281
  %v402 = vpack.c.b16 %v290, %v286
  %v403 = vpack.c.b16 %v291, %v287
  %v404 = vpack.c.b16 %v292, %v288
  %v405 = vpack.c.b16 %v293, %v289
  %v406 = vpack.c.b16 %v298, %v294
  %v407 = vpack.c.b16 %v299, %v295
  %v408 = vpack.c.b16 %v300, %v296
  %v409 = vpack.c.b16 %v301, %v297
  %v410 = vpack.c.b16 %v306, %v302
  %v411 = vpack.c.b16 %v307, %v303
  %v412 = vpack.c.b16 %v308, %v304
  %v413 = vpack.c.b16 %v309, %v305
  %v414 = vpack.c.b16 %v314, %v310
  %v415 = vpack.c.b16 %v315, %v311
  %v416 = vpack.c.b16 %v316, %v312
  %v417 = vpack.c.b16 %v317, %v313
  %v418 = vpack.c.b16 %v322, %v318
  %v419 = vpack.c.b16 %v323, %v319
  %v420 = vpack.c.b16 %v324, %v320
  %v421 = vpack.c.b16 %v325, %v321
  %v422 = vpack.c.b16 %v330, %v326
  %v423 = vpack.c.b16 %v331, %v327
  %v424 = vpack.c.b16 %v332, %v328
  %v425 = vpack.c.b16 %v333, %v329
  %v426 = vpack.c.b16 %v338, %v334
  %v427 = vpack.c.b16 %v339, %v335
  %v428 = vpack.c.b16 %v340, %v336
  %v429 = vpack.c.b16 %v341, %v337
  %v430 = vpack.c.b16 %v346, %v342
  %v431 = vpack.c.b16 %v347, %v343
  %v432 = vpack.c.b16 %v348, %v344
  %v433 = vpack.c.b16 %v349, %v345
  %v434 = vpack.c.b16 %v354, %v350
  %v435 = vpack.c.b16 %v355, %v351
  %v436 = vpack.c.b16 %v356, %v352
  %v437 = vpack.c.b16 %v357, %v353
  %v438 = vpack.c.b16 %v362, %v358
  %v439 = vpack.c.b16 %v363, %v359
  %v440 = vpack.c.b16 %v364, %v360
  %v441 = vpack.c.b16 %v365, %v361
  %v442 = vpack.c.b16 %v370, %v366
  %v443 = vpack.c.b16 %v371, %v367
  %v444 = vpack.c.b16 %v372, %v368
  %v445 = vpack.c.b16 %v373, %v369
  %v582 = vunpack.c.l.b16 %v87
  %v583 = vunpack.c.l.b16 %v88
  %v584 = vunpack.c.l.b16 %v89
  %v585 = vunpack.c.l.b16 %v90
  %v586 = vunpack.c.l.b16 %v91
  %v587 = vunpack.c.l.b16 %v92
  %v588 = vunpack.c.l.b16 %v93
  %v589 = vunpack.c.l.b16 %v94
  %v590 = vunpack.c.l.b16 %v95
  %v591 = vunpack.c.l.b16 %v96
  %v592 = vunpack.c.l.b16 %v97
  %v593 = vunpack.c.l.b16 %v98
  %v594 = vunpack.c.l.b16 %v99
  %v595 = vunpack.c.l.b16 %v100
  %v596 = vunpack.c.l.b16 %v101
  %v597 = vunpack.c.l.b16 %v102
  %v598 = vunpack.c.l.b16 %v103
  %v599 = vunpack.c.l.b16 %v104
  %v600 = vunpack.c.l.b16 %v105
  %v601 = vunpack.c.l.b16 %v106
  %v602 = vunpack.c.l.b16 %v107
  %v603 = vunpack.c.l.b16 %v108
  %v604 = vunpack.c.l.b16 %v109
  %v605 = vunpack.c.l.b16 %v110
  %v606 = vunpack.c.l.b16 %v111
  %v607 = vunpack.c.l.b16 %v112
  %v608 = vunpack.c.l.b16 %v113
  %v609 = vunpack.c.l.b16 %v114
  %v610 = vunpack.c.l.b16 %v115
  %v611 = vunpack.c.l.b16 %v116
  %v612 = vunpack.c.l.b16 %v117
  %v613 = vunpack.c.l.b16 %v118
  %v614 = vunpack.c.l.b16 %v119
  %v615 = vunpack.c.l.b16 %v120
  %v616 = vunpack.c.l.b16 %v121
  %v617 = vunpack.c.l.b16 %v122
  %v618 = vunpack.c.l.b16 %v123
  %v619 = vunpack.c.l.b16 %v124
  %v620 = vunpack.c.l.b16 %v125
  %v621 = vunpack.c.l.b16 %v126
  %v622 = vunpack.c.l.b16 %v127
  %v623 = vunpack.c.l.b16 %v128
  %v624 = vunpack.c.l.b16 %v129
  %v625 = vunpack.c.l.b16 %v130
  %v626 = vunpack.c.l.b16 %v131
  %v627 = vunpack.c.l.b16 %v132
  %v628 = vunpack.c.l.b16 %v133
  %v629 = vunpack.c.l.b16 %v134
  %v630 = vunpack.c.l.b16 %v135
  %v631 = vunpack.c.l.b16 %v136
  %v632 = vunpack.c.l.b16 %v137
  %v633 = vunpack.c.l.b16 %v138
  %v634 = vunpack.c.l.b16 %v139
  %v635 = vunpack.c.l.b16 %v140
  %v636 = vunpack.c.l.b16 %v141
  %v637 = vunpack.c.l.b16 %v142
  %v638 = vunpack.c.l.b16 %v143
  %v639 = vunpack.c.l.b16 %v144
  %v640 = vunpack.c.l.b16 %v145
  %v641 = vunpack.c.l.b16 %v146
  %v642 = vunpack.c.l.b16 %v147
  %v643 = vunpack.c.l.b16 %v148
  %v644 = vunpack.c.l.b16 %v149
  %v645 = vunpack.c.l.b16 %v150
  %v646 = vpack.c.b16 %v583, %v582
  %v647 = vpack.c.b16 %v585, %v584
  %v648 = vpack.c.b16 %v587, %v586
  %v649 = vpack.c.b16 %v589, %v588
  %v650 = vpack.c.b16 %v591, %v590
  %v651 = vpack.c.b16 %v593, %v592
  %v652 = vpack.c.b16 %v595, %v594
  %v653 = vpack.c.b16 %v597, %v596
  %v654 = vpack.c.b16 %v599, %v598
  %v655 = vpack.c.b16 %v601, %v600
  %v656 = vpack.c.b16 %v603, %v602
  %v657 = vpack.c.b16 %v605, %v604
  %v658 = vpack.c.b16 %v607, %v606
  %v659 = vpack.c.b16 %v609, %v608
  %v660 = vpack.c.b16 %v611, %v610
  %v661 = vpack.c.b16 %v613, %v612
  %v662 = vpack.c.b16 %v615, %v614
  %v663 = vpack.c.b16 %v617, %v616
  %v664 = vpack.c.b16 %v619, %v618
  %v665 = vpack.c.b16 %v621, %v620
  %v666 = vpack.c.b16 %v623, %v622
  %v667 = vpack.c.b16 %v625, %v624
  %v668 = vpack.c.b16 %v627, %v626
  %v669 = vpack.c.b16 %v629, %v628
  %v670 = vpack.c.b16 %v631, %v630
  %v671 = vpack.c.b16 %v633, %v632
  %v672 = vpack.c.b16 %v635, %v634
  %v673 = vpack.c.b16 %v637, %v636
  %v674 = vpack.c.b16 %v639, %v638
  %v675 = vpack.c.b16 %v641, %v640
  %v676 = vpack.c.b16 %v643, %v642
  %v677 = vpack.c.b16 %v645, %v644
  %710 = vmatprep.subr.bf16.mxu0 0
  %711 = vmatpush1.bf16.msra.mxu0 %v653
  %712 = vmatprep.subr.bf16.mxu0 0
  %713 = vmatpush1.bf16.msra.mxu0 %v652
  %714 = vmatprep.subr.bf16.mxu0 0
  %715 = vmatpush1.bf16.msra.mxu0 %v651
  %716 = vmatprep.subr.bf16.mxu0 0
  %717 = vmatpush1.bf16.msra.mxu0 %v650
  %718 = vmatprep.subr.bf16.mxu0 0
  %719 = vmatpush1.bf16.msra.mxu0 %v649
  %720 = vmatprep.subr.bf16.mxu0 0
  %721 = vmatpush1.bf16.msra.mxu0 %v648
  %722 = vmatprep.subr.bf16.mxu0 0
  %723 = vmatpush1.bf16.msra.mxu0 %v647
  %724 = vmatprep.subr.bf16.mxu0 0
  %725 = vmatpush1.bf16.msra.mxu0 %v646
  %726 = vmatprep.subr.bf16.mxu0 0
  %727 = vmatpush2.bf16.msra.mxu0 %v661
  %728 = vmatprep.subr.bf16.mxu0 0
  %729 = vmatpush2.bf16.msra.mxu0 %v660
  %730 = vmatprep.subr.bf16.mxu0 0
  %731 = vmatpush2.bf16.msra.mxu0 %v659
  %732 = vmatprep.subr.bf16.mxu0 0
  %733 = vmatpush2.bf16.msra.mxu0 %v658
  %734 = vmatprep.subr.bf16.mxu0 0
  %735 = vmatpush2.bf16.msra.mxu0 %v657
  %736 = vmatprep.subr.bf16.mxu0 0
  %737 = vmatpush2.bf16.msra.mxu0 %v656
  %738 = vmatprep.subr.bf16.mxu0 0
  %739 = vmatpush2.bf16.msra.mxu0 %v655
  %740 = vmatprep.subr.bf16.mxu0 0
  %741 = vmatpush2.bf16.msra.mxu0 %v654
  %742 = vmatprep.mubr.bf16.mxu0 %v375
  %743 = vmatmul.mubr.bf16.gmra.mxu0 %v374
  %v744 = vpop.f32.mrf.mxu0
  %v745 = vadd.f32 %v156, %v744
  %v746 = vpop.f32.mrf.mxu0
  %v747 = vpop.f32.mrf.mxu0
  %v748 = vadd.f32 %v156, %v747
  %v749 = vpop.f32.mrf.mxu0
  %750 = vmatprep.mubr.bf16.mxu0 %v379
  %751 = vmatmul.mubr.bf16.gmra.mxu0 %v378
  %v752 = vpop.f32.mrf.mxu0
  %v753 = vadd.f32 %v156, %v752
  %v754 = vpop.f32.mrf.mxu0
  %v755 = vpop.f32.mrf.mxu0
  %v756 = vadd.f32 %v156, %v755
  %v757 = vpop.f32.mrf.mxu0
  %758 = vmatprep.mubr.bf16.mxu0 %v383
  %759 = vmatmul.mubr.bf16.gmra.mxu0 %v382
  %v760 = vpop.f32.mrf.mxu0
  %v761 = vadd.f32 %v156, %v760
  %v762 = vpop.f32.mrf.mxu0
  %v763 = vpop.f32.mrf.mxu0
  %v764 = vadd.f32 %v156, %v763
  %v765 = vpop.f32.mrf.mxu0
  %766 = vmatprep.mubr.bf16.mxu0 %v387
  %767 = vmatmul.mubr.bf16.gmra.mxu0 %v386
  %v768 = vpop.f32.mrf.mxu0
  %v769 = vadd.f32 %v156, %v768
  %v770 = vpop.f32.mrf.mxu0
  %v771 = vpop.f32.mrf.mxu0
  %v772 = vadd.f32 %v156, %v771
  %v773 = vpop.f32.mrf.mxu0
  %774 = vmatprep.mubr.bf16.mxu0 %v391
  %775 = vmatmul.mubr.bf16.gmra.mxu0 %v390
  %v776 = vpop.f32.mrf.mxu0
  %v777 = vadd.f32 %v156, %v776
  %v778 = vpop.f32.mrf.mxu0
  %v779 = vpop.f32.mrf.mxu0
  %v780 = vadd.f32 %v156, %v779
  %v781 = vpop.f32.mrf.mxu0
  %782 = vmatprep.mubr.bf16.mxu0 %v395
  %783 = vmatmul.mubr.bf16.gmra.mxu0 %v394
  %v784 = vpop.f32.mrf.mxu0
  %v785 = vadd.f32 %v156, %v784
  %v786 = vpop.f32.mrf.mxu0
  %v787 = vpop.f32.mrf.mxu0
  %v788 = vadd.f32 %v156, %v787
  %v789 = vpop.f32.mrf.mxu0
  %790 = vmatprep.mubr.bf16.mxu0 %v399
  %791 = vmatmul.mubr.bf16.gmra.mxu0 %v398
  %v792 = vpop.f32.mrf.mxu0
  %v793 = vadd.f32 %v156, %v792
  %v794 = vpop.f32.mrf.mxu0
  %v795 = vpop.f32.mrf.mxu0
  %v796 = vadd.f32 %v156, %v795
  %v797 = vpop.f32.mrf.mxu0
  %798 = vmatprep.mubr.bf16.mxu0 %v403
  %799 = vmatmul.mubr.bf16.gmra.mxu0 %v402
  %v800 = vpop.f32.mrf.mxu0
  %v801 = vadd.f32 %v156, %v800
  %v802 = vpop.f32.mrf.mxu0
  %v803 = vpop.f32.mrf.mxu0
  %v804 = vadd.f32 %v156, %v803
  %v805 = vpop.f32.mrf.mxu0
  %806 = vmatprep.mubr.bf16.mxu0 %v407
  %807 = vmatmul.mubr.bf16.gmra.mxu0 %v406
  %v808 = vpop.f32.mrf.mxu0
  %v809 = vadd.f32 %v156, %v808
  %v810 = vpop.f32.mrf.mxu0
  %v811 = vpop.f32.mrf.mxu0
  %v812 = vadd.f32 %v156, %v811
  %v813 = vpop.f32.mrf.mxu0
  %814 = vmatprep.mubr.bf16.mxu0 %v411
  %815 = vmatmul.mubr.bf16.gmra.mxu0 %v410
  %v816 = vpop.f32.mrf.mxu0
  %v817 = vadd.f32 %v156, %v816
  %v818 = vpop.f32.mrf.mxu0
  %v819 = vpop.f32.mrf.mxu0
  %v820 = vadd.f32 %v156, %v819
  %v821 = vpop.f32.mrf.mxu0
  %822 = vmatprep.mubr.bf16.mxu0 %v415
  %823 = vmatmul.mubr.bf16.gmra.mxu0 %v414
  %v824 = vpop.f32.mrf.mxu0
  %v825 = vadd.f32 %v156, %v824
  %v826 = vpop.f32.mrf.mxu0
  %v827 = vpop.f32.mrf.mxu0
  %v828 = vadd.f32 %v156, %v827
  %v829 = vpop.f32.mrf.mxu0
  %830 = vmatprep.mubr.bf16.mxu0 %v419
  %831 = vmatmul.mubr.bf16.gmra.mxu0 %v418
  %v832 = vpop.f32.mrf.mxu0
  %v833 = vadd.f32 %v156, %v832
  %v834 = vpop.f32.mrf.mxu0
  %v835 = vpop.f32.mrf.mxu0
  %v836 = vadd.f32 %v156, %v835
  %v837 = vpop.f32.mrf.mxu0
  %838 = vmatprep.mubr.bf16.mxu0 %v423
  %839 = vmatmul.mubr.bf16.gmra.mxu0 %v422
  %v840 = vpop.f32.mrf.mxu0
  %v841 = vadd.f32 %v156, %v840
  %v842 = vpop.f32.mrf.mxu0
  %v843 = vpop.f32.mrf.mxu0
  %v844 = vadd.f32 %v156, %v843
  %v845 = vpop.f32.mrf.mxu0
  %846 = vmatprep.mubr.bf16.mxu0 %v427
  %847 = vmatmul.mubr.bf16.gmra.mxu0 %v426
  %v848 = vpop.f32.mrf.mxu0
  %v849 = vadd.f32 %v156, %v848
  %v850 = vpop.f32.mrf.mxu0
  %v851 = vpop.f32.mrf.mxu0
  %v852 = vadd.f32 %v156, %v851
  %v853 = vpop.f32.mrf.mxu0
  %854 = vmatprep.mubr.bf16.mxu0 %v431
  %855 = vmatmul.mubr.bf16.gmra.mxu0 %v430
  %v856 = vpop.f32.mrf.mxu0
  %v857 = vadd.f32 %v156, %v856
  %v858 = vpop.f32.mrf.mxu0
  %v859 = vpop.f32.mrf.mxu0
  %v860 = vadd.f32 %v156, %v859
  %v861 = vpop.f32.mrf.mxu0
  %862 = vmatprep.mubr.bf16.mxu0 %v435
  %863 = vmatmul.mubr.bf16.gmra.mxu0 %v434
  %v864 = vpop.f32.mrf.mxu0
  %v865 = vadd.f32 %v156, %v864
  %v866 = vpop.f32.mrf.mxu0
  %v867 = vpop.f32.mrf.mxu0
  %v868 = vadd.f32 %v156, %v867
  %v869 = vpop.f32.mrf.mxu0
  %870 = vmatprep.mubr.bf16.mxu0 %v439
  %871 = vmatmul.mubr.bf16.gmra.mxu0 %v438
  %v872 = vpop.f32.mrf.mxu0
  %v873 = vadd.f32 %v156, %v872
  %v874 = vpop.f32.mrf.mxu0
  %v875 = vpop.f32.mrf.mxu0
  %v876 = vadd.f32 %v156, %v875
  %v877 = vpop.f32.mrf.mxu0
  %878 = vmatprep.mubr.bf16.mxu0 %v443
  %879 = vmatmul.mubr.bf16.gmra.mxu0 %v442
  %v880 = vpop.f32.mrf.mxu0
  %v881 = vadd.f32 %v156, %v880
  %v882 = vpop.f32.mrf.mxu0
  %v883 = vpop.f32.mrf.mxu0
  %v884 = vadd.f32 %v156, %v883
  %v885 = vpop.f32.mrf.mxu0
  %886 = vdwg.mxu0
  %887 = vmatprep.subr.bf16.mxu0 0
  %888 = vmatpush1.bf16.msra.mxu0 %v669
  %889 = vmatprep.subr.bf16.mxu0 0
  %890 = vmatpush1.bf16.msra.mxu0 %v668
  %891 = vmatprep.subr.bf16.mxu0 0
  %892 = vmatpush1.bf16.msra.mxu0 %v667
  %893 = vmatprep.subr.bf16.mxu0 0
  %894 = vmatpush1.bf16.msra.mxu0 %v666
  %895 = vmatprep.subr.bf16.mxu0 0
  %896 = vmatpush1.bf16.msra.mxu0 %v665
  %897 = vmatprep.subr.bf16.mxu0 0
  %898 = vmatpush1.bf16.msra.mxu0 %v664
  %899 = vmatprep.subr.bf16.mxu0 0
  %900 = vmatpush1.bf16.msra.mxu0 %v663
  %901 = vmatprep.subr.bf16.mxu0 0
  %902 = vmatpush1.bf16.msra.mxu0 %v662
  %903 = vmatprep.subr.bf16.mxu0 0
  %904 = vmatpush2.bf16.msra.mxu0 %v677
  %905 = vmatprep.subr.bf16.mxu0 0
  %906 = vmatpush2.bf16.msra.mxu0 %v676
  %907 = vmatprep.subr.bf16.mxu0 0
  %908 = vmatpush2.bf16.msra.mxu0 %v675
  %909 = vmatprep.subr.bf16.mxu0 0
  %910 = vmatpush2.bf16.msra.mxu0 %v674
  %911 = vmatprep.subr.bf16.mxu0 0
  %912 = vmatpush2.bf16.msra.mxu0 %v673
  %913 = vmatprep.subr.bf16.mxu0 0
  %914 = vmatpush2.bf16.msra.mxu0 %v672
  %915 = vmatprep.subr.bf16.mxu0 0
  %916 = vmatpush2.bf16.msra.mxu0 %v671
  %917 = vmatprep.subr.bf16.mxu0 0
  %918 = vmatpush2.bf16.msra.mxu0 %v670
  %919 = vmatprep.mubr.bf16.mxu0 %v377
  %920 = vmatmul.mubr.bf16.gmra.mxu0 %v376
  %v921 = vpop.f32.mrf.mxu0
  %v922 = vadd.f32 %v745, %v921
  %v923 = vpop.f32.mrf.mxu0
  %v924 = vpop.f32.mrf.mxu0
  %v925 = vadd.f32 %v748, %v924
  %v926 = vpop.f32.mrf.mxu0
  %927 = vmatprep.mubr.bf16.mxu0 %v381
  %928 = vmatmul.mubr.bf16.gmra.mxu0 %v380
  %v929 = vpop.f32.mrf.mxu0
  %v930 = vadd.f32 %v753, %v929
  %v931 = vpop.f32.mrf.mxu0
  %v932 = vpop.f32.mrf.mxu0
  %v933 = vadd.f32 %v756, %v932
  %v934 = vpop.f32.mrf.mxu0
  %935 = vmatprep.mubr.bf16.mxu0 %v385
  %936 = vmatmul.mubr.bf16.gmra.mxu0 %v384
  %v937 = vpop.f32.mrf.mxu0
  %v938 = vadd.f32 %v761, %v937
  %v939 = vpop.f32.mrf.mxu0
  %v940 = vpop.f32.mrf.mxu0
  %v941 = vadd.f32 %v764, %v940
  %v942 = vpop.f32.mrf.mxu0
  %943 = vmatprep.mubr.bf16.mxu0 %v389
  %944 = vmatmul.mubr.bf16.gmra.mxu0 %v388
  %v945 = vpop.f32.mrf.mxu0
  %v946 = vadd.f32 %v769, %v945
  %v947 = vpop.f32.mrf.mxu0
  %v948 = vpop.f32.mrf.mxu0
  %v949 = vadd.f32 %v772, %v948
  %v950 = vpop.f32.mrf.mxu0
  %951 = vmatprep.mubr.bf16.mxu0 %v393
  %952 = vmatmul.mubr.bf16.gmra.mxu0 %v392
  %v953 = vpop.f32.mrf.mxu0
  %v954 = vadd.f32 %v777, %v953
  %v955 = vpop.f32.mrf.mxu0
  %v956 = vpop.f32.mrf.mxu0
  %v957 = vadd.f32 %v780, %v956
  %v958 = vpop.f32.mrf.mxu0
  %959 = vmatprep.mubr.bf16.mxu0 %v397
  %960 = vmatmul.mubr.bf16.gmra.mxu0 %v396
  %v961 = vpop.f32.mrf.mxu0
  %v962 = vadd.f32 %v785, %v961
  %v963 = vpop.f32.mrf.mxu0
  %v964 = vpop.f32.mrf.mxu0
  %v965 = vadd.f32 %v788, %v964
  %v966 = vpop.f32.mrf.mxu0
  %967 = vmatprep.mubr.bf16.mxu0 %v401
  %968 = vmatmul.mubr.bf16.gmra.mxu0 %v400
  %v969 = vpop.f32.mrf.mxu0
  %v970 = vadd.f32 %v793, %v969
  %v971 = vpop.f32.mrf.mxu0
  %v972 = vpop.f32.mrf.mxu0
  %v973 = vadd.f32 %v796, %v972
  %v974 = vpop.f32.mrf.mxu0
  %975 = vmatprep.mubr.bf16.mxu0 %v405
  %976 = vmatmul.mubr.bf16.gmra.mxu0 %v404
  %v977 = vpop.f32.mrf.mxu0
  %v978 = vadd.f32 %v801, %v977
  %v979 = vpop.f32.mrf.mxu0
  %v980 = vpop.f32.mrf.mxu0
  %v981 = vadd.f32 %v804, %v980
  %v982 = vpop.f32.mrf.mxu0
  %983 = vmatprep.mubr.bf16.mxu0 %v409
  %984 = vmatmul.mubr.bf16.gmra.mxu0 %v408
  %v985 = vpop.f32.mrf.mxu0
  %v986 = vadd.f32 %v809, %v985
  %v987 = vpop.f32.mrf.mxu0
  %v988 = vpop.f32.mrf.mxu0
  %v989 = vadd.f32 %v812, %v988
  %v990 = vpop.f32.mrf.mxu0
  %991 = vmatprep.mubr.bf16.mxu0 %v413
  %992 = vmatmul.mubr.bf16.gmra.mxu0 %v412
  %v993 = vpop.f32.mrf.mxu0
  %v994 = vadd.f32 %v817, %v993
  %v995 = vpop.f32.mrf.mxu0
  %v996 = vpop.f32.mrf.mxu0
  %v997 = vadd.f32 %v820, %v996
  %v998 = vpop.f32.mrf.mxu0
  %999 = vmatprep.mubr.bf16.mxu0 %v417
  %1000 = vmatmul.mubr.bf16.gmra.mxu0 %v416
  %v1001 = vpop.f32.mrf.mxu0
  %v1002 = vadd.f32 %v825, %v1001
  %v1003 = vpop.f32.mrf.mxu0
  %v1004 = vpop.f32.mrf.mxu0
  %v1005 = vadd.f32 %v828, %v1004
  %v1006 = vpop.f32.mrf.mxu0
  %1007 = vmatprep.mubr.bf16.mxu0 %v421
  %1008 = vmatmul.mubr.bf16.gmra.mxu0 %v420
  %v1009 = vpop.f32.mrf.mxu0
  %v1010 = vadd.f32 %v833, %v1009
  %v1011 = vpop.f32.mrf.mxu0
  %v1012 = vpop.f32.mrf.mxu0
  %v1013 = vadd.f32 %v836, %v1012
  %v1014 = vpop.f32.mrf.mxu0
  %1015 = vmatprep.mubr.bf16.mxu0 %v425
  %1016 = vmatmul.mubr.bf16.gmra.mxu0 %v424
  %v1017 = vpop.f32.mrf.mxu0
  %v1018 = vadd.f32 %v841, %v1017
  %v1019 = vpop.f32.mrf.mxu0
  %v1020 = vpop.f32.mrf.mxu0
  %v1021 = vadd.f32 %v844, %v1020
  %v1022 = vpop.f32.mrf.mxu0
  %1023 = vmatprep.mubr.bf16.mxu0 %v429
  %1024 = vmatmul.mubr.bf16.gmra.mxu0 %v428
  %v1025 = vpop.f32.mrf.mxu0
  %v1026 = vadd.f32 %v849, %v1025
  %v1027 = vpop.f32.mrf.mxu0
  %v1028 = vpop.f32.mrf.mxu0
  %v1029 = vadd.f32 %v852, %v1028
  %v1030 = vpop.f32.mrf.mxu0
  %1031 = vmatprep.mubr.bf16.mxu0 %v433
  %1032 = vmatmul.mubr.bf16.gmra.mxu0 %v432
  %v1033 = vpop.f32.mrf.mxu0
  %v1034 = vadd.f32 %v857, %v1033
  %v1035 = vpop.f32.mrf.mxu0
  %v1036 = vpop.f32.mrf.mxu0
  %v1037 = vadd.f32 %v860, %v1036
  %v1038 = vpop.f32.mrf.mxu0
  %1039 = vmatprep.mubr.bf16.mxu0 %v437
  %1040 = vmatmul.mubr.bf16.gmra.mxu0 %v436
  %v1041 = vpop.f32.mrf.mxu0
  %v1042 = vadd.f32 %v865, %v1041
  %v1043 = vpop.f32.mrf.mxu0
  %v1044 = vpop.f32.mrf.mxu0
  %v1045 = vadd.f32 %v868, %v1044
  %v1046 = vpop.f32.mrf.mxu0
  %1047 = vmatprep.mubr.bf16.mxu0 %v441
  %1048 = vmatmul.mubr.bf16.gmra.mxu0 %v440
  %v1049 = vpop.f32.mrf.mxu0
  %v1050 = vadd.f32 %v873, %v1049
  %v1051 = vpop.f32.mrf.mxu0
  %v1052 = vpop.f32.mrf.mxu0
  %v1053 = vadd.f32 %v876, %v1052
  %v1054 = vpop.f32.mrf.mxu0
  %1055 = vmatprep.mubr.bf16.mxu0 %v445
  %1056 = vmatmul.mubr.bf16.gmra.mxu0 %v444
  %v1057 = vpop.f32.mrf.mxu0
  %v1058 = vadd.f32 %v881, %v1057
  %v1059 = vpop.f32.mrf.mxu0
  %v1060 = vpop.f32.mrf.mxu0
  %v1061 = vadd.f32 %v884, %v1060
  %v1062 = vpop.f32.mrf.mxu0
  %1063 = vdwg.mxu0
  %v1064 = vmax.f32 %v922, 0.0
  %v1065 = vmax.f32 %v925, 0.0
  %v1066 = vmax.f32 %v930, 0.0
  %v1067 = vmax.f32 %v933, 0.0
  %v1068 = vmax.f32 %v938, 0.0
  %v1069 = vmax.f32 %v941, 0.0
  %v1070 = vmax.f32 %v946, 0.0
  %v1071 = vmax.f32 %v949, 0.0
  %v1072 = vmax.f32 %v954, 0.0
  %v1073 = vmax.f32 %v957, 0.0
  %v1074 = vmax.f32 %v962, 0.0
  %v1075 = vmax.f32 %v965, 0.0
  %v1076 = vmax.f32 %v970, 0.0
  %v1077 = vmax.f32 %v973, 0.0
  %v1078 = vmax.f32 %v978, 0.0
  %v1079 = vmax.f32 %v981, 0.0
  %v1080 = vmax.f32 %v986, 0.0
  %v1081 = vmax.f32 %v989, 0.0
  %v1082 = vmax.f32 %v994, 0.0
  %v1083 = vmax.f32 %v997, 0.0
  %v1084 = vmax.f32 %v1002, 0.0
  %v1085 = vmax.f32 %v1005, 0.0
  %v1086 = vmax.f32 %v1010, 0.0
  %v1087 = vmax.f32 %v1013, 0.0
  %v1088 = vmax.f32 %v1018, 0.0
  %v1089 = vmax.f32 %v1021, 0.0
  %v1090 = vmax.f32 %v1026, 0.0
  %v1091 = vmax.f32 %v1029, 0.0
  %v1092 = vmax.f32 %v1034, 0.0
  %v1093 = vmax.f32 %v1037, 0.0
  %v1094 = vmax.f32 %v1042, 0.0
  %v1095 = vmax.f32 %v1045, 0.0
  %v1096 = vmax.f32 %v1050, 0.0
  %v1097 = vmax.f32 %v1053, 0.0
  %v1098 = vmax.f32 %v1058, 0.0
  %v1099 = vmax.f32 %v1061, 0.0
  %v1100 = vpack.c.bf16 %v1065, %v1064
  %v1101 = vpack.c.bf16 %v1067, %v1066
  %v1102 = vpack.c.bf16 %v1069, %v1068
  %v1103 = vpack.c.bf16 %v1071, %v1070
  %v1104 = vpack.c.bf16 %v1073, %v1072
  %v1105 = vpack.c.bf16 %v1075, %v1074
  %v1106 = vpack.c.bf16 %v1077, %v1076
  %v1107 = vpack.c.bf16 %v1079, %v1078
  %v1108 = vpack.c.bf16 %v1081, %v1080
  %v1109 = vpack.c.bf16 %v1083, %v1082
  %v1110 = vpack.c.bf16 %v1085, %v1084
  %v1111 = vpack.c.bf16 %v1087, %v1086
  %v1112 = vpack.c.bf16 %v1089, %v1088
  %v1113 = vpack.c.bf16 %v1091, %v1090
  %v1114 = vpack.c.bf16 %v1093, %v1092
  %v1115 = vpack.c.bf16 %v1095, %v1094
  %v1116 = vpack.c.bf16 %v1097, %v1096
  %v1117 = vpack.c.bf16 %v1099, %v1098
  %v1136 = vunpack.c.l.b16 %v1100
  %v1137 = vunpack.c.h.b16 %v1100
  %v1138 = vunpack.c.l.b16 %v1101
  %v1139 = vunpack.c.h.b16 %v1101
  %v1140 = vunpack.c.l.b16 %v1102
  %v1141 = vunpack.c.h.b16 %v1102
  %v1142 = vunpack.c.l.b16 %v1103
  %v1143 = vunpack.c.h.b16 %v1103
  %v1144 = vunpack.c.l.b16 %v1104
  %v1145 = vunpack.c.h.b16 %v1104
  %v1146 = vunpack.c.l.b16 %v1105
  %v1147 = vunpack.c.h.b16 %v1105
  %v1148 = vunpack.c.l.b16 %v1106
  %v1149 = vunpack.c.h.b16 %v1106
  %v1150 = vunpack.c.l.b16 %v1107
  %v1151 = vunpack.c.h.b16 %v1107
  %v1152 = vunpack.c.l.b16 %v1108
  %v1153 = vunpack.c.h.b16 %v1108
  %v1154 = vunpack.c.l.b16 %v1109
  %v1155 = vunpack.c.h.b16 %v1109
  %v1156 = vunpack.c.l.b16 %v1110
  %v1157 = vunpack.c.h.b16 %v1110
  %v1158 = vunpack.c.l.b16 %v1111
  %v1159 = vunpack.c.h.b16 %v1111
  %v1160 = vunpack.c.l.b16 %v1112
  %v1161 = vunpack.c.h.b16 %v1112
  %v1162 = vunpack.c.l.b16 %v1113
  %v1163 = vunpack.c.h.b16 %v1113
  %v1164 = vunpack.c.l.b16 %v1114
  %v1165 = vunpack.c.h.b16 %v1114
  %v1166 = vunpack.c.l.b16 %v1115
  %v1167 = vunpack.c.h.b16 %v1115
  %v1168 = vunpack.c.l.b16 %v1116
  %v1169 = vunpack.c.h.b16 %v1116
  %v1170 = vunpack.c.l.b16 %v1117
  %v1171 = vunpack.c.h.b16 %v1117
  %v1172 = vpack.c.b16 %v1136, %v1136
  %v1173 = vpack.c.b16 %v1137, %v1137
  %v1174 = vpack.c.b16 %v1138, %v1138
  %v1175 = vpack.c.b16 %v1139, %v1139
  %v1176 = vpack.c.b16 %v1140, %v1140
  %v1177 = vpack.c.b16 %v1141, %v1141
  %v1178 = vpack.c.b16 %v1142, %v1142
  %v1179 = vpack.c.b16 %v1143, %v1143
  %v1180 = vpack.c.b16 %v1144, %v1144
  %v1181 = vpack.c.b16 %v1145, %v1145
  %v1182 = vpack.c.b16 %v1146, %v1146
  %v1183 = vpack.c.b16 %v1147, %v1147
  %v1184 = vpack.c.b16 %v1148, %v1148
  %v1185 = vpack.c.b16 %v1149, %v1149
  %v1186 = vpack.c.b16 %v1150, %v1150
  %v1187 = vpack.c.b16 %v1151, %v1151
  %v1188 = vpack.c.b16 %v1152, %v1152
  %v1189 = vpack.c.b16 %v1153, %v1153
  %v1190 = vpack.c.b16 %v1154, %v1154
  %v1191 = vpack.c.b16 %v1155, %v1155
  %v1192 = vpack.c.b16 %v1156, %v1156
  %v1193 = vpack.c.b16 %v1157, %v1157
  %v1194 = vpack.c.b16 %v1158, %v1158
  %v1195 = vpack.c.b16 %v1159, %v1159
  %v1196 = vpack.c.b16 %v1160, %v1160
  %v1197 = vpack.c.b16 %v1161, %v1161
  %v1198 = vpack.c.b16 %v1162, %v1162
  %v1199 = vpack.c.b16 %v1163, %v1163
  %v1200 = vpack.c.b16 %v1164, %v1164
  %v1201 = vpack.c.b16 %v1165, %v1165
  %v1202 = vpack.c.b16 %v1166, %v1166
  %v1203 = vpack.c.b16 %v1167, %v1167
  %v1204 = vpack.c.b16 %v1168, %v1168
  %v1205 = vpack.c.b16 %v1169, %v1169
  %v1206 = vpack.c.b16 %v1170, %v1170
  %v1207 = vpack.c.b16 %v1171, %v1171
  %vm1244 = vcmask 519168
  %1245 = vst.msk [vmem:[%s3] sm:$0xf] %vm1244, %v1172
  %1246 = vst.msk [vmem:[%s3 + $0x4] sm:$0xf] %vm1244, %v1173
  %1247 = vst.msk [vmem:[%s3 + $0x8] sm:$0xf] %vm1244, %v1174
  %1248 = vst.msk [vmem:[%s3 + $0xc] sm:$0xf] %vm1244, %v1175
  %1249 = vst.msk [vmem:[%s3 + $0x10] sm:$0xf] %vm1244, %v1176
  %1250 = vst.msk [vmem:[%s3 + $0x14] sm:$0xf] %vm1244, %v1177
  %1251 = vst.msk [vmem:[%s3 + $0x18] sm:$0xf] %vm1244, %v1178
  %1252 = vst.msk [vmem:[%s3 + $0x1c] sm:$0xf] %vm1244, %v1179
  %1253 = vst.msk [vmem:[%s3 + $0x20] sm:$0xf] %vm1244, %v1180
  %1254 = vst.msk [vmem:[%s3 + $0x24] sm:$0xf] %vm1244, %v1181
  %1255 = vst.msk [vmem:[%s3 + $0x28] sm:$0xf] %vm1244, %v1182
  %1256 = vst.msk [vmem:[%s3 + $0x2c] sm:$0xf] %vm1244, %v1183
  %1257 = vst.msk [vmem:[%s3 + $0x30] sm:$0xf] %vm1244, %v1184
  %1258 = vst.msk [vmem:[%s3 + $0x34] sm:$0xf] %vm1244, %v1185
  %1259 = vst.msk [vmem:[%s3 + $0x38] sm:$0xf] %vm1244, %v1186
  %1260 = vst.msk [vmem:[%s3 + $0x3c] sm:$0xf] %vm1244, %v1187
  %1261 = vst.msk [vmem:[%s3 + $0x40] sm:$0xf] %vm1244, %v1188
  %1262 = vst.msk [vmem:[%s3 + $0x44] sm:$0xf] %vm1244, %v1189
  %1263 = vst.msk [vmem:[%s3 + $0x48] sm:$0xf] %vm1244, %v1190
  %1264 = vst.msk [vmem:[%s3 + $0x4c] sm:$0xf] %vm1244, %v1191
  %1265 = vst.msk [vmem:[%s3 + $0x50] sm:$0xf] %vm1244, %v1192
  %1266 = vst.msk [vmem:[%s3 + $0x54] sm:$0xf] %vm1244, %v1193
  %1267 = vst.msk [vmem:[%s3 + $0x58] sm:$0xf] %vm1244, %v1194
  %1268 = vst.msk [vmem:[%s3 + $0x5c] sm:$0xf] %vm1244, %v1195
  %1269 = vst.msk [vmem:[%s3 + $0x60] sm:$0xf] %vm1244, %v1196
  %1270 = vst.msk [vmem:[%s3 + $0x64] sm:$0xf] %vm1244, %v1197
  %1271 = vst.msk [vmem:[%s3 + $0x68] sm:$0xf] %vm1244, %v1198
  %1272 = vst.msk [vmem:[%s3 + $0x6c] sm:$0xf] %vm1244, %v1199
  %1273 = vst.msk [vmem:[%s3 + $0x70] sm:$0xf] %vm1244, %v1200
  %1274 = vst.msk [vmem:[%s3 + $0x74] sm:$0xf] %vm1244, %v1201
  %1275 = vst.msk [vmem:[%s3 + $0x78] sm:$0xf] %vm1244, %v1202
  %1276 = vst.msk [vmem:[%s3 + $0x7c] sm:$0xf] %vm1244, %v1203
  %1277 = vst.msk [vmem:[%s3 + $0x80] sm:$0xf] %vm1244, %v1204
  %1278 = vst.msk [vmem:[%s3 + $0x84] sm:$0xf] %vm1244, %v1205
  %1279 = vst.msk [vmem:[%s3 + $0x88] sm:$0xf] %vm1244, %v1206
  %1280 = vst.msk [vmem:[%s3 + $0x8c] sm:$0xf] %vm1244, %v1207
  // Predicated region
  $region14: #{_lambda_.5} parent=0 // pred_check
    _
  $region15: #{_lambda_.5} parent=0 // pred_check_branch
    %1282 = sbr.rel (0) target = $region17
  $region16: #{_lambda_.5} parent=0 // pred_region
    _
  $region17: #{_lambda_.5} parent=0 // pred_fallthru
    _
  // Predicated region
  $region18: #{_lambda_.5} parent=0 // pred_check
    _
  $region19: #{_lambda_.5} parent=0 // pred_check_branch
    %1284 = sbr.rel (0) target = $region21
  $region20: #{_lambda_.5} parent=0 // pred_region
    _
  $region21: #{_lambda_.5} parent=0 // pred_fallthru
    _

// kernel: _lambda_.6
$region0: #{_lambda_.6}
  #allocation0 [shape = 'u32[]', space=smem, size = 0x4, offset = 0x4, fixed_abs, tag = 'smem constant byte address 0x4 - core index']
  #allocation1 [shape = 'u32[144,128]{1,0:T(1,128)}', space=vmem, size = 0x12000, scoped, tag = 'internal scratch']
  %s0 = inlined_call_operand.vmem [shape: bf16[288,576], index: 0, kind: input, shape index: {}]
  %s1 = inlined_call_operand.vmem [shape: bf16[576,64], index: 1, kind: input, shape index: {}]
  %s2 = inlined_call_operand.vmem [shape: f32[1,64], index: 2, kind: input, shape index: {}]
  %s3 = inlined_call_operand.vmem [shape: bf16[288,64], index: 3, kind: output, shape index: {}]
  %s4 = sld [smem:[#allocation0]]
  $region22: #{_lambda_.6} parent=0
    _
  %s6 = ssub.s32 1, %s4
  %s7 = scalar_select 0, %s6, %s4
  // Predicated region
  $region2: #{_lambda_.6} parent=0 // pred_check
    _
  $region3: #{_lambda_.6} parent=0 // pred_check_branch
    %9 = sbr.rel (0) target = $region5
  $region4: #{_lambda_.6} parent=0 // pred_region
    _
  $region5: #{_lambda_.6} parent=0 // pred_fallthru
    _
  // Predicated region
  $region6: #{_lambda_.6} parent=0 // pred_check
    _
  $region7: #{_lambda_.6} parent=0 // pred_check_branch
    %11 = sbr.rel (0) target = $region9
  $region8: #{_lambda_.6} parent=0 // pred_region
    _
  $region9: #{_lambda_.6} parent=0 // pred_fallthru
    _
  // Predicated region
  $region10: #{_lambda_.6} parent=0 // pred_check
    _
  $region11: #{_lambda_.6} parent=0 // pred_check_branch
    %13 = sbr.rel (0) target = $region13
  $region12: #{_lambda_.6} parent=0 // pred_region
    _
  $region13: #{_lambda_.6} parent=0 // pred_fallthru
    _
  %v15 = vld [vmem:[%s0] sm:$0xff]
  %v16 = vld [vmem:[%s0 + $0x8] sm:$0xff]
  %v17 = vld [vmem:[%s0 + $0x10] sm:$0xf]
  %v18 = vld [vmem:[%s0 + $0x14] sm:$0xff]
  %v19 = vld [vmem:[%s0 + $0x1c] sm:$0xff]
  %v20 = vld [vmem:[%s0 + $0x24] sm:$0xf]
  %v21 = vld [vmem:[%s0 + $0x28] sm:$0xff]
  %v22 = vld [vmem:[%s0 + $0x30] sm:$0xff]
  %v23 = vld [vmem:[%s0 + $0x38] sm:$0xf]
  %v24 = vld [vmem:[%s0 + $0x3c] sm:$0xff]
  %v25 = vld [vmem:[%s0 + $0x44] sm:$0xff]
  %v26 = vld [vmem:[%s0 + $0x4c] sm:$0xf]
  %v27 = vld [vmem:[%s0 + $0x50] sm:$0xff]
  %v28 = vld [vmem:[%s0 + $0x58] sm:$0xff]
  %v29 = vld [vmem:[%s0 + $0x60] sm:$0xf]
  %v30 = vld [vmem:[%s0 + $0x64] sm:$0xff]
  %v31 = vld [vmem:[%s0 + $0x6c] sm:$0xff]
  %v32 = vld [vmem:[%s0 + $0x74] sm:$0xf]
  %v33 = vld [vmem:[%s0 + $0x78] sm:$0xff]
  %v34 = vld [vmem:[%s0 + $0x80] sm:$0xff]
  %v35 = vld [vmem:[%s0 + $0x88] sm:$0xf]
  %v36 = vld [vmem:[%s0 + $0x8c] sm:$0xff]
  %v37 = vld [vmem:[%s0 + $0x94] sm:$0xff]
  %v38 = vld [vmem:[%s0 + $0x9c] sm:$0xf]
  %v39 = vld [vmem:[%s0 + $0xa0] sm:$0xff]
  %v40 = vld [vmem:[%s0 + $0xa8] sm:$0xff]
  %v41 = vld [vmem:[%s0 + $0xb0] sm:$0xf]
  %v42 = vld [vmem:[%s0 + $0xb4] sm:$0xff]
  %v43 = vld [vmem:[%s0 + $0xbc] sm:$0xff]
  %v44 = vld [vmem:[%s0 + $0xc4] sm:$0xf]
  %v45 = vld [vmem:[%s0 + $0xc8] sm:$0xff]
  %v46 = vld [vmem:[%s0 + $0xd0] sm:$0xff]
  %v47 = vld [vmem:[%s0 + $0xd8] sm:$0xf]
  %v48 = vld [vmem:[%s0 + $0xdc] sm:$0xff]
  %v49 = vld [vmem:[%s0 + $0xe4] sm:$0xff]
  %v50 = vld [vmem:[%s0 + $0xec] sm:$0xf]
  %v51 = vld [vmem:[%s0 + $0xf0] sm:$0xff]
  %v52 = vld [vmem:[%s0 + $0xf8] sm:$0xff]
  %v53 = vld [vmem:[%s0 + $0x100] sm:$0xf]
  %v54 = vld [vmem:[%s0 + $0x104] sm:$0xff]
  %v55 = vld [vmem:[%s0 + $0x10c] sm:$0xff]
  %v56 = vld [vmem:[%s0 + $0x114] sm:$0xf]
  %v57 = vld [vmem:[%s0 + $0x118] sm:$0xff]
  %v58 = vld [vmem:[%s0 + $0x120] sm:$0xff]
  %v59 = vld [vmem:[%s0 + $0x128] sm:$0xf]
  %v60 = vld [vmem:[%s0 + $0x12c] sm:$0xff]
  %v61 = vld [vmem:[%s0 + $0x134] sm:$0xff]
  %v62 = vld [vmem:[%s0 + $0x13c] sm:$0xf]
  %v63 = vld [vmem:[%s0 + $0x140] sm:$0xff]
  %v64 = vld [vmem:[%s0 + $0x148] sm:$0xff]
  %v65 = vld [vmem:[%s0 + $0x150] sm:$0xf]
  %v66 = vld [vmem:[%s0 + $0x154] sm:$0xff]
  %v67 = vld [vmem:[%s0 + $0x15c] sm:$0xff]
  %v68 = vld [vmem:[%s0 + $0x164] sm:$0xf]
  %v69 = vld [vmem:[%s0 + $0x168] sm:$0xff]
  %v70 = vld [vmem:[%s0 + $0x170] sm:$0xff]
  %v71 = vld [vmem:[%s0 + $0x178] sm:$0xf]
  %v72 = vld [vmem:[%s0 + $0x17c] sm:$0xff]
  %v73 = vld [vmem:[%s0 + $0x184] sm:$0xff]
  %v74 = vld [vmem:[%s0 + $0x18c] sm:$0xf]
  %v75 = vld [vmem:[%s0 + $0x190] sm:$0xff]
  %v76 = vld [vmem:[%s0 + $0x198] sm:$0xff]
  %v77 = vld [vmem:[%s0 + $0x1a0] sm:$0xf]
  %v78 = vld [vmem:[%s0 + $0x1a4] sm:$0xff]
  %v79 = vld [vmem:[%s0 + $0x1ac] sm:$0xff]
  %v80 = vld [vmem:[%s0 + $0x1b4] sm:$0xf]
  %v81 = vld [vmem:[%s0 + $0x1b8] sm:$0xff]
  %v82 = vld [vmem:[%s0 + $0x1c0] sm:$0xff]
  %v83 = vld [vmem:[%s0 + $0x1c8] sm:$0xf]
  %v84 = vld [vmem:[%s0 + $0x1cc] sm:$0xff]
  %v85 = vld [vmem:[%s0 + $0x1d4] sm:$0xff]
  %v86 = vld [vmem:[%s0 + $0x1dc] sm:$0xf]
  %v87 = vld [vmem:[%s0 + $0x1e0] sm:$0xff]
  %v88 = vld [vmem:[%s0 + $0x1e8] sm:$0xff]
  %v89 = vld [vmem:[%s0 + $0x1f0] sm:$0xf]
  %v90 = vld [vmem:[%s0 + $0x1f4] sm:$0xff]
  %v91 = vld [vmem:[%s0 + $0x1fc] sm:$0xff]
  %v92 = vld [vmem:[%s0 + $0x204] sm:$0xf]
  %v93 = vld [vmem:[%s0 + $0x208] sm:$0xff]
  %v94 = vld [vmem:[%s0 + $0x210] sm:$0xff]
  %v95 = vld [vmem:[%s0 + $0x218] sm:$0xf]
  %v96 = vld [vmem:[%s0 + $0x21c] sm:$0xff]
  %v97 = vld [vmem:[%s0 + $0x224] sm:$0xff]
  %v98 = vld [vmem:[%s0 + $0x22c] sm:$0xf]
  %v99 = vld [vmem:[%s0 + $0x230] sm:$0xff]
  %v100 = vld [vmem:[%s0 + $0x238] sm:$0xff]
  %v101 = vld [vmem:[%s0 + $0x240] sm:$0xf]
  %v102 = vld [vmem:[%s0 + $0x244] sm:$0xff]
  %v103 = vld [vmem:[%s0 + $0x24c] sm:$0xff]
  %v104 = vld [vmem:[%s0 + $0x254] sm:$0xf]
  %v105 = vld [vmem:[%s0 + $0x258] sm:$0xff]
  %v106 = vld [vmem:[%s0 + $0x260] sm:$0xff]
  %v107 = vld [vmem:[%s0 + $0x268] sm:$0xf]
  %v108 = vld [vmem:[%s0 + $0x26c] sm:$0xff]
  %v109 = vld [vmem:[%s0 + $0x274] sm:$0xff]
  %v110 = vld [vmem:[%s0 + $0x27c] sm:$0xf]
  %v111 = vld [vmem:[%s0 + $0x280] sm:$0xff]
  %v112 = vld [vmem:[%s0 + $0x288] sm:$0xff]
  %v113 = vld [vmem:[%s0 + $0x290] sm:$0xf]
  %v114 = vld [vmem:[%s0 + $0x294] sm:$0xff]
  %v115 = vld [vmem:[%s0 + $0x29c] sm:$0xff]
  %v116 = vld [vmem:[%s0 + $0x2a4] sm:$0xf]
  %v117 = vld [vmem:[%s0 + $0x2a8] sm:$0xff]
  %v118 = vld [vmem:[%s0 + $0x2b0] sm:$0xff]
  %v119 = vld [vmem:[%s0 + $0x2b8] sm:$0xf]
  %v120 = vld [vmem:[%s0 + $0x2bc] sm:$0xff]
  %v121 = vld [vmem:[%s0 + $0x2c4] sm:$0xff]
  %v122 = vld [vmem:[%s0 + $0x2cc] sm:$0xf]
  %v123 = vld [vmem:[%s1] sm:$0xf]
  %v124 = vld [vmem:[%s1 + $0x4] sm:$0xf]
  %v125 = vld [vmem:[%s1 + $0x8] sm:$0xf]
  %v126 = vld [vmem:[%s1 + $0xc] sm:$0xf]
  %v127 = vld [vmem:[%s1 + $0x10] sm:$0xf]
  %v128 = vld [vmem:[%s1 + $0x14] sm:$0xf]
  %v129 = vld [vmem:[%s1 + $0x18] sm:$0xf]
  %v130 = vld [vmem:[%s1 + $0x1c] sm:$0xf]
  %v131 = vld [vmem:[%s1 + $0x20] sm:$0xf]
  %v132 = vld [vmem:[%s1 + $0x24] sm:$0xf]
  %v133 = vld [vmem:[%s1 + $0x28] sm:$0xf]
  %v134 = vld [vmem:[%s1 + $0x2c] sm:$0xf]
  %v135 = vld [vmem:[%s1 + $0x30] sm:$0xf]
  %v136 = vld [vmem:[%s1 + $0x34] sm:$0xf]
  %v137 = vld [vmem:[%s1 + $0x38] sm:$0xf]
  %v138 = vld [vmem:[%s1 + $0x3c] sm:$0xf]
  %v139 = vld [vmem:[%s1 + $0x40] sm:$0xf]
  %v140 = vld [vmem:[%s1 + $0x44] sm:$0xf]
  %v141 = vld [vmem:[%s1 + $0x48] sm:$0xf]
  %v142 = vld [vmem:[%s1 + $0x4c] sm:$0xf]
  %v143 = vld [vmem:[%s1 + $0x50] sm:$0xf]
  %v144 = vld [vmem:[%s1 + $0x54] sm:$0xf]
  %v145 = vld [vmem:[%s1 + $0x58] sm:$0xf]
  %v146 = vld [vmem:[%s1 + $0x5c] sm:$0xf]
  %v147 = vld [vmem:[%s1 + $0x60] sm:$0xf]
  %v148 = vld [vmem:[%s1 + $0x64] sm:$0xf]
  %v149 = vld [vmem:[%s1 + $0x68] sm:$0xf]
  %v150 = vld [vmem:[%s1 + $0x6c] sm:$0xf]
  %v151 = vld [vmem:[%s1 + $0x70] sm:$0xf]
  %v152 = vld [vmem:[%s1 + $0x74] sm:$0xf]
  %v153 = vld [vmem:[%s1 + $0x78] sm:$0xf]
  %v154 = vld [vmem:[%s1 + $0x7c] sm:$0xf]
  %v155 = vld [vmem:[%s1 + $0x80] sm:$0xf]
  %v156 = vld [vmem:[%s1 + $0x84] sm:$0xf]
  %v157 = vld [vmem:[%s1 + $0x88] sm:$0xf]
  %v158 = vld [vmem:[%s1 + $0x8c] sm:$0xf]
  %v159 = vld [vmem:[%s1 + $0x90] sm:$0xf]
  %v160 = vld [vmem:[%s1 + $0x94] sm:$0xf]
  %v161 = vld [vmem:[%s1 + $0x98] sm:$0xf]
  %v162 = vld [vmem:[%s1 + $0x9c] sm:$0xf]
  %v163 = vld [vmem:[%s1 + $0xa0] sm:$0xf]
  %v164 = vld [vmem:[%s1 + $0xa4] sm:$0xf]
  %v165 = vld [vmem:[%s1 + $0xa8] sm:$0xf]
  %v166 = vld [vmem:[%s1 + $0xac] sm:$0xf]
  %v167 = vld [vmem:[%s1 + $0xb0] sm:$0xf]
  %v168 = vld [vmem:[%s1 + $0xb4] sm:$0xf]
  %v169 = vld [vmem:[%s1 + $0xb8] sm:$0xf]
  %v170 = vld [vmem:[%s1 + $0xbc] sm:$0xf]
  %v171 = vld [vmem:[%s1 + $0xc0] sm:$0xf]
  %v172 = vld [vmem:[%s1 + $0xc4] sm:$0xf]
  %v173 = vld [vmem:[%s1 + $0xc8] sm:$0xf]
  %v174 = vld [vmem:[%s1 + $0xcc] sm:$0xf]
  %v175 = vld [vmem:[%s1 + $0xd0] sm:$0xf]
  %v176 = vld [vmem:[%s1 + $0xd4] sm:$0xf]
  %v177 = vld [vmem:[%s1 + $0xd8] sm:$0xf]
  %v178 = vld [vmem:[%s1 + $0xdc] sm:$0xf]
  %v179 = vld [vmem:[%s1 + $0xe0] sm:$0xf]
  %v180 = vld [vmem:[%s1 + $0xe4] sm:$0xf]
  %v181 = vld [vmem:[%s1 + $0xe8] sm:$0xf]
  %v182 = vld [vmem:[%s1 + $0xec] sm:$0xf]
  %v183 = vld [vmem:[%s1 + $0xf0] sm:$0xf]
  %v184 = vld [vmem:[%s1 + $0xf4] sm:$0xf]
  %v185 = vld [vmem:[%s1 + $0xf8] sm:$0xf]
  %v186 = vld [vmem:[%s1 + $0xfc] sm:$0xf]
  %v187 = vld [vmem:[%s1 + $0x100] sm:$0xf]
  %v188 = vld [vmem:[%s1 + $0x104] sm:$0xf]
  %v189 = vld [vmem:[%s1 + $0x108] sm:$0xf]
  %v190 = vld [vmem:[%s1 + $0x10c] sm:$0xf]
  %v191 = vld [vmem:[%s1 + $0x110] sm:$0xf]
  %v192 = vld [vmem:[%s1 + $0x114] sm:$0xf]
  %v193 = vld [vmem:[%s1 + $0x118] sm:$0xf]
  %v194 = vld [vmem:[%s1 + $0x11c] sm:$0xf]
  %v195 = vld [vmem:[%s2] sm:$0x1]
  %v197 = vlaneseq
  %v198 = vshrl.u32 %v197, 7
  %v199 = vsub.s32 0, %v198
  %v200 = vrot.slane %v195, %v199
  %v310 = vunpack.c.l.b16 %v15
  %v311 = vunpack.c.h.b16 %v15
  %v312 = vunpack.c.l.b16 %v16
  %v313 = vunpack.c.h.b16 %v16
  %v314 = vunpack.c.l.b16 %v17
  %v315 = vunpack.c.l.b16 %v18
  %v316 = vunpack.c.h.b16 %v18
  %v317 = vunpack.c.l.b16 %v19
  %v318 = vunpack.c.h.b16 %v19
  %v319 = vunpack.c.l.b16 %v20
  %v320 = vunpack.c.l.b16 %v21
  %v321 = vunpack.c.h.b16 %v21
  %v322 = vunpack.c.l.b16 %v22
  %v323 = vunpack.c.h.b16 %v22
  %v324 = vunpack.c.l.b16 %v23
  %v325 = vunpack.c.l.b16 %v24
  %v326 = vunpack.c.h.b16 %v24
  %v327 = vunpack.c.l.b16 %v25
  %v328 = vunpack.c.h.b16 %v25
  %v329 = vunpack.c.l.b16 %v26
  %v330 = vunpack.c.l.b16 %v27
  %v331 = vunpack.c.h.b16 %v27
  %v332 = vunpack.c.l.b16 %v28
  %v333 = vunpack.c.h.b16 %v28
  %v334 = vunpack.c.l.b16 %v29
  %v335 = vunpack.c.l.b16 %v30
  %v336 = vunpack.c.h.b16 %v30
  %v337 = vunpack.c.l.b16 %v31
  %v338 = vunpack.c.h.b16 %v31
  %v339 = vunpack.c.l.b16 %v32
  %v340 = vunpack.c.l.b16 %v33
  %v341 = vunpack.c.h.b16 %v33
  %v342 = vunpack.c.l.b16 %v34
  %v343 = vunpack.c.h.b16 %v34
  %v344 = vunpack.c.l.b16 %v35
  %v345 = vunpack.c.l.b16 %v36
  %v346 = vunpack.c.h.b16 %v36
  %v347 = vunpack.c.l.b16 %v37
  %v348 = vunpack.c.h.b16 %v37
  %v349 = vunpack.c.l.b16 %v38
  %v350 = vunpack.c.l.b16 %v39
  %v351 = vunpack.c.h.b16 %v39
  %v352 = vunpack.c.l.b16 %v40
  %v353 = vunpack.c.h.b16 %v40
  %v354 = vunpack.c.l.b16 %v41
  %v355 = vunpack.c.l.b16 %v42
  %v356 = vunpack.c.h.b16 %v42
  %v357 = vunpack.c.l.b16 %v43
  %v358 = vunpack.c.h.b16 %v43
  %v359 = vunpack.c.l.b16 %v44
  %v360 = vunpack.c.l.b16 %v45
  %v361 = vunpack.c.h.b16 %v45
  %v362 = vunpack.c.l.b16 %v46
  %v363 = vunpack.c.h.b16 %v46
  %v364 = vunpack.c.l.b16 %v47
  %v365 = vunpack.c.l.b16 %v48
  %v366 = vunpack.c.h.b16 %v48
  %v367 = vunpack.c.l.b16 %v49
  %v368 = vunpack.c.h.b16 %v49
  %v369 = vunpack.c.l.b16 %v50
  %v370 = vunpack.c.l.b16 %v51
  %v371 = vunpack.c.h.b16 %v51
  %v372 = vunpack.c.l.b16 %v52
  %v373 = vunpack.c.h.b16 %v52
  %v374 = vunpack.c.l.b16 %v53
  %v375 = vunpack.c.l.b16 %v54
  %v376 = vunpack.c.h.b16 %v54
  %v377 = vunpack.c.l.b16 %v55
  %v378 = vunpack.c.h.b16 %v55
  %v379 = vunpack.c.l.b16 %v56
  %v380 = vunpack.c.l.b16 %v57
  %v381 = vunpack.c.h.b16 %v57
  %v382 = vunpack.c.l.b16 %v58
  %v383 = vunpack.c.h.b16 %v58
  %v384 = vunpack.c.l.b16 %v59
  %v385 = vunpack.c.l.b16 %v60
  %v386 = vunpack.c.h.b16 %v60
  %v387 = vunpack.c.l.b16 %v61
  %v388 = vunpack.c.h.b16 %v61
  %v389 = vunpack.c.l.b16 %v62
  %v390 = vunpack.c.l.b16 %v63
  %v391 = vunpack.c.h.b16 %v63
  %v392 = vunpack.c.l.b16 %v64
  %v393 = vunpack.c.h.b16 %v64
  %v394 = vunpack.c.l.b16 %v65
  %v395 = vunpack.c.l.b16 %v66
  %v396 = vunpack.c.h.b16 %v66
  %v397 = vunpack.c.l.b16 %v67
  %v398 = vunpack.c.h.b16 %v67
  %v399 = vunpack.c.l.b16 %v68
  %v400 = vunpack.c.l.b16 %v69
  %v401 = vunpack.c.h.b16 %v69
  %v402 = vunpack.c.l.b16 %v70
  %v403 = vunpack.c.h.b16 %v70
  %v404 = vunpack.c.l.b16 %v71
  %v405 = vunpack.c.l.b16 %v72
  %v406 = vunpack.c.h.b16 %v72
  %v407 = vunpack.c.l.b16 %v73
  %v408 = vunpack.c.h.b16 %v73
  %v409 = vunpack.c.l.b16 %v74
  %v410 = vunpack.c.l.b16 %v75
  %v411 = vunpack.c.h.b16 %v75
  %v412 = vunpack.c.l.b16 %v76
  %v413 = vunpack.c.h.b16 %v76
  %v414 = vunpack.c.l.b16 %v77
  %v415 = vunpack.c.l.b16 %v78
  %v416 = vunpack.c.h.b16 %v78
  %v417 = vunpack.c.l.b16 %v79
  %v418 = vunpack.c.h.b16 %v79
  %v419 = vunpack.c.l.b16 %v80
  %v420 = vunpack.c.l.b16 %v81
  %v421 = vunpack.c.h.b16 %v81
  %v422 = vunpack.c.l.b16 %v82
  %v423 = vunpack.c.h.b16 %v82
  %v424 = vunpack.c.l.b16 %v83
  %v425 = vunpack.c.l.b16 %v84
  %v426 = vunpack.c.h.b16 %v84
  %v427 = vunpack.c.l.b16 %v85
  %v428 = vunpack.c.h.b16 %v85
  %v429 = vunpack.c.l.b16 %v86
  %v430 = vunpack.c.l.b16 %v87
  %v431 = vunpack.c.h.b16 %v87
  %v432 = vunpack.c.l.b16 %v88
  %v433 = vunpack.c.h.b16 %v88
  %v434 = vunpack.c.l.b16 %v89
  %v435 = vunpack.c.l.b16 %v90
  %v436 = vunpack.c.h.b16 %v90
  %v437 = vunpack.c.l.b16 %v91
  %v438 = vunpack.c.h.b16 %v91
  %v439 = vunpack.c.l.b16 %v92
  %v440 = vunpack.c.l.b16 %v93
  %v441 = vunpack.c.h.b16 %v93
  %v442 = vunpack.c.l.b16 %v94
  %v443 = vunpack.c.h.b16 %v94
  %v444 = vunpack.c.l.b16 %v95
  %v445 = vunpack.c.l.b16 %v96
  %v446 = vunpack.c.h.b16 %v96
  %v447 = vunpack.c.l.b16 %v97
  %v448 = vunpack.c.h.b16 %v97
  %v449 = vunpack.c.l.b16 %v98
  %v450 = vunpack.c.l.b16 %v99
  %v451 = vunpack.c.h.b16 %v99
  %v452 = vunpack.c.l.b16 %v100
  %v453 = vunpack.c.h.b16 %v100
  %v454 = vunpack.c.l.b16 %v101
  %v455 = vunpack.c.l.b16 %v102
  %v456 = vunpack.c.h.b16 %v102
  %v457 = vunpack.c.l.b16 %v103
  %v458 = vunpack.c.h.b16 %v103
  %v459 = vunpack.c.l.b16 %v104
  %v460 = vunpack.c.l.b16 %v105
  %v461 = vunpack.c.h.b16 %v105
  %v462 = vunpack.c.l.b16 %v106
  %v463 = vunpack.c.h.b16 %v106
  %v464 = vunpack.c.l.b16 %v107
  %v465 = vunpack.c.l.b16 %v108
  %v466 = vunpack.c.h.b16 %v108
  %v467 = vunpack.c.l.b16 %v109
  %v468 = vunpack.c.h.b16 %v109
  %v469 = vunpack.c.l.b16 %v110
  %v470 = vunpack.c.l.b16 %v111
  %v471 = vunpack.c.h.b16 %v111
  %v472 = vunpack.c.l.b16 %v112
  %v473 = vunpack.c.h.b16 %v112
  %v474 = vunpack.c.l.b16 %v113
  %v475 = vunpack.c.l.b16 %v114
  %v476 = vunpack.c.h.b16 %v114
  %v477 = vunpack.c.l.b16 %v115
  %v478 = vunpack.c.h.b16 %v115
  %v479 = vunpack.c.l.b16 %v116
  %v480 = vunpack.c.l.b16 %v117
  %v481 = vunpack.c.h.b16 %v117
  %v482 = vunpack.c.l.b16 %v118
  %v483 = vunpack.c.h.b16 %v118
  %v484 = vunpack.c.l.b16 %v119
  %v485 = vunpack.c.l.b16 %v120
  %v486 = vunpack.c.h.b16 %v120
  %v487 = vunpack.c.l.b16 %v121
  %v488 = vunpack.c.h.b16 %v121
  %v489 = vunpack.c.l.b16 %v122
  %v490 = vpack.c.b16 %v315, %v310
  %v491 = vpack.c.b16 %v316, %v311
  %v492 = vpack.c.b16 %v317, %v312
  %v493 = vpack.c.b16 %v318, %v313
  %v494 = vpack.c.b16 %v319, %v314
  %v495 = vpack.c.b16 %v325, %v320
  %v496 = vpack.c.b16 %v326, %v321
  %v497 = vpack.c.b16 %v327, %v322
  %v498 = vpack.c.b16 %v328, %v323
  %v499 = vpack.c.b16 %v329, %v324
  %v500 = vpack.c.b16 %v335, %v330
  %v501 = vpack.c.b16 %v336, %v331
  %v502 = vpack.c.b16 %v337, %v332
  %v503 = vpack.c.b16 %v338, %v333
  %v504 = vpack.c.b16 %v339, %v334
  %v505 = vpack.c.b16 %v345, %v340
  %v506 = vpack.c.b16 %v346, %v341
  %v507 = vpack.c.b16 %v347, %v342
  %v508 = vpack.c.b16 %v348, %v343
  %v509 = vpack.c.b16 %v349, %v344
  %v510 = vpack.c.b16 %v355, %v350
  %v511 = vpack.c.b16 %v356, %v351
  %v512 = vpack.c.b16 %v357, %v352
  %v513 = vpack.c.b16 %v358, %v353
  %v514 = vpack.c.b16 %v359, %v354
  %v515 = vpack.c.b16 %v365, %v360
  %v516 = vpack.c.b16 %v366, %v361
  %v517 = vpack.c.b16 %v367, %v362
  %v518 = vpack.c.b16 %v368, %v363
  %v519 = vpack.c.b16 %v369, %v364
  %v520 = vpack.c.b16 %v375, %v370
  %v521 = vpack.c.b16 %v376, %v371
  %v522 = vpack.c.b16 %v377, %v372
  %v523 = vpack.c.b16 %v378, %v373
  %v524 = vpack.c.b16 %v379, %v374
  %v525 = vpack.c.b16 %v385, %v380
  %v526 = vpack.c.b16 %v386, %v381
  %v527 = vpack.c.b16 %v387, %v382
  %v528 = vpack.c.b16 %v388, %v383
  %v529 = vpack.c.b16 %v389, %v384
  %v530 = vpack.c.b16 %v395, %v390
  %v531 = vpack.c.b16 %v396, %v391
  %v532 = vpack.c.b16 %v397, %v392
  %v533 = vpack.c.b16 %v398, %v393
  %v534 = vpack.c.b16 %v399, %v394
  %v535 = vpack.c.b16 %v405, %v400
  %v536 = vpack.c.b16 %v406, %v401
  %v537 = vpack.c.b16 %v407, %v402
  %v538 = vpack.c.b16 %v408, %v403
  %v539 = vpack.c.b16 %v409, %v404
  %v540 = vpack.c.b16 %v415, %v410
  %v541 = vpack.c.b16 %v416, %v411
  %v542 = vpack.c.b16 %v417, %v412
  %v543 = vpack.c.b16 %v418, %v413
  %v544 = vpack.c.b16 %v419, %v414
  %v545 = vpack.c.b16 %v425, %v420
  %v546 = vpack.c.b16 %v426, %v421
  %v547 = vpack.c.b16 %v427, %v422
  %v548 = vpack.c.b16 %v428, %v423
  %v549 = vpack.c.b16 %v429, %v424
  %v550 = vpack.c.b16 %v435, %v430
  %v551 = vpack.c.b16 %v436, %v431
  %v552 = vpack.c.b16 %v437, %v432
  %v553 = vpack.c.b16 %v438, %v433
  %v554 = vpack.c.b16 %v439, %v434
  %v555 = vpack.c.b16 %v445, %v440
  %v556 = vpack.c.b16 %v446, %v441
  %v557 = vpack.c.b16 %v447, %v442
  %v558 = vpack.c.b16 %v448, %v443
  %v559 = vpack.c.b16 %v449, %v444
  %v560 = vpack.c.b16 %v455, %v450
  %v561 = vpack.c.b16 %v456, %v451
  %v562 = vpack.c.b16 %v457, %v452
  %v563 = vpack.c.b16 %v458, %v453
  %v564 = vpack.c.b16 %v459, %v454
  %v565 = vpack.c.b16 %v465, %v460
  %v566 = vpack.c.b16 %v466, %v461
  %v567 = vpack.c.b16 %v467, %v462
  %v568 = vpack.c.b16 %v468, %v463
  %v569 = vpack.c.b16 %v469, %v464
  %v570 = vpack.c.b16 %v475, %v470
  %v571 = vpack.c.b16 %v476, %v471
  %v572 = vpack.c.b16 %v477, %v472
  %v573 = vpack.c.b16 %v478, %v473
  %v574 = vpack.c.b16 %v479, %v474
  %v575 = vpack.c.b16 %v485, %v480
  %v576 = vpack.c.b16 %v486, %v481
  %v577 = vpack.c.b16 %v487, %v482
  %v578 = vpack.c.b16 %v488, %v483
  %v579 = vpack.c.b16 %v489, %v484
  %v724 = vunpack.c.l.b16 %v123
  %v725 = vunpack.c.l.b16 %v124
  %v726 = vunpack.c.l.b16 %v125
  %v727 = vunpack.c.l.b16 %v126
  %v728 = vunpack.c.l.b16 %v127
  %v729 = vunpack.c.l.b16 %v128
  %v730 = vunpack.c.l.b16 %v129
  %v731 = vunpack.c.l.b16 %v130
  %v732 = vunpack.c.l.b16 %v131
  %v733 = vunpack.c.l.b16 %v132
  %v734 = vunpack.c.l.b16 %v133
  %v735 = vunpack.c.l.b16 %v134
  %v736 = vunpack.c.l.b16 %v135
  %v737 = vunpack.c.l.b16 %v136
  %v738 = vunpack.c.l.b16 %v137
  %v739 = vunpack.c.l.b16 %v138
  %v740 = vunpack.c.l.b16 %v139
  %v741 = vunpack.c.l.b16 %v140
  %v742 = vunpack.c.l.b16 %v141
  %v743 = vunpack.c.l.b16 %v142
  %v744 = vunpack.c.l.b16 %v143
  %v745 = vunpack.c.l.b16 %v144
  %v746 = vunpack.c.l.b16 %v145
  %v747 = vunpack.c.l.b16 %v146
  %v748 = vunpack.c.l.b16 %v147
  %v749 = vunpack.c.l.b16 %v148
  %v750 = vunpack.c.l.b16 %v149
  %v751 = vunpack.c.l.b16 %v150
  %v752 = vunpack.c.l.b16 %v151
  %v753 = vunpack.c.l.b16 %v152
  %v754 = vunpack.c.l.b16 %v153
  %v755 = vunpack.c.l.b16 %v154
  %v756 = vunpack.c.l.b16 %v155
  %v757 = vunpack.c.l.b16 %v156
  %v758 = vunpack.c.l.b16 %v157
  %v759 = vunpack.c.l.b16 %v158
  %v760 = vunpack.c.l.b16 %v159
  %v761 = vunpack.c.l.b16 %v160
  %v762 = vunpack.c.l.b16 %v161
  %v763 = vunpack.c.l.b16 %v162
  %v764 = vunpack.c.l.b16 %v163
  %v765 = vunpack.c.l.b16 %v164
  %v766 = vunpack.c.l.b16 %v165
  %v767 = vunpack.c.l.b16 %v166
  %v768 = vunpack.c.l.b16 %v167
  %v769 = vunpack.c.l.b16 %v168
  %v770 = vunpack.c.l.b16 %v169
  %v771 = vunpack.c.l.b16 %v170
  %v772 = vunpack.c.l.b16 %v171
  %v773 = vunpack.c.l.b16 %v172
  %v774 = vunpack.c.l.b16 %v173
  %v775 = vunpack.c.l.b16 %v174
  %v776 = vunpack.c.l.b16 %v175
  %v777 = vunpack.c.l.b16 %v176
  %v778 = vunpack.c.l.b16 %v177
  %v779 = vunpack.c.l.b16 %v178
  %v780 = vunpack.c.l.b16 %v179
  %v781 = vunpack.c.l.b16 %v180
  %v782 = vunpack.c.l.b16 %v181
  %v783 = vunpack.c.l.b16 %v182
  %v784 = vunpack.c.l.b16 %v183
  %v785 = vunpack.c.l.b16 %v184
  %v786 = vunpack.c.l.b16 %v185
  %v787 = vunpack.c.l.b16 %v186
  %v788 = vunpack.c.l.b16 %v187
  %v789 = vunpack.c.l.b16 %v188
  %v790 = vunpack.c.l.b16 %v189
  %v791 = vunpack.c.l.b16 %v190
  %v792 = vunpack.c.l.b16 %v191
  %v793 = vunpack.c.l.b16 %v192
  %v794 = vunpack.c.l.b16 %v193
  %v795 = vunpack.c.l.b16 %v194
  %v796 = vpack.c.b16 %v725, %v724
  %v797 = vpack.c.b16 %v727, %v726
  %v798 = vpack.c.b16 %v729, %v728
  %v799 = vpack.c.b16 %v731, %v730
  %v800 = vpack.c.b16 %v733, %v732
  %v801 = vpack.c.b16 %v735, %v734
  %v802 = vpack.c.b16 %v737, %v736
  %v803 = vpack.c.b16 %v739, %v738
  %v804 = vpack.c.b16 %v741, %v740
  %v805 = vpack.c.b16 %v743, %v742
  %v806 = vpack.c.b16 %v745, %v744
  %v807 = vpack.c.b16 %v747, %v746
  %v808 = vpack.c.b16 %v749, %v748
  %v809 = vpack.c.b16 %v751, %v750
  %v810 = vpack.c.b16 %v753, %v752
  %v811 = vpack.c.b16 %v755, %v754
  %v812 = vpack.c.b16 %v757, %v756
  %v813 = vpack.c.b16 %v759, %v758
  %v814 = vpack.c.b16 %v761, %v760
  %v815 = vpack.c.b16 %v763, %v762
  %v816 = vpack.c.b16 %v765, %v764
  %v817 = vpack.c.b16 %v767, %v766
  %v818 = vpack.c.b16 %v769, %v768
  %v819 = vpack.c.b16 %v771, %v770
  %v820 = vpack.c.b16 %v773, %v772
  %v821 = vpack.c.b16 %v775, %v774
  %v822 = vpack.c.b16 %v777, %v776
  %v823 = vpack.c.b16 %v779, %v778
  %v824 = vpack.c.b16 %v781, %v780
  %v825 = vpack.c.b16 %v783, %v782
  %v826 = vpack.c.b16 %v785, %v784
  %v827 = vpack.c.b16 %v787, %v786
  %v828 = vpack.c.b16 %v789, %v788
  %v829 = vpack.c.b16 %v791, %v790
  %v830 = vpack.c.b16 %v793, %v792
  %v831 = vpack.c.b16 %v795, %v794
  %vm868 = vcmask 523264
  %v870 = vsel %vm868, %v494, 0
  %v873 = vsel %vm868, %v499, 0
  %v876 = vsel %vm868, %v504, 0
  %v879 = vsel %vm868, %v509, 0
  %v882 = vsel %vm868, %v514, 0
  %v885 = vsel %vm868, %v519, 0
  %v888 = vsel %vm868, %v524, 0
  %v891 = vsel %vm868, %v529, 0
  %v894 = vsel %vm868, %v534, 0
  %v897 = vsel %vm868, %v539, 0
  %v900 = vsel %vm868, %v544, 0
  %v903 = vsel %vm868, %v549, 0
  %v906 = vsel %vm868, %v554, 0
  %v909 = vsel %vm868, %v559, 0
  %v912 = vsel %vm868, %v564, 0
  %v915 = vsel %vm868, %v569, 0
  %v918 = vsel %vm868, %v574, 0
  %v921 = vsel %vm868, %v579, 0
  %923 = vmatprep.subr.bf16.mxu0 0
  %924 = vmatpush1.bf16.msra.mxu0 %v803
  %925 = vmatprep.subr.bf16.mxu0 0
  %926 = vmatpush1.bf16.msra.mxu0 %v802
  %927 = vmatprep.subr.bf16.mxu0 0
  %928 = vmatpush1.bf16.msra.mxu0 %v801
  %929 = vmatprep.subr.bf16.mxu0 0
  %930 = vmatpush1.bf16.msra.mxu0 %v800
  %931 = vmatprep.subr.bf16.mxu0 0
  %932 = vmatpush1.bf16.msra.mxu0 %v799
  %933 = vmatprep.subr.bf16.mxu0 0
  %934 = vmatpush1.bf16.msra.mxu0 %v798
  %935 = vmatprep.subr.bf16.mxu0 0
  %936 = vmatpush1.bf16.msra.mxu0 %v797
  %937 = vmatprep.subr.bf16.mxu0 0
  %938 = vmatpush1.bf16.msra.mxu0 %v796
  %939 = vmatprep.subr.bf16.mxu0 0
  %940 = vmatpush2.bf16.msra.mxu0 %v811
  %941 = vmatprep.subr.bf16.mxu0 0
  %942 = vmatpush2.bf16.msra.mxu0 %v810
  %943 = vmatprep.subr.bf16.mxu0 0
  %944 = vmatpush2.bf16.msra.mxu0 %v809
  %945 = vmatprep.subr.bf16.mxu0 0
  %946 = vmatpush2.bf16.msra.mxu0 %v808
  %947 = vmatprep.subr.bf16.mxu0 0
  %948 = vmatpush2.bf16.msra.mxu0 %v807
  %949 = vmatprep.subr.bf16.mxu0 0
  %950 = vmatpush2.bf16.msra.mxu0 %v806
  %951 = vmatprep.subr.bf16.mxu0 0
  %952 = vmatpush2.bf16.msra.mxu0 %v805
  %953 = vmatprep.subr.bf16.mxu0 0
  %954 = vmatpush2.bf16.msra.mxu0 %v804
  %955 = vmatprep.mubr.bf16.mxu0 %v491
  %956 = vmatmul.mubr.bf16.gmra.mxu0 %v490
  %v957 = vpop.f32.mrf.mxu0
  %v958 = vadd.f32 %v200, %v957
  %v959 = vpop.f32.mrf.mxu0
  %v960 = vpop.f32.mrf.mxu0
  %v961 = vadd.f32 %v200, %v960
  %v962 = vpop.f32.mrf.mxu0
  %963 = vmatprep.mubr.bf16.mxu0 %v496
  %964 = vmatmul.mubr.bf16.gmra.mxu0 %v495
  %v965 = vpop.f32.mrf.mxu0
  %v966 = vadd.f32 %v200, %v965
  %v967 = vpop.f32.mrf.mxu0
  %v968 = vpop.f32.mrf.mxu0
  %v969 = vadd.f32 %v200, %v968
  %v970 = vpop.f32.mrf.mxu0
  %971 = vmatprep.mubr.bf16.mxu0 %v501
  %972 = vmatmul.mubr.bf16.gmra.mxu0 %v500
  %v973 = vpop.f32.mrf.mxu0
  %v974 = vadd.f32 %v200, %v973
  %v975 = vpop.f32.mrf.mxu0
  %v976 = vpop.f32.mrf.mxu0
  %v977 = vadd.f32 %v200, %v976
  %v978 = vpop.f32.mrf.mxu0
  %979 = vmatprep.mubr.bf16.mxu0 %v506
  %980 = vmatmul.mubr.bf16.gmra.mxu0 %v505
  %v981 = vpop.f32.mrf.mxu0
  %v982 = vadd.f32 %v200, %v981
  %v983 = vpop.f32.mrf.mxu0
  %v984 = vpop.f32.mrf.mxu0
  %v985 = vadd.f32 %v200, %v984
  %v986 = vpop.f32.mrf.mxu0
  %987 = vmatprep.mubr.bf16.mxu0 %v511
  %988 = vmatmul.mubr.bf16.gmra.mxu0 %v510
  %v989 = vpop.f32.mrf.mxu0
  %v990 = vadd.f32 %v200, %v989
  %v991 = vpop.f32.mrf.mxu0
  %v992 = vpop.f32.mrf.mxu0
  %v993 = vadd.f32 %v200, %v992
  %v994 = vpop.f32.mrf.mxu0
  %995 = vmatprep.mubr.bf16.mxu0 %v516
  %996 = vmatmul.mubr.bf16.gmra.mxu0 %v515
  %v997 = vpop.f32.mrf.mxu0
  %v998 = vadd.f32 %v200, %v997
  %v999 = vpop.f32.mrf.mxu0
  %v1000 = vpop.f32.mrf.mxu0
  %v1001 = vadd.f32 %v200, %v1000
  %v1002 = vpop.f32.mrf.mxu0
  %1003 = vmatprep.mubr.bf16.mxu0 %v521
  %1004 = vmatmul.mubr.bf16.gmra.mxu0 %v520
  %v1005 = vpop.f32.mrf.mxu0
  %v1006 = vadd.f32 %v200, %v1005
  %v1007 = vpop.f32.mrf.mxu0
  %v1008 = vpop.f32.mrf.mxu0
  %v1009 = vadd.f32 %v200, %v1008
  %v1010 = vpop.f32.mrf.mxu0
  %1011 = vmatprep.mubr.bf16.mxu0 %v526
  %1012 = vmatmul.mubr.bf16.gmra.mxu0 %v525
  %v1013 = vpop.f32.mrf.mxu0
  %v1014 = vadd.f32 %v200, %v1013
  %v1015 = vpop.f32.mrf.mxu0
  %v1016 = vpop.f32.mrf.mxu0
  %v1017 = vadd.f32 %v200, %v1016
  %v1018 = vpop.f32.mrf.mxu0
  %1019 = vmatprep.mubr.bf16.mxu0 %v531
  %1020 = vmatmul.mubr.bf16.gmra.mxu0 %v530
  %v1021 = vpop.f32.mrf.mxu0
  %v1022 = vadd.f32 %v200, %v1021
  %v1023 = vpop.f32.mrf.mxu0
  %v1024 = vpop.f32.mrf.mxu0
  %v1025 = vadd.f32 %v200, %v1024
  %v1026 = vpop.f32.mrf.mxu0
  %1027 = vmatprep.mubr.bf16.mxu0 %v536
  %1028 = vmatmul.mubr.bf16.gmra.mxu0 %v535
  %v1029 = vpop.f32.mrf.mxu0
  %v1030 = vadd.f32 %v200, %v1029
  %v1031 = vpop.f32.mrf.mxu0
  %v1032 = vpop.f32.mrf.mxu0
  %v1033 = vadd.f32 %v200, %v1032
  %v1034 = vpop.f32.mrf.mxu0
  %1035 = vmatprep.mubr.bf16.mxu0 %v541
  %1036 = vmatmul.mubr.bf16.gmra.mxu0 %v540
  %v1037 = vpop.f32.mrf.mxu0
  %v1038 = vadd.f32 %v200, %v1037
  %v1039 = vpop.f32.mrf.mxu0
  %v1040 = vpop.f32.mrf.mxu0
  %v1041 = vadd.f32 %v200, %v1040
  %v1042 = vpop.f32.mrf.mxu0
  %1043 = vmatprep.mubr.bf16.mxu0 %v546
  %1044 = vmatmul.mubr.bf16.gmra.mxu0 %v545
  %v1045 = vpop.f32.mrf.mxu0
  %v1046 = vadd.f32 %v200, %v1045
  %v1047 = vpop.f32.mrf.mxu0
  %v1048 = vpop.f32.mrf.mxu0
  %v1049 = vadd.f32 %v200, %v1048
  %v1050 = vpop.f32.mrf.mxu0
  %1051 = vmatprep.mubr.bf16.mxu0 %v551
  %1052 = vmatmul.mubr.bf16.gmra.mxu0 %v550
  %v1053 = vpop.f32.mrf.mxu0
  %v1054 = vadd.f32 %v200, %v1053
  %v1055 = vpop.f32.mrf.mxu0
  %v1056 = vpop.f32.mrf.mxu0
  %v1057 = vadd.f32 %v200, %v1056
  %v1058 = vpop.f32.mrf.mxu0
  %1059 = vmatprep.mubr.bf16.mxu0 %v556
  %1060 = vmatmul.mubr.bf16.gmra.mxu0 %v555
  %v1061 = vpop.f32.mrf.mxu0
  %v1062 = vadd.f32 %v200, %v1061
  %v1063 = vpop.f32.mrf.mxu0
  %v1064 = vpop.f32.mrf.mxu0
  %v1065 = vadd.f32 %v200, %v1064
  %v1066 = vpop.f32.mrf.mxu0
  %1067 = vmatprep.mubr.bf16.mxu0 %v561
  %1068 = vmatmul.mubr.bf16.gmra.mxu0 %v560
  %v1069 = vpop.f32.mrf.mxu0
  %v1070 = vadd.f32 %v200, %v1069
  %v1071 = vpop.f32.mrf.mxu0
  %v1072 = vpop.f32.mrf.mxu0
  %v1073 = vadd.f32 %v200, %v1072
  %v1074 = vpop.f32.mrf.mxu0
  %1075 = vmatprep.mubr.bf16.mxu0 %v566
  %1076 = vmatmul.mubr.bf16.gmra.mxu0 %v565
  %v1077 = vpop.f32.mrf.mxu0
  %v1078 = vadd.f32 %v200, %v1077
  %v1079 = vpop.f32.mrf.mxu0
  %v1080 = vpop.f32.mrf.mxu0
  %v1081 = vadd.f32 %v200, %v1080
  %v1082 = vpop.f32.mrf.mxu0
  %1083 = vmatprep.mubr.bf16.mxu0 %v571
  %1084 = vmatmul.mubr.bf16.gmra.mxu0 %v570
  %v1085 = vpop.f32.mrf.mxu0
  %v1086 = vadd.f32 %v200, %v1085
  %v1087 = vpop.f32.mrf.mxu0
  %v1088 = vpop.f32.mrf.mxu0
  %v1089 = vadd.f32 %v200, %v1088
  %v1090 = vpop.f32.mrf.mxu0
  %1091 = vmatprep.mubr.bf16.mxu0 %v576
  %1092 = vmatmul.mubr.bf16.gmra.mxu0 %v575
  %v1093 = vpop.f32.mrf.mxu0
  %v1094 = vadd.f32 %v200, %v1093
  %v1095 = vpop.f32.mrf.mxu0
  %v1096 = vpop.f32.mrf.mxu0
  %v1097 = vadd.f32 %v200, %v1096
  %v1098 = vpop.f32.mrf.mxu0
  %1099 = vdwg.mxu0
  %1100 = vmatprep.subr.bf16.mxu0 0
  %1101 = vmatpush1.bf16.msra.mxu0 %v819
  %1102 = vmatprep.subr.bf16.mxu0 0
  %1103 = vmatpush1.bf16.msra.mxu0 %v818
  %1104 = vmatprep.subr.bf16.mxu0 0
  %1105 = vmatpush1.bf16.msra.mxu0 %v817
  %1106 = vmatprep.subr.bf16.mxu0 0
  %1107 = vmatpush1.bf16.msra.mxu0 %v816
  %1108 = vmatprep.subr.bf16.mxu0 0
  %1109 = vmatpush1.bf16.msra.mxu0 %v815
  %1110 = vmatprep.subr.bf16.mxu0 0
  %1111 = vmatpush1.bf16.msra.mxu0 %v814
  %1112 = vmatprep.subr.bf16.mxu0 0
  %1113 = vmatpush1.bf16.msra.mxu0 %v813
  %1114 = vmatprep.subr.bf16.mxu0 0
  %1115 = vmatpush1.bf16.msra.mxu0 %v812
  %1116 = vmatprep.subr.bf16.mxu0 0
  %1117 = vmatpush2.bf16.msra.mxu0 %v827
  %1118 = vmatprep.subr.bf16.mxu0 0
  %1119 = vmatpush2.bf16.msra.mxu0 %v826
  %1120 = vmatprep.subr.bf16.mxu0 0
  %1121 = vmatpush2.bf16.msra.mxu0 %v825
  %1122 = vmatprep.subr.bf16.mxu0 0
  %1123 = vmatpush2.bf16.msra.mxu0 %v824
  %1124 = vmatprep.subr.bf16.mxu0 0
  %1125 = vmatpush2.bf16.msra.mxu0 %v823
  %1126 = vmatprep.subr.bf16.mxu0 0
  %1127 = vmatpush2.bf16.msra.mxu0 %v822
  %1128 = vmatprep.subr.bf16.mxu0 0
  %1129 = vmatpush2.bf16.msra.mxu0 %v821
  %1130 = vmatprep.subr.bf16.mxu0 0
  %1131 = vmatpush2.bf16.msra.mxu0 %v820
  %1132 = vmatprep.mubr.bf16.mxu0 %v493
  %1133 = vmatmul.mubr.bf16.gmra.mxu0 %v492
  %v1134 = vpop.f32.mrf.mxu0
  %v1135 = vadd.f32 %v958, %v1134
  %v1136 = vpop.f32.mrf.mxu0
  %v1137 = vpop.f32.mrf.mxu0
  %v1138 = vadd.f32 %v961, %v1137
  %v1139 = vpop.f32.mrf.mxu0
  %1140 = vmatprep.mubr.bf16.mxu0 %v498
  %1141 = vmatmul.mubr.bf16.gmra.mxu0 %v497
  %v1142 = vpop.f32.mrf.mxu0
  %v1143 = vadd.f32 %v966, %v1142
  %v1144 = vpop.f32.mrf.mxu0
  %v1145 = vpop.f32.mrf.mxu0
  %v1146 = vadd.f32 %v969, %v1145
  %v1147 = vpop.f32.mrf.mxu0
  %1148 = vmatprep.mubr.bf16.mxu0 %v503
  %1149 = vmatmul.mubr.bf16.gmra.mxu0 %v502
  %v1150 = vpop.f32.mrf.mxu0
  %v1151 = vadd.f32 %v974, %v1150
  %v1152 = vpop.f32.mrf.mxu0
  %v1153 = vpop.f32.mrf.mxu0
  %v1154 = vadd.f32 %v977, %v1153
  %v1155 = vpop.f32.mrf.mxu0
  %1156 = vmatprep.mubr.bf16.mxu0 %v508
  %1157 = vmatmul.mubr.bf16.gmra.mxu0 %v507
  %v1158 = vpop.f32.mrf.mxu0
  %v1159 = vadd.f32 %v982, %v1158
  %v1160 = vpop.f32.mrf.mxu0
  %v1161 = vpop.f32.mrf.mxu0
  %v1162 = vadd.f32 %v985, %v1161
  %v1163 = vpop.f32.mrf.mxu0
  %1164 = vmatprep.mubr.bf16.mxu0 %v513
  %1165 = vmatmul.mubr.bf16.gmra.mxu0 %v512
  %v1166 = vpop.f32.mrf.mxu0
  %v1167 = vadd.f32 %v990, %v1166
  %v1168 = vpop.f32.mrf.mxu0
  %v1169 = vpop.f32.mrf.mxu0
  %v1170 = vadd.f32 %v993, %v1169
  %v1171 = vpop.f32.mrf.mxu0
  %1172 = vmatprep.mubr.bf16.mxu0 %v518
  %1173 = vmatmul.mubr.bf16.gmra.mxu0 %v517
  %v1174 = vpop.f32.mrf.mxu0
  %v1175 = vadd.f32 %v998, %v1174
  %v1176 = vpop.f32.mrf.mxu0
  %v1177 = vpop.f32.mrf.mxu0
  %v1178 = vadd.f32 %v1001, %v1177
  %v1179 = vpop.f32.mrf.mxu0
  %1180 = vmatprep.mubr.bf16.mxu0 %v523
  %1181 = vmatmul.mubr.bf16.gmra.mxu0 %v522
  %v1182 = vpop.f32.mrf.mxu0
  %v1183 = vadd.f32 %v1006, %v1182
  %v1184 = vpop.f32.mrf.mxu0
  %v1185 = vpop.f32.mrf.mxu0
  %v1186 = vadd.f32 %v1009, %v1185
  %v1187 = vpop.f32.mrf.mxu0
  %1188 = vmatprep.mubr.bf16.mxu0 %v528
  %1189 = vmatmul.mubr.bf16.gmra.mxu0 %v527
  %v1190 = vpop.f32.mrf.mxu0
  %v1191 = vadd.f32 %v1014, %v1190
  %v1192 = vpop.f32.mrf.mxu0
  %v1193 = vpop.f32.mrf.mxu0
  %v1194 = vadd.f32 %v1017, %v1193
  %v1195 = vpop.f32.mrf.mxu0
  %1196 = vmatprep.mubr.bf16.mxu0 %v533
  %1197 = vmatmul.mubr.bf16.gmra.mxu0 %v532
  %v1198 = vpop.f32.mrf.mxu0
  %v1199 = vadd.f32 %v1022, %v1198
  %v1200 = vpop.f32.mrf.mxu0
  %v1201 = vpop.f32.mrf.mxu0
  %v1202 = vadd.f32 %v1025, %v1201
  %v1203 = vpop.f32.mrf.mxu0
  %1204 = vmatprep.mubr.bf16.mxu0 %v538
  %1205 = vmatmul.mubr.bf16.gmra.mxu0 %v537
  %v1206 = vpop.f32.mrf.mxu0
  %v1207 = vadd.f32 %v1030, %v1206
  %v1208 = vpop.f32.mrf.mxu0
  %v1209 = vpop.f32.mrf.mxu0
  %v1210 = vadd.f32 %v1033, %v1209
  %v1211 = vpop.f32.mrf.mxu0
  %1212 = vmatprep.mubr.bf16.mxu0 %v543
  %1213 = vmatmul.mubr.bf16.gmra.mxu0 %v542
  %v1214 = vpop.f32.mrf.mxu0
  %v1215 = vadd.f32 %v1038, %v1214
  %v1216 = vpop.f32.mrf.mxu0
  %v1217 = vpop.f32.mrf.mxu0
  %v1218 = vadd.f32 %v1041, %v1217
  %v1219 = vpop.f32.mrf.mxu0
  %1220 = vmatprep.mubr.bf16.mxu0 %v548
  %1221 = vmatmul.mubr.bf16.gmra.mxu0 %v547
  %v1222 = vpop.f32.mrf.mxu0
  %v1223 = vadd.f32 %v1046, %v1222
  %v1224 = vpop.f32.mrf.mxu0
  %v1225 = vpop.f32.mrf.mxu0
  %v1226 = vadd.f32 %v1049, %v1225
  %v1227 = vpop.f32.mrf.mxu0
  %1228 = vmatprep.mubr.bf16.mxu0 %v553
  %1229 = vmatmul.mubr.bf16.gmra.mxu0 %v552
  %v1230 = vpop.f32.mrf.mxu0
  %v1231 = vadd.f32 %v1054, %v1230
  %v1232 = vpop.f32.mrf.mxu0
  %v1233 = vpop.f32.mrf.mxu0
  %v1234 = vadd.f32 %v1057, %v1233
  %v1235 = vpop.f32.mrf.mxu0
  %1236 = vmatprep.mubr.bf16.mxu0 %v558
  %1237 = vmatmul.mubr.bf16.gmra.mxu0 %v557
  %v1238 = vpop.f32.mrf.mxu0
  %v1239 = vadd.f32 %v1062, %v1238
  %v1240 = vpop.f32.mrf.mxu0
  %v1241 = vpop.f32.mrf.mxu0
  %v1242 = vadd.f32 %v1065, %v1241
  %v1243 = vpop.f32.mrf.mxu0
  %1244 = vmatprep.mubr.bf16.mxu0 %v563
  %1245 = vmatmul.mubr.bf16.gmra.mxu0 %v562
  %v1246 = vpop.f32.mrf.mxu0
  %v1247 = vadd.f32 %v1070, %v1246
  %v1248 = vpop.f32.mrf.mxu0
  %v1249 = vpop.f32.mrf.mxu0
  %v1250 = vadd.f32 %v1073, %v1249
  %v1251 = vpop.f32.mrf.mxu0
  %1252 = vmatprep.mubr.bf16.mxu0 %v568
  %1253 = vmatmul.mubr.bf16.gmra.mxu0 %v567
  %v1254 = vpop.f32.mrf.mxu0
  %v1255 = vadd.f32 %v1078, %v1254
  %v1256 = vpop.f32.mrf.mxu0
  %v1257 = vpop.f32.mrf.mxu0
  %v1258 = vadd.f32 %v1081, %v1257
  %v1259 = vpop.f32.mrf.mxu0
  %1260 = vmatprep.mubr.bf16.mxu0 %v573
  %1261 = vmatmul.mubr.bf16.gmra.mxu0 %v572
  %v1262 = vpop.f32.mrf.mxu0
  %v1263 = vadd.f32 %v1086, %v1262
  %v1264 = vpop.f32.mrf.mxu0
  %v1265 = vpop.f32.mrf.mxu0
  %v1266 = vadd.f32 %v1089, %v1265
  %v1267 = vpop.f32.mrf.mxu0
  %1268 = vmatprep.mubr.bf16.mxu0 %v578
  %1269 = vmatmul.mubr.bf16.gmra.mxu0 %v577
  %v1270 = vpop.f32.mrf.mxu0
  %v1271 = vadd.f32 %v1094, %v1270
  %v1272 = vpop.f32.mrf.mxu0
  %v1273 = vpop.f32.mrf.mxu0
  %v1274 = vadd.f32 %v1097, %v1273
  %v1275 = vpop.f32.mrf.mxu0
  %1276 = vdwg.mxu0
  %1277 = vmatprep.subr.bf16.mxu0 0
  %1278 = vmatpush1.bf16.msra.mxu0 0
  %1279 = vmatprep.subr.bf16.mxu0 0
  %1280 = vmatpush1.bf16.msra.mxu0 0
  %1281 = vmatprep.subr.bf16.mxu0 0
  %1282 = vmatpush1.bf16.msra.mxu0 0
  %1283 = vmatprep.subr.bf16.mxu0 0
  %1284 = vmatpush1.bf16.msra.mxu0 0
  %1285 = vmatprep.subr.bf16.mxu0 0
  %1286 = vmatpush1.bf16.msra.mxu0 %v831
  %1287 = vmatprep.subr.bf16.mxu0 0
  %1288 = vmatpush1.bf16.msra.mxu0 %v830
  %1289 = vmatprep.subr.bf16.mxu0 0
  %1290 = vmatpush1.bf16.msra.mxu0 %v829
  %1291 = vmatprep.subr.bf16.mxu0 0
  %1292 = vmatpush1.bf16.msra.mxu0 %v828
  %1293 = vmatprep.subr.bf16.mxu0 0
  %1294 = vmatpush2.bf16.msra.mxu0 0
  %1295 = vmatprep.subr.bf16.mxu0 0
  %1296 = vmatpush2.bf16.msra.mxu0 0
  %1297 = vmatprep.subr.bf16.mxu0 0
  %1298 = vmatpush2.bf16.msra.mxu0 0
  %1299 = vmatprep.subr.bf16.mxu0 0
  %1300 = vmatpush2.bf16.msra.mxu0 0
  %1301 = vmatprep.subr.bf16.mxu0 0
  %1302 = vmatpush2.bf16.msra.mxu0 0
  %1303 = vmatprep.subr.bf16.mxu0 0
  %1304 = vmatpush2.bf16.msra.mxu0 0
  %1305 = vmatprep.subr.bf16.mxu0 0
  %1306 = vmatpush2.bf16.msra.mxu0 0
  %1307 = vmatprep.subr.bf16.mxu0 0
  %1308 = vmatpush2.bf16.msra.mxu0 0
  %1309 = vmatprep.mubr.bf16.mxu0 0
  %1310 = vmatmul.mubr.bf16.gmra.mxu0 %v870
  %v1311 = vpop.f32.mrf.mxu0
  %v1312 = vadd.f32 %v1135, %v1311
  %v1313 = vpop.f32.mrf.mxu0
  %v1314 = vpop.f32.mrf.mxu0
  %v1315 = vadd.f32 %v1138, %v1314
  %v1316 = vpop.f32.mrf.mxu0
  %1317 = vmatprep.mubr.bf16.mxu0 0
  %1318 = vmatmul.mubr.bf16.gmra.mxu0 %v873
  %v1319 = vpop.f32.mrf.mxu0
  %v1320 = vadd.f32 %v1143, %v1319
  %v1321 = vpop.f32.mrf.mxu0
  %v1322 = vpop.f32.mrf.mxu0
  %v1323 = vadd.f32 %v1146, %v1322
  %v1324 = vpop.f32.mrf.mxu0
  %1325 = vmatprep.mubr.bf16.mxu0 0
  %1326 = vmatmul.mubr.bf16.gmra.mxu0 %v876
  %v1327 = vpop.f32.mrf.mxu0
  %v1328 = vadd.f32 %v1151, %v1327
  %v1329 = vpop.f32.mrf.mxu0
  %v1330 = vpop.f32.mrf.mxu0
  %v1331 = vadd.f32 %v1154, %v1330
  %v1332 = vpop.f32.mrf.mxu0
  %1333 = vmatprep.mubr.bf16.mxu0 0
  %1334 = vmatmul.mubr.bf16.gmra.mxu0 %v879
  %v1335 = vpop.f32.mrf.mxu0
  %v1336 = vadd.f32 %v1159, %v1335
  %v1337 = vpop.f32.mrf.mxu0
  %v1338 = vpop.f32.mrf.mxu0
  %v1339 = vadd.f32 %v1162, %v1338
  %v1340 = vpop.f32.mrf.mxu0
  %1341 = vmatprep.mubr.bf16.mxu0 0
  %1342 = vmatmul.mubr.bf16.gmra.mxu0 %v882
  %v1343 = vpop.f32.mrf.mxu0
  %v1344 = vadd.f32 %v1167, %v1343
  %v1345 = vpop.f32.mrf.mxu0
  %v1346 = vpop.f32.mrf.mxu0
  %v1347 = vadd.f32 %v1170, %v1346
  %v1348 = vpop.f32.mrf.mxu0
  %1349 = vmatprep.mubr.bf16.mxu0 0
  %1350 = vmatmul.mubr.bf16.gmra.mxu0 %v885
  %v1351 = vpop.f32.mrf.mxu0
  %v1352 = vadd.f32 %v1175, %v1351
  %v1353 = vpop.f32.mrf.mxu0
  %v1354 = vpop.f32.mrf.mxu0
  %v1355 = vadd.f32 %v1178, %v1354
  %v1356 = vpop.f32.mrf.mxu0
  %1357 = vmatprep.mubr.bf16.mxu0 0
  %1358 = vmatmul.mubr.bf16.gmra.mxu0 %v888
  %v1359 = vpop.f32.mrf.mxu0
  %v1360 = vadd.f32 %v1183, %v1359
  %v1361 = vpop.f32.mrf.mxu0
  %v1362 = vpop.f32.mrf.mxu0
  %v1363 = vadd.f32 %v1186, %v1362
  %v1364 = vpop.f32.mrf.mxu0
  %1365 = vmatprep.mubr.bf16.mxu0 0
  %1366 = vmatmul.mubr.bf16.gmra.mxu0 %v891
  %v1367 = vpop.f32.mrf.mxu0
  %v1368 = vadd.f32 %v1191, %v1367
  %v1369 = vpop.f32.mrf.mxu0
  %v1370 = vpop.f32.mrf.mxu0
  %v1371 = vadd.f32 %v1194, %v1370
  %v1372 = vpop.f32.mrf.mxu0
  %1373 = vmatprep.mubr.bf16.mxu0 0
  %1374 = vmatmul.mubr.bf16.gmra.mxu0 %v894
  %v1375 = vpop.f32.mrf.mxu0
  %v1376 = vadd.f32 %v1199, %v1375
  %v1377 = vpop.f32.mrf.mxu0
  %v1378 = vpop.f32.mrf.mxu0
  %v1379 = vadd.f32 %v1202, %v1378
  %v1380 = vpop.f32.mrf.mxu0
  %1381 = vmatprep.mubr.bf16.mxu0 0
  %1382 = vmatmul.mubr.bf16.gmra.mxu0 %v897
  %v1383 = vpop.f32.mrf.mxu0
  %v1384 = vadd.f32 %v1207, %v1383
  %v1385 = vpop.f32.mrf.mxu0
  %v1386 = vpop.f32.mrf.mxu0
  %v1387 = vadd.f32 %v1210, %v1386
  %v1388 = vpop.f32.mrf.mxu0
  %1389 = vmatprep.mubr.bf16.mxu0 0
  %1390 = vmatmul.mubr.bf16.gmra.mxu0 %v900
  %v1391 = vpop.f32.mrf.mxu0
  %v1392 = vadd.f32 %v1215, %v1391
  %v1393 = vpop.f32.mrf.mxu0
  %v1394 = vpop.f32.mrf.mxu0
  %v1395 = vadd.f32 %v1218, %v1394
  %v1396 = vpop.f32.mrf.mxu0
  %1397 = vmatprep.mubr.bf16.mxu0 0
  %1398 = vmatmul.mubr.bf16.gmra.mxu0 %v903
  %v1399 = vpop.f32.mrf.mxu0
  %v1400 = vadd.f32 %v1223, %v1399
  %v1401 = vpop.f32.mrf.mxu0
  %v1402 = vpop.f32.mrf.mxu0
  %v1403 = vadd.f32 %v1226, %v1402
  %v1404 = vpop.f32.mrf.mxu0
  %1405 = vmatprep.mubr.bf16.mxu0 0
  %1406 = vmatmul.mubr.bf16.gmra.mxu0 %v906
  %v1407 = vpop.f32.mrf.mxu0
  %v1408 = vadd.f32 %v1231, %v1407
  %v1409 = vpop.f32.mrf.mxu0
  %v1410 = vpop.f32.mrf.mxu0
  %v1411 = vadd.f32 %v1234, %v1410
  %v1412 = vpop.f32.mrf.mxu0
  %1413 = vmatprep.mubr.bf16.mxu0 0
  %1414 = vmatmul.mubr.bf16.gmra.mxu0 %v909
  %v1415 = vpop.f32.mrf.mxu0
  %v1416 = vadd.f32 %v1239, %v1415
  %v1417 = vpop.f32.mrf.mxu0
  %v1418 = vpop.f32.mrf.mxu0
  %v1419 = vadd.f32 %v1242, %v1418
  %v1420 = vpop.f32.mrf.mxu0
  %1421 = vmatprep.mubr.bf16.mxu0 0
  %1422 = vmatmul.mubr.bf16.gmra.mxu0 %v912
  %v1423 = vpop.f32.mrf.mxu0
  %v1424 = vadd.f32 %v1247, %v1423
  %v1425 = vpop.f32.mrf.mxu0
  %v1426 = vpop.f32.mrf.mxu0
  %v1427 = vadd.f32 %v1250, %v1426
  %v1428 = vpop.f32.mrf.mxu0
  %1429 = vmatprep.mubr.bf16.mxu0 0
  %1430 = vmatmul.mubr.bf16.gmra.mxu0 %v915
  %v1431 = vpop.f32.mrf.mxu0
  %v1432 = vadd.f32 %v1255, %v1431
  %v1433 = vpop.f32.mrf.mxu0
  %v1434 = vpop.f32.mrf.mxu0
  %v1435 = vadd.f32 %v1258, %v1434
  %v1436 = vpop.f32.mrf.mxu0
  %1437 = vmatprep.mubr.bf16.mxu0 0
  %1438 = vmatmul.mubr.bf16.gmra.mxu0 %v918
  %v1439 = vpop.f32.mrf.mxu0
  %v1440 = vadd.f32 %v1263, %v1439
  %v1441 = vpop.f32.mrf.mxu0
  %v1442 = vpop.f32.mrf.mxu0
  %v1443 = vadd.f32 %v1266, %v1442
  %v1444 = vpop.f32.mrf.mxu0
  %1445 = vmatprep.mubr.bf16.mxu0 0
  %1446 = vmatmul.mubr.bf16.gmra.mxu0 %v921
  %v1447 = vpop.f32.mrf.mxu0
  %v1448 = vadd.f32 %v1271, %v1447
  %v1449 = vpop.f32.mrf.mxu0
  %v1450 = vpop.f32.mrf.mxu0
  %v1451 = vadd.f32 %v1274, %v1450
  %v1452 = vpop.f32.mrf.mxu0
  %1453 = vdwg.mxu0
  %v1454 = vmax.f32 %v1312, 0.0
  %v1455 = vmax.f32 %v1315, 0.0
  %v1456 = vmax.f32 %v1320, 0.0
  %v1457 = vmax.f32 %v1323, 0.0
  %v1458 = vmax.f32 %v1328, 0.0
  %v1459 = vmax.f32 %v1331, 0.0
  %v1460 = vmax.f32 %v1336, 0.0
  %v1461 = vmax.f32 %v1339, 0.0
  %v1462 = vmax.f32 %v1344, 0.0
  %v1463 = vmax.f32 %v1347, 0.0
  %v1464 = vmax.f32 %v1352, 0.0
  %v1465 = vmax.f32 %v1355, 0.0
  %v1466 = vmax.f32 %v1360, 0.0
  %v1467 = vmax.f32 %v1363, 0.0
  %v1468 = vmax.f32 %v1368, 0.0
  %v1469 = vmax.f32 %v1371, 0.0
  %v1470 = vmax.f32 %v1376, 0.0
  %v1471 = vmax.f32 %v1379, 0.0
  %v1472 = vmax.f32 %v1384, 0.0
  %v1473 = vmax.f32 %v1387, 0.0
  %v1474 = vmax.f32 %v1392, 0.0
  %v1475 = vmax.f32 %v1395, 0.0
  %v1476 = vmax.f32 %v1400, 0.0
  %v1477 = vmax.f32 %v1403, 0.0
  %v1478 = vmax.f32 %v1408, 0.0
  %v1479 = vmax.f32 %v1411, 0.0
  %v1480 = vmax.f32 %v1416, 0.0
  %v1481 = vmax.f32 %v1419, 0.0
  %v1482 = vmax.f32 %v1424, 0.0
  %v1483 = vmax.f32 %v1427, 0.0
  %v1484 = vmax.f32 %v1432, 0.0
  %v1485 = vmax.f32 %v1435, 0.0
  %v1486 = vmax.f32 %v1440, 0.0
  %v1487 = vmax.f32 %v1443, 0.0
  %v1488 = vmax.f32 %v1448, 0.0
  %v1489 = vmax.f32 %v1451, 0.0
  %v1490 = vpack.c.bf16 %v1455, %v1454
  %v1491 = vpack.c.bf16 %v1457, %v1456
  %v1492 = vpack.c.bf16 %v1459, %v1458
  %v1493 = vpack.c.bf16 %v1461, %v1460
  %v1494 = vpack.c.bf16 %v1463, %v1462
  %v1495 = vpack.c.bf16 %v1465, %v1464
  %v1496 = vpack.c.bf16 %v1467, %v1466
  %v1497 = vpack.c.bf16 %v1469, %v1468
  %v1498 = vpack.c.bf16 %v1471, %v1470
  %v1499 = vpack.c.bf16 %v1473, %v1472
  %v1500 = vpack.c.bf16 %v1475, %v1474
  %v1501 = vpack.c.bf16 %v1477, %v1476
  %v1502 = vpack.c.bf16 %v1479, %v1478
  %v1503 = vpack.c.bf16 %v1481, %v1480
  %v1504 = vpack.c.bf16 %v1483, %v1482
  %v1505 = vpack.c.bf16 %v1485, %v1484
  %v1506 = vpack.c.bf16 %v1487, %v1486
  %v1507 = vpack.c.bf16 %v1489, %v1488
  %v1526 = vunpack.c.l.b16 %v1490
  %v1527 = vunpack.c.h.b16 %v1490
  %v1528 = vunpack.c.l.b16 %v1491
  %v1529 = vunpack.c.h.b16 %v1491
  %v1530 = vunpack.c.l.b16 %v1492
  %v1531 = vunpack.c.h.b16 %v1492
  %v1532 = vunpack.c.l.b16 %v1493
  %v1533 = vunpack.c.h.b16 %v1493
  %v1534 = vunpack.c.l.b16 %v1494
  %v1535 = vunpack.c.h.b16 %v1494
  %v1536 = vunpack.c.l.b16 %v1495
  %v1537 = vunpack.c.h.b16 %v1495
  %v1538 = vunpack.c.l.b16 %v1496
  %v1539 = vunpack.c.h.b16 %v1496
  %v1540 = vunpack.c.l.b16 %v1497
  %v1541 = vunpack.c.h.b16 %v1497
  %v1542 = vunpack.c.l.b16 %v1498
  %v1543 = vunpack.c.h.b16 %v1498
  %v1544 = vunpack.c.l.b16 %v1499
  %v1545 = vunpack.c.h.b16 %v1499
  %v1546 = vunpack.c.l.b16 %v1500
  %v1547 = vunpack.c.h.b16 %v1500
  %v1548 = vunpack.c.l.b16 %v1501
  %v1549 = vunpack.c.h.b16 %v1501
  %v1550 = vunpack.c.l.b16 %v1502
  %v1551 = vunpack.c.h.b16 %v1502
  %v1552 = vunpack.c.l.b16 %v1503
  %v1553 = vunpack.c.h.b16 %v1503
  %v1554 = vunpack.c.l.b16 %v1504
  %v1555 = vunpack.c.h.b16 %v1504
  %v1556 = vunpack.c.l.b16 %v1505
  %v1557 = vunpack.c.h.b16 %v1505
  %v1558 = vunpack.c.l.b16 %v1506
  %v1559 = vunpack.c.h.b16 %v1506
  %v1560 = vunpack.c.l.b16 %v1507
  %v1561 = vunpack.c.h.b16 %v1507
  %v1562 = vpack.c.b16 %v1526, %v1526
  %v1563 = vpack.c.b16 %v1527, %v1527
  %v1564 = vpack.c.b16 %v1528, %v1528
  %v1565 = vpack.c.b16 %v1529, %v1529
  %v1566 = vpack.c.b16 %v1530, %v1530
  %v1567 = vpack.c.b16 %v1531, %v1531
  %v1568 = vpack.c.b16 %v1532, %v1532
  %v1569 = vpack.c.b16 %v1533, %v1533
  %v1570 = vpack.c.b16 %v1534, %v1534
  %v1571 = vpack.c.b16 %v1535, %v1535
  %v1572 = vpack.c.b16 %v1536, %v1536
  %v1573 = vpack.c.b16 %v1537, %v1537
  %v1574 = vpack.c.b16 %v1538, %v1538
  %v1575 = vpack.c.b16 %v1539, %v1539
  %v1576 = vpack.c.b16 %v1540, %v1540
  %v1577 = vpack.c.b16 %v1541, %v1541
  %v1578 = vpack.c.b16 %v1542, %v1542
  %v1579 = vpack.c.b16 %v1543, %v1543
  %v1580 = vpack.c.b16 %v1544, %v1544
  %v1581 = vpack.c.b16 %v1545, %v1545
  %v1582 = vpack.c.b16 %v1546, %v1546
  %v1583 = vpack.c.b16 %v1547, %v1547
  %v1584 = vpack.c.b16 %v1548, %v1548
  %v1585 = vpack.c.b16 %v1549, %v1549
  %v1586 = vpack.c.b16 %v1550, %v1550
  %v1587 = vpack.c.b16 %v1551, %v1551
  %v1588 = vpack.c.b16 %v1552, %v1552
  %v1589 = vpack.c.b16 %v1553, %v1553
  %v1590 = vpack.c.b16 %v1554, %v1554
  %v1591 = vpack.c.b16 %v1555, %v1555
  %v1592 = vpack.c.b16 %v1556, %v1556
  %v1593 = vpack.c.b16 %v1557, %v1557
  %v1594 = vpack.c.b16 %v1558, %v1558
  %v1595 = vpack.c.b16 %v1559, %v1559
  %v1596 = vpack.c.b16 %v1560, %v1560
  %v1597 = vpack.c.b16 %v1561, %v1561
  %vm1634 = vcmask 519168
  %1635 = vst.msk [vmem:[%s3] sm:$0xf] %vm1634, %v1562
  %1636 = vst.msk [vmem:[%s3 + $0x4] sm:$0xf] %vm1634, %v1563
  %1637 = vst.msk [vmem:[%s3 + $0x8] sm:$0xf] %vm1634, %v1564
  %1638 = vst.msk [vmem:[%s3 + $0xc] sm:$0xf] %vm1634, %v1565
  %1639 = vst.msk [vmem:[%s3 + $0x10] sm:$0xf] %vm1634, %v1566
  %1640 = vst.msk [vmem:[%s3 + $0x14] sm:$0xf] %vm1634, %v1567
  %1641 = vst.msk [vmem:[%s3 + $0x18] sm:$0xf] %vm1634, %v1568
  %1642 = vst.msk [vmem:[%s3 + $0x1c] sm:$0xf] %vm1634, %v1569
  %1643 = vst.msk [vmem:[%s3 + $0x20] sm:$0xf] %vm1634, %v1570
  %1644 = vst.msk [vmem:[%s3 + $0x24] sm:$0xf] %vm1634, %v1571
  %1645 = vst.msk [vmem:[%s3 + $0x28] sm:$0xf] %vm1634, %v1572
  %1646 = vst.msk [vmem:[%s3 + $0x2c] sm:$0xf] %vm1634, %v1573
  %1647 = vst.msk [vmem:[%s3 + $0x30] sm:$0xf] %vm1634, %v1574
  %1648 = vst.msk [vmem:[%s3 + $0x34] sm:$0xf] %vm1634, %v1575
  %1649 = vst.msk [vmem:[%s3 + $0x38] sm:$0xf] %vm1634, %v1576
  %1650 = vst.msk [vmem:[%s3 + $0x3c] sm:$0xf] %vm1634, %v1577
  %1651 = vst.msk [vmem:[%s3 + $0x40] sm:$0xf] %vm1634, %v1578
  %1652 = vst.msk [vmem:[%s3 + $0x44] sm:$0xf] %vm1634, %v1579
  %1653 = vst.msk [vmem:[%s3 + $0x48] sm:$0xf] %vm1634, %v1580
  %1654 = vst.msk [vmem:[%s3 + $0x4c] sm:$0xf] %vm1634, %v1581
  %1655 = vst.msk [vmem:[%s3 + $0x50] sm:$0xf] %vm1634, %v1582
  %1656 = vst.msk [vmem:[%s3 + $0x54] sm:$0xf] %vm1634, %v1583
  %1657 = vst.msk [vmem:[%s3 + $0x58] sm:$0xf] %vm1634, %v1584
  %1658 = vst.msk [vmem:[%s3 + $0x5c] sm:$0xf] %vm1634, %v1585
  %1659 = vst.msk [vmem:[%s3 + $0x60] sm:$0xf] %vm1634, %v1586
  %1660 = vst.msk [vmem:[%s3 + $0x64] sm:$0xf] %vm1634, %v1587
  %1661 = vst.msk [vmem:[%s3 + $0x68] sm:$0xf] %vm1634, %v1588
  %1662 = vst.msk [vmem:[%s3 + $0x6c] sm:$0xf] %vm1634, %v1589
  %1663 = vst.msk [vmem:[%s3 + $0x70] sm:$0xf] %vm1634, %v1590
  %1664 = vst.msk [vmem:[%s3 + $0x74] sm:$0xf] %vm1634, %v1591
  %1665 = vst.msk [vmem:[%s3 + $0x78] sm:$0xf] %vm1634, %v1592
  %1666 = vst.msk [vmem:[%s3 + $0x7c] sm:$0xf] %vm1634, %v1593
  %1667 = vst.msk [vmem:[%s3 + $0x80] sm:$0xf] %vm1634, %v1594
  %1668 = vst.msk [vmem:[%s3 + $0x84] sm:$0xf] %vm1634, %v1595
  %1669 = vst.msk [vmem:[%s3 + $0x88] sm:$0xf] %vm1634, %v1596
  %1670 = vst.msk [vmem:[%s3 + $0x8c] sm:$0xf] %vm1634, %v1597
  // Predicated region
  $region14: #{_lambda_.6} parent=0 // pred_check
    _
  $region15: #{_lambda_.6} parent=0 // pred_check_branch
    %1672 = sbr.rel (0) target = $region17
  $region16: #{_lambda_.6} parent=0 // pred_region
    _
  $region17: #{_lambda_.6} parent=0 // pred_fallthru
    _
  // Predicated region
  $region18: #{_lambda_.6} parent=0 // pred_check
    _
  $region19: #{_lambda_.6} parent=0 // pred_check_branch
    %1674 = sbr.rel (0) target = $region21
  $region20: #{_lambda_.6} parent=0 // pred_region
    _
  $region21: #{_lambda_.6} parent=0 // pred_fallthru
    _

// kernel: _lambda_.7
$region0: #{_lambda_.7}
  #allocation0 [shape = 'u32[]', space=smem, size = 0x4, offset = 0x4, fixed_abs, tag = 'smem constant byte address 0x4 - core index']
  #allocation1 [shape = 'u32[144,128]{1,0:T(1,128)}', space=vmem, size = 0x12000, scoped, tag = 'internal scratch']
  #allocation2 [shape = 'f32[2,512]{1,0:T(2,128)}', space=vmem, size = 0x1000, scoped, tag = 'scratch operand']
  %s0 = inlined_call_operand.vmem [shape: bf16[2,9216], index: 0, kind: input, shape index: {}]
  %s1 = inlined_call_operand.vmem [shape: bf16[9216,512], index: 1, kind: input, shape index: {}]
  %s2 = inlined_call_operand.vmem [shape: f32[1,512], index: 2, kind: input, shape index: {}]
  %s3 = inlined_call_operand.vmem [shape: bf16[512,128], index: 3, kind: input, shape index: {}]
  %s4 = inlined_call_operand.vmem [shape: f32[1,128], index: 4, kind: input, shape index: {}]
  %s5 = inlined_call_operand.vmem [shape: f32[2,128], index: 5, kind: output, shape index: {}]
  %s6 = sld [smem:[#allocation0]]
  $region61: #{_lambda_.7} parent=0
    _
  %s8 = ssub.s32 1, %s6
  %s9 = scalar_select 0, %s8, %s6
  loop: start=0, step=1, limit=6
  $region2: #{_lambda_.7} parent=0 // loop_pre_header
    _
  $region3: #{_lambda_.7} parent=0 // loop_header
    %s11 = sphi 0, %s15
    %p12 = scmp.ge.s32.totalorder %s11, 6
    %s21 = sphi 0, %s23
    %s24 = sphi 0, %s21
    %s25 = sphi 0, %s24
    %s41 = sphi 0, %s25
    %s47 = sphi 0, %s49
    %s50 = sphi 0, %s47
    %s51 = sphi 0, %s50
    %s67 = sphi 0, %s51
    %s71 = sphi 0, %s71
    %s73 = sphi 0, %s71
    %s74 = sphi 0, %s73
    %s88 = sphi 0, %s74
    %s92 = sphi 0, %s92
    %s94 = sphi 0, %s92
    %s95 = sphi 0, %s94
    %s109 = sphi 0, %s95
    %s113 = sphi 0, %s113
    %s115 = sphi 0, %s113
    %s116 = sphi 0, %s115
    %s130 = sphi 0, %s116
    %s134 = sphi 0, %s134
    %s136 = sphi 0, %s134
    %s137 = sphi 0, %s136
    %s151 = sphi 0, %s137
  $region4: #{_lambda_.7} parent=0 // loop_header_branch
    %14 = sbr.rel (%p12) target = $region8
  $region5: #{_lambda_.7} parent=0 // loop_body
    %s16 = ssub.s32 %s11, 1
    %s17 = ssub.s32 %s11, 2
    %s18 = sadd.s32 %s11, 1
    %s19 = ssub.s32 %s11, %s18
    %p20 = scmp.eq.s32.totalorder %s19, 0
    %s22 = sadd.s32 %s21, 1
    %s23 = scalar_select %p20, %s21, %s22
    %p26 = pneg %p20
    %p27 = scmp.eq.s32.totalorder %s11, 3
    %p28 = por %p26, %p27
    %p29 = scmp.ne.s32.totalorder %s21, %s24
    %p30 = scmp.eq.s32.totalorder %s11, 0
    %p31 = por %p29, %p30
    %p32 = scmp.ne.s32.totalorder %s21, %s24
    %p33 = scmp.eq.s32.totalorder %s16, 3
    %p34 = por %p32, %p33
    %p35 = scmp.ne.s32.totalorder %s24, %s25
    %p36 = scmp.eq.s32.totalorder %s16, 0
    %p37 = por %p35, %p36
    %p38 = scmp.ne.s32.totalorder %s24, %s25
    %p39 = scmp.eq.s32.totalorder %s17, 3
    %p40 = por %p38, %p39
    %p42 = scmp.ne.s32.totalorder %s25, %s41
    %p43 = scmp.eq.s32.totalorder %s17, 0
    %p44 = por %p42, %p43
    %s45 = ssub.s32 %s11, %s18
    %p46 = scmp.eq.s32.totalorder %s45, 0
    %s48 = sadd.s32 %s47, 1
    %s49 = scalar_select %p46, %s47, %s48
    %p52 = pneg %p46
    %p53 = scmp.eq.s32.totalorder %s11, 3
    %p54 = por %p52, %p53
    %p55 = scmp.ne.s32.totalorder %s47, %s50
    %p56 = scmp.eq.s32.totalorder %s11, 0
    %p57 = por %p55, %p56
    %p58 = scmp.ne.s32.totalorder %s47, %s50
    %p59 = scmp.eq.s32.totalorder %s16, 3
    %p60 = por %p58, %p59
    %p61 = scmp.ne.s32.totalorder %s50, %s51
    %p62 = scmp.eq.s32.totalorder %s16, 0
    %p63 = por %p61, %p62
    %p64 = scmp.ne.s32.totalorder %s50, %s51
    %p65 = scmp.eq.s32.totalorder %s17, 3
    %p66 = por %p64, %p65
    %p68 = scmp.ne.s32.totalorder %s51, %s67
    %p69 = scmp.eq.s32.totalorder %s17, 0
    %p70 = por %p68, %p69
    %s72 = sadd.s32 %s71, 1
    %p75 = scmp.eq.s32.totalorder %s11, 3
    %p76 = scmp.ne.s32.totalorder %s71, %s73
    %p77 = scmp.eq.s32.totalorder %s11, 0
    %p78 = por %p76, %p77
    %p79 = scmp.ne.s32.totalorder %s71, %s73
    %p80 = scmp.eq.s32.totalorder %s16, 3
    %p81 = por %p79, %p80
    %p82 = scmp.ne.s32.totalorder %s73, %s74
    %p83 = scmp.eq.s32.totalorder %s16, 0
    %p84 = por %p82, %p83
    %p85 = scmp.ne.s32.totalorder %s73, %s74
    %p86 = scmp.eq.s32.totalorder %s17, 3
    %p87 = por %p85, %p86
    %p89 = scmp.ne.s32.totalorder %s74, %s88
    %p90 = scmp.eq.s32.totalorder %s17, 0
    %p91 = por %p89, %p90
    %s93 = sadd.s32 %s92, 1
    %p96 = scmp.eq.s32.totalorder %s11, 3
    %p97 = scmp.ne.s32.totalorder %s92, %s94
    %p98 = scmp.eq.s32.totalorder %s11, 0
    %p99 = por %p97, %p98
    %p100 = scmp.ne.s32.totalorder %s92, %s94
    %p101 = scmp.eq.s32.totalorder %s16, 3
    %p102 = por %p100, %p101
    %p103 = scmp.ne.s32.totalorder %s94, %s95
    %p104 = scmp.eq.s32.totalorder %s16, 0
    %p105 = por %p103, %p104
    %p106 = scmp.ne.s32.totalorder %s94, %s95
    %p107 = scmp.eq.s32.totalorder %s17, 3
    %p108 = por %p106, %p107
    %p110 = scmp.ne.s32.totalorder %s95, %s109
    %p111 = scmp.eq.s32.totalorder %s17, 0
    %p112 = por %p110, %p111
    %s114 = sadd.s32 %s113, 1
    %p117 = scmp.eq.s32.totalorder %s11, 3
    %p118 = scmp.ne.s32.totalorder %s113, %s115
    %p119 = scmp.eq.s32.totalorder %s11, 0
    %p120 = por %p118, %p119
    %p121 = scmp.ne.s32.totalorder %s113, %s115
    %p122 = scmp.eq.s32.totalorder %s16, 3
    %p123 = por %p121, %p122
    %p124 = scmp.ne.s32.totalorder %s115, %s116
    %p125 = scmp.eq.s32.totalorder %s16, 0
    %p126 = por %p124, %p125
    %p127 = scmp.ne.s32.totalorder %s115, %s116
    %p128 = scmp.eq.s32.totalorder %s17, 3
    %p129 = por %p127, %p128
    %p131 = scmp.ne.s32.totalorder %s116, %s130
    %p132 = scmp.eq.s32.totalorder %s17, 0
    %p133 = por %p131, %p132
    %s135 = sadd.s32 %s134, 1
    %p138 = scmp.eq.s32.totalorder %s11, 3
    %p139 = scmp.ne.s32.totalorder %s134, %s136
    %p140 = scmp.eq.s32.totalorder %s11, 0
    %p141 = por %p139, %p140
    %p142 = scmp.ne.s32.totalorder %s134, %s136
    %p143 = scmp.eq.s32.totalorder %s16, 3
    %p144 = por %p142, %p143
    %p145 = scmp.ne.s32.totalorder %s136, %s137
    %p146 = scmp.eq.s32.totalorder %s16, 0
    %p147 = por %p145, %p146
    %p148 = scmp.ne.s32.totalorder %s136, %s137
    %p149 = scmp.eq.s32.totalorder %s17, 3
    %p150 = por %p148, %p149
    %p152 = scmp.ne.s32.totalorder %s137, %s151
    %p153 = scmp.eq.s32.totalorder %s17, 0
    %p154 = por %p152, %p153
    %p155 = scmp.le.s32.totalorder 1, %s11
    %p156 = scmp.lt.s32.totalorder %s11, 5
    %p157 = pnand %p155, %p156
    %p158 = pneg %p157
    // Predicated region
    $region9: #{_lambda_.7} parent=5 // pred_check
      _
    $region10: #{_lambda_.7} parent=5 // pred_check_branch
      %160 = sbr.rel (%p157) target = $region12
    $region11: #{_lambda_.7} parent=5 // pred_region
      %s161 = ssub.s32 %s11, 1
      // Predicated region
      $region13: #{_lambda_.7} parent=11 // pred_check
        %p162 = pneg %p84
      $region14: #{_lambda_.7} parent=11 // pred_check_branch
        %164 = sbr.rel (%p162) target = $region16
      $region15: #{_lambda_.7} parent=11 // pred_region
        _
      $region16: #{_lambda_.7} parent=11 // pred_fallthru
        _
      // Predicated region
      $region17: #{_lambda_.7} parent=11 // pred_check
        %p165 = pneg %p105
      $region18: #{_lambda_.7} parent=11 // pred_check_branch
        %167 = sbr.rel (%p165) target = $region20
      $region19: #{_lambda_.7} parent=11 // pred_region
        _
      $region20: #{_lambda_.7} parent=11 // pred_fallthru
        _
      // Predicated region
      $region21: #{_lambda_.7} parent=11 // pred_check
        %p168 = pneg %p126
      $region22: #{_lambda_.7} parent=11 // pred_check_branch
        %170 = sbr.rel (%p168) target = $region24
      $region23: #{_lambda_.7} parent=11 // pred_region
        _
      $region24: #{_lambda_.7} parent=11 // pred_fallthru
        _
    $region12: #{_lambda_.7} parent=5 // pred_fallthru
      _
    %p171 = scmp.lt.s32.totalorder %s11, 4
    // Predicated region
    $region25: #{_lambda_.7} parent=5 // pred_check
      %p172 = pneg %p171
    $region26: #{_lambda_.7} parent=5 // pred_check_branch
      %174 = sbr.rel (%p172) target = $region28
    $region27: #{_lambda_.7} parent=5 // pred_region
      // Predicated region
      $region29: #{_lambda_.7} parent=27 // pred_check
        %p175 = pneg %p31
      $region30: #{_lambda_.7} parent=27 // pred_check_branch
        %177 = sbr.rel (%p175) target = $region32
      $region31: #{_lambda_.7} parent=27 // pred_region
        %s178 = smul.u32 18, %s11
        %p179 = scmp.lt.s32.totalorder %s178, 71
        %s180 = scalar_select %p179, %s178, 71
        %s181 = scalar_lea.vmem %s0, %s180
        %s182 = smul.u32 18, %s11
      $region32: #{_lambda_.7} parent=27 // pred_fallthru
        _
      // Predicated region
      $region33: #{_lambda_.7} parent=27 // pred_check
        %p183 = pneg %p57
      $region34: #{_lambda_.7} parent=27 // pred_check_branch
        %185 = sbr.rel (%p183) target = $region36
      $region35: #{_lambda_.7} parent=27 // pred_region
        %s186 = smul.u32 288, %s11
        %p187 = scmp.lt.s32.totalorder %s186, 1151
        %s188 = scalar_select %p187, %s186, 1151
        %s189 = smul.addr %s188, 4
        %s190 = smul.addr %s189, 4
        %s191 = scalar_lea.vmem %s1, %s190
        %s192 = smul.u32 288, %s11
      $region36: #{_lambda_.7} parent=27 // pred_fallthru
        _
    $region28: #{_lambda_.7} parent=5 // pred_fallthru
      _
    %p193 = scmp.le.s32.totalorder 1, %s11
    %p194 = scmp.lt.s32.totalorder %s11, 5
    %p195 = pnand %p193, %p194
    %p196 = pneg %p195
    // Predicated region
    $region37: #{_lambda_.7} parent=5 // pred_check
      _
    $region38: #{_lambda_.7} parent=5 // pred_check_branch
      %198 = sbr.rel (%p195) target = $region40
    $region39: #{_lambda_.7} parent=5 // pred_region
      %s199 = ssub.s32 %s11, 1
      %s200 = smul.u32 18, %s16
      %p201 = scmp.lt.s32.totalorder %s200, 71
      %s202 = scalar_select %p201, %s200, 71
      %s203 = scalar_lea.vmem %s0, %s202
      %p204 = pneg %p37
      %p205 = pneg %p34
      %s206 = smul.u32 288, %s16
      %p207 = scmp.lt.s32.totalorder %s206, 1151
      %s208 = scalar_select %p207, %s206, 1151
      %s209 = smul.addr %s208, 4
      %s210 = smul.addr %s209, 4
      %s211 = scalar_lea.vmem %s1, %s210
      %p212 = pneg %p63
      %p213 = pneg %p60
      %p214 = pneg %p84
      %p215 = pneg %p81
      %p216 = pneg %p105
      %p217 = pneg %p102
      %p218 = pneg %p126
      %p219 = pneg %p123
      %p220 = pneg %p147
      %p221 = pneg %p144
      %s222 = smul.u32 18, %s16
      %p223 = scmp.lt.s32.totalorder %s222, 71
      %s224 = scalar_select %p223, %s222, 71
      %s225 = scalar_lea.vmem %s0, %s224
      %s226 = smul.u32 18, %s16
      %s227 = smul.u32 288, %s16
      %p228 = scmp.lt.s32.totalorder %s227, 1151
      %s229 = scalar_select %p228, %s227, 1151
      %s230 = smul.addr %s229, 4
      %s231 = smul.addr %s230, 4
      %s232 = scalar_lea.vmem %s1, %s231
      %s233 = smul.u32 288, %s16
      %p235 = scmp.eq.s32.totalorder %s16, 0
      // Predicated region
      $region41: #{_lambda_.7} parent=39 // pred_check
        %p236 = pneg %p235
      $region42: #{_lambda_.7} parent=39 // pred_check_branch
        %238 = sbr.rel (%p236) target = $region44
      $region43: #{_lambda_.7} parent=39 // pred_region
        %239 = vst [vmem:[#allocation2] sm:$0xff] 0.0
      $region44: #{_lambda_.7} parent=39 // pred_fallthru
        _
      %v240 = vld [vmem:[#allocation2] sm:$0xff]
      %v241 = vld [vmem:[%s225] sm:$0xff]
      %v242 = vld [vmem:[%s225 + $0x8] sm:$0xff]
      %v243 = vld [vmem:[%s225 + $0x10] sm:$0x3]
      %v244 = vld [vmem:[%s232] sm:$0xff]
      %v245 = vld [vmem:[%s232 + $0x8] sm:$0xff]
      %v246 = vld [vmem:[%s232 + $0x10] sm:$0xff]
      %v247 = vld [vmem:[%s232 + $0x18] sm:$0xff]
      %v248 = vld [vmem:[%s232 + $0x20] sm:$0xff]
      %v249 = vld [vmem:[%s232 + $0x28] sm:$0xff]
      %v250 = vld [vmem:[%s232 + $0x30] sm:$0xff]
      %v251 = vld [vmem:[%s232 + $0x38] sm:$0xff]
      %v252 = vld [vmem:[%s232 + $0x40] sm:$0xff]
      %v253 = vld [vmem:[%s232 + $0x48] sm:$0xff]
      %v254 = vld [vmem:[%s232 + $0x50] sm:$0xff]
      %v255 = vld [vmem:[%s232 + $0x58] sm:$0xff]
      %v256 = vld [vmem:[%s232 + $0x60] sm:$0xff]
      %v257 = vld [vmem:[%s232 + $0x68] sm:$0xff]
      %v258 = vld [vmem:[%s232 + $0x70] sm:$0xff]
      %v259 = vld [vmem:[%s232 + $0x78] sm:$0xff]
      %v260 = vld [vmem:[%s232 + $0x80] sm:$0xff]
      %v261 = vld [vmem:[%s232 + $0x88] sm:$0xff]
      %v262 = vld [vmem:[%s232 + $0x90] sm:$0xff]
      %v263 = vld [vmem:[%s232 + $0x98] sm:$0xff]
      %v264 = vld [vmem:[%s232 + $0xa0] sm:$0xff]
      %v265 = vld [vmem:[%s232 + $0xa8] sm:$0xff]
      %v266 = vld [vmem:[%s232 + $0xb0] sm:$0xff]
      %v267 = vld [vmem:[%s232 + $0xb8] sm:$0xff]
      %v268 = vld [vmem:[%s232 + $0xc0] sm:$0xff]
      %v269 = vld [vmem:[%s232 + $0xc8] sm:$0xff]
      %v270 = vld [vmem:[%s232 + $0xd0] sm:$0xff]
      %v271 = vld [vmem:[%s232 + $0xd8] sm:$0xff]
      %v272 = vld [vmem:[%s232 + $0xe0] sm:$0xff]
      %v273 = vld [vmem:[%s232 + $0xe8] sm:$0xff]
      %v274 = vld [vmem:[%s232 + $0xf0] sm:$0xff]
      %v275 = vld [vmem:[%s232 + $0xf8] sm:$0xff]
      %v276 = vld [vmem:[%s232 + $0x100] sm:$0xff]
      %v277 = vld [vmem:[%s232 + $0x108] sm:$0xff]
      %v278 = vld [vmem:[%s232 + $0x110] sm:$0xff]
      %v279 = vld [vmem:[%s232 + $0x118] sm:$0xff]
      %v280 = vld [vmem:[%s232 + $0x120] sm:$0xff]
      %v281 = vld [vmem:[%s232 + $0x128] sm:$0xff]
      %v282 = vld [vmem:[%s232 + $0x130] sm:$0xff]
      %v283 = vld [vmem:[%s232 + $0x138] sm:$0xff]
      %v284 = vld [vmem:[%s232 + $0x140] sm:$0xff]
      %v285 = vld [vmem:[%s232 + $0x148] sm:$0xff]
      %v286 = vld [vmem:[%s232 + $0x150] sm:$0xff]
      %v287 = vld [vmem:[%s232 + $0x158] sm:$0xff]
      %v288 = vld [vmem:[%s232 + $0x160] sm:$0xff]
      %v289 = vld [vmem:[%s232 + $0x168] sm:$0xff]
      %v290 = vld [vmem:[%s232 + $0x170] sm:$0xff]
      %v291 = vld [vmem:[%s232 + $0x178] sm:$0xff]
      %v292 = vld [vmem:[%s232 + $0x180] sm:$0xff]
      %v293 = vld [vmem:[%s232 + $0x188] sm:$0xff]
      %v294 = vld [vmem:[%s232 + $0x190] sm:$0xff]
      %v295 = vld [vmem:[%s232 + $0x198] sm:$0xff]
      %v296 = vld [vmem:[%s232 + $0x1a0] sm:$0xff]
      %v297 = vld [vmem:[%s232 + $0x1a8] sm:$0xff]
      %v298 = vld [vmem:[%s232 + $0x1b0] sm:$0xff]
      %v299 = vld [vmem:[%s232 + $0x1b8] sm:$0xff]
      %v300 = vld [vmem:[%s232 + $0x1c0] sm:$0xff]
      %v301 = vld [vmem:[%s232 + $0x1c8] sm:$0xff]
      %v302 = vld [vmem:[%s232 + $0x1d0] sm:$0xff]
      %v303 = vld [vmem:[%s232 + $0x1d8] sm:$0xff]
      %v304 = vld [vmem:[%s232 + $0x1e0] sm:$0xff]
      %v305 = vld [vmem:[%s232 + $0x1e8] sm:$0xff]
      %v306 = vld [vmem:[%s232 + $0x1f0] sm:$0xff]
      %v307 = vld [vmem:[%s232 + $0x1f8] sm:$0xff]
      %v308 = vld [vmem:[%s232 + $0x200] sm:$0xff]
      %v309 = vld [vmem:[%s232 + $0x208] sm:$0xff]
      %v310 = vld [vmem:[%s232 + $0x210] sm:$0xff]
      %v311 = vld [vmem:[%s232 + $0x218] sm:$0xff]
      %v312 = vld [vmem:[%s232 + $0x220] sm:$0xff]
      %v313 = vld [vmem:[%s232 + $0x228] sm:$0xff]
      %v314 = vld [vmem:[%s232 + $0x230] sm:$0xff]
      %v315 = vld [vmem:[%s232 + $0x238] sm:$0xff]
      %v316 = vld [vmem:[%s232 + $0x240] sm:$0xff]
      %v317 = vld [vmem:[%s232 + $0x248] sm:$0xff]
      %v318 = vld [vmem:[%s232 + $0x250] sm:$0xff]
      %v319 = vld [vmem:[%s232 + $0x258] sm:$0xff]
      %v320 = vld [vmem:[%s232 + $0x260] sm:$0xff]
      %v321 = vld [vmem:[%s232 + $0x268] sm:$0xff]
      %v322 = vld [vmem:[%s232 + $0x270] sm:$0xff]
      %v323 = vld [vmem:[%s232 + $0x278] sm:$0xff]
      %v324 = vld [vmem:[%s232 + $0x280] sm:$0xff]
      %v325 = vld [vmem:[%s232 + $0x288] sm:$0xff]
      %v326 = vld [vmem:[%s232 + $0x290] sm:$0xff]
      %v327 = vld [vmem:[%s232 + $0x298] sm:$0xff]
      %v328 = vld [vmem:[%s232 + $0x2a0] sm:$0xff]
      %v329 = vld [vmem:[%s232 + $0x2a8] sm:$0xff]
      %v330 = vld [vmem:[%s232 + $0x2b0] sm:$0xff]
      %v331 = vld [vmem:[%s232 + $0x2b8] sm:$0xff]
      %v332 = vld [vmem:[%s232 + $0x2c0] sm:$0xff]
      %v333 = vld [vmem:[%s232 + $0x2c8] sm:$0xff]
      %v334 = vld [vmem:[%s232 + $0x2d0] sm:$0xff]
      %v335 = vld [vmem:[%s232 + $0x2d8] sm:$0xff]
      %v336 = vld [vmem:[%s232 + $0x2e0] sm:$0xff]
      %v337 = vld [vmem:[%s232 + $0x2e8] sm:$0xff]
      %v338 = vld [vmem:[%s232 + $0x2f0] sm:$0xff]
      %v339 = vld [vmem:[%s232 + $0x2f8] sm:$0xff]
      %v340 = vld [vmem:[%s232 + $0x300] sm:$0xff]
      %v341 = vld [vmem:[%s232 + $0x308] sm:$0xff]
      %v342 = vld [vmem:[%s232 + $0x310] sm:$0xff]
      %v343 = vld [vmem:[%s232 + $0x318] sm:$0xff]
      %v344 = vld [vmem:[%s232 + $0x320] sm:$0xff]
      %v345 = vld [vmem:[%s232 + $0x328] sm:$0xff]
      %v346 = vld [vmem:[%s232 + $0x330] sm:$0xff]
      %v347 = vld [vmem:[%s232 + $0x338] sm:$0xff]
      %v348 = vld [vmem:[%s232 + $0x340] sm:$0xff]
      %v349 = vld [vmem:[%s232 + $0x348] sm:$0xff]
      %v350 = vld [vmem:[%s232 + $0x350] sm:$0xff]
      %v351 = vld [vmem:[%s232 + $0x358] sm:$0xff]
      %v352 = vld [vmem:[%s232 + $0x360] sm:$0xff]
      %v353 = vld [vmem:[%s232 + $0x368] sm:$0xff]
      %v354 = vld [vmem:[%s232 + $0x370] sm:$0xff]
      %v355 = vld [vmem:[%s232 + $0x378] sm:$0xff]
      %v356 = vld [vmem:[%s232 + $0x380] sm:$0xff]
      %v357 = vld [vmem:[%s232 + $0x388] sm:$0xff]
      %v358 = vld [vmem:[%s232 + $0x390] sm:$0xff]
      %v359 = vld [vmem:[%s232 + $0x398] sm:$0xff]
      %v360 = vld [vmem:[%s232 + $0x3a0] sm:$0xff]
      %v361 = vld [vmem:[%s232 + $0x3a8] sm:$0xff]
      %v362 = vld [vmem:[%s232 + $0x3b0] sm:$0xff]
      %v363 = vld [vmem:[%s232 + $0x3b8] sm:$0xff]
      %v364 = vld [vmem:[%s232 + $0x3c0] sm:$0xff]
      %v365 = vld [vmem:[%s232 + $0x3c8] sm:$0xff]
      %v366 = vld [vmem:[%s232 + $0x3d0] sm:$0xff]
      %v367 = vld [vmem:[%s232 + $0x3d8] sm:$0xff]
      %v368 = vld [vmem:[%s232 + $0x3e0] sm:$0xff]
      %v369 = vld [vmem:[%s232 + $0x3e8] sm:$0xff]
      %v370 = vld [vmem:[%s232 + $0x3f0] sm:$0xff]
      %v371 = vld [vmem:[%s232 + $0x3f8] sm:$0xff]
      %v372 = vld [vmem:[%s232 + $0x400] sm:$0xff]
      %v373 = vld [vmem:[%s232 + $0x408] sm:$0xff]
      %v374 = vld [vmem:[%s232 + $0x410] sm:$0xff]
      %v375 = vld [vmem:[%s232 + $0x418] sm:$0xff]
      %v376 = vld [vmem:[%s232 + $0x420] sm:$0xff]
      %v377 = vld [vmem:[%s232 + $0x428] sm:$0xff]
      %v378 = vld [vmem:[%s232 + $0x430] sm:$0xff]
      %v379 = vld [vmem:[%s232 + $0x438] sm:$0xff]
      %v380 = vld [vmem:[%s232 + $0x440] sm:$0xff]
      %v381 = vld [vmem:[%s232 + $0x448] sm:$0xff]
      %v382 = vld [vmem:[%s232 + $0x450] sm:$0xff]
      %v383 = vld [vmem:[%s232 + $0x458] sm:$0xff]
      %v384 = vld [vmem:[%s232 + $0x460] sm:$0xff]
      %v385 = vld [vmem:[%s232 + $0x468] sm:$0xff]
      %v386 = vld [vmem:[%s232 + $0x470] sm:$0xff]
      %v387 = vld [vmem:[%s232 + $0x478] sm:$0xff]
      %v388 = vld [vmem:[%s232 + $0x480] sm:$0xff]
      %v389 = vld [vmem:[%s232 + $0x488] sm:$0xff]
      %v390 = vld [vmem:[%s232 + $0x490] sm:$0xff]
      %v391 = vld [vmem:[%s232 + $0x498] sm:$0xff]
      %v392 = vld [vmem:[%s232 + $0x4a0] sm:$0xff]
      %v393 = vld [vmem:[%s232 + $0x4a8] sm:$0xff]
      %v394 = vld [vmem:[%s232 + $0x4b0] sm:$0xff]
      %v395 = vld [vmem:[%s232 + $0x4b8] sm:$0xff]
      %v396 = vld [vmem:[%s232 + $0x4c0] sm:$0xff]
      %v397 = vld [vmem:[%s232 + $0x4c8] sm:$0xff]
      %v398 = vld [vmem:[%s232 + $0x4d0] sm:$0xff]
      %v399 = vld [vmem:[%s232 + $0x4d8] sm:$0xff]
      %v400 = vld [vmem:[%s232 + $0x4e0] sm:$0xff]
      %v401 = vld [vmem:[%s232 + $0x4e8] sm:$0xff]
      %v402 = vld [vmem:[%s232 + $0x4f0] sm:$0xff]
      %v403 = vld [vmem:[%s232 + $0x4f8] sm:$0xff]
      %v404 = vld [vmem:[%s232 + $0x500] sm:$0xff]
      %v405 = vld [vmem:[%s232 + $0x508] sm:$0xff]
      %v406 = vld [vmem:[%s232 + $0x510] sm:$0xff]
      %v407 = vld [vmem:[%s232 + $0x518] sm:$0xff]
      %v408 = vld [vmem:[%s232 + $0x520] sm:$0xff]
      %v409 = vld [vmem:[%s232 + $0x528] sm:$0xff]
      %v410 = vld [vmem:[%s232 + $0x530] sm:$0xff]
      %v411 = vld [vmem:[%s232 + $0x538] sm:$0xff]
      %v412 = vld [vmem:[%s232 + $0x540] sm:$0xff]
      %v413 = vld [vmem:[%s232 + $0x548] sm:$0xff]
      %v414 = vld [vmem:[%s232 + $0x550] sm:$0xff]
      %v415 = vld [vmem:[%s232 + $0x558] sm:$0xff]
      %v416 = vld [vmem:[%s232 + $0x560] sm:$0xff]
      %v417 = vld [vmem:[%s232 + $0x568] sm:$0xff]
      %v418 = vld [vmem:[%s232 + $0x570] sm:$0xff]
      %v419 = vld [vmem:[%s232 + $0x578] sm:$0xff]
      %v420 = vld [vmem:[%s232 + $0x580] sm:$0xff]
      %v421 = vld [vmem:[%s232 + $0x588] sm:$0xff]
      %v422 = vld [vmem:[%s232 + $0x590] sm:$0xff]
      %v423 = vld [vmem:[%s232 + $0x598] sm:$0xff]
      %v424 = vld [vmem:[%s232 + $0x5a0] sm:$0xff]
      %v425 = vld [vmem:[%s232 + $0x5a8] sm:$0xff]
      %v426 = vld [vmem:[%s232 + $0x5b0] sm:$0xff]
      %v427 = vld [vmem:[%s232 + $0x5b8] sm:$0xff]
      %v428 = vld [vmem:[%s232 + $0x5c0] sm:$0xff]
      %v429 = vld [vmem:[%s232 + $0x5c8] sm:$0xff]
      %v430 = vld [vmem:[%s232 + $0x5d0] sm:$0xff]
      %v431 = vld [vmem:[%s232 + $0x5d8] sm:$0xff]
      %v432 = vld [vmem:[%s232 + $0x5e0] sm:$0xff]
      %v433 = vld [vmem:[%s232 + $0x5e8] sm:$0xff]
      %v434 = vld [vmem:[%s232 + $0x5f0] sm:$0xff]
      %v435 = vld [vmem:[%s232 + $0x5f8] sm:$0xff]
      %v436 = vld [vmem:[%s232 + $0x600] sm:$0xff]
      %v437 = vld [vmem:[%s232 + $0x608] sm:$0xff]
      %v438 = vld [vmem:[%s232 + $0x610] sm:$0xff]
      %v439 = vld [vmem:[%s232 + $0x618] sm:$0xff]
      %v440 = vld [vmem:[%s232 + $0x620] sm:$0xff]
      %v441 = vld [vmem:[%s232 + $0x628] sm:$0xff]
      %v442 = vld [vmem:[%s232 + $0x630] sm:$0xff]
      %v443 = vld [vmem:[%s232 + $0x638] sm:$0xff]
      %v444 = vld [vmem:[%s232 + $0x640] sm:$0xff]
      %v445 = vld [vmem:[%s232 + $0x648] sm:$0xff]
      %v446 = vld [vmem:[%s232 + $0x650] sm:$0xff]
      %v447 = vld [vmem:[%s232 + $0x658] sm:$0xff]
      %v448 = vld [vmem:[%s232 + $0x660] sm:$0xff]
      %v449 = vld [vmem:[%s232 + $0x668] sm:$0xff]
      %v450 = vld [vmem:[%s232 + $0x670] sm:$0xff]
      %v451 = vld [vmem:[%s232 + $0x678] sm:$0xff]
      %v452 = vld [vmem:[%s232 + $0x680] sm:$0xff]
      %v453 = vld [vmem:[%s232 + $0x688] sm:$0xff]
      %v454 = vld [vmem:[%s232 + $0x690] sm:$0xff]
      %v455 = vld [vmem:[%s232 + $0x698] sm:$0xff]
      %v456 = vld [vmem:[%s232 + $0x6a0] sm:$0xff]
      %v457 = vld [vmem:[%s232 + $0x6a8] sm:$0xff]
      %v458 = vld [vmem:[%s232 + $0x6b0] sm:$0xff]
      %v459 = vld [vmem:[%s232 + $0x6b8] sm:$0xff]
      %v460 = vld [vmem:[%s232 + $0x6c0] sm:$0xff]
      %v461 = vld [vmem:[%s232 + $0x6c8] sm:$0xff]
      %v462 = vld [vmem:[%s232 + $0x6d0] sm:$0xff]
      %v463 = vld [vmem:[%s232 + $0x6d8] sm:$0xff]
      %v464 = vld [vmem:[%s232 + $0x6e0] sm:$0xff]
      %v465 = vld [vmem:[%s232 + $0x6e8] sm:$0xff]
      %v466 = vld [vmem:[%s232 + $0x6f0] sm:$0xff]
      %v467 = vld [vmem:[%s232 + $0x6f8] sm:$0xff]
      %v468 = vld [vmem:[%s232 + $0x700] sm:$0xff]
      %v469 = vld [vmem:[%s232 + $0x708] sm:$0xff]
      %v470 = vld [vmem:[%s232 + $0x710] sm:$0xff]
      %v471 = vld [vmem:[%s232 + $0x718] sm:$0xff]
      %v472 = vld [vmem:[%s232 + $0x720] sm:$0xff]
      %v473 = vld [vmem:[%s232 + $0x728] sm:$0xff]
      %v474 = vld [vmem:[%s232 + $0x730] sm:$0xff]
      %v475 = vld [vmem:[%s232 + $0x738] sm:$0xff]
      %v476 = vld [vmem:[%s232 + $0x740] sm:$0xff]
      %v477 = vld [vmem:[%s232 + $0x748] sm:$0xff]
      %v478 = vld [vmem:[%s232 + $0x750] sm:$0xff]
      %v479 = vld [vmem:[%s232 + $0x758] sm:$0xff]
      %v480 = vld [vmem:[%s232 + $0x760] sm:$0xff]
      %v481 = vld [vmem:[%s232 + $0x768] sm:$0xff]
      %v482 = vld [vmem:[%s232 + $0x770] sm:$0xff]
      %v483 = vld [vmem:[%s232 + $0x778] sm:$0xff]
      %v484 = vld [vmem:[%s232 + $0x780] sm:$0xff]
      %v485 = vld [vmem:[%s232 + $0x788] sm:$0xff]
      %v486 = vld [vmem:[%s232 + $0x790] sm:$0xff]
      %v487 = vld [vmem:[%s232 + $0x798] sm:$0xff]
      %v488 = vld [vmem:[%s232 + $0x7a0] sm:$0xff]
      %v489 = vld [vmem:[%s232 + $0x7a8] sm:$0xff]
      %v490 = vld [vmem:[%s232 + $0x7b0] sm:$0xff]
      %v491 = vld [vmem:[%s232 + $0x7b8] sm:$0xff]
      %v492 = vld [vmem:[%s232 + $0x7c0] sm:$0xff]
      %v493 = vld [vmem:[%s232 + $0x7c8] sm:$0xff]
      %v494 = vld [vmem:[%s232 + $0x7d0] sm:$0xff]
      %v495 = vld [vmem:[%s232 + $0x7d8] sm:$0xff]
      %v496 = vld [vmem:[%s232 + $0x7e0] sm:$0xff]
      %v497 = vld [vmem:[%s232 + $0x7e8] sm:$0xff]
      %v498 = vld [vmem:[%s232 + $0x7f0] sm:$0xff]
      %v499 = vld [vmem:[%s232 + $0x7f8] sm:$0xff]
      %v500 = vld [vmem:[%s232 + $0x800] sm:$0xff]
      %v501 = vld [vmem:[%s232 + $0x808] sm:$0xff]
      %v502 = vld [vmem:[%s232 + $0x810] sm:$0xff]
      %v503 = vld [vmem:[%s232 + $0x818] sm:$0xff]
      %v504 = vld [vmem:[%s232 + $0x820] sm:$0xff]
      %v505 = vld [vmem:[%s232 + $0x828] sm:$0xff]
      %v506 = vld [vmem:[%s232 + $0x830] sm:$0xff]
      %v507 = vld [vmem:[%s232 + $0x838] sm:$0xff]
      %v508 = vld [vmem:[%s232 + $0x840] sm:$0xff]
      %v509 = vld [vmem:[%s232 + $0x848] sm:$0xff]
      %v510 = vld [vmem:[%s232 + $0x850] sm:$0xff]
      %v511 = vld [vmem:[%s232 + $0x858] sm:$0xff]
      %v512 = vld [vmem:[%s232 + $0x860] sm:$0xff]
      %v513 = vld [vmem:[%s232 + $0x868] sm:$0xff]
      %v514 = vld [vmem:[%s232 + $0x870] sm:$0xff]
      %v515 = vld [vmem:[%s232 + $0x878] sm:$0xff]
      %v516 = vld [vmem:[%s232 + $0x880] sm:$0xff]
      %v517 = vld [vmem:[%s232 + $0x888] sm:$0xff]
      %v518 = vld [vmem:[%s232 + $0x890] sm:$0xff]
      %v519 = vld [vmem:[%s232 + $0x898] sm:$0xff]
      %v520 = vld [vmem:[%s232 + $0x8a0] sm:$0xff]
      %v521 = vld [vmem:[%s232 + $0x8a8] sm:$0xff]
      %v522 = vld [vmem:[%s232 + $0x8b0] sm:$0xff]
      %v523 = vld [vmem:[%s232 + $0x8b8] sm:$0xff]
      %v524 = vld [vmem:[%s232 + $0x8c0] sm:$0xff]
      %v525 = vld [vmem:[%s232 + $0x8c8] sm:$0xff]
      %v526 = vld [vmem:[%s232 + $0x8d0] sm:$0xff]
      %v527 = vld [vmem:[%s232 + $0x8d8] sm:$0xff]
      %v528 = vld [vmem:[%s232 + $0x8e0] sm:$0xff]
      %v529 = vld [vmem:[%s232 + $0x8e8] sm:$0xff]
      %v530 = vld [vmem:[%s232 + $0x8f0] sm:$0xff]
      %v531 = vld [vmem:[%s232 + $0x8f8] sm:$0xff]
      %v532 = vld [vmem:[%s232 + $0x900] sm:$0xff]
      %v533 = vld [vmem:[%s232 + $0x908] sm:$0xff]
      %v534 = vld [vmem:[%s232 + $0x910] sm:$0xff]
      %v535 = vld [vmem:[%s232 + $0x918] sm:$0xff]
      %v536 = vld [vmem:[%s232 + $0x920] sm:$0xff]
      %v537 = vld [vmem:[%s232 + $0x928] sm:$0xff]
      %v538 = vld [vmem:[%s232 + $0x930] sm:$0xff]
      %v539 = vld [vmem:[%s232 + $0x938] sm:$0xff]
      %v540 = vld [vmem:[%s232 + $0x940] sm:$0xff]
      %v541 = vld [vmem:[%s232 + $0x948] sm:$0xff]
      %v542 = vld [vmem:[%s232 + $0x950] sm:$0xff]
      %v543 = vld [vmem:[%s232 + $0x958] sm:$0xff]
      %v544 = vld [vmem:[%s232 + $0x960] sm:$0xff]
      %v545 = vld [vmem:[%s232 + $0x968] sm:$0xff]
      %v546 = vld [vmem:[%s232 + $0x970] sm:$0xff]
      %v547 = vld [vmem:[%s232 + $0x978] sm:$0xff]
      %v548 = vld [vmem:[%s232 + $0x980] sm:$0xff]
      %v549 = vld [vmem:[%s232 + $0x988] sm:$0xff]
      %v550 = vld [vmem:[%s232 + $0x990] sm:$0xff]
      %v551 = vld [vmem:[%s232 + $0x998] sm:$0xff]
      %v552 = vld [vmem:[%s232 + $0x9a0] sm:$0xff]
      %v553 = vld [vmem:[%s232 + $0x9a8] sm:$0xff]
      %v554 = vld [vmem:[%s232 + $0x9b0] sm:$0xff]
      %v555 = vld [vmem:[%s232 + $0x9b8] sm:$0xff]
      %v556 = vld [vmem:[%s232 + $0x9c0] sm:$0xff]
      %v557 = vld [vmem:[%s232 + $0x9c8] sm:$0xff]
      %v558 = vld [vmem:[%s232 + $0x9d0] sm:$0xff]
      %v559 = vld [vmem:[%s232 + $0x9d8] sm:$0xff]
      %v560 = vld [vmem:[%s232 + $0x9e0] sm:$0xff]
      %v561 = vld [vmem:[%s232 + $0x9e8] sm:$0xff]
      %v562 = vld [vmem:[%s232 + $0x9f0] sm:$0xff]
      %v563 = vld [vmem:[%s232 + $0x9f8] sm:$0xff]
      %v564 = vld [vmem:[%s232 + $0xa00] sm:$0xff]
      %v565 = vld [vmem:[%s232 + $0xa08] sm:$0xff]
      %v566 = vld [vmem:[%s232 + $0xa10] sm:$0xff]
      %v567 = vld [vmem:[%s232 + $0xa18] sm:$0xff]
      %v568 = vld [vmem:[%s232 + $0xa20] sm:$0xff]
      %v569 = vld [vmem:[%s232 + $0xa28] sm:$0xff]
      %v570 = vld [vmem:[%s232 + $0xa30] sm:$0xff]
      %v571 = vld [vmem:[%s232 + $0xa38] sm:$0xff]
      %v572 = vld [vmem:[%s232 + $0xa40] sm:$0xff]
      %v573 = vld [vmem:[%s232 + $0xa48] sm:$0xff]
      %v574 = vld [vmem:[%s232 + $0xa50] sm:$0xff]
      %v575 = vld [vmem:[%s232 + $0xa58] sm:$0xff]
      %v576 = vld [vmem:[%s232 + $0xa60] sm:$0xff]
      %v577 = vld [vmem:[%s232 + $0xa68] sm:$0xff]
      %v578 = vld [vmem:[%s232 + $0xa70] sm:$0xff]
      %v579 = vld [vmem:[%s232 + $0xa78] sm:$0xff]
      %v580 = vld [vmem:[%s232 + $0xa80] sm:$0xff]
      %v581 = vld [vmem:[%s232 + $0xa88] sm:$0xff]
      %v582 = vld [vmem:[%s232 + $0xa90] sm:$0xff]
      %v583 = vld [vmem:[%s232 + $0xa98] sm:$0xff]
      %v584 = vld [vmem:[%s232 + $0xaa0] sm:$0xff]
      %v585 = vld [vmem:[%s232 + $0xaa8] sm:$0xff]
      %v586 = vld [vmem:[%s232 + $0xab0] sm:$0xff]
      %v587 = vld [vmem:[%s232 + $0xab8] sm:$0xff]
      %v588 = vld [vmem:[%s232 + $0xac0] sm:$0xff]
      %v589 = vld [vmem:[%s232 + $0xac8] sm:$0xff]
      %v590 = vld [vmem:[%s232 + $0xad0] sm:$0xff]
      %v591 = vld [vmem:[%s232 + $0xad8] sm:$0xff]
      %v592 = vld [vmem:[%s232 + $0xae0] sm:$0xff]
      %v593 = vld [vmem:[%s232 + $0xae8] sm:$0xff]
      %v594 = vld [vmem:[%s232 + $0xaf0] sm:$0xff]
      %v595 = vld [vmem:[%s232 + $0xaf8] sm:$0xff]
      %v596 = vld [vmem:[%s232 + $0xb00] sm:$0xff]
      %v597 = vld [vmem:[%s232 + $0xb08] sm:$0xff]
      %v598 = vld [vmem:[%s232 + $0xb10] sm:$0xff]
      %v599 = vld [vmem:[%s232 + $0xb18] sm:$0xff]
      %v600 = vld [vmem:[%s232 + $0xb20] sm:$0xff]
      %v601 = vld [vmem:[%s232 + $0xb28] sm:$0xff]
      %v602 = vld [vmem:[%s232 + $0xb30] sm:$0xff]
      %v603 = vld [vmem:[%s232 + $0xb38] sm:$0xff]
      %v604 = vld [vmem:[%s232 + $0xb40] sm:$0xff]
      %v605 = vld [vmem:[%s232 + $0xb48] sm:$0xff]
      %v606 = vld [vmem:[%s232 + $0xb50] sm:$0xff]
      %v607 = vld [vmem:[%s232 + $0xb58] sm:$0xff]
      %v608 = vld [vmem:[%s232 + $0xb60] sm:$0xff]
      %v609 = vld [vmem:[%s232 + $0xb68] sm:$0xff]
      %v610 = vld [vmem:[%s232 + $0xb70] sm:$0xff]
      %v611 = vld [vmem:[%s232 + $0xb78] sm:$0xff]
      %v612 = vld [vmem:[%s232 + $0xb80] sm:$0xff]
      %v613 = vld [vmem:[%s232 + $0xb88] sm:$0xff]
      %v614 = vld [vmem:[%s232 + $0xb90] sm:$0xff]
      %v615 = vld [vmem:[%s232 + $0xb98] sm:$0xff]
      %v616 = vld [vmem:[%s232 + $0xba0] sm:$0xff]
      %v617 = vld [vmem:[%s232 + $0xba8] sm:$0xff]
      %v618 = vld [vmem:[%s232 + $0xbb0] sm:$0xff]
      %v619 = vld [vmem:[%s232 + $0xbb8] sm:$0xff]
      %v620 = vld [vmem:[%s232 + $0xbc0] sm:$0xff]
      %v621 = vld [vmem:[%s232 + $0xbc8] sm:$0xff]
      %v622 = vld [vmem:[%s232 + $0xbd0] sm:$0xff]
      %v623 = vld [vmem:[%s232 + $0xbd8] sm:$0xff]
      %v624 = vld [vmem:[%s232 + $0xbe0] sm:$0xff]
      %v625 = vld [vmem:[%s232 + $0xbe8] sm:$0xff]
      %v626 = vld [vmem:[%s232 + $0xbf0] sm:$0xff]
      %v627 = vld [vmem:[%s232 + $0xbf8] sm:$0xff]
      %v628 = vld [vmem:[%s232 + $0xc00] sm:$0xff]
      %v629 = vld [vmem:[%s232 + $0xc08] sm:$0xff]
      %v630 = vld [vmem:[%s232 + $0xc10] sm:$0xff]
      %v631 = vld [vmem:[%s232 + $0xc18] sm:$0xff]
      %v632 = vld [vmem:[%s232 + $0xc20] sm:$0xff]
      %v633 = vld [vmem:[%s232 + $0xc28] sm:$0xff]
      %v634 = vld [vmem:[%s232 + $0xc30] sm:$0xff]
      %v635 = vld [vmem:[%s232 + $0xc38] sm:$0xff]
      %v636 = vld [vmem:[%s232 + $0xc40] sm:$0xff]
      %v637 = vld [vmem:[%s232 + $0xc48] sm:$0xff]
      %v638 = vld [vmem:[%s232 + $0xc50] sm:$0xff]
      %v639 = vld [vmem:[%s232 + $0xc58] sm:$0xff]
      %v640 = vld [vmem:[%s232 + $0xc60] sm:$0xff]
      %v641 = vld [vmem:[%s232 + $0xc68] sm:$0xff]
      %v642 = vld [vmem:[%s232 + $0xc70] sm:$0xff]
      %v643 = vld [vmem:[%s232 + $0xc78] sm:$0xff]
      %v644 = vld [vmem:[%s232 + $0xc80] sm:$0xff]
      %v645 = vld [vmem:[%s232 + $0xc88] sm:$0xff]
      %v646 = vld [vmem:[%s232 + $0xc90] sm:$0xff]
      %v647 = vld [vmem:[%s232 + $0xc98] sm:$0xff]
      %v648 = vld [vmem:[%s232 + $0xca0] sm:$0xff]
      %v649 = vld [vmem:[%s232 + $0xca8] sm:$0xff]
      %v650 = vld [vmem:[%s232 + $0xcb0] sm:$0xff]
      %v651 = vld [vmem:[%s232 + $0xcb8] sm:$0xff]
      %v652 = vld [vmem:[%s232 + $0xcc0] sm:$0xff]
      %v653 = vld [vmem:[%s232 + $0xcc8] sm:$0xff]
      %v654 = vld [vmem:[%s232 + $0xcd0] sm:$0xff]
      %v655 = vld [vmem:[%s232 + $0xcd8] sm:$0xff]
      %v656 = vld [vmem:[%s232 + $0xce0] sm:$0xff]
      %v657 = vld [vmem:[%s232 + $0xce8] sm:$0xff]
      %v658 = vld [vmem:[%s232 + $0xcf0] sm:$0xff]
      %v659 = vld [vmem:[%s232 + $0xcf8] sm:$0xff]
      %v660 = vld [vmem:[%s232 + $0xd00] sm:$0xff]
      %v661 = vld [vmem:[%s232 + $0xd08] sm:$0xff]
      %v662 = vld [vmem:[%s232 + $0xd10] sm:$0xff]
      %v663 = vld [vmem:[%s232 + $0xd18] sm:$0xff]
      %v664 = vld [vmem:[%s232 + $0xd20] sm:$0xff]
      %v665 = vld [vmem:[%s232 + $0xd28] sm:$0xff]
      %v666 = vld [vmem:[%s232 + $0xd30] sm:$0xff]
      %v667 = vld [vmem:[%s232 + $0xd38] sm:$0xff]
      %v668 = vld [vmem:[%s232 + $0xd40] sm:$0xff]
      %v669 = vld [vmem:[%s232 + $0xd48] sm:$0xff]
      %v670 = vld [vmem:[%s232 + $0xd50] sm:$0xff]
      %v671 = vld [vmem:[%s232 + $0xd58] sm:$0xff]
      %v672 = vld [vmem:[%s232 + $0xd60] sm:$0xff]
      %v673 = vld [vmem:[%s232 + $0xd68] sm:$0xff]
      %v674 = vld [vmem:[%s232 + $0xd70] sm:$0xff]
      %v675 = vld [vmem:[%s232 + $0xd78] sm:$0xff]
      %v676 = vld [vmem:[%s232 + $0xd80] sm:$0xff]
      %v677 = vld [vmem:[%s232 + $0xd88] sm:$0xff]
      %v678 = vld [vmem:[%s232 + $0xd90] sm:$0xff]
      %v679 = vld [vmem:[%s232 + $0xd98] sm:$0xff]
      %v680 = vld [vmem:[%s232 + $0xda0] sm:$0xff]
      %v681 = vld [vmem:[%s232 + $0xda8] sm:$0xff]
      %v682 = vld [vmem:[%s232 + $0xdb0] sm:$0xff]
      %v683 = vld [vmem:[%s232 + $0xdb8] sm:$0xff]
      %v684 = vld [vmem:[%s232 + $0xdc0] sm:$0xff]
      %v685 = vld [vmem:[%s232 + $0xdc8] sm:$0xff]
      %v686 = vld [vmem:[%s232 + $0xdd0] sm:$0xff]
      %v687 = vld [vmem:[%s232 + $0xdd8] sm:$0xff]
      %v688 = vld [vmem:[%s232 + $0xde0] sm:$0xff]
      %v689 = vld [vmem:[%s232 + $0xde8] sm:$0xff]
      %v690 = vld [vmem:[%s232 + $0xdf0] sm:$0xff]
      %v691 = vld [vmem:[%s232 + $0xdf8] sm:$0xff]
      %v692 = vld [vmem:[%s232 + $0xe00] sm:$0xff]
      %v693 = vld [vmem:[%s232 + $0xe08] sm:$0xff]
      %v694 = vld [vmem:[%s232 + $0xe10] sm:$0xff]
      %v695 = vld [vmem:[%s232 + $0xe18] sm:$0xff]
      %v696 = vld [vmem:[%s232 + $0xe20] sm:$0xff]
      %v697 = vld [vmem:[%s232 + $0xe28] sm:$0xff]
      %v698 = vld [vmem:[%s232 + $0xe30] sm:$0xff]
      %v699 = vld [vmem:[%s232 + $0xe38] sm:$0xff]
      %v700 = vld [vmem:[%s232 + $0xe40] sm:$0xff]
      %v701 = vld [vmem:[%s232 + $0xe48] sm:$0xff]
      %v702 = vld [vmem:[%s232 + $0xe50] sm:$0xff]
      %v703 = vld [vmem:[%s232 + $0xe58] sm:$0xff]
      %v704 = vld [vmem:[%s232 + $0xe60] sm:$0xff]
      %v705 = vld [vmem:[%s232 + $0xe68] sm:$0xff]
      %v706 = vld [vmem:[%s232 + $0xe70] sm:$0xff]
      %v707 = vld [vmem:[%s232 + $0xe78] sm:$0xff]
      %v708 = vld [vmem:[%s232 + $0xe80] sm:$0xff]
      %v709 = vld [vmem:[%s232 + $0xe88] sm:$0xff]
      %v710 = vld [vmem:[%s232 + $0xe90] sm:$0xff]
      %v711 = vld [vmem:[%s232 + $0xe98] sm:$0xff]
      %v712 = vld [vmem:[%s232 + $0xea0] sm:$0xff]
      %v713 = vld [vmem:[%s232 + $0xea8] sm:$0xff]
      %v714 = vld [vmem:[%s232 + $0xeb0] sm:$0xff]
      %v715 = vld [vmem:[%s232 + $0xeb8] sm:$0xff]
      %v716 = vld [vmem:[%s232 + $0xec0] sm:$0xff]
      %v717 = vld [vmem:[%s232 + $0xec8] sm:$0xff]
      %v718 = vld [vmem:[%s232 + $0xed0] sm:$0xff]
      %v719 = vld [vmem:[%s232 + $0xed8] sm:$0xff]
      %v720 = vld [vmem:[%s232 + $0xee0] sm:$0xff]
      %v721 = vld [vmem:[%s232 + $0xee8] sm:$0xff]
      %v722 = vld [vmem:[%s232 + $0xef0] sm:$0xff]
      %v723 = vld [vmem:[%s232 + $0xef8] sm:$0xff]
      %v724 = vld [vmem:[%s232 + $0xf00] sm:$0xff]
      %v725 = vld [vmem:[%s232 + $0xf08] sm:$0xff]
      %v726 = vld [vmem:[%s232 + $0xf10] sm:$0xff]
      %v727 = vld [vmem:[%s232 + $0xf18] sm:$0xff]
      %v728 = vld [vmem:[%s232 + $0xf20] sm:$0xff]
      %v729 = vld [vmem:[%s232 + $0xf28] sm:$0xff]
      %v730 = vld [vmem:[%s232 + $0xf30] sm:$0xff]
      %v731 = vld [vmem:[%s232 + $0xf38] sm:$0xff]
      %v732 = vld [vmem:[%s232 + $0xf40] sm:$0xff]
      %v733 = vld [vmem:[%s232 + $0xf48] sm:$0xff]
      %v734 = vld [vmem:[%s232 + $0xf50] sm:$0xff]
      %v735 = vld [vmem:[%s232 + $0xf58] sm:$0xff]
      %v736 = vld [vmem:[%s232 + $0xf60] sm:$0xff]
      %v737 = vld [vmem:[%s232 + $0xf68] sm:$0xff]
      %v738 = vld [vmem:[%s232 + $0xf70] sm:$0xff]
      %v739 = vld [vmem:[%s232 + $0xf78] sm:$0xff]
      %v740 = vld [vmem:[%s232 + $0xf80] sm:$0xff]
      %v741 = vld [vmem:[%s232 + $0xf88] sm:$0xff]
      %v742 = vld [vmem:[%s232 + $0xf90] sm:$0xff]
      %v743 = vld [vmem:[%s232 + $0xf98] sm:$0xff]
      %v744 = vld [vmem:[%s232 + $0xfa0] sm:$0xff]
      %v745 = vld [vmem:[%s232 + $0xfa8] sm:$0xff]
      %v746 = vld [vmem:[%s232 + $0xfb0] sm:$0xff]
      %v747 = vld [vmem:[%s232 + $0xfb8] sm:$0xff]
      %v748 = vld [vmem:[%s232 + $0xfc0] sm:$0xff]
      %v749 = vld [vmem:[%s232 + $0xfc8] sm:$0xff]
      %v750 = vld [vmem:[%s232 + $0xfd0] sm:$0xff]
      %v751 = vld [vmem:[%s232 + $0xfd8] sm:$0xff]
      %v752 = vld [vmem:[%s232 + $0xfe0] sm:$0xff]
      %v753 = vld [vmem:[%s232 + $0xfe8] sm:$0xff]
      %v754 = vld [vmem:[%s232 + $0xff0] sm:$0xff]
      %v755 = vld [vmem:[%s232 + $0xff8] sm:$0xff]
      %v756 = vld [vmem:[%s232 + $0x1000] sm:$0xff]
      %v757 = vld [vmem:[%s232 + $0x1008] sm:$0xff]
      %v758 = vld [vmem:[%s232 + $0x1010] sm:$0xff]
      %v759 = vld [vmem:[%s232 + $0x1018] sm:$0xff]
      %v760 = vld [vmem:[%s232 + $0x1020] sm:$0xff]
      %v761 = vld [vmem:[%s232 + $0x1028] sm:$0xff]
      %v762 = vld [vmem:[%s232 + $0x1030] sm:$0xff]
      %v763 = vld [vmem:[%s232 + $0x1038] sm:$0xff]
      %v764 = vld [vmem:[%s232 + $0x1040] sm:$0xff]
      %v765 = vld [vmem:[%s232 + $0x1048] sm:$0xff]
      %v766 = vld [vmem:[%s232 + $0x1050] sm:$0xff]
      %v767 = vld [vmem:[%s232 + $0x1058] sm:$0xff]
      %v768 = vld [vmem:[%s232 + $0x1060] sm:$0xff]
      %v769 = vld [vmem:[%s232 + $0x1068] sm:$0xff]
      %v770 = vld [vmem:[%s232 + $0x1070] sm:$0xff]
      %v771 = vld [vmem:[%s232 + $0x1078] sm:$0xff]
      %v772 = vld [vmem:[%s232 + $0x1080] sm:$0xff]
      %v773 = vld [vmem:[%s232 + $0x1088] sm:$0xff]
      %v774 = vld [vmem:[%s232 + $0x1090] sm:$0xff]
      %v775 = vld [vmem:[%s232 + $0x1098] sm:$0xff]
      %v776 = vld [vmem:[%s232 + $0x10a0] sm:$0xff]
      %v777 = vld [vmem:[%s232 + $0x10a8] sm:$0xff]
      %v778 = vld [vmem:[%s232 + $0x10b0] sm:$0xff]
      %v779 = vld [vmem:[%s232 + $0x10b8] sm:$0xff]
      %v780 = vld [vmem:[%s232 + $0x10c0] sm:$0xff]
      %v781 = vld [vmem:[%s232 + $0x10c8] sm:$0xff]
      %v782 = vld [vmem:[%s232 + $0x10d0] sm:$0xff]
      %v783 = vld [vmem:[%s232 + $0x10d8] sm:$0xff]
      %v784 = vld [vmem:[%s232 + $0x10e0] sm:$0xff]
      %v785 = vld [vmem:[%s232 + $0x10e8] sm:$0xff]
      %v786 = vld [vmem:[%s232 + $0x10f0] sm:$0xff]
      %v787 = vld [vmem:[%s232 + $0x10f8] sm:$0xff]
      %v788 = vld [vmem:[%s232 + $0x1100] sm:$0xff]
      %v789 = vld [vmem:[%s232 + $0x1108] sm:$0xff]
      %v790 = vld [vmem:[%s232 + $0x1110] sm:$0xff]
      %v791 = vld [vmem:[%s232 + $0x1118] sm:$0xff]
      %v792 = vld [vmem:[%s232 + $0x1120] sm:$0xff]
      %v793 = vld [vmem:[%s232 + $0x1128] sm:$0xff]
      %v794 = vld [vmem:[%s232 + $0x1130] sm:$0xff]
      %v795 = vld [vmem:[%s232 + $0x1138] sm:$0xff]
      %v796 = vld [vmem:[%s232 + $0x1140] sm:$0xff]
      %v797 = vld [vmem:[%s232 + $0x1148] sm:$0xff]
      %v798 = vld [vmem:[%s232 + $0x1150] sm:$0xff]
      %v799 = vld [vmem:[%s232 + $0x1158] sm:$0xff]
      %v800 = vld [vmem:[%s232 + $0x1160] sm:$0xff]
      %v801 = vld [vmem:[%s232 + $0x1168] sm:$0xff]
      %v802 = vld [vmem:[%s232 + $0x1170] sm:$0xff]
      %v803 = vld [vmem:[%s232 + $0x1178] sm:$0xff]
      %v804 = vld [vmem:[%s232 + $0x1180] sm:$0xff]
      %v805 = vld [vmem:[%s232 + $0x1188] sm:$0xff]
      %v806 = vld [vmem:[%s232 + $0x1190] sm:$0xff]
      %v807 = vld [vmem:[%s232 + $0x1198] sm:$0xff]
      %v808 = vld [vmem:[%s232 + $0x11a0] sm:$0xff]
      %v809 = vld [vmem:[%s232 + $0x11a8] sm:$0xff]
      %v810 = vld [vmem:[%s232 + $0x11b0] sm:$0xff]
      %v811 = vld [vmem:[%s232 + $0x11b8] sm:$0xff]
      %v812 = vld [vmem:[%s232 + $0x11c0] sm:$0xff]
      %v813 = vld [vmem:[%s232 + $0x11c8] sm:$0xff]
      %v814 = vld [vmem:[%s232 + $0x11d0] sm:$0xff]
      %v815 = vld [vmem:[%s232 + $0x11d8] sm:$0xff]
      %v816 = vld [vmem:[%s232 + $0x11e0] sm:$0xff]
      %v817 = vld [vmem:[%s232 + $0x11e8] sm:$0xff]
      %v818 = vld [vmem:[%s232 + $0x11f0] sm:$0xff]
      %v819 = vld [vmem:[%s232 + $0x11f8] sm:$0xff]
      %v823 = vcombine.high %v241, %v241
      %v825 = vunpack.c.l.s4 1966171168
      %v826 = vunpack.c.0.s8 %v825
      %v827 = vlaneseq
      %v828 = vshrl.u32 %v827, 7
      %v829 = vsub.s32 %v826, %v828
      %v830 = vrot.slane %v241, %v829
      %v832 = vunpack.c.l.s4 1966171168
      %v833 = vunpack.c.0.s8 %v832
      %v834 = vlaneseq
      %v835 = vshrl.u32 %v834, 7
      %v836 = vsub.s32 %v833, %v835
      %v837 = vrot.slane %v823, %v836
      %v838 = vcombine.high %v830, %v830
      %v839 = vcombine.high %v837, %v837
      %v841 = vunpack.c.l.s4 1966171168
      %v842 = vunpack.c.0.s8 %v841
      %v843 = vlaneseq
      %v844 = vshrl.u32 %v843, 7
      %v845 = vsub.s32 %v842, %v844
      %v846 = vrot.slane %v830, %v845
      %v848 = vunpack.c.l.s4 1966171168
      %v849 = vunpack.c.0.s8 %v848
      %v850 = vlaneseq
      %v851 = vshrl.u32 %v850, 7
      %v852 = vsub.s32 %v849, %v851
      %v853 = vrot.slane %v837, %v852
      %v855 = vunpack.c.l.s4 1966171168
      %v856 = vunpack.c.0.s8 %v855
      %v857 = vlaneseq
      %v858 = vshrl.u32 %v857, 7
      %v859 = vsub.s32 %v856, %v858
      %v860 = vrot.slane %v838, %v859
      %v862 = vunpack.c.l.s4 1966171168
      %v863 = vunpack.c.0.s8 %v862
      %v864 = vlaneseq
      %v865 = vshrl.u32 %v864, 7
      %v866 = vsub.s32 %v863, %v865
      %v867 = vrot.slane %v839, %v866
      %v868 = vcombine.high %v846, %v846
      %v869 = vcombine.high %v853, %v853
      %v870 = vcombine.high %v860, %v860
      %v871 = vcombine.high %v867, %v867
      %v872 = vcombine.high %v242, %v242
      %v874 = vunpack.c.l.s4 1966171168
      %v875 = vunpack.c.0.s8 %v874
      %v876 = vlaneseq
      %v877 = vshrl.u32 %v876, 7
      %v878 = vsub.s32 %v875, %v877
      %v879 = vrot.slane %v242, %v878
      %v881 = vunpack.c.l.s4 1966171168
      %v882 = vunpack.c.0.s8 %v881
      %v883 = vlaneseq
      %v884 = vshrl.u32 %v883, 7
      %v885 = vsub.s32 %v882, %v884
      %v886 = vrot.slane %v872, %v885
      %v887 = vcombine.high %v879, %v879
      %v888 = vcombine.high %v886, %v886
      %v890 = vunpack.c.l.s4 1966171168
      %v891 = vunpack.c.0.s8 %v890
      %v892 = vlaneseq
      %v893 = vshrl.u32 %v892, 7
      %v894 = vsub.s32 %v891, %v893
      %v895 = vrot.slane %v879, %v894
      %v897 = vunpack.c.l.s4 1966171168
      %v898 = vunpack.c.0.s8 %v897
      %v899 = vlaneseq
      %v900 = vshrl.u32 %v899, 7
      %v901 = vsub.s32 %v898, %v900
      %v902 = vrot.slane %v886, %v901
      %v904 = vunpack.c.l.s4 1966171168
      %v905 = vunpack.c.0.s8 %v904
      %v906 = vlaneseq
      %v907 = vshrl.u32 %v906, 7
      %v908 = vsub.s32 %v905, %v907
      %v909 = vrot.slane %v887, %v908
      %v911 = vunpack.c.l.s4 1966171168
      %v912 = vunpack.c.0.s8 %v911
      %v913 = vlaneseq
      %v914 = vshrl.u32 %v913, 7
      %v915 = vsub.s32 %v912, %v914
      %v916 = vrot.slane %v888, %v915
      %v917 = vcombine.high %v895, %v895
      %v918 = vcombine.high %v902, %v902
      %v919 = vcombine.high %v909, %v909
      %v920 = vcombine.high %v916, %v916
      %v922 = vunpack.c.l.s4 1966171168
      %v923 = vunpack.c.0.s8 %v922
      %v924 = vlaneseq
      %v925 = vshrl.u32 %v924, 7
      %v926 = vsub.s32 %v923, %v925
      %v927 = vrot.slane %v243, %v926
      %v928 = vcombine.high %v927, %v927
      %v930 = vunpack.c.l.s4 1966171168
      %v931 = vunpack.c.0.s8 %v930
      %v932 = vlaneseq
      %v933 = vshrl.u32 %v932, 7
      %v934 = vsub.s32 %v931, %v933
      %v935 = vrot.slane %v927, %v934
      %v937 = vunpack.c.l.s4 1966171168
      %v938 = vunpack.c.0.s8 %v937
      %v939 = vlaneseq
      %v940 = vshrl.u32 %v939, 7
      %v941 = vsub.s32 %v938, %v940
      %v942 = vrot.slane %v928, %v941
      %v1537 = vunpack.c.l.b16 %v244
      %v1538 = vunpack.c.h.b16 %v244
      %v1539 = vunpack.c.l.b16 %v245
      %v1540 = vunpack.c.h.b16 %v245
      %v1541 = vunpack.c.l.b16 %v246
      %v1542 = vunpack.c.h.b16 %v246
      %v1543 = vunpack.c.l.b16 %v247
      %v1544 = vunpack.c.h.b16 %v247
      %v1545 = vunpack.c.l.b16 %v248
      %v1546 = vunpack.c.h.b16 %v248
      %v1547 = vunpack.c.l.b16 %v249
      %v1548 = vunpack.c.h.b16 %v249
      %v1549 = vunpack.c.l.b16 %v250
      %v1550 = vunpack.c.h.b16 %v250
      %v1551 = vunpack.c.l.b16 %v251
      %v1552 = vunpack.c.h.b16 %v251
      %v1553 = vunpack.c.l.b16 %v252
      %v1554 = vunpack.c.h.b16 %v252
      %v1555 = vunpack.c.l.b16 %v253
      %v1556 = vunpack.c.h.b16 %v253
      %v1557 = vunpack.c.l.b16 %v254
      %v1558 = vunpack.c.h.b16 %v254
      %v1559 = vunpack.c.l.b16 %v255
      %v1560 = vunpack.c.h.b16 %v255
      %v1561 = vunpack.c.l.b16 %v256
      %v1562 = vunpack.c.h.b16 %v256
      %v1563 = vunpack.c.l.b16 %v257
      %v1564 = vunpack.c.h.b16 %v257
      %v1565 = vunpack.c.l.b16 %v258
      %v1566 = vunpack.c.h.b16 %v258
      %v1567 = vunpack.c.l.b16 %v259
      %v1568 = vunpack.c.h.b16 %v259
      %v1569 = vunpack.c.l.b16 %v260
      %v1570 = vunpack.c.h.b16 %v260
      %v1571 = vunpack.c.l.b16 %v261
      %v1572 = vunpack.c.h.b16 %v261
      %v1573 = vunpack.c.l.b16 %v262
      %v1574 = vunpack.c.h.b16 %v262
      %v1575 = vunpack.c.l.b16 %v263
      %v1576 = vunpack.c.h.b16 %v263
      %v1577 = vunpack.c.l.b16 %v264
      %v1578 = vunpack.c.h.b16 %v264
      %v1579 = vunpack.c.l.b16 %v265
      %v1580 = vunpack.c.h.b16 %v265
      %v1581 = vunpack.c.l.b16 %v266
      %v1582 = vunpack.c.h.b16 %v266
      %v1583 = vunpack.c.l.b16 %v267
      %v1584 = vunpack.c.h.b16 %v267
      %v1585 = vunpack.c.l.b16 %v268
      %v1586 = vunpack.c.h.b16 %v268
      %v1587 = vunpack.c.l.b16 %v269
      %v1588 = vunpack.c.h.b16 %v269
      %v1589 = vunpack.c.l.b16 %v270
      %v1590 = vunpack.c.h.b16 %v270
      %v1591 = vunpack.c.l.b16 %v271
      %v1592 = vunpack.c.h.b16 %v271
      %v1593 = vunpack.c.l.b16 %v272
      %v1594 = vunpack.c.h.b16 %v272
      %v1595 = vunpack.c.l.b16 %v273
      %v1596 = vunpack.c.h.b16 %v273
      %v1597 = vunpack.c.l.b16 %v274
      %v1598 = vunpack.c.h.b16 %v274
      %v1599 = vunpack.c.l.b16 %v275
      %v1600 = vunpack.c.h.b16 %v275
      %v1601 = vunpack.c.l.b16 %v276
      %v1602 = vunpack.c.h.b16 %v276
      %v1603 = vunpack.c.l.b16 %v277
      %v1604 = vunpack.c.h.b16 %v277
      %v1605 = vunpack.c.l.b16 %v278
      %v1606 = vunpack.c.h.b16 %v278
      %v1607 = vunpack.c.l.b16 %v279
      %v1608 = vunpack.c.h.b16 %v279
      %v1609 = vunpack.c.l.b16 %v280
      %v1610 = vunpack.c.h.b16 %v280
      %v1611 = vunpack.c.l.b16 %v281
      %v1612 = vunpack.c.h.b16 %v281
      %v1613 = vunpack.c.l.b16 %v282
      %v1614 = vunpack.c.h.b16 %v282
      %v1615 = vunpack.c.l.b16 %v283
      %v1616 = vunpack.c.h.b16 %v283
      %v1617 = vunpack.c.l.b16 %v284
      %v1618 = vunpack.c.h.b16 %v284
      %v1619 = vunpack.c.l.b16 %v285
      %v1620 = vunpack.c.h.b16 %v285
      %v1621 = vunpack.c.l.b16 %v286
      %v1622 = vunpack.c.h.b16 %v286
      %v1623 = vunpack.c.l.b16 %v287
      %v1624 = vunpack.c.h.b16 %v287
      %v1625 = vunpack.c.l.b16 %v288
      %v1626 = vunpack.c.h.b16 %v288
      %v1627 = vunpack.c.l.b16 %v289
      %v1628 = vunpack.c.h.b16 %v289
      %v1629 = vunpack.c.l.b16 %v290
      %v1630 = vunpack.c.h.b16 %v290
      %v1631 = vunpack.c.l.b16 %v291
      %v1632 = vunpack.c.h.b16 %v291
      %v1633 = vunpack.c.l.b16 %v292
      %v1634 = vunpack.c.h.b16 %v292
      %v1635 = vunpack.c.l.b16 %v293
      %v1636 = vunpack.c.h.b16 %v293
      %v1637 = vunpack.c.l.b16 %v294
      %v1638 = vunpack.c.h.b16 %v294
      %v1639 = vunpack.c.l.b16 %v295
      %v1640 = vunpack.c.h.b16 %v295
      %v1641 = vunpack.c.l.b16 %v296
      %v1642 = vunpack.c.h.b16 %v296
      %v1643 = vunpack.c.l.b16 %v297
      %v1644 = vunpack.c.h.b16 %v297
      %v1645 = vunpack.c.l.b16 %v298
      %v1646 = vunpack.c.h.b16 %v298
      %v1647 = vunpack.c.l.b16 %v299
      %v1648 = vunpack.c.h.b16 %v299
      %v1649 = vunpack.c.l.b16 %v300
      %v1650 = vunpack.c.h.b16 %v300
      %v1651 = vunpack.c.l.b16 %v301
      %v1652 = vunpack.c.h.b16 %v301
      %v1653 = vunpack.c.l.b16 %v302
      %v1654 = vunpack.c.h.b16 %v302
      %v1655 = vunpack.c.l.b16 %v303
      %v1656 = vunpack.c.h.b16 %v303
      %v1657 = vunpack.c.l.b16 %v304
      %v1658 = vunpack.c.h.b16 %v304
      %v1659 = vunpack.c.l.b16 %v305
      %v1660 = vunpack.c.h.b16 %v305
      %v1661 = vunpack.c.l.b16 %v306
      %v1662 = vunpack.c.h.b16 %v306
      %v1663 = vunpack.c.l.b16 %v307
      %v1664 = vunpack.c.h.b16 %v307
      %v1665 = vunpack.c.l.b16 %v308
      %v1666 = vunpack.c.h.b16 %v308
      %v1667 = vunpack.c.l.b16 %v309
      %v1668 = vunpack.c.h.b16 %v309
      %v1669 = vunpack.c.l.b16 %v310
      %v1670 = vunpack.c.h.b16 %v310
      %v1671 = vunpack.c.l.b16 %v311
      %v1672 = vunpack.c.h.b16 %v311
      %v1673 = vunpack.c.l.b16 %v312
      %v1674 = vunpack.c.h.b16 %v312
      %v1675 = vunpack.c.l.b16 %v313
      %v1676 = vunpack.c.h.b16 %v313
      %v1677 = vunpack.c.l.b16 %v314
      %v1678 = vunpack.c.h.b16 %v314
      %v1679 = vunpack.c.l.b16 %v315
      %v1680 = vunpack.c.h.b16 %v315
      %v1681 = vunpack.c.l.b16 %v316
      %v1682 = vunpack.c.h.b16 %v316
      %v1683 = vunpack.c.l.b16 %v317
      %v1684 = vunpack.c.h.b16 %v317
      %v1685 = vunpack.c.l.b16 %v318
      %v1686 = vunpack.c.h.b16 %v318
      %v1687 = vunpack.c.l.b16 %v319
      %v1688 = vunpack.c.h.b16 %v319
      %v1689 = vunpack.c.l.b16 %v320
      %v1690 = vunpack.c.h.b16 %v320
      %v1691 = vunpack.c.l.b16 %v321
      %v1692 = vunpack.c.h.b16 %v321
      %v1693 = vunpack.c.l.b16 %v322
      %v1694 = vunpack.c.h.b16 %v322
      %v1695 = vunpack.c.l.b16 %v323
      %v1696 = vunpack.c.h.b16 %v323
      %v1697 = vunpack.c.l.b16 %v324
      %v1698 = vunpack.c.h.b16 %v324
      %v1699 = vunpack.c.l.b16 %v325
      %v1700 = vunpack.c.h.b16 %v325
      %v1701 = vunpack.c.l.b16 %v326
      %v1702 = vunpack.c.h.b16 %v326
      %v1703 = vunpack.c.l.b16 %v327
      %v1704 = vunpack.c.h.b16 %v327
      %v1705 = vunpack.c.l.b16 %v328
      %v1706 = vunpack.c.h.b16 %v328
      %v1707 = vunpack.c.l.b16 %v329
      %v1708 = vunpack.c.h.b16 %v329
      %v1709 = vunpack.c.l.b16 %v330
      %v1710 = vunpack.c.h.b16 %v330
      %v1711 = vunpack.c.l.b16 %v331
      %v1712 = vunpack.c.h.b16 %v331
      %v1713 = vunpack.c.l.b16 %v332
      %v1714 = vunpack.c.h.b16 %v332
      %v1715 = vunpack.c.l.b16 %v333
      %v1716 = vunpack.c.h.b16 %v333
      %v1717 = vunpack.c.l.b16 %v334
      %v1718 = vunpack.c.h.b16 %v334
      %v1719 = vunpack.c.l.b16 %v335
      %v1720 = vunpack.c.h.b16 %v335
      %v1721 = vunpack.c.l.b16 %v336
      %v1722 = vunpack.c.h.b16 %v336
      %v1723 = vunpack.c.l.b16 %v337
      %v1724 = vunpack.c.h.b16 %v337
      %v1725 = vunpack.c.l.b16 %v338
      %v1726 = vunpack.c.h.b16 %v338
      %v1727 = vunpack.c.l.b16 %v339
      %v1728 = vunpack.c.h.b16 %v339
      %v1729 = vunpack.c.l.b16 %v340
      %v1730 = vunpack.c.h.b16 %v340
      %v1731 = vunpack.c.l.b16 %v341
      %v1732 = vunpack.c.h.b16 %v341
      %v1733 = vunpack.c.l.b16 %v342
      %v1734 = vunpack.c.h.b16 %v342
      %v1735 = vunpack.c.l.b16 %v343
      %v1736 = vunpack.c.h.b16 %v343
      %v1737 = vunpack.c.l.b16 %v344
      %v1738 = vunpack.c.h.b16 %v344
      %v1739 = vunpack.c.l.b16 %v345
      %v1740 = vunpack.c.h.b16 %v345
      %v1741 = vunpack.c.l.b16 %v346
      %v1742 = vunpack.c.h.b16 %v346
      %v1743 = vunpack.c.l.b16 %v347
      %v1744 = vunpack.c.h.b16 %v347
      %v1745 = vunpack.c.l.b16 %v348
      %v1746 = vunpack.c.h.b16 %v348
      %v1747 = vunpack.c.l.b16 %v349
      %v1748 = vunpack.c.h.b16 %v349
      %v1749 = vunpack.c.l.b16 %v350
      %v1750 = vunpack.c.h.b16 %v350
      %v1751 = vunpack.c.l.b16 %v351
      %v1752 = vunpack.c.h.b16 %v351
      %v1753 = vunpack.c.l.b16 %v352
      %v1754 = vunpack.c.h.b16 %v352
      %v1755 = vunpack.c.l.b16 %v353
      %v1756 = vunpack.c.h.b16 %v353
      %v1757 = vunpack.c.l.b16 %v354
      %v1758 = vunpack.c.h.b16 %v354
      %v1759 = vunpack.c.l.b16 %v355
      %v1760 = vunpack.c.h.b16 %v355
      %v1761 = vunpack.c.l.b16 %v356
      %v1762 = vunpack.c.h.b16 %v356
      %v1763 = vunpack.c.l.b16 %v357
      %v1764 = vunpack.c.h.b16 %v357
      %v1765 = vunpack.c.l.b16 %v358
      %v1766 = vunpack.c.h.b16 %v358
      %v1767 = vunpack.c.l.b16 %v359
      %v1768 = vunpack.c.h.b16 %v359
      %v1769 = vunpack.c.l.b16 %v360
      %v1770 = vunpack.c.h.b16 %v360
      %v1771 = vunpack.c.l.b16 %v361
      %v1772 = vunpack.c.h.b16 %v361
      %v1773 = vunpack.c.l.b16 %v362
      %v1774 = vunpack.c.h.b16 %v362
      %v1775 = vunpack.c.l.b16 %v363
      %v1776 = vunpack.c.h.b16 %v363
      %v1777 = vunpack.c.l.b16 %v364
      %v1778 = vunpack.c.h.b16 %v364
      %v1779 = vunpack.c.l.b16 %v365
      %v1780 = vunpack.c.h.b16 %v365
      %v1781 = vunpack.c.l.b16 %v366
      %v1782 = vunpack.c.h.b16 %v366
      %v1783 = vunpack.c.l.b16 %v367
      %v1784 = vunpack.c.h.b16 %v367
      %v1785 = vunpack.c.l.b16 %v368
      %v1786 = vunpack.c.h.b16 %v368
      %v1787 = vunpack.c.l.b16 %v369
      %v1788 = vunpack.c.h.b16 %v369
      %v1789 = vunpack.c.l.b16 %v370
      %v1790 = vunpack.c.h.b16 %v370
      %v1791 = vunpack.c.l.b16 %v371
      %v1792 = vunpack.c.h.b16 %v371
      %v1793 = vunpack.c.l.b16 %v372
      %v1794 = vunpack.c.h.b16 %v372
      %v1795 = vunpack.c.l.b16 %v373
      %v1796 = vunpack.c.h.b16 %v373
      %v1797 = vunpack.c.l.b16 %v374
      %v1798 = vunpack.c.h.b16 %v374
      %v1799 = vunpack.c.l.b16 %v375
      %v1800 = vunpack.c.h.b16 %v375
      %v1801 = vunpack.c.l.b16 %v376
      %v1802 = vunpack.c.h.b16 %v376
      %v1803 = vunpack.c.l.b16 %v377
      %v1804 = vunpack.c.h.b16 %v377
      %v1805 = vunpack.c.l.b16 %v378
      %v1806 = vunpack.c.h.b16 %v378
      %v1807 = vunpack.c.l.b16 %v379
      %v1808 = vunpack.c.h.b16 %v379
      %v1809 = vunpack.c.l.b16 %v380
      %v1810 = vunpack.c.h.b16 %v380
      %v1811 = vunpack.c.l.b16 %v381
      %v1812 = vunpack.c.h.b16 %v381
      %v1813 = vunpack.c.l.b16 %v382
      %v1814 = vunpack.c.h.b16 %v382
      %v1815 = vunpack.c.l.b16 %v383
      %v1816 = vunpack.c.h.b16 %v383
      %v1817 = vunpack.c.l.b16 %v384
      %v1818 = vunpack.c.h.b16 %v384
      %v1819 = vunpack.c.l.b16 %v385
      %v1820 = vunpack.c.h.b16 %v385
      %v1821 = vunpack.c.l.b16 %v386
      %v1822 = vunpack.c.h.b16 %v386
      %v1823 = vunpack.c.l.b16 %v387
      %v1824 = vunpack.c.h.b16 %v387
      %v1825 = vunpack.c.l.b16 %v388
      %v1826 = vunpack.c.h.b16 %v388
      %v1827 = vunpack.c.l.b16 %v389
      %v1828 = vunpack.c.h.b16 %v389
      %v1829 = vunpack.c.l.b16 %v390
      %v1830 = vunpack.c.h.b16 %v390
      %v1831 = vunpack.c.l.b16 %v391
      %v1832 = vunpack.c.h.b16 %v391
      %v1833 = vunpack.c.l.b16 %v392
      %v1834 = vunpack.c.h.b16 %v392
      %v1835 = vunpack.c.l.b16 %v393
      %v1836 = vunpack.c.h.b16 %v393
      %v1837 = vunpack.c.l.b16 %v394
      %v1838 = vunpack.c.h.b16 %v394
      %v1839 = vunpack.c.l.b16 %v395
      %v1840 = vunpack.c.h.b16 %v395
      %v1841 = vunpack.c.l.b16 %v396
      %v1842 = vunpack.c.h.b16 %v396
      %v1843 = vunpack.c.l.b16 %v397
      %v1844 = vunpack.c.h.b16 %v397
      %v1845 = vunpack.c.l.b16 %v398
      %v1846 = vunpack.c.h.b16 %v398
      %v1847 = vunpack.c.l.b16 %v399
      %v1848 = vunpack.c.h.b16 %v399
      %v1849 = vunpack.c.l.b16 %v400
      %v1850 = vunpack.c.h.b16 %v400
      %v1851 = vunpack.c.l.b16 %v401
      %v1852 = vunpack.c.h.b16 %v401
      %v1853 = vunpack.c.l.b16 %v402
      %v1854 = vunpack.c.h.b16 %v402
      %v1855 = vunpack.c.l.b16 %v403
      %v1856 = vunpack.c.h.b16 %v403
      %v1857 = vunpack.c.l.b16 %v404
      %v1858 = vunpack.c.h.b16 %v404
      %v1859 = vunpack.c.l.b16 %v405
      %v1860 = vunpack.c.h.b16 %v405
      %v1861 = vunpack.c.l.b16 %v406
      %v1862 = vunpack.c.h.b16 %v406
      %v1863 = vunpack.c.l.b16 %v407
      %v1864 = vunpack.c.h.b16 %v407
      %v1865 = vunpack.c.l.b16 %v408
      %v1866 = vunpack.c.h.b16 %v408
      %v1867 = vunpack.c.l.b16 %v409
      %v1868 = vunpack.c.h.b16 %v409
      %v1869 = vunpack.c.l.b16 %v410
      %v1870 = vunpack.c.h.b16 %v410
      %v1871 = vunpack.c.l.b16 %v411
      %v1872 = vunpack.c.h.b16 %v411
      %v1873 = vunpack.c.l.b16 %v412
      %v1874 = vunpack.c.h.b16 %v412
      %v1875 = vunpack.c.l.b16 %v413
      %v1876 = vunpack.c.h.b16 %v413
      %v1877 = vunpack.c.l.b16 %v414
      %v1878 = vunpack.c.h.b16 %v414
      %v1879 = vunpack.c.l.b16 %v415
      %v1880 = vunpack.c.h.b16 %v415
      %v1881 = vunpack.c.l.b16 %v416
      %v1882 = vunpack.c.h.b16 %v416
      %v1883 = vunpack.c.l.b16 %v417
      %v1884 = vunpack.c.h.b16 %v417
      %v1885 = vunpack.c.l.b16 %v418
      %v1886 = vunpack.c.h.b16 %v418
      %v1887 = vunpack.c.l.b16 %v419
      %v1888 = vunpack.c.h.b16 %v419
      %v1889 = vunpack.c.l.b16 %v420
      %v1890 = vunpack.c.h.b16 %v420
      %v1891 = vunpack.c.l.b16 %v421
      %v1892 = vunpack.c.h.b16 %v421
      %v1893 = vunpack.c.l.b16 %v422
      %v1894 = vunpack.c.h.b16 %v422
      %v1895 = vunpack.c.l.b16 %v423
      %v1896 = vunpack.c.h.b16 %v423
      %v1897 = vunpack.c.l.b16 %v424
      %v1898 = vunpack.c.h.b16 %v424
      %v1899 = vunpack.c.l.b16 %v425
      %v1900 = vunpack.c.h.b16 %v425
      %v1901 = vunpack.c.l.b16 %v426
      %v1902 = vunpack.c.h.b16 %v426
      %v1903 = vunpack.c.l.b16 %v427
      %v1904 = vunpack.c.h.b16 %v427
      %v1905 = vunpack.c.l.b16 %v428
      %v1906 = vunpack.c.h.b16 %v428
      %v1907 = vunpack.c.l.b16 %v429
      %v1908 = vunpack.c.h.b16 %v429
      %v1909 = vunpack.c.l.b16 %v430
      %v1910 = vunpack.c.h.b16 %v430
      %v1911 = vunpack.c.l.b16 %v431
      %v1912 = vunpack.c.h.b16 %v431
      %v1913 = vunpack.c.l.b16 %v432
      %v1914 = vunpack.c.h.b16 %v432
      %v1915 = vunpack.c.l.b16 %v433
      %v1916 = vunpack.c.h.b16 %v433
      %v1917 = vunpack.c.l.b16 %v434
      %v1918 = vunpack.c.h.b16 %v434
      %v1919 = vunpack.c.l.b16 %v435
      %v1920 = vunpack.c.h.b16 %v435
      %v1921 = vunpack.c.l.b16 %v436
      %v1922 = vunpack.c.h.b16 %v436
      %v1923 = vunpack.c.l.b16 %v437
      %v1924 = vunpack.c.h.b16 %v437
      %v1925 = vunpack.c.l.b16 %v438
      %v1926 = vunpack.c.h.b16 %v438
      %v1927 = vunpack.c.l.b16 %v439
      %v1928 = vunpack.c.h.b16 %v439
      %v1929 = vunpack.c.l.b16 %v440
      %v1930 = vunpack.c.h.b16 %v440
      %v1931 = vunpack.c.l.b16 %v441
      %v1932 = vunpack.c.h.b16 %v441
      %v1933 = vunpack.c.l.b16 %v442
      %v1934 = vunpack.c.h.b16 %v442
      %v1935 = vunpack.c.l.b16 %v443
      %v1936 = vunpack.c.h.b16 %v443
      %v1937 = vunpack.c.l.b16 %v444
      %v1938 = vunpack.c.h.b16 %v444
      %v1939 = vunpack.c.l.b16 %v445
      %v1940 = vunpack.c.h.b16 %v445
      %v1941 = vunpack.c.l.b16 %v446
      %v1942 = vunpack.c.h.b16 %v446
      %v1943 = vunpack.c.l.b16 %v447
      %v1944 = vunpack.c.h.b16 %v447
      %v1945 = vunpack.c.l.b16 %v448
      %v1946 = vunpack.c.h.b16 %v448
      %v1947 = vunpack.c.l.b16 %v449
      %v1948 = vunpack.c.h.b16 %v449
      %v1949 = vunpack.c.l.b16 %v450
      %v1950 = vunpack.c.h.b16 %v450
      %v1951 = vunpack.c.l.b16 %v451
      %v1952 = vunpack.c.h.b16 %v451
      %v1953 = vunpack.c.l.b16 %v452
      %v1954 = vunpack.c.h.b16 %v452
      %v1955 = vunpack.c.l.b16 %v453
      %v1956 = vunpack.c.h.b16 %v453
      %v1957 = vunpack.c.l.b16 %v454
      %v1958 = vunpack.c.h.b16 %v454
      %v1959 = vunpack.c.l.b16 %v455
      %v1960 = vunpack.c.h.b16 %v455
      %v1961 = vunpack.c.l.b16 %v456
      %v1962 = vunpack.c.h.b16 %v456
      %v1963 = vunpack.c.l.b16 %v457
      %v1964 = vunpack.c.h.b16 %v457
      %v1965 = vunpack.c.l.b16 %v458
      %v1966 = vunpack.c.h.b16 %v458
      %v1967 = vunpack.c.l.b16 %v459
      %v1968 = vunpack.c.h.b16 %v459
      %v1969 = vunpack.c.l.b16 %v460
      %v1970 = vunpack.c.h.b16 %v460
      %v1971 = vunpack.c.l.b16 %v461
      %v1972 = vunpack.c.h.b16 %v461
      %v1973 = vunpack.c.l.b16 %v462
      %v1974 = vunpack.c.h.b16 %v462
      %v1975 = vunpack.c.l.b16 %v463
      %v1976 = vunpack.c.h.b16 %v463
      %v1977 = vunpack.c.l.b16 %v464
      %v1978 = vunpack.c.h.b16 %v464
      %v1979 = vunpack.c.l.b16 %v465
      %v1980 = vunpack.c.h.b16 %v465
      %v1981 = vunpack.c.l.b16 %v466
      %v1982 = vunpack.c.h.b16 %v466
      %v1983 = vunpack.c.l.b16 %v467
      %v1984 = vunpack.c.h.b16 %v467
      %v1985 = vunpack.c.l.b16 %v468
      %v1986 = vunpack.c.h.b16 %v468
      %v1987 = vunpack.c.l.b16 %v469
      %v1988 = vunpack.c.h.b16 %v469
      %v1989 = vunpack.c.l.b16 %v470
      %v1990 = vunpack.c.h.b16 %v470
      %v1991 = vunpack.c.l.b16 %v471
      %v1992 = vunpack.c.h.b16 %v471
      %v1993 = vunpack.c.l.b16 %v472
      %v1994 = vunpack.c.h.b16 %v472
      %v1995 = vunpack.c.l.b16 %v473
      %v1996 = vunpack.c.h.b16 %v473
      %v1997 = vunpack.c.l.b16 %v474
      %v1998 = vunpack.c.h.b16 %v474
      %v1999 = vunpack.c.l.b16 %v475
      %v2000 = vunpack.c.h.b16 %v475
      %v2001 = vunpack.c.l.b16 %v476
      %v2002 = vunpack.c.h.b16 %v476
      %v2003 = vunpack.c.l.b16 %v477
      %v2004 = vunpack.c.h.b16 %v477
      %v2005 = vunpack.c.l.b16 %v478
      %v2006 = vunpack.c.h.b16 %v478
      %v2007 = vunpack.c.l.b16 %v479
      %v2008 = vunpack.c.h.b16 %v479
      %v2009 = vunpack.c.l.b16 %v480
      %v2010 = vunpack.c.h.b16 %v480
      %v2011 = vunpack.c.l.b16 %v481
      %v2012 = vunpack.c.h.b16 %v481
      %v2013 = vunpack.c.l.b16 %v482
      %v2014 = vunpack.c.h.b16 %v482
      %v2015 = vunpack.c.l.b16 %v483
      %v2016 = vunpack.c.h.b16 %v483
      %v2017 = vunpack.c.l.b16 %v484
      %v2018 = vunpack.c.h.b16 %v484
      %v2019 = vunpack.c.l.b16 %v485
      %v2020 = vunpack.c.h.b16 %v485
      %v2021 = vunpack.c.l.b16 %v486
      %v2022 = vunpack.c.h.b16 %v486
      %v2023 = vunpack.c.l.b16 %v487
      %v2024 = vunpack.c.h.b16 %v487
      %v2025 = vunpack.c.l.b16 %v488
      %v2026 = vunpack.c.h.b16 %v488
      %v2027 = vunpack.c.l.b16 %v489
      %v2028 = vunpack.c.h.b16 %v489
      %v2029 = vunpack.c.l.b16 %v490
      %v2030 = vunpack.c.h.b16 %v490
      %v2031 = vunpack.c.l.b16 %v491
      %v2032 = vunpack.c.h.b16 %v491
      %v2033 = vunpack.c.l.b16 %v492
      %v2034 = vunpack.c.h.b16 %v492
      %v2035 = vunpack.c.l.b16 %v493
      %v2036 = vunpack.c.h.b16 %v493
      %v2037 = vunpack.c.l.b16 %v494
      %v2038 = vunpack.c.h.b16 %v494
      %v2039 = vunpack.c.l.b16 %v495
      %v2040 = vunpack.c.h.b16 %v495
      %v2041 = vunpack.c.l.b16 %v496
      %v2042 = vunpack.c.h.b16 %v496
      %v2043 = vunpack.c.l.b16 %v497
      %v2044 = vunpack.c.h.b16 %v497
      %v2045 = vunpack.c.l.b16 %v498
      %v2046 = vunpack.c.h.b16 %v498
      %v2047 = vunpack.c.l.b16 %v499
      %v2048 = vunpack.c.h.b16 %v499
      %v2049 = vunpack.c.l.b16 %v500
      %v2050 = vunpack.c.h.b16 %v500
      %v2051 = vunpack.c.l.b16 %v501
      %v2052 = vunpack.c.h.b16 %v501
      %v2053 = vunpack.c.l.b16 %v502
      %v2054 = vunpack.c.h.b16 %v502
      %v2055 = vunpack.c.l.b16 %v503
      %v2056 = vunpack.c.h.b16 %v503
      %v2057 = vunpack.c.l.b16 %v504
      %v2058 = vunpack.c.h.b16 %v504
      %v2059 = vunpack.c.l.b16 %v505
      %v2060 = vunpack.c.h.b16 %v505
      %v2061 = vunpack.c.l.b16 %v506
      %v2062 = vunpack.c.h.b16 %v506
      %v2063 = vunpack.c.l.b16 %v507
      %v2064 = vunpack.c.h.b16 %v507
      %v2065 = vunpack.c.l.b16 %v508
      %v2066 = vunpack.c.h.b16 %v508
      %v2067 = vunpack.c.l.b16 %v509
      %v2068 = vunpack.c.h.b16 %v509
      %v2069 = vunpack.c.l.b16 %v510
      %v2070 = vunpack.c.h.b16 %v510
      %v2071 = vunpack.c.l.b16 %v511
      %v2072 = vunpack.c.h.b16 %v511
      %v2073 = vunpack.c.l.b16 %v512
      %v2074 = vunpack.c.h.b16 %v512
      %v2075 = vunpack.c.l.b16 %v513
      %v2076 = vunpack.c.h.b16 %v513
      %v2077 = vunpack.c.l.b16 %v514
      %v2078 = vunpack.c.h.b16 %v514
      %v2079 = vunpack.c.l.b16 %v515
      %v2080 = vunpack.c.h.b16 %v515
      %v2081 = vunpack.c.l.b16 %v516
      %v2082 = vunpack.c.h.b16 %v516
      %v2083 = vunpack.c.l.b16 %v517
      %v2084 = vunpack.c.h.b16 %v517
      %v2085 = vunpack.c.l.b16 %v518
      %v2086 = vunpack.c.h.b16 %v518
      %v2087 = vunpack.c.l.b16 %v519
      %v2088 = vunpack.c.h.b16 %v519
      %v2089 = vunpack.c.l.b16 %v520
      %v2090 = vunpack.c.h.b16 %v520
      %v2091 = vunpack.c.l.b16 %v521
      %v2092 = vunpack.c.h.b16 %v521
      %v2093 = vunpack.c.l.b16 %v522
      %v2094 = vunpack.c.h.b16 %v522
      %v2095 = vunpack.c.l.b16 %v523
      %v2096 = vunpack.c.h.b16 %v523
      %v2097 = vunpack.c.l.b16 %v524
      %v2098 = vunpack.c.h.b16 %v524
      %v2099 = vunpack.c.l.b16 %v525
      %v2100 = vunpack.c.h.b16 %v525
      %v2101 = vunpack.c.l.b16 %v526
      %v2102 = vunpack.c.h.b16 %v526
      %v2103 = vunpack.c.l.b16 %v527
      %v2104 = vunpack.c.h.b16 %v527
      %v2105 = vunpack.c.l.b16 %v528
      %v2106 = vunpack.c.h.b16 %v528
      %v2107 = vunpack.c.l.b16 %v529
      %v2108 = vunpack.c.h.b16 %v529
      %v2109 = vunpack.c.l.b16 %v530
      %v2110 = vunpack.c.h.b16 %v530
      %v2111 = vunpack.c.l.b16 %v531
      %v2112 = vunpack.c.h.b16 %v531
      %v2113 = vunpack.c.l.b16 %v532
      %v2114 = vunpack.c.h.b16 %v532
      %v2115 = vunpack.c.l.b16 %v533
      %v2116 = vunpack.c.h.b16 %v533
      %v2117 = vunpack.c.l.b16 %v534
      %v2118 = vunpack.c.h.b16 %v534
      %v2119 = vunpack.c.l.b16 %v535
      %v2120 = vunpack.c.h.b16 %v535
      %v2121 = vunpack.c.l.b16 %v536
      %v2122 = vunpack.c.h.b16 %v536
      %v2123 = vunpack.c.l.b16 %v537
      %v2124 = vunpack.c.h.b16 %v537
      %v2125 = vunpack.c.l.b16 %v538
      %v2126 = vunpack.c.h.b16 %v538
      %v2127 = vunpack.c.l.b16 %v539
      %v2128 = vunpack.c.h.b16 %v539
      %v2129 = vunpack.c.l.b16 %v540
      %v2130 = vunpack.c.h.b16 %v540
      %v2131 = vunpack.c.l.b16 %v541
      %v2132 = vunpack.c.h.b16 %v541
      %v2133 = vunpack.c.l.b16 %v542
      %v2134 = vunpack.c.h.b16 %v542
      %v2135 = vunpack.c.l.b16 %v543
      %v2136 = vunpack.c.h.b16 %v543
      %v2137 = vunpack.c.l.b16 %v544
      %v2138 = vunpack.c.h.b16 %v544
      %v2139 = vunpack.c.l.b16 %v545
      %v2140 = vunpack.c.h.b16 %v545
      %v2141 = vunpack.c.l.b16 %v546
      %v2142 = vunpack.c.h.b16 %v546
      %v2143 = vunpack.c.l.b16 %v547
      %v2144 = vunpack.c.h.b16 %v547
      %v2145 = vunpack.c.l.b16 %v548
      %v2146 = vunpack.c.h.b16 %v548
      %v2147 = vunpack.c.l.b16 %v549
      %v2148 = vunpack.c.h.b16 %v549
      %v2149 = vunpack.c.l.b16 %v550
      %v2150 = vunpack.c.h.b16 %v550
      %v2151 = vunpack.c.l.b16 %v551
      %v2152 = vunpack.c.h.b16 %v551
      %v2153 = vunpack.c.l.b16 %v552
      %v2154 = vunpack.c.h.b16 %v552
      %v2155 = vunpack.c.l.b16 %v553
      %v2156 = vunpack.c.h.b16 %v553
      %v2157 = vunpack.c.l.b16 %v554
      %v2158 = vunpack.c.h.b16 %v554
      %v2159 = vunpack.c.l.b16 %v555
      %v2160 = vunpack.c.h.b16 %v555
      %v2161 = vunpack.c.l.b16 %v556
      %v2162 = vunpack.c.h.b16 %v556
      %v2163 = vunpack.c.l.b16 %v557
      %v2164 = vunpack.c.h.b16 %v557
      %v2165 = vunpack.c.l.b16 %v558
      %v2166 = vunpack.c.h.b16 %v558
      %v2167 = vunpack.c.l.b16 %v559
      %v2168 = vunpack.c.h.b16 %v559
      %v2169 = vunpack.c.l.b16 %v560
      %v2170 = vunpack.c.h.b16 %v560
      %v2171 = vunpack.c.l.b16 %v561
      %v2172 = vunpack.c.h.b16 %v561
      %v2173 = vunpack.c.l.b16 %v562
      %v2174 = vunpack.c.h.b16 %v562
      %v2175 = vunpack.c.l.b16 %v563
      %v2176 = vunpack.c.h.b16 %v563
      %v2177 = vunpack.c.l.b16 %v564
      %v2178 = vunpack.c.h.b16 %v564
      %v2179 = vunpack.c.l.b16 %v565
      %v2180 = vunpack.c.h.b16 %v565
      %v2181 = vunpack.c.l.b16 %v566
      %v2182 = vunpack.c.h.b16 %v566
      %v2183 = vunpack.c.l.b16 %v567
      %v2184 = vunpack.c.h.b16 %v567
      %v2185 = vunpack.c.l.b16 %v568
      %v2186 = vunpack.c.h.b16 %v568
      %v2187 = vunpack.c.l.b16 %v569
      %v2188 = vunpack.c.h.b16 %v569
      %v2189 = vunpack.c.l.b16 %v570
      %v2190 = vunpack.c.h.b16 %v570
      %v2191 = vunpack.c.l.b16 %v571
      %v2192 = vunpack.c.h.b16 %v571
      %v2193 = vunpack.c.l.b16 %v572
      %v2194 = vunpack.c.h.b16 %v572
      %v2195 = vunpack.c.l.b16 %v573
      %v2196 = vunpack.c.h.b16 %v573
      %v2197 = vunpack.c.l.b16 %v574
      %v2198 = vunpack.c.h.b16 %v574
      %v2199 = vunpack.c.l.b16 %v575
      %v2200 = vunpack.c.h.b16 %v575
      %v2201 = vunpack.c.l.b16 %v576
      %v2202 = vunpack.c.h.b16 %v576
      %v2203 = vunpack.c.l.b16 %v577
      %v2204 = vunpack.c.h.b16 %v577
      %v2205 = vunpack.c.l.b16 %v578
      %v2206 = vunpack.c.h.b16 %v578
      %v2207 = vunpack.c.l.b16 %v579
      %v2208 = vunpack.c.h.b16 %v579
      %v2209 = vunpack.c.l.b16 %v580
      %v2210 = vunpack.c.h.b16 %v580
      %v2211 = vunpack.c.l.b16 %v581
      %v2212 = vunpack.c.h.b16 %v581
      %v2213 = vunpack.c.l.b16 %v582
      %v2214 = vunpack.c.h.b16 %v582
      %v2215 = vunpack.c.l.b16 %v583
      %v2216 = vunpack.c.h.b16 %v583
      %v2217 = vunpack.c.l.b16 %v584
      %v2218 = vunpack.c.h.b16 %v584
      %v2219 = vunpack.c.l.b16 %v585
      %v2220 = vunpack.c.h.b16 %v585
      %v2221 = vunpack.c.l.b16 %v586
      %v2222 = vunpack.c.h.b16 %v586
      %v2223 = vunpack.c.l.b16 %v587
      %v2224 = vunpack.c.h.b16 %v587
      %v2225 = vunpack.c.l.b16 %v588
      %v2226 = vunpack.c.h.b16 %v588
      %v2227 = vunpack.c.l.b16 %v589
      %v2228 = vunpack.c.h.b16 %v589
      %v2229 = vunpack.c.l.b16 %v590
      %v2230 = vunpack.c.h.b16 %v590
      %v2231 = vunpack.c.l.b16 %v591
      %v2232 = vunpack.c.h.b16 %v591
      %v2233 = vunpack.c.l.b16 %v592
      %v2234 = vunpack.c.h.b16 %v592
      %v2235 = vunpack.c.l.b16 %v593
      %v2236 = vunpack.c.h.b16 %v593
      %v2237 = vunpack.c.l.b16 %v594
      %v2238 = vunpack.c.h.b16 %v594
      %v2239 = vunpack.c.l.b16 %v595
      %v2240 = vunpack.c.h.b16 %v595
      %v2241 = vunpack.c.l.b16 %v596
      %v2242 = vunpack.c.h.b16 %v596
      %v2243 = vunpack.c.l.b16 %v597
      %v2244 = vunpack.c.h.b16 %v597
      %v2245 = vunpack.c.l.b16 %v598
      %v2246 = vunpack.c.h.b16 %v598
      %v2247 = vunpack.c.l.b16 %v599
      %v2248 = vunpack.c.h.b16 %v599
      %v2249 = vunpack.c.l.b16 %v600
      %v2250 = vunpack.c.h.b16 %v600
      %v2251 = vunpack.c.l.b16 %v601
      %v2252 = vunpack.c.h.b16 %v601
      %v2253 = vunpack.c.l.b16 %v602
      %v2254 = vunpack.c.h.b16 %v602
      %v2255 = vunpack.c.l.b16 %v603
      %v2256 = vunpack.c.h.b16 %v603
      %v2257 = vunpack.c.l.b16 %v604
      %v2258 = vunpack.c.h.b16 %v604
      %v2259 = vunpack.c.l.b16 %v605
      %v2260 = vunpack.c.h.b16 %v605
      %v2261 = vunpack.c.l.b16 %v606
      %v2262 = vunpack.c.h.b16 %v606
      %v2263 = vunpack.c.l.b16 %v607
      %v2264 = vunpack.c.h.b16 %v607
      %v2265 = vunpack.c.l.b16 %v608
      %v2266 = vunpack.c.h.b16 %v608
      %v2267 = vunpack.c.l.b16 %v609
      %v2268 = vunpack.c.h.b16 %v609
      %v2269 = vunpack.c.l.b16 %v610
      %v2270 = vunpack.c.h.b16 %v610
      %v2271 = vunpack.c.l.b16 %v611
      %v2272 = vunpack.c.h.b16 %v611
      %v2273 = vunpack.c.l.b16 %v612
      %v2274 = vunpack.c.h.b16 %v612
      %v2275 = vunpack.c.l.b16 %v613
      %v2276 = vunpack.c.h.b16 %v613
      %v2277 = vunpack.c.l.b16 %v614
      %v2278 = vunpack.c.h.b16 %v614
      %v2279 = vunpack.c.l.b16 %v615
      %v2280 = vunpack.c.h.b16 %v615
      %v2281 = vunpack.c.l.b16 %v616
      %v2282 = vunpack.c.h.b16 %v616
      %v2283 = vunpack.c.l.b16 %v617
      %v2284 = vunpack.c.h.b16 %v617
      %v2285 = vunpack.c.l.b16 %v618
      %v2286 = vunpack.c.h.b16 %v618
      %v2287 = vunpack.c.l.b16 %v619
      %v2288 = vunpack.c.h.b16 %v619
      %v2289 = vunpack.c.l.b16 %v620
      %v2290 = vunpack.c.h.b16 %v620
      %v2291 = vunpack.c.l.b16 %v621
      %v2292 = vunpack.c.h.b16 %v621
      %v2293 = vunpack.c.l.b16 %v622
      %v2294 = vunpack.c.h.b16 %v622
      %v2295 = vunpack.c.l.b16 %v623
      %v2296 = vunpack.c.h.b16 %v623
      %v2297 = vunpack.c.l.b16 %v624
      %v2298 = vunpack.c.h.b16 %v624
      %v2299 = vunpack.c.l.b16 %v625
      %v2300 = vunpack.c.h.b16 %v625
      %v2301 = vunpack.c.l.b16 %v626
      %v2302 = vunpack.c.h.b16 %v626
      %v2303 = vunpack.c.l.b16 %v627
      %v2304 = vunpack.c.h.b16 %v627
      %v2305 = vunpack.c.l.b16 %v628
      %v2306 = vunpack.c.h.b16 %v628
      %v2307 = vunpack.c.l.b16 %v629
      %v2308 = vunpack.c.h.b16 %v629
      %v2309 = vunpack.c.l.b16 %v630
      %v2310 = vunpack.c.h.b16 %v630
      %v2311 = vunpack.c.l.b16 %v631
      %v2312 = vunpack.c.h.b16 %v631
      %v2313 = vunpack.c.l.b16 %v632
      %v2314 = vunpack.c.h.b16 %v632
      %v2315 = vunpack.c.l.b16 %v633
      %v2316 = vunpack.c.h.b16 %v633
      %v2317 = vunpack.c.l.b16 %v634
      %v2318 = vunpack.c.h.b16 %v634
      %v2319 = vunpack.c.l.b16 %v635
      %v2320 = vunpack.c.h.b16 %v635
      %v2321 = vunpack.c.l.b16 %v636
      %v2322 = vunpack.c.h.b16 %v636
      %v2323 = vunpack.c.l.b16 %v637
      %v2324 = vunpack.c.h.b16 %v637
      %v2325 = vunpack.c.l.b16 %v638
      %v2326 = vunpack.c.h.b16 %v638
      %v2327 = vunpack.c.l.b16 %v639
      %v2328 = vunpack.c.h.b16 %v639
      %v2329 = vunpack.c.l.b16 %v640
      %v2330 = vunpack.c.h.b16 %v640
      %v2331 = vunpack.c.l.b16 %v641
      %v2332 = vunpack.c.h.b16 %v641
      %v2333 = vunpack.c.l.b16 %v642
      %v2334 = vunpack.c.h.b16 %v642
      %v2335 = vunpack.c.l.b16 %v643
      %v2336 = vunpack.c.h.b16 %v643
      %v2337 = vunpack.c.l.b16 %v644
      %v2338 = vunpack.c.h.b16 %v644
      %v2339 = vunpack.c.l.b16 %v645
      %v2340 = vunpack.c.h.b16 %v645
      %v2341 = vunpack.c.l.b16 %v646
      %v2342 = vunpack.c.h.b16 %v646
      %v2343 = vunpack.c.l.b16 %v647
      %v2344 = vunpack.c.h.b16 %v647
      %v2345 = vunpack.c.l.b16 %v648
      %v2346 = vunpack.c.h.b16 %v648
      %v2347 = vunpack.c.l.b16 %v649
      %v2348 = vunpack.c.h.b16 %v649
      %v2349 = vunpack.c.l.b16 %v650
      %v2350 = vunpack.c.h.b16 %v650
      %v2351 = vunpack.c.l.b16 %v651
      %v2352 = vunpack.c.h.b16 %v651
      %v2353 = vunpack.c.l.b16 %v652
      %v2354 = vunpack.c.h.b16 %v652
      %v2355 = vunpack.c.l.b16 %v653
      %v2356 = vunpack.c.h.b16 %v653
      %v2357 = vunpack.c.l.b16 %v654
      %v2358 = vunpack.c.h.b16 %v654
      %v2359 = vunpack.c.l.b16 %v655
      %v2360 = vunpack.c.h.b16 %v655
      %v2361 = vunpack.c.l.b16 %v656
      %v2362 = vunpack.c.h.b16 %v656
      %v2363 = vunpack.c.l.b16 %v657
      %v2364 = vunpack.c.h.b16 %v657
      %v2365 = vunpack.c.l.b16 %v658
      %v2366 = vunpack.c.h.b16 %v658
      %v2367 = vunpack.c.l.b16 %v659
      %v2368 = vunpack.c.h.b16 %v659
      %v2369 = vunpack.c.l.b16 %v660
      %v2370 = vunpack.c.h.b16 %v660
      %v2371 = vunpack.c.l.b16 %v661
      %v2372 = vunpack.c.h.b16 %v661
      %v2373 = vunpack.c.l.b16 %v662
      %v2374 = vunpack.c.h.b16 %v662
      %v2375 = vunpack.c.l.b16 %v663
      %v2376 = vunpack.c.h.b16 %v663
      %v2377 = vunpack.c.l.b16 %v664
      %v2378 = vunpack.c.h.b16 %v664
      %v2379 = vunpack.c.l.b16 %v665
      %v2380 = vunpack.c.h.b16 %v665
      %v2381 = vunpack.c.l.b16 %v666
      %v2382 = vunpack.c.h.b16 %v666
      %v2383 = vunpack.c.l.b16 %v667
      %v2384 = vunpack.c.h.b16 %v667
      %v2385 = vunpack.c.l.b16 %v668
      %v2386 = vunpack.c.h.b16 %v668
      %v2387 = vunpack.c.l.b16 %v669
      %v2388 = vunpack.c.h.b16 %v669
      %v2389 = vunpack.c.l.b16 %v670
      %v2390 = vunpack.c.h.b16 %v670
      %v2391 = vunpack.c.l.b16 %v671
      %v2392 = vunpack.c.h.b16 %v671
      %v2393 = vunpack.c.l.b16 %v672
      %v2394 = vunpack.c.h.b16 %v672
      %v2395 = vunpack.c.l.b16 %v673
      %v2396 = vunpack.c.h.b16 %v673
      %v2397 = vunpack.c.l.b16 %v674
      %v2398 = vunpack.c.h.b16 %v674
      %v2399 = vunpack.c.l.b16 %v675
      %v2400 = vunpack.c.h.b16 %v675
      %v2401 = vunpack.c.l.b16 %v676
      %v2402 = vunpack.c.h.b16 %v676
      %v2403 = vunpack.c.l.b16 %v677
      %v2404 = vunpack.c.h.b16 %v677
      %v2405 = vunpack.c.l.b16 %v678
      %v2406 = vunpack.c.h.b16 %v678
      %v2407 = vunpack.c.l.b16 %v679
      %v2408 = vunpack.c.h.b16 %v679
      %v2409 = vunpack.c.l.b16 %v680
      %v2410 = vunpack.c.h.b16 %v680
      %v2411 = vunpack.c.l.b16 %v681
      %v2412 = vunpack.c.h.b16 %v681
      %v2413 = vunpack.c.l.b16 %v682
      %v2414 = vunpack.c.h.b16 %v682
      %v2415 = vunpack.c.l.b16 %v683
      %v2416 = vunpack.c.h.b16 %v683
      %v2417 = vunpack.c.l.b16 %v684
      %v2418 = vunpack.c.h.b16 %v684
      %v2419 = vunpack.c.l.b16 %v685
      %v2420 = vunpack.c.h.b16 %v685
      %v2421 = vunpack.c.l.b16 %v686
      %v2422 = vunpack.c.h.b16 %v686
      %v2423 = vunpack.c.l.b16 %v687
      %v2424 = vunpack.c.h.b16 %v687
      %v2425 = vunpack.c.l.b16 %v688
      %v2426 = vunpack.c.h.b16 %v688
      %v2427 = vunpack.c.l.b16 %v689
      %v2428 = vunpack.c.h.b16 %v689
      %v2429 = vunpack.c.l.b16 %v690
      %v2430 = vunpack.c.h.b16 %v690
      %v2431 = vunpack.c.l.b16 %v691
      %v2432 = vunpack.c.h.b16 %v691
      %v2433 = vunpack.c.l.b16 %v692
      %v2434 = vunpack.c.h.b16 %v692
      %v2435 = vunpack.c.l.b16 %v693
      %v2436 = vunpack.c.h.b16 %v693
      %v2437 = vunpack.c.l.b16 %v694
      %v2438 = vunpack.c.h.b16 %v694
      %v2439 = vunpack.c.l.b16 %v695
      %v2440 = vunpack.c.h.b16 %v695
      %v2441 = vunpack.c.l.b16 %v696
      %v2442 = vunpack.c.h.b16 %v696
      %v2443 = vunpack.c.l.b16 %v697
      %v2444 = vunpack.c.h.b16 %v697
      %v2445 = vunpack.c.l.b16 %v698
      %v2446 = vunpack.c.h.b16 %v698
      %v2447 = vunpack.c.l.b16 %v699
      %v2448 = vunpack.c.h.b16 %v699
      %v2449 = vunpack.c.l.b16 %v700
      %v2450 = vunpack.c.h.b16 %v700
      %v2451 = vunpack.c.l.b16 %v701
      %v2452 = vunpack.c.h.b16 %v701
      %v2453 = vunpack.c.l.b16 %v702
      %v2454 = vunpack.c.h.b16 %v702
      %v2455 = vunpack.c.l.b16 %v703
      %v2456 = vunpack.c.h.b16 %v703
      %v2457 = vunpack.c.l.b16 %v704
      %v2458 = vunpack.c.h.b16 %v704
      %v2459 = vunpack.c.l.b16 %v705
      %v2460 = vunpack.c.h.b16 %v705
      %v2461 = vunpack.c.l.b16 %v706
      %v2462 = vunpack.c.h.b16 %v706
      %v2463 = vunpack.c.l.b16 %v707
      %v2464 = vunpack.c.h.b16 %v707
      %v2465 = vunpack.c.l.b16 %v708
      %v2466 = vunpack.c.h.b16 %v708
      %v2467 = vunpack.c.l.b16 %v709
      %v2468 = vunpack.c.h.b16 %v709
      %v2469 = vunpack.c.l.b16 %v710
      %v2470 = vunpack.c.h.b16 %v710
      %v2471 = vunpack.c.l.b16 %v711
      %v2472 = vunpack.c.h.b16 %v711
      %v2473 = vunpack.c.l.b16 %v712
      %v2474 = vunpack.c.h.b16 %v712
      %v2475 = vunpack.c.l.b16 %v713
      %v2476 = vunpack.c.h.b16 %v713
      %v2477 = vunpack.c.l.b16 %v714
      %v2478 = vunpack.c.h.b16 %v714
      %v2479 = vunpack.c.l.b16 %v715
      %v2480 = vunpack.c.h.b16 %v715
      %v2481 = vunpack.c.l.b16 %v716
      %v2482 = vunpack.c.h.b16 %v716
      %v2483 = vunpack.c.l.b16 %v717
      %v2484 = vunpack.c.h.b16 %v717
      %v2485 = vunpack.c.l.b16 %v718
      %v2486 = vunpack.c.h.b16 %v718
      %v2487 = vunpack.c.l.b16 %v719
      %v2488 = vunpack.c.h.b16 %v719
      %v2489 = vunpack.c.l.b16 %v720
      %v2490 = vunpack.c.h.b16 %v720
      %v2491 = vunpack.c.l.b16 %v721
      %v2492 = vunpack.c.h.b16 %v721
      %v2493 = vunpack.c.l.b16 %v722
      %v2494 = vunpack.c.h.b16 %v722
      %v2495 = vunpack.c.l.b16 %v723
      %v2496 = vunpack.c.h.b16 %v723
      %v2497 = vunpack.c.l.b16 %v724
      %v2498 = vunpack.c.h.b16 %v724
      %v2499 = vunpack.c.l.b16 %v725
      %v2500 = vunpack.c.h.b16 %v725
      %v2501 = vunpack.c.l.b16 %v726
      %v2502 = vunpack.c.h.b16 %v726
      %v2503 = vunpack.c.l.b16 %v727
      %v2504 = vunpack.c.h.b16 %v727
      %v2505 = vunpack.c.l.b16 %v728
      %v2506 = vunpack.c.h.b16 %v728
      %v2507 = vunpack.c.l.b16 %v729
      %v2508 = vunpack.c.h.b16 %v729
      %v2509 = vunpack.c.l.b16 %v730
      %v2510 = vunpack.c.h.b16 %v730
      %v2511 = vunpack.c.l.b16 %v731
      %v2512 = vunpack.c.h.b16 %v731
      %v2513 = vunpack.c.l.b16 %v732
      %v2514 = vunpack.c.h.b16 %v732
      %v2515 = vunpack.c.l.b16 %v733
      %v2516 = vunpack.c.h.b16 %v733
      %v2517 = vunpack.c.l.b16 %v734
      %v2518 = vunpack.c.h.b16 %v734
      %v2519 = vunpack.c.l.b16 %v735
      %v2520 = vunpack.c.h.b16 %v735
      %v2521 = vunpack.c.l.b16 %v736
      %v2522 = vunpack.c.h.b16 %v736
      %v2523 = vunpack.c.l.b16 %v737
      %v2524 = vunpack.c.h.b16 %v737
      %v2525 = vunpack.c.l.b16 %v738
      %v2526 = vunpack.c.h.b16 %v738
      %v2527 = vunpack.c.l.b16 %v739
      %v2528 = vunpack.c.h.b16 %v739
      %v2529 = vunpack.c.l.b16 %v740
      %v2530 = vunpack.c.h.b16 %v740
      %v2531 = vunpack.c.l.b16 %v741
      %v2532 = vunpack.c.h.b16 %v741
      %v2533 = vunpack.c.l.b16 %v742
      %v2534 = vunpack.c.h.b16 %v742
      %v2535 = vunpack.c.l.b16 %v743
      %v2536 = vunpack.c.h.b16 %v743
      %v2537 = vunpack.c.l.b16 %v744
      %v2538 = vunpack.c.h.b16 %v744
      %v2539 = vunpack.c.l.b16 %v745
      %v2540 = vunpack.c.h.b16 %v745
      %v2541 = vunpack.c.l.b16 %v746
      %v2542 = vunpack.c.h.b16 %v746
      %v2543 = vunpack.c.l.b16 %v747
      %v2544 = vunpack.c.h.b16 %v747
      %v2545 = vunpack.c.l.b16 %v748
      %v2546 = vunpack.c.h.b16 %v748
      %v2547 = vunpack.c.l.b16 %v749
      %v2548 = vunpack.c.h.b16 %v749
      %v2549 = vunpack.c.l.b16 %v750
      %v2550 = vunpack.c.h.b16 %v750
      %v2551 = vunpack.c.l.b16 %v751
      %v2552 = vunpack.c.h.b16 %v751
      %v2553 = vunpack.c.l.b16 %v752
      %v2554 = vunpack.c.h.b16 %v752
      %v2555 = vunpack.c.l.b16 %v753
      %v2556 = vunpack.c.h.b16 %v753
      %v2557 = vunpack.c.l.b16 %v754
      %v2558 = vunpack.c.h.b16 %v754
      %v2559 = vunpack.c.l.b16 %v755
      %v2560 = vunpack.c.h.b16 %v755
      %v2561 = vunpack.c.l.b16 %v756
      %v2562 = vunpack.c.h.b16 %v756
      %v2563 = vunpack.c.l.b16 %v757
      %v2564 = vunpack.c.h.b16 %v757
      %v2565 = vunpack.c.l.b16 %v758
      %v2566 = vunpack.c.h.b16 %v758
      %v2567 = vunpack.c.l.b16 %v759
      %v2568 = vunpack.c.h.b16 %v759
      %v2569 = vunpack.c.l.b16 %v760
      %v2570 = vunpack.c.h.b16 %v760
      %v2571 = vunpack.c.l.b16 %v761
      %v2572 = vunpack.c.h.b16 %v761
      %v2573 = vunpack.c.l.b16 %v762
      %v2574 = vunpack.c.h.b16 %v762
      %v2575 = vunpack.c.l.b16 %v763
      %v2576 = vunpack.c.h.b16 %v763
      %v2577 = vunpack.c.l.b16 %v764
      %v2578 = vunpack.c.h.b16 %v764
      %v2579 = vunpack.c.l.b16 %v765
      %v2580 = vunpack.c.h.b16 %v765
      %v2581 = vunpack.c.l.b16 %v766
      %v2582 = vunpack.c.h.b16 %v766
      %v2583 = vunpack.c.l.b16 %v767
      %v2584 = vunpack.c.h.b16 %v767
      %v2585 = vunpack.c.l.b16 %v768
      %v2586 = vunpack.c.h.b16 %v768
      %v2587 = vunpack.c.l.b16 %v769
      %v2588 = vunpack.c.h.b16 %v769
      %v2589 = vunpack.c.l.b16 %v770
      %v2590 = vunpack.c.h.b16 %v770
      %v2591 = vunpack.c.l.b16 %v771
      %v2592 = vunpack.c.h.b16 %v771
      %v2593 = vunpack.c.l.b16 %v772
      %v2594 = vunpack.c.h.b16 %v772
      %v2595 = vunpack.c.l.b16 %v773
      %v2596 = vunpack.c.h.b16 %v773
      %v2597 = vunpack.c.l.b16 %v774
      %v2598 = vunpack.c.h.b16 %v774
      %v2599 = vunpack.c.l.b16 %v775
      %v2600 = vunpack.c.h.b16 %v775
      %v2601 = vunpack.c.l.b16 %v776
      %v2602 = vunpack.c.h.b16 %v776
      %v2603 = vunpack.c.l.b16 %v777
      %v2604 = vunpack.c.h.b16 %v777
      %v2605 = vunpack.c.l.b16 %v778
      %v2606 = vunpack.c.h.b16 %v778
      %v2607 = vunpack.c.l.b16 %v779
      %v2608 = vunpack.c.h.b16 %v779
      %v2609 = vunpack.c.l.b16 %v780
      %v2610 = vunpack.c.h.b16 %v780
      %v2611 = vunpack.c.l.b16 %v781
      %v2612 = vunpack.c.h.b16 %v781
      %v2613 = vunpack.c.l.b16 %v782
      %v2614 = vunpack.c.h.b16 %v782
      %v2615 = vunpack.c.l.b16 %v783
      %v2616 = vunpack.c.h.b16 %v783
      %v2617 = vunpack.c.l.b16 %v784
      %v2618 = vunpack.c.h.b16 %v784
      %v2619 = vunpack.c.l.b16 %v785
      %v2620 = vunpack.c.h.b16 %v785
      %v2621 = vunpack.c.l.b16 %v786
      %v2622 = vunpack.c.h.b16 %v786
      %v2623 = vunpack.c.l.b16 %v787
      %v2624 = vunpack.c.h.b16 %v787
      %v2625 = vunpack.c.l.b16 %v788
      %v2626 = vunpack.c.h.b16 %v788
      %v2627 = vunpack.c.l.b16 %v789
      %v2628 = vunpack.c.h.b16 %v789
      %v2629 = vunpack.c.l.b16 %v790
      %v2630 = vunpack.c.h.b16 %v790
      %v2631 = vunpack.c.l.b16 %v791
      %v2632 = vunpack.c.h.b16 %v791
      %v2633 = vunpack.c.l.b16 %v792
      %v2634 = vunpack.c.h.b16 %v792
      %v2635 = vunpack.c.l.b16 %v793
      %v2636 = vunpack.c.h.b16 %v793
      %v2637 = vunpack.c.l.b16 %v794
      %v2638 = vunpack.c.h.b16 %v794
      %v2639 = vunpack.c.l.b16 %v795
      %v2640 = vunpack.c.h.b16 %v795
      %v2641 = vunpack.c.l.b16 %v796
      %v2642 = vunpack.c.h.b16 %v796
      %v2643 = vunpack.c.l.b16 %v797
      %v2644 = vunpack.c.h.b16 %v797
      %v2645 = vunpack.c.l.b16 %v798
      %v2646 = vunpack.c.h.b16 %v798
      %v2647 = vunpack.c.l.b16 %v799
      %v2648 = vunpack.c.h.b16 %v799
      %v2649 = vunpack.c.l.b16 %v800
      %v2650 = vunpack.c.h.b16 %v800
      %v2651 = vunpack.c.l.b16 %v801
      %v2652 = vunpack.c.h.b16 %v801
      %v2653 = vunpack.c.l.b16 %v802
      %v2654 = vunpack.c.h.b16 %v802
      %v2655 = vunpack.c.l.b16 %v803
      %v2656 = vunpack.c.h.b16 %v803
      %v2657 = vunpack.c.l.b16 %v804
      %v2658 = vunpack.c.h.b16 %v804
      %v2659 = vunpack.c.l.b16 %v805
      %v2660 = vunpack.c.h.b16 %v805
      %v2661 = vunpack.c.l.b16 %v806
      %v2662 = vunpack.c.h.b16 %v806
      %v2663 = vunpack.c.l.b16 %v807
      %v2664 = vunpack.c.h.b16 %v807
      %v2665 = vunpack.c.l.b16 %v808
      %v2666 = vunpack.c.h.b16 %v808
      %v2667 = vunpack.c.l.b16 %v809
      %v2668 = vunpack.c.h.b16 %v809
      %v2669 = vunpack.c.l.b16 %v810
      %v2670 = vunpack.c.h.b16 %v810
      %v2671 = vunpack.c.l.b16 %v811
      %v2672 = vunpack.c.h.b16 %v811
      %v2673 = vunpack.c.l.b16 %v812
      %v2674 = vunpack.c.h.b16 %v812
      %v2675 = vunpack.c.l.b16 %v813
      %v2676 = vunpack.c.h.b16 %v813
      %v2677 = vunpack.c.l.b16 %v814
      %v2678 = vunpack.c.h.b16 %v814
      %v2679 = vunpack.c.l.b16 %v815
      %v2680 = vunpack.c.h.b16 %v815
      %v2681 = vunpack.c.l.b16 %v816
      %v2682 = vunpack.c.h.b16 %v816
      %v2683 = vunpack.c.l.b16 %v817
      %v2684 = vunpack.c.h.b16 %v817
      %v2685 = vunpack.c.l.b16 %v818
      %v2686 = vunpack.c.h.b16 %v818
      %v2687 = vunpack.c.l.b16 %v819
      %v2688 = vunpack.c.h.b16 %v819
      %v2689 = vpack.c.b16 %v1541, %v1537
      %v2690 = vpack.c.b16 %v1542, %v1538
      %v2691 = vpack.c.b16 %v1543, %v1539
      %v2692 = vpack.c.b16 %v1544, %v1540
      %v2693 = vpack.c.b16 %v1549, %v1545
      %v2694 = vpack.c.b16 %v1550, %v1546
      %v2695 = vpack.c.b16 %v1551, %v1547
      %v2696 = vpack.c.b16 %v1552, %v1548
      %v2697 = vpack.c.b16 %v1557, %v1553
      %v2698 = vpack.c.b16 %v1558, %v1554
      %v2699 = vpack.c.b16 %v1559, %v1555
      %v2700 = vpack.c.b16 %v1560, %v1556
      %v2701 = vpack.c.b16 %v1565, %v1561
      %v2702 = vpack.c.b16 %v1566, %v1562
      %v2703 = vpack.c.b16 %v1567, %v1563
      %v2704 = vpack.c.b16 %v1568, %v1564
      %v2705 = vpack.c.b16 %v1573, %v1569
      %v2706 = vpack.c.b16 %v1574, %v1570
      %v2707 = vpack.c.b16 %v1575, %v1571
      %v2708 = vpack.c.b16 %v1576, %v1572
      %v2709 = vpack.c.b16 %v1581, %v1577
      %v2710 = vpack.c.b16 %v1582, %v1578
      %v2711 = vpack.c.b16 %v1583, %v1579
      %v2712 = vpack.c.b16 %v1584, %v1580
      %v2713 = vpack.c.b16 %v1589, %v1585
      %v2714 = vpack.c.b16 %v1590, %v1586
      %v2715 = vpack.c.b16 %v1591, %v1587
      %v2716 = vpack.c.b16 %v1592, %v1588
      %v2717 = vpack.c.b16 %v1597, %v1593
      %v2718 = vpack.c.b16 %v1598, %v1594
      %v2719 = vpack.c.b16 %v1599, %v1595
      %v2720 = vpack.c.b16 %v1600, %v1596
      %v2721 = vpack.c.b16 %v1605, %v1601
      %v2722 = vpack.c.b16 %v1606, %v1602
      %v2723 = vpack.c.b16 %v1607, %v1603
      %v2724 = vpack.c.b16 %v1608, %v1604
      %v2725 = vpack.c.b16 %v1613, %v1609
      %v2726 = vpack.c.b16 %v1614, %v1610
      %v2727 = vpack.c.b16 %v1615, %v1611
      %v2728 = vpack.c.b16 %v1616, %v1612
      %v2729 = vpack.c.b16 %v1621, %v1617
      %v2730 = vpack.c.b16 %v1622, %v1618
      %v2731 = vpack.c.b16 %v1623, %v1619
      %v2732 = vpack.c.b16 %v1624, %v1620
      %v2733 = vpack.c.b16 %v1629, %v1625
      %v2734 = vpack.c.b16 %v1630, %v1626
      %v2735 = vpack.c.b16 %v1631, %v1627
      %v2736 = vpack.c.b16 %v1632, %v1628
      %v2737 = vpack.c.b16 %v1637, %v1633
      %v2738 = vpack.c.b16 %v1638, %v1634
      %v2739 = vpack.c.b16 %v1639, %v1635
      %v2740 = vpack.c.b16 %v1640, %v1636
      %v2741 = vpack.c.b16 %v1645, %v1641
      %v2742 = vpack.c.b16 %v1646, %v1642
      %v2743 = vpack.c.b16 %v1647, %v1643
      %v2744 = vpack.c.b16 %v1648, %v1644
      %v2745 = vpack.c.b16 %v1653, %v1649
      %v2746 = vpack.c.b16 %v1654, %v1650
      %v2747 = vpack.c.b16 %v1655, %v1651
      %v2748 = vpack.c.b16 %v1656, %v1652
      %v2749 = vpack.c.b16 %v1661, %v1657
      %v2750 = vpack.c.b16 %v1662, %v1658
      %v2751 = vpack.c.b16 %v1663, %v1659
      %v2752 = vpack.c.b16 %v1664, %v1660
      %v2753 = vpack.c.b16 %v1669, %v1665
      %v2754 = vpack.c.b16 %v1670, %v1666
      %v2755 = vpack.c.b16 %v1671, %v1667
      %v2756 = vpack.c.b16 %v1672, %v1668
      %v2757 = vpack.c.b16 %v1677, %v1673
      %v2758 = vpack.c.b16 %v1678, %v1674
      %v2759 = vpack.c.b16 %v1679, %v1675
      %v2760 = vpack.c.b16 %v1680, %v1676
      %v2761 = vpack.c.b16 %v1685, %v1681
      %v2762 = vpack.c.b16 %v1686, %v1682
      %v2763 = vpack.c.b16 %v1687, %v1683
      %v2764 = vpack.c.b16 %v1688, %v1684
      %v2765 = vpack.c.b16 %v1693, %v1689
      %v2766 = vpack.c.b16 %v1694, %v1690
      %v2767 = vpack.c.b16 %v1695, %v1691
      %v2768 = vpack.c.b16 %v1696, %v1692
      %v2769 = vpack.c.b16 %v1701, %v1697
      %v2770 = vpack.c.b16 %v1702, %v1698
      %v2771 = vpack.c.b16 %v1703, %v1699
      %v2772 = vpack.c.b16 %v1704, %v1700
      %v2773 = vpack.c.b16 %v1709, %v1705
      %v2774 = vpack.c.b16 %v1710, %v1706
      %v2775 = vpack.c.b16 %v1711, %v1707
      %v2776 = vpack.c.b16 %v1712, %v1708
      %v2777 = vpack.c.b16 %v1717, %v1713
      %v2778 = vpack.c.b16 %v1718, %v1714
      %v2779 = vpack.c.b16 %v1719, %v1715
      %v2780 = vpack.c.b16 %v1720, %v1716
      %v2781 = vpack.c.b16 %v1725, %v1721
      %v2782 = vpack.c.b16 %v1726, %v1722
      %v2783 = vpack.c.b16 %v1727, %v1723
      %v2784 = vpack.c.b16 %v1728, %v1724
      %v2785 = vpack.c.b16 %v1733, %v1729
      %v2786 = vpack.c.b16 %v1734, %v1730
      %v2787 = vpack.c.b16 %v1735, %v1731
      %v2788 = vpack.c.b16 %v1736, %v1732
      %v2789 = vpack.c.b16 %v1741, %v1737
      %v2790 = vpack.c.b16 %v1742, %v1738
      %v2791 = vpack.c.b16 %v1743, %v1739
      %v2792 = vpack.c.b16 %v1744, %v1740
      %v2793 = vpack.c.b16 %v1749, %v1745
      %v2794 = vpack.c.b16 %v1750, %v1746
      %v2795 = vpack.c.b16 %v1751, %v1747
      %v2796 = vpack.c.b16 %v1752, %v1748
      %v2797 = vpack.c.b16 %v1757, %v1753
      %v2798 = vpack.c.b16 %v1758, %v1754
      %v2799 = vpack.c.b16 %v1759, %v1755
      %v2800 = vpack.c.b16 %v1760, %v1756
      %v2801 = vpack.c.b16 %v1765, %v1761
      %v2802 = vpack.c.b16 %v1766, %v1762
      %v2803 = vpack.c.b16 %v1767, %v1763
      %v2804 = vpack.c.b16 %v1768, %v1764
      %v2805 = vpack.c.b16 %v1773, %v1769
      %v2806 = vpack.c.b16 %v1774, %v1770
      %v2807 = vpack.c.b16 %v1775, %v1771
      %v2808 = vpack.c.b16 %v1776, %v1772
      %v2809 = vpack.c.b16 %v1781, %v1777
      %v2810 = vpack.c.b16 %v1782, %v1778
      %v2811 = vpack.c.b16 %v1783, %v1779
      %v2812 = vpack.c.b16 %v1784, %v1780
      %v2813 = vpack.c.b16 %v1789, %v1785
      %v2814 = vpack.c.b16 %v1790, %v1786
      %v2815 = vpack.c.b16 %v1791, %v1787
      %v2816 = vpack.c.b16 %v1792, %v1788
      %v2817 = vpack.c.b16 %v1797, %v1793
      %v2818 = vpack.c.b16 %v1798, %v1794
      %v2819 = vpack.c.b16 %v1799, %v1795
      %v2820 = vpack.c.b16 %v1800, %v1796
      %v2821 = vpack.c.b16 %v1805, %v1801
      %v2822 = vpack.c.b16 %v1806, %v1802
      %v2823 = vpack.c.b16 %v1807, %v1803
      %v2824 = vpack.c.b16 %v1808, %v1804
      %v2825 = vpack.c.b16 %v1813, %v1809
      %v2826 = vpack.c.b16 %v1814, %v1810
      %v2827 = vpack.c.b16 %v1815, %v1811
      %v2828 = vpack.c.b16 %v1816, %v1812
      %v2829 = vpack.c.b16 %v1821, %v1817
      %v2830 = vpack.c.b16 %v1822, %v1818
      %v2831 = vpack.c.b16 %v1823, %v1819
      %v2832 = vpack.c.b16 %v1824, %v1820
      %v2833 = vpack.c.b16 %v1829, %v1825
      %v2834 = vpack.c.b16 %v1830, %v1826
      %v2835 = vpack.c.b16 %v1831, %v1827
      %v2836 = vpack.c.b16 %v1832, %v1828
      %v2837 = vpack.c.b16 %v1837, %v1833
      %v2838 = vpack.c.b16 %v1838, %v1834
      %v2839 = vpack.c.b16 %v1839, %v1835
      %v2840 = vpack.c.b16 %v1840, %v1836
      %v2841 = vpack.c.b16 %v1845, %v1841
      %v2842 = vpack.c.b16 %v1846, %v1842
      %v2843 = vpack.c.b16 %v1847, %v1843
      %v2844 = vpack.c.b16 %v1848, %v1844
      %v2845 = vpack.c.b16 %v1853, %v1849
      %v2846 = vpack.c.b16 %v1854, %v1850
      %v2847 = vpack.c.b16 %v1855, %v1851
      %v2848 = vpack.c.b16 %v1856, %v1852
      %v2849 = vpack.c.b16 %v1861, %v1857
      %v2850 = vpack.c.b16 %v1862, %v1858
      %v2851 = vpack.c.b16 %v1863, %v1859
      %v2852 = vpack.c.b16 %v1864, %v1860
      %v2853 = vpack.c.b16 %v1869, %v1865
      %v2854 = vpack.c.b16 %v1870, %v1866
      %v2855 = vpack.c.b16 %v1871, %v1867
      %v2856 = vpack.c.b16 %v1872, %v1868
      %v2857 = vpack.c.b16 %v1877, %v1873
      %v2858 = vpack.c.b16 %v1878, %v1874
      %v2859 = vpack.c.b16 %v1879, %v1875
      %v2860 = vpack.c.b16 %v1880, %v1876
      %v2861 = vpack.c.b16 %v1885, %v1881
      %v2862 = vpack.c.b16 %v1886, %v1882
      %v2863 = vpack.c.b16 %v1887, %v1883
      %v2864 = vpack.c.b16 %v1888, %v1884
      %v2865 = vpack.c.b16 %v1893, %v1889
      %v2866 = vpack.c.b16 %v1894, %v1890
      %v2867 = vpack.c.b16 %v1895, %v1891
      %v2868 = vpack.c.b16 %v1896, %v1892
      %v2869 = vpack.c.b16 %v1901, %v1897
      %v2870 = vpack.c.b16 %v1902, %v1898
      %v2871 = vpack.c.b16 %v1903, %v1899
      %v2872 = vpack.c.b16 %v1904, %v1900
      %v2873 = vpack.c.b16 %v1909, %v1905
      %v2874 = vpack.c.b16 %v1910, %v1906
      %v2875 = vpack.c.b16 %v1911, %v1907
      %v2876 = vpack.c.b16 %v1912, %v1908
      %v2877 = vpack.c.b16 %v1917, %v1913
      %v2878 = vpack.c.b16 %v1918, %v1914
      %v2879 = vpack.c.b16 %v1919, %v1915
      %v2880 = vpack.c.b16 %v1920, %v1916
      %v2881 = vpack.c.b16 %v1925, %v1921
      %v2882 = vpack.c.b16 %v1926, %v1922
      %v2883 = vpack.c.b16 %v1927, %v1923
      %v2884 = vpack.c.b16 %v1928, %v1924
      %v2885 = vpack.c.b16 %v1933, %v1929
      %v2886 = vpack.c.b16 %v1934, %v1930
      %v2887 = vpack.c.b16 %v1935, %v1931
      %v2888 = vpack.c.b16 %v1936, %v1932
      %v2889 = vpack.c.b16 %v1941, %v1937
      %v2890 = vpack.c.b16 %v1942, %v1938
      %v2891 = vpack.c.b16 %v1943, %v1939
      %v2892 = vpack.c.b16 %v1944, %v1940
      %v2893 = vpack.c.b16 %v1949, %v1945
      %v2894 = vpack.c.b16 %v1950, %v1946
      %v2895 = vpack.c.b16 %v1951, %v1947
      %v2896 = vpack.c.b16 %v1952, %v1948
      %v2897 = vpack.c.b16 %v1957, %v1953
      %v2898 = vpack.c.b16 %v1958, %v1954
      %v2899 = vpack.c.b16 %v1959, %v1955
      %v2900 = vpack.c.b16 %v1960, %v1956
      %v2901 = vpack.c.b16 %v1965, %v1961
      %v2902 = vpack.c.b16 %v1966, %v1962
      %v2903 = vpack.c.b16 %v1967, %v1963
      %v2904 = vpack.c.b16 %v1968, %v1964
      %v2905 = vpack.c.b16 %v1973, %v1969
      %v2906 = vpack.c.b16 %v1974, %v1970
      %v2907 = vpack.c.b16 %v1975, %v1971
      %v2908 = vpack.c.b16 %v1976, %v1972
      %v2909 = vpack.c.b16 %v1981, %v1977
      %v2910 = vpack.c.b16 %v1982, %v1978
      %v2911 = vpack.c.b16 %v1983, %v1979
      %v2912 = vpack.c.b16 %v1984, %v1980
      %v2913 = vpack.c.b16 %v1989, %v1985
      %v2914 = vpack.c.b16 %v1990, %v1986
      %v2915 = vpack.c.b16 %v1991, %v1987
      %v2916 = vpack.c.b16 %v1992, %v1988
      %v2917 = vpack.c.b16 %v1997, %v1993
      %v2918 = vpack.c.b16 %v1998, %v1994
      %v2919 = vpack.c.b16 %v1999, %v1995
      %v2920 = vpack.c.b16 %v2000, %v1996
      %v2921 = vpack.c.b16 %v2005, %v2001
      %v2922 = vpack.c.b16 %v2006, %v2002
      %v2923 = vpack.c.b16 %v2007, %v2003
      %v2924 = vpack.c.b16 %v2008, %v2004
      %v2925 = vpack.c.b16 %v2013, %v2009
      %v2926 = vpack.c.b16 %v2014, %v2010
      %v2927 = vpack.c.b16 %v2015, %v2011
      %v2928 = vpack.c.b16 %v2016, %v2012
      %v2929 = vpack.c.b16 %v2021, %v2017
      %v2930 = vpack.c.b16 %v2022, %v2018
      %v2931 = vpack.c.b16 %v2023, %v2019
      %v2932 = vpack.c.b16 %v2024, %v2020
      %v2933 = vpack.c.b16 %v2029, %v2025
      %v2934 = vpack.c.b16 %v2030, %v2026
      %v2935 = vpack.c.b16 %v2031, %v2027
      %v2936 = vpack.c.b16 %v2032, %v2028
      %v2937 = vpack.c.b16 %v2037, %v2033
      %v2938 = vpack.c.b16 %v2038, %v2034
      %v2939 = vpack.c.b16 %v2039, %v2035
      %v2940 = vpack.c.b16 %v2040, %v2036
      %v2941 = vpack.c.b16 %v2045, %v2041
      %v2942 = vpack.c.b16 %v2046, %v2042
      %v2943 = vpack.c.b16 %v2047, %v2043
      %v2944 = vpack.c.b16 %v2048, %v2044
      %v2945 = vpack.c.b16 %v2053, %v2049
      %v2946 = vpack.c.b16 %v2054, %v2050
      %v2947 = vpack.c.b16 %v2055, %v2051
      %v2948 = vpack.c.b16 %v2056, %v2052
      %v2949 = vpack.c.b16 %v2061, %v2057
      %v2950 = vpack.c.b16 %v2062, %v2058
      %v2951 = vpack.c.b16 %v2063, %v2059
      %v2952 = vpack.c.b16 %v2064, %v2060
      %v2953 = vpack.c.b16 %v2069, %v2065
      %v2954 = vpack.c.b16 %v2070, %v2066
      %v2955 = vpack.c.b16 %v2071, %v2067
      %v2956 = vpack.c.b16 %v2072, %v2068
      %v2957 = vpack.c.b16 %v2077, %v2073
      %v2958 = vpack.c.b16 %v2078, %v2074
      %v2959 = vpack.c.b16 %v2079, %v2075
      %v2960 = vpack.c.b16 %v2080, %v2076
      %v2961 = vpack.c.b16 %v2085, %v2081
      %v2962 = vpack.c.b16 %v2086, %v2082
      %v2963 = vpack.c.b16 %v2087, %v2083
      %v2964 = vpack.c.b16 %v2088, %v2084
      %v2965 = vpack.c.b16 %v2093, %v2089
      %v2966 = vpack.c.b16 %v2094, %v2090
      %v2967 = vpack.c.b16 %v2095, %v2091
      %v2968 = vpack.c.b16 %v2096, %v2092
      %v2969 = vpack.c.b16 %v2101, %v2097
      %v2970 = vpack.c.b16 %v2102, %v2098
      %v2971 = vpack.c.b16 %v2103, %v2099
      %v2972 = vpack.c.b16 %v2104, %v2100
      %v2973 = vpack.c.b16 %v2109, %v2105
      %v2974 = vpack.c.b16 %v2110, %v2106
      %v2975 = vpack.c.b16 %v2111, %v2107
      %v2976 = vpack.c.b16 %v2112, %v2108
      %v2977 = vpack.c.b16 %v2117, %v2113
      %v2978 = vpack.c.b16 %v2118, %v2114
      %v2979 = vpack.c.b16 %v2119, %v2115
      %v2980 = vpack.c.b16 %v2120, %v2116
      %v2981 = vpack.c.b16 %v2125, %v2121
      %v2982 = vpack.c.b16 %v2126, %v2122
      %v2983 = vpack.c.b16 %v2127, %v2123
      %v2984 = vpack.c.b16 %v2128, %v2124
      %v2985 = vpack.c.b16 %v2133, %v2129
      %v2986 = vpack.c.b16 %v2134, %v2130
      %v2987 = vpack.c.b16 %v2135, %v2131
      %v2988 = vpack.c.b16 %v2136, %v2132
      %v2989 = vpack.c.b16 %v2141, %v2137
      %v2990 = vpack.c.b16 %v2142, %v2138
      %v2991 = vpack.c.b16 %v2143, %v2139
      %v2992 = vpack.c.b16 %v2144, %v2140
      %v2993 = vpack.c.b16 %v2149, %v2145
      %v2994 = vpack.c.b16 %v2150, %v2146
      %v2995 = vpack.c.b16 %v2151, %v2147
      %v2996 = vpack.c.b16 %v2152, %v2148
      %v2997 = vpack.c.b16 %v2157, %v2153
      %v2998 = vpack.c.b16 %v2158, %v2154
      %v2999 = vpack.c.b16 %v2159, %v2155
      %v3000 = vpack.c.b16 %v2160, %v2156
      %v3001 = vpack.c.b16 %v2165, %v2161
      %v3002 = vpack.c.b16 %v2166, %v2162
      %v3003 = vpack.c.b16 %v2167, %v2163
      %v3004 = vpack.c.b16 %v2168, %v2164
      %v3005 = vpack.c.b16 %v2173, %v2169
      %v3006 = vpack.c.b16 %v2174, %v2170
      %v3007 = vpack.c.b16 %v2175, %v2171
      %v3008 = vpack.c.b16 %v2176, %v2172
      %v3009 = vpack.c.b16 %v2181, %v2177
      %v3010 = vpack.c.b16 %v2182, %v2178
      %v3011 = vpack.c.b16 %v2183, %v2179
      %v3012 = vpack.c.b16 %v2184, %v2180
      %v3013 = vpack.c.b16 %v2189, %v2185
      %v3014 = vpack.c.b16 %v2190, %v2186
      %v3015 = vpack.c.b16 %v2191, %v2187
      %v3016 = vpack.c.b16 %v2192, %v2188
      %v3017 = vpack.c.b16 %v2197, %v2193
      %v3018 = vpack.c.b16 %v2198, %v2194
      %v3019 = vpack.c.b16 %v2199, %v2195
      %v3020 = vpack.c.b16 %v2200, %v2196
      %v3021 = vpack.c.b16 %v2205, %v2201
      %v3022 = vpack.c.b16 %v2206, %v2202
      %v3023 = vpack.c.b16 %v2207, %v2203
      %v3024 = vpack.c.b16 %v2208, %v2204
      %v3025 = vpack.c.b16 %v2213, %v2209
      %v3026 = vpack.c.b16 %v2214, %v2210
      %v3027 = vpack.c.b16 %v2215, %v2211
      %v3028 = vpack.c.b16 %v2216, %v2212
      %v3029 = vpack.c.b16 %v2221, %v2217
      %v3030 = vpack.c.b16 %v2222, %v2218
      %v3031 = vpack.c.b16 %v2223, %v2219
      %v3032 = vpack.c.b16 %v2224, %v2220
      %v3033 = vpack.c.b16 %v2229, %v2225
      %v3034 = vpack.c.b16 %v2230, %v2226
      %v3035 = vpack.c.b16 %v2231, %v2227
      %v3036 = vpack.c.b16 %v2232, %v2228
      %v3037 = vpack.c.b16 %v2237, %v2233
      %v3038 = vpack.c.b16 %v2238, %v2234
      %v3039 = vpack.c.b16 %v2239, %v2235
      %v3040 = vpack.c.b16 %v2240, %v2236
      %v3041 = vpack.c.b16 %v2245, %v2241
      %v3042 = vpack.c.b16 %v2246, %v2242
      %v3043 = vpack.c.b16 %v2247, %v2243
      %v3044 = vpack.c.b16 %v2248, %v2244
      %v3045 = vpack.c.b16 %v2253, %v2249
      %v3046 = vpack.c.b16 %v2254, %v2250
      %v3047 = vpack.c.b16 %v2255, %v2251
      %v3048 = vpack.c.b16 %v2256, %v2252
      %v3049 = vpack.c.b16 %v2261, %v2257
      %v3050 = vpack.c.b16 %v2262, %v2258
      %v3051 = vpack.c.b16 %v2263, %v2259
      %v3052 = vpack.c.b16 %v2264, %v2260
      %v3053 = vpack.c.b16 %v2269, %v2265
      %v3054 = vpack.c.b16 %v2270, %v2266
      %v3055 = vpack.c.b16 %v2271, %v2267
      %v3056 = vpack.c.b16 %v2272, %v2268
      %v3057 = vpack.c.b16 %v2277, %v2273
      %v3058 = vpack.c.b16 %v2278, %v2274
      %v3059 = vpack.c.b16 %v2279, %v2275
      %v3060 = vpack.c.b16 %v2280, %v2276
      %v3061 = vpack.c.b16 %v2285, %v2281
      %v3062 = vpack.c.b16 %v2286, %v2282
      %v3063 = vpack.c.b16 %v2287, %v2283
      %v3064 = vpack.c.b16 %v2288, %v2284
      %v3065 = vpack.c.b16 %v2293, %v2289
      %v3066 = vpack.c.b16 %v2294, %v2290
      %v3067 = vpack.c.b16 %v2295, %v2291
      %v3068 = vpack.c.b16 %v2296, %v2292
      %v3069 = vpack.c.b16 %v2301, %v2297
      %v3070 = vpack.c.b16 %v2302, %v2298
      %v3071 = vpack.c.b16 %v2303, %v2299
      %v3072 = vpack.c.b16 %v2304, %v2300
      %v3073 = vpack.c.b16 %v2309, %v2305
      %v3074 = vpack.c.b16 %v2310, %v2306
      %v3075 = vpack.c.b16 %v2311, %v2307
      %v3076 = vpack.c.b16 %v2312, %v2308
      %v3077 = vpack.c.b16 %v2317, %v2313
      %v3078 = vpack.c.b16 %v2318, %v2314
      %v3079 = vpack.c.b16 %v2319, %v2315
      %v3080 = vpack.c.b16 %v2320, %v2316
      %v3081 = vpack.c.b16 %v2325, %v2321
      %v3082 = vpack.c.b16 %v2326, %v2322
      %v3083 = vpack.c.b16 %v2327, %v2323
      %v3084 = vpack.c.b16 %v2328, %v2324
      %v3085 = vpack.c.b16 %v2333, %v2329
      %v3086 = vpack.c.b16 %v2334, %v2330
      %v3087 = vpack.c.b16 %v2335, %v2331
      %v3088 = vpack.c.b16 %v2336, %v2332
      %v3089 = vpack.c.b16 %v2341, %v2337
      %v3090 = vpack.c.b16 %v2342, %v2338
      %v3091 = vpack.c.b16 %v2343, %v2339
      %v3092 = vpack.c.b16 %v2344, %v2340
      %v3093 = vpack.c.b16 %v2349, %v2345
      %v3094 = vpack.c.b16 %v2350, %v2346
      %v3095 = vpack.c.b16 %v2351, %v2347
      %v3096 = vpack.c.b16 %v2352, %v2348
      %v3097 = vpack.c.b16 %v2357, %v2353
      %v3098 = vpack.c.b16 %v2358, %v2354
      %v3099 = vpack.c.b16 %v2359, %v2355
      %v3100 = vpack.c.b16 %v2360, %v2356
      %v3101 = vpack.c.b16 %v2365, %v2361
      %v3102 = vpack.c.b16 %v2366, %v2362
      %v3103 = vpack.c.b16 %v2367, %v2363
      %v3104 = vpack.c.b16 %v2368, %v2364
      %v3105 = vpack.c.b16 %v2373, %v2369
      %v3106 = vpack.c.b16 %v2374, %v2370
      %v3107 = vpack.c.b16 %v2375, %v2371
      %v3108 = vpack.c.b16 %v2376, %v2372
      %v3109 = vpack.c.b16 %v2381, %v2377
      %v3110 = vpack.c.b16 %v2382, %v2378
      %v3111 = vpack.c.b16 %v2383, %v2379
      %v3112 = vpack.c.b16 %v2384, %v2380
      %v3113 = vpack.c.b16 %v2389, %v2385
      %v3114 = vpack.c.b16 %v2390, %v2386
      %v3115 = vpack.c.b16 %v2391, %v2387
      %v3116 = vpack.c.b16 %v2392, %v2388
      %v3117 = vpack.c.b16 %v2397, %v2393
      %v3118 = vpack.c.b16 %v2398, %v2394
      %v3119 = vpack.c.b16 %v2399, %v2395
      %v3120 = vpack.c.b16 %v2400, %v2396
      %v3121 = vpack.c.b16 %v2405, %v2401
      %v3122 = vpack.c.b16 %v2406, %v2402
      %v3123 = vpack.c.b16 %v2407, %v2403
      %v3124 = vpack.c.b16 %v2408, %v2404
      %v3125 = vpack.c.b16 %v2413, %v2409
      %v3126 = vpack.c.b16 %v2414, %v2410
      %v3127 = vpack.c.b16 %v2415, %v2411
      %v3128 = vpack.c.b16 %v2416, %v2412
      %v3129 = vpack.c.b16 %v2421, %v2417
      %v3130 = vpack.c.b16 %v2422, %v2418
      %v3131 = vpack.c.b16 %v2423, %v2419
      %v3132 = vpack.c.b16 %v2424, %v2420
      %v3133 = vpack.c.b16 %v2429, %v2425
      %v3134 = vpack.c.b16 %v2430, %v2426
      %v3135 = vpack.c.b16 %v2431, %v2427
      %v3136 = vpack.c.b16 %v2432, %v2428
      %v3137 = vpack.c.b16 %v2437, %v2433
      %v3138 = vpack.c.b16 %v2438, %v2434
      %v3139 = vpack.c.b16 %v2439, %v2435
      %v3140 = vpack.c.b16 %v2440, %v2436
      %v3141 = vpack.c.b16 %v2445, %v2441
      %v3142 = vpack.c.b16 %v2446, %v2442
      %v3143 = vpack.c.b16 %v2447, %v2443
      %v3144 = vpack.c.b16 %v2448, %v2444
      %v3145 = vpack.c.b16 %v2453, %v2449
      %v3146 = vpack.c.b16 %v2454, %v2450
      %v3147 = vpack.c.b16 %v2455, %v2451
      %v3148 = vpack.c.b16 %v2456, %v2452
      %v3149 = vpack.c.b16 %v2461, %v2457
      %v3150 = vpack.c.b16 %v2462, %v2458
      %v3151 = vpack.c.b16 %v2463, %v2459
      %v3152 = vpack.c.b16 %v2464, %v2460
      %v3153 = vpack.c.b16 %v2469, %v2465
      %v3154 = vpack.c.b16 %v2470, %v2466
      %v3155 = vpack.c.b16 %v2471, %v2467
      %v3156 = vpack.c.b16 %v2472, %v2468
      %v3157 = vpack.c.b16 %v2477, %v2473
      %v3158 = vpack.c.b16 %v2478, %v2474
      %v3159 = vpack.c.b16 %v2479, %v2475
      %v3160 = vpack.c.b16 %v2480, %v2476
      %v3161 = vpack.c.b16 %v2485, %v2481
      %v3162 = vpack.c.b16 %v2486, %v2482
      %v3163 = vpack.c.b16 %v2487, %v2483
      %v3164 = vpack.c.b16 %v2488, %v2484
      %v3165 = vpack.c.b16 %v2493, %v2489
      %v3166 = vpack.c.b16 %v2494, %v2490
      %v3167 = vpack.c.b16 %v2495, %v2491
      %v3168 = vpack.c.b16 %v2496, %v2492
      %v3169 = vpack.c.b16 %v2501, %v2497
      %v3170 = vpack.c.b16 %v2502, %v2498
      %v3171 = vpack.c.b16 %v2503, %v2499
      %v3172 = vpack.c.b16 %v2504, %v2500
      %v3173 = vpack.c.b16 %v2509, %v2505
      %v3174 = vpack.c.b16 %v2510, %v2506
      %v3175 = vpack.c.b16 %v2511, %v2507
      %v3176 = vpack.c.b16 %v2512, %v2508
      %v3177 = vpack.c.b16 %v2517, %v2513
      %v3178 = vpack.c.b16 %v2518, %v2514
      %v3179 = vpack.c.b16 %v2519, %v2515
      %v3180 = vpack.c.b16 %v2520, %v2516
      %v3181 = vpack.c.b16 %v2525, %v2521
      %v3182 = vpack.c.b16 %v2526, %v2522
      %v3183 = vpack.c.b16 %v2527, %v2523
      %v3184 = vpack.c.b16 %v2528, %v2524
      %v3185 = vpack.c.b16 %v2533, %v2529
      %v3186 = vpack.c.b16 %v2534, %v2530
      %v3187 = vpack.c.b16 %v2535, %v2531
      %v3188 = vpack.c.b16 %v2536, %v2532
      %v3189 = vpack.c.b16 %v2541, %v2537
      %v3190 = vpack.c.b16 %v2542, %v2538
      %v3191 = vpack.c.b16 %v2543, %v2539
      %v3192 = vpack.c.b16 %v2544, %v2540
      %v3193 = vpack.c.b16 %v2549, %v2545
      %v3194 = vpack.c.b16 %v2550, %v2546
      %v3195 = vpack.c.b16 %v2551, %v2547
      %v3196 = vpack.c.b16 %v2552, %v2548
      %v3197 = vpack.c.b16 %v2557, %v2553
      %v3198 = vpack.c.b16 %v2558, %v2554
      %v3199 = vpack.c.b16 %v2559, %v2555
      %v3200 = vpack.c.b16 %v2560, %v2556
      %v3201 = vpack.c.b16 %v2565, %v2561
      %v3202 = vpack.c.b16 %v2566, %v2562
      %v3203 = vpack.c.b16 %v2567, %v2563
      %v3204 = vpack.c.b16 %v2568, %v2564
      %v3205 = vpack.c.b16 %v2573, %v2569
      %v3206 = vpack.c.b16 %v2574, %v2570
      %v3207 = vpack.c.b16 %v2575, %v2571
      %v3208 = vpack.c.b16 %v2576, %v2572
      %v3209 = vpack.c.b16 %v2581, %v2577
      %v3210 = vpack.c.b16 %v2582, %v2578
      %v3211 = vpack.c.b16 %v2583, %v2579
      %v3212 = vpack.c.b16 %v2584, %v2580
      %v3213 = vpack.c.b16 %v2589, %v2585
      %v3214 = vpack.c.b16 %v2590, %v2586
      %v3215 = vpack.c.b16 %v2591, %v2587
      %v3216 = vpack.c.b16 %v2592, %v2588
      %v3217 = vpack.c.b16 %v2597, %v2593
      %v3218 = vpack.c.b16 %v2598, %v2594
      %v3219 = vpack.c.b16 %v2599, %v2595
      %v3220 = vpack.c.b16 %v2600, %v2596
      %v3221 = vpack.c.b16 %v2605, %v2601
      %v3222 = vpack.c.b16 %v2606, %v2602
      %v3223 = vpack.c.b16 %v2607, %v2603
      %v3224 = vpack.c.b16 %v2608, %v2604
      %v3225 = vpack.c.b16 %v2613, %v2609
      %v3226 = vpack.c.b16 %v2614, %v2610
      %v3227 = vpack.c.b16 %v2615, %v2611
      %v3228 = vpack.c.b16 %v2616, %v2612
      %v3229 = vpack.c.b16 %v2621, %v2617
      %v3230 = vpack.c.b16 %v2622, %v2618
      %v3231 = vpack.c.b16 %v2623, %v2619
      %v3232 = vpack.c.b16 %v2624, %v2620
      %v3233 = vpack.c.b16 %v2629, %v2625
      %v3234 = vpack.c.b16 %v2630, %v2626
      %v3235 = vpack.c.b16 %v2631, %v2627
      %v3236 = vpack.c.b16 %v2632, %v2628
      %v3237 = vpack.c.b16 %v2637, %v2633
      %v3238 = vpack.c.b16 %v2638, %v2634
      %v3239 = vpack.c.b16 %v2639, %v2635
      %v3240 = vpack.c.b16 %v2640, %v2636
      %v3241 = vpack.c.b16 %v2645, %v2641
      %v3242 = vpack.c.b16 %v2646, %v2642
      %v3243 = vpack.c.b16 %v2647, %v2643
      %v3244 = vpack.c.b16 %v2648, %v2644
      %v3245 = vpack.c.b16 %v2653, %v2649
      %v3246 = vpack.c.b16 %v2654, %v2650
      %v3247 = vpack.c.b16 %v2655, %v2651
      %v3248 = vpack.c.b16 %v2656, %v2652
      %v3249 = vpack.c.b16 %v2661, %v2657
      %v3250 = vpack.c.b16 %v2662, %v2658
      %v3251 = vpack.c.b16 %v2663, %v2659
      %v3252 = vpack.c.b16 %v2664, %v2660
      %v3253 = vpack.c.b16 %v2669, %v2665
      %v3254 = vpack.c.b16 %v2670, %v2666
      %v3255 = vpack.c.b16 %v2671, %v2667
      %v3256 = vpack.c.b16 %v2672, %v2668
      %v3257 = vpack.c.b16 %v2677, %v2673
      %v3258 = vpack.c.b16 %v2678, %v2674
      %v3259 = vpack.c.b16 %v2679, %v2675
      %v3260 = vpack.c.b16 %v2680, %v2676
      %v3261 = vpack.c.b16 %v2685, %v2681
      %v3262 = vpack.c.b16 %v2686, %v2682
      %v3263 = vpack.c.b16 %v2687, %v2683
      %v3264 = vpack.c.b16 %v2688, %v2684
      %3841 = vmatprep.subr.bf16.mxu0 %v2718
      %3842 = vmatpush1.bf16.msra.mxu0 %v2717
      %3843 = vmatprep.subr.bf16.mxu0 %v2714
      %3844 = vmatpush1.bf16.msra.mxu0 %v2713
      %3845 = vmatprep.subr.bf16.mxu0 %v2710
      %3846 = vmatpush1.bf16.msra.mxu0 %v2709
      %3847 = vmatprep.subr.bf16.mxu0 %v2706
      %3848 = vmatpush1.bf16.msra.mxu0 %v2705
      %3849 = vmatprep.subr.bf16.mxu0 %v2702
      %3850 = vmatpush1.bf16.msra.mxu0 %v2701
      %3851 = vmatprep.subr.bf16.mxu0 %v2698
      %3852 = vmatpush1.bf16.msra.mxu0 %v2697
      %3853 = vmatprep.subr.bf16.mxu0 %v2694
      %3854 = vmatpush1.bf16.msra.mxu0 %v2693
      %3855 = vmatprep.subr.bf16.mxu0 %v2690
      %3856 = vmatpush1.bf16.msra.mxu0 %v2689
      %3857 = vmatprep.subr.bf16.mxu0 %v2750
      %3858 = vmatpush2.bf16.msra.mxu0 %v2749
      %3859 = vmatprep.subr.bf16.mxu0 %v2746
      %3860 = vmatpush2.bf16.msra.mxu0 %v2745
      %3861 = vmatprep.subr.bf16.mxu0 %v2742
      %3862 = vmatpush2.bf16.msra.mxu0 %v2741
      %3863 = vmatprep.subr.bf16.mxu0 %v2738
      %3864 = vmatpush2.bf16.msra.mxu0 %v2737
      %3865 = vmatprep.subr.bf16.mxu0 %v2734
      %3866 = vmatpush2.bf16.msra.mxu0 %v2733
      %3867 = vmatprep.subr.bf16.mxu0 %v2730
      %3868 = vmatpush2.bf16.msra.mxu0 %v2729
      %3869 = vmatprep.subr.bf16.mxu0 %v2726
      %3870 = vmatpush2.bf16.msra.mxu0 %v2725
      %3871 = vmatprep.subr.bf16.mxu0 %v2722
      %3872 = vmatpush2.bf16.msra.mxu0 %v2721
      %3873 = vmatprep.mubr.bf16.mxu0 %v860
      %3874 = vmatmul.mubr.bf16.gmra.mxu0 %v846
      %v3875 = vpop.f32.mrf.mxu0
      %v3876 = vadd.f32 0.0, %v3875
      %v3877 = vpop.f32.mrf.mxu0
      %v3878 = vadd.f32 0.0, %v3877
      %v3879 = vpop.f32.mrf.mxu0
      %v3880 = vpop.f32.mrf.mxu0
      %3881 = vdwg.mxu0
      %3882 = vmatprep.subr.bf16.mxu0 %v2782
      %3883 = vmatpush1.bf16.msra.mxu0 %v2781
      %3884 = vmatprep.subr.bf16.mxu0 %v2778
      %3885 = vmatpush1.bf16.msra.mxu0 %v2777
      %3886 = vmatprep.subr.bf16.mxu0 %v2774
      %3887 = vmatpush1.bf16.msra.mxu0 %v2773
      %3888 = vmatprep.subr.bf16.mxu0 %v2770
      %3889 = vmatpush1.bf16.msra.mxu0 %v2769
      %3890 = vmatprep.subr.bf16.mxu0 %v2766
      %3891 = vmatpush1.bf16.msra.mxu0 %v2765
      %3892 = vmatprep.subr.bf16.mxu0 %v2762
      %3893 = vmatpush1.bf16.msra.mxu0 %v2761
      %3894 = vmatprep.subr.bf16.mxu0 %v2758
      %3895 = vmatpush1.bf16.msra.mxu0 %v2757
      %3896 = vmatprep.subr.bf16.mxu0 %v2754
      %3897 = vmatpush1.bf16.msra.mxu0 %v2753
      %3898 = vmatprep.subr.bf16.mxu0 %v2814
      %3899 = vmatpush2.bf16.msra.mxu0 %v2813
      %3900 = vmatprep.subr.bf16.mxu0 %v2810
      %3901 = vmatpush2.bf16.msra.mxu0 %v2809
      %3902 = vmatprep.subr.bf16.mxu0 %v2806
      %3903 = vmatpush2.bf16.msra.mxu0 %v2805
      %3904 = vmatprep.subr.bf16.mxu0 %v2802
      %3905 = vmatpush2.bf16.msra.mxu0 %v2801
      %3906 = vmatprep.subr.bf16.mxu0 %v2798
      %3907 = vmatpush2.bf16.msra.mxu0 %v2797
      %3908 = vmatprep.subr.bf16.mxu0 %v2794
      %3909 = vmatpush2.bf16.msra.mxu0 %v2793
      %3910 = vmatprep.subr.bf16.mxu0 %v2790
      %3911 = vmatpush2.bf16.msra.mxu0 %v2789
      %3912 = vmatprep.subr.bf16.mxu0 %v2786
      %3913 = vmatpush2.bf16.msra.mxu0 %v2785
      %3914 = vmatprep.mubr.bf16.mxu0 %v870
      %3915 = vmatmul.mubr.bf16.gmra.mxu0 %v868
      %v3916 = vpop.f32.mrf.mxu0
      %v3917 = vadd.f32 %v3876, %v3916
      %v3918 = vpop.f32.mrf.mxu0
      %v3919 = vadd.f32 %v3878, %v3918
      %v3920 = vpop.f32.mrf.mxu0
      %v3921 = vpop.f32.mrf.mxu0
      %3922 = vdwg.mxu0
      %3923 = vmatprep.subr.bf16.mxu0 %v2846
      %3924 = vmatpush1.bf16.msra.mxu0 %v2845
      %3925 = vmatprep.subr.bf16.mxu0 %v2842
      %3926 = vmatpush1.bf16.msra.mxu0 %v2841
      %3927 = vmatprep.subr.bf16.mxu0 %v2838
      %3928 = vmatpush1.bf16.msra.mxu0 %v2837
      %3929 = vmatprep.subr.bf16.mxu0 %v2834
      %3930 = vmatpush1.bf16.msra.mxu0 %v2833
      %3931 = vmatprep.subr.bf16.mxu0 %v2830
      %3932 = vmatpush1.bf16.msra.mxu0 %v2829
      %3933 = vmatprep.subr.bf16.mxu0 %v2826
      %3934 = vmatpush1.bf16.msra.mxu0 %v2825
      %3935 = vmatprep.subr.bf16.mxu0 %v2822
      %3936 = vmatpush1.bf16.msra.mxu0 %v2821
      %3937 = vmatprep.subr.bf16.mxu0 %v2818
      %3938 = vmatpush1.bf16.msra.mxu0 %v2817
      %3939 = vmatprep.subr.bf16.mxu0 %v2878
      %3940 = vmatpush2.bf16.msra.mxu0 %v2877
      %3941 = vmatprep.subr.bf16.mxu0 %v2874
      %3942 = vmatpush2.bf16.msra.mxu0 %v2873
      %3943 = vmatprep.subr.bf16.mxu0 %v2870
      %3944 = vmatpush2.bf16.msra.mxu0 %v2869
      %3945 = vmatprep.subr.bf16.mxu0 %v2866
      %3946 = vmatpush2.bf16.msra.mxu0 %v2865
      %3947 = vmatprep.subr.bf16.mxu0 %v2862
      %3948 = vmatpush2.bf16.msra.mxu0 %v2861
      %3949 = vmatprep.subr.bf16.mxu0 %v2858
      %3950 = vmatpush2.bf16.msra.mxu0 %v2857
      %3951 = vmatprep.subr.bf16.mxu0 %v2854
      %3952 = vmatpush2.bf16.msra.mxu0 %v2853
      %3953 = vmatprep.subr.bf16.mxu0 %v2850
      %3954 = vmatpush2.bf16.msra.mxu0 %v2849
      %3955 = vmatprep.mubr.bf16.mxu0 %v867
      %3956 = vmatmul.mubr.bf16.gmra.mxu0 %v853
      %v3957 = vpop.f32.mrf.mxu0
      %v3958 = vadd.f32 %v3917, %v3957
      %v3959 = vpop.f32.mrf.mxu0
      %v3960 = vadd.f32 %v3919, %v3959
      %v3961 = vpop.f32.mrf.mxu0
      %v3962 = vpop.f32.mrf.mxu0
      %3963 = vdwg.mxu0
      %3964 = vmatprep.subr.bf16.mxu0 %v2910
      %3965 = vmatpush1.bf16.msra.mxu0 %v2909
      %3966 = vmatprep.subr.bf16.mxu0 %v2906
      %3967 = vmatpush1.bf16.msra.mxu0 %v2905
      %3968 = vmatprep.subr.bf16.mxu0 %v2902
      %3969 = vmatpush1.bf16.msra.mxu0 %v2901
      %3970 = vmatprep.subr.bf16.mxu0 %v2898
      %3971 = vmatpush1.bf16.msra.mxu0 %v2897
      %3972 = vmatprep.subr.bf16.mxu0 %v2894
      %3973 = vmatpush1.bf16.msra.mxu0 %v2893
      %3974 = vmatprep.subr.bf16.mxu0 %v2890
      %3975 = vmatpush1.bf16.msra.mxu0 %v2889
      %3976 = vmatprep.subr.bf16.mxu0 %v2886
      %3977 = vmatpush1.bf16.msra.mxu0 %v2885
      %3978 = vmatprep.subr.bf16.mxu0 %v2882
      %3979 = vmatpush1.bf16.msra.mxu0 %v2881
      %3980 = vmatprep.subr.bf16.mxu0 %v2942
      %3981 = vmatpush2.bf16.msra.mxu0 %v2941
      %3982 = vmatprep.subr.bf16.mxu0 %v2938
      %3983 = vmatpush2.bf16.msra.mxu0 %v2937
      %3984 = vmatprep.subr.bf16.mxu0 %v2934
      %3985 = vmatpush2.bf16.msra.mxu0 %v2933
      %3986 = vmatprep.subr.bf16.mxu0 %v2930
      %3987 = vmatpush2.bf16.msra.mxu0 %v2929
      %3988 = vmatprep.subr.bf16.mxu0 %v2926
      %3989 = vmatpush2.bf16.msra.mxu0 %v2925
      %3990 = vmatprep.subr.bf16.mxu0 %v2922
      %3991 = vmatpush2.bf16.msra.mxu0 %v2921
      %3992 = vmatprep.subr.bf16.mxu0 %v2918
      %3993 = vmatpush2.bf16.msra.mxu0 %v2917
      %3994 = vmatprep.subr.bf16.mxu0 %v2914
      %3995 = vmatpush2.bf16.msra.mxu0 %v2913
      %3996 = vmatprep.mubr.bf16.mxu0 %v871
      %3997 = vmatmul.mubr.bf16.gmra.mxu0 %v869
      %v3998 = vpop.f32.mrf.mxu0
      %v3999 = vadd.f32 %v3958, %v3998
      %v4000 = vpop.f32.mrf.mxu0
      %v4001 = vadd.f32 %v3960, %v4000
      %v4002 = vpop.f32.mrf.mxu0
      %v4003 = vpop.f32.mrf.mxu0
      %4004 = vdwg.mxu0
      %4005 = vmatprep.subr.bf16.mxu0 %v2974
      %4006 = vmatpush1.bf16.msra.mxu0 %v2973
      %4007 = vmatprep.subr.bf16.mxu0 %v2970
      %4008 = vmatpush1.bf16.msra.mxu0 %v2969
      %4009 = vmatprep.subr.bf16.mxu0 %v2966
      %4010 = vmatpush1.bf16.msra.mxu0 %v2965
      %4011 = vmatprep.subr.bf16.mxu0 %v2962
      %4012 = vmatpush1.bf16.msra.mxu0 %v2961
      %4013 = vmatprep.subr.bf16.mxu0 %v2958
      %4014 = vmatpush1.bf16.msra.mxu0 %v2957
      %4015 = vmatprep.subr.bf16.mxu0 %v2954
      %4016 = vmatpush1.bf16.msra.mxu0 %v2953
      %4017 = vmatprep.subr.bf16.mxu0 %v2950
      %4018 = vmatpush1.bf16.msra.mxu0 %v2949
      %4019 = vmatprep.subr.bf16.mxu0 %v2946
      %4020 = vmatpush1.bf16.msra.mxu0 %v2945
      %4021 = vmatprep.subr.bf16.mxu0 %v3006
      %4022 = vmatpush2.bf16.msra.mxu0 %v3005
      %4023 = vmatprep.subr.bf16.mxu0 %v3002
      %4024 = vmatpush2.bf16.msra.mxu0 %v3001
      %4025 = vmatprep.subr.bf16.mxu0 %v2998
      %4026 = vmatpush2.bf16.msra.mxu0 %v2997
      %4027 = vmatprep.subr.bf16.mxu0 %v2994
      %4028 = vmatpush2.bf16.msra.mxu0 %v2993
      %4029 = vmatprep.subr.bf16.mxu0 %v2990
      %4030 = vmatpush2.bf16.msra.mxu0 %v2989
      %4031 = vmatprep.subr.bf16.mxu0 %v2986
      %4032 = vmatpush2.bf16.msra.mxu0 %v2985
      %4033 = vmatprep.subr.bf16.mxu0 %v2982
      %4034 = vmatpush2.bf16.msra.mxu0 %v2981
      %4035 = vmatprep.subr.bf16.mxu0 %v2978
      %4036 = vmatpush2.bf16.msra.mxu0 %v2977
      %4037 = vmatprep.mubr.bf16.mxu0 %v909
      %4038 = vmatmul.mubr.bf16.gmra.mxu0 %v895
      %v4039 = vpop.f32.mrf.mxu0
      %v4040 = vadd.f32 %v3999, %v4039
      %v4041 = vpop.f32.mrf.mxu0
      %v4042 = vadd.f32 %v4001, %v4041
      %v4043 = vpop.f32.mrf.mxu0
      %v4044 = vpop.f32.mrf.mxu0
      %4045 = vdwg.mxu0
      %4046 = vmatprep.subr.bf16.mxu0 %v3038
      %4047 = vmatpush1.bf16.msra.mxu0 %v3037
      %4048 = vmatprep.subr.bf16.mxu0 %v3034
      %4049 = vmatpush1.bf16.msra.mxu0 %v3033
      %4050 = vmatprep.subr.bf16.mxu0 %v3030
      %4051 = vmatpush1.bf16.msra.mxu0 %v3029
      %4052 = vmatprep.subr.bf16.mxu0 %v3026
      %4053 = vmatpush1.bf16.msra.mxu0 %v3025
      %4054 = vmatprep.subr.bf16.mxu0 %v3022
      %4055 = vmatpush1.bf16.msra.mxu0 %v3021
      %4056 = vmatprep.subr.bf16.mxu0 %v3018
      %4057 = vmatpush1.bf16.msra.mxu0 %v3017
      %4058 = vmatprep.subr.bf16.mxu0 %v3014
      %4059 = vmatpush1.bf16.msra.mxu0 %v3013
      %4060 = vmatprep.subr.bf16.mxu0 %v3010
      %4061 = vmatpush1.bf16.msra.mxu0 %v3009
      %4062 = vmatprep.subr.bf16.mxu0 %v3070
      %4063 = vmatpush2.bf16.msra.mxu0 %v3069
      %4064 = vmatprep.subr.bf16.mxu0 %v3066
      %4065 = vmatpush2.bf16.msra.mxu0 %v3065
      %4066 = vmatprep.subr.bf16.mxu0 %v3062
      %4067 = vmatpush2.bf16.msra.mxu0 %v3061
      %4068 = vmatprep.subr.bf16.mxu0 %v3058
      %4069 = vmatpush2.bf16.msra.mxu0 %v3057
      %4070 = vmatprep.subr.bf16.mxu0 %v3054
      %4071 = vmatpush2.bf16.msra.mxu0 %v3053
      %4072 = vmatprep.subr.bf16.mxu0 %v3050
      %4073 = vmatpush2.bf16.msra.mxu0 %v3049
      %4074 = vmatprep.subr.bf16.mxu0 %v3046
      %4075 = vmatpush2.bf16.msra.mxu0 %v3045
      %4076 = vmatprep.subr.bf16.mxu0 %v3042
      %4077 = vmatpush2.bf16.msra.mxu0 %v3041
      %4078 = vmatprep.mubr.bf16.mxu0 %v919
      %4079 = vmatmul.mubr.bf16.gmra.mxu0 %v917
      %v4080 = vpop.f32.mrf.mxu0
      %v4081 = vadd.f32 %v4040, %v4080
      %v4082 = vpop.f32.mrf.mxu0
      %v4083 = vadd.f32 %v4042, %v4082
      %v4084 = vpop.f32.mrf.mxu0
      %v4085 = vpop.f32.mrf.mxu0
      %4086 = vdwg.mxu0
      %4087 = vmatprep.subr.bf16.mxu0 %v3102
      %4088 = vmatpush1.bf16.msra.mxu0 %v3101
      %4089 = vmatprep.subr.bf16.mxu0 %v3098
      %4090 = vmatpush1.bf16.msra.mxu0 %v3097
      %4091 = vmatprep.subr.bf16.mxu0 %v3094
      %4092 = vmatpush1.bf16.msra.mxu0 %v3093
      %4093 = vmatprep.subr.bf16.mxu0 %v3090
      %4094 = vmatpush1.bf16.msra.mxu0 %v3089
      %4095 = vmatprep.subr.bf16.mxu0 %v3086
      %4096 = vmatpush1.bf16.msra.mxu0 %v3085
      %4097 = vmatprep.subr.bf16.mxu0 %v3082
      %4098 = vmatpush1.bf16.msra.mxu0 %v3081
      %4099 = vmatprep.subr.bf16.mxu0 %v3078
      %4100 = vmatpush1.bf16.msra.mxu0 %v3077
      %4101 = vmatprep.subr.bf16.mxu0 %v3074
      %4102 = vmatpush1.bf16.msra.mxu0 %v3073
      %4103 = vmatprep.subr.bf16.mxu0 %v3134
      %4104 = vmatpush2.bf16.msra.mxu0 %v3133
      %4105 = vmatprep.subr.bf16.mxu0 %v3130
      %4106 = vmatpush2.bf16.msra.mxu0 %v3129
      %4107 = vmatprep.subr.bf16.mxu0 %v3126
      %4108 = vmatpush2.bf16.msra.mxu0 %v3125
      %4109 = vmatprep.subr.bf16.mxu0 %v3122
      %4110 = vmatpush2.bf16.msra.mxu0 %v3121
      %4111 = vmatprep.subr.bf16.mxu0 %v3118
      %4112 = vmatpush2.bf16.msra.mxu0 %v3117
      %4113 = vmatprep.subr.bf16.mxu0 %v3114
      %4114 = vmatpush2.bf16.msra.mxu0 %v3113
      %4115 = vmatprep.subr.bf16.mxu0 %v3110
      %4116 = vmatpush2.bf16.msra.mxu0 %v3109
      %4117 = vmatprep.subr.bf16.mxu0 %v3106
      %4118 = vmatpush2.bf16.msra.mxu0 %v3105
      %4119 = vmatprep.mubr.bf16.mxu0 %v916
      %4120 = vmatmul.mubr.bf16.gmra.mxu0 %v902
      %v4121 = vpop.f32.mrf.mxu0
      %v4122 = vadd.f32 %v4081, %v4121
      %v4123 = vpop.f32.mrf.mxu0
      %v4124 = vadd.f32 %v4083, %v4123
      %v4125 = vpop.f32.mrf.mxu0
      %v4126 = vpop.f32.mrf.mxu0
      %4127 = vdwg.mxu0
      %4128 = vmatprep.subr.bf16.mxu0 %v3166
      %4129 = vmatpush1.bf16.msra.mxu0 %v3165
      %4130 = vmatprep.subr.bf16.mxu0 %v3162
      %4131 = vmatpush1.bf16.msra.mxu0 %v3161
      %4132 = vmatprep.subr.bf16.mxu0 %v3158
      %4133 = vmatpush1.bf16.msra.mxu0 %v3157
      %4134 = vmatprep.subr.bf16.mxu0 %v3154
      %4135 = vmatpush1.bf16.msra.mxu0 %v3153
      %4136 = vmatprep.subr.bf16.mxu0 %v3150
      %4137 = vmatpush1.bf16.msra.mxu0 %v3149
      %4138 = vmatprep.subr.bf16.mxu0 %v3146
      %4139 = vmatpush1.bf16.msra.mxu0 %v3145
      %4140 = vmatprep.subr.bf16.mxu0 %v3142
      %4141 = vmatpush1.bf16.msra.mxu0 %v3141
      %4142 = vmatprep.subr.bf16.mxu0 %v3138
      %4143 = vmatpush1.bf16.msra.mxu0 %v3137
      %4144 = vmatprep.subr.bf16.mxu0 %v3198
      %4145 = vmatpush2.bf16.msra.mxu0 %v3197
      %4146 = vmatprep.subr.bf16.mxu0 %v3194
      %4147 = vmatpush2.bf16.msra.mxu0 %v3193
      %4148 = vmatprep.subr.bf16.mxu0 %v3190
      %4149 = vmatpush2.bf16.msra.mxu0 %v3189
      %4150 = vmatprep.subr.bf16.mxu0 %v3186
      %4151 = vmatpush2.bf16.msra.mxu0 %v3185
      %4152 = vmatprep.subr.bf16.mxu0 %v3182
      %4153 = vmatpush2.bf16.msra.mxu0 %v3181
      %4154 = vmatprep.subr.bf16.mxu0 %v3178
      %4155 = vmatpush2.bf16.msra.mxu0 %v3177
      %4156 = vmatprep.subr.bf16.mxu0 %v3174
      %4157 = vmatpush2.bf16.msra.mxu0 %v3173
      %4158 = vmatprep.subr.bf16.mxu0 %v3170
      %4159 = vmatpush2.bf16.msra.mxu0 %v3169
      %4160 = vmatprep.mubr.bf16.mxu0 %v920
      %4161 = vmatmul.mubr.bf16.gmra.mxu0 %v918
      %v4162 = vpop.f32.mrf.mxu0
      %v4163 = vadd.f32 %v4122, %v4162
      %v4164 = vpop.f32.mrf.mxu0
      %v4165 = vadd.f32 %v4124, %v4164
      %v4166 = vpop.f32.mrf.mxu0
      %v4167 = vpop.f32.mrf.mxu0
      %4168 = vdwg.mxu0
      %4169 = vmatprep.subr.bf16.mxu0 %v3230
      %4170 = vmatpush1.bf16.msra.mxu0 %v3229
      %4171 = vmatprep.subr.bf16.mxu0 %v3226
      %4172 = vmatpush1.bf16.msra.mxu0 %v3225
      %4173 = vmatprep.subr.bf16.mxu0 %v3222
      %4174 = vmatpush1.bf16.msra.mxu0 %v3221
      %4175 = vmatprep.subr.bf16.mxu0 %v3218
      %4176 = vmatpush1.bf16.msra.mxu0 %v3217
      %4177 = vmatprep.subr.bf16.mxu0 %v3214
      %4178 = vmatpush1.bf16.msra.mxu0 %v3213
      %4179 = vmatprep.subr.bf16.mxu0 %v3210
      %4180 = vmatpush1.bf16.msra.mxu0 %v3209
      %4181 = vmatprep.subr.bf16.mxu0 %v3206
      %4182 = vmatpush1.bf16.msra.mxu0 %v3205
      %4183 = vmatprep.subr.bf16.mxu0 %v3202
      %4184 = vmatpush1.bf16.msra.mxu0 %v3201
      %4185 = vmatprep.subr.bf16.mxu0 %v3262
      %4186 = vmatpush2.bf16.msra.mxu0 %v3261
      %4187 = vmatprep.subr.bf16.mxu0 %v3258
      %4188 = vmatpush2.bf16.msra.mxu0 %v3257
      %4189 = vmatprep.subr.bf16.mxu0 %v3254
      %4190 = vmatpush2.bf16.msra.mxu0 %v3253
      %4191 = vmatprep.subr.bf16.mxu0 %v3250
      %4192 = vmatpush2.bf16.msra.mxu0 %v3249
      %4193 = vmatprep.subr.bf16.mxu0 %v3246
      %4194 = vmatpush2.bf16.msra.mxu0 %v3245
      %4195 = vmatprep.subr.bf16.mxu0 %v3242
      %4196 = vmatpush2.bf16.msra.mxu0 %v3241
      %4197 = vmatprep.subr.bf16.mxu0 %v3238
      %4198 = vmatpush2.bf16.msra.mxu0 %v3237
      %4199 = vmatprep.subr.bf16.mxu0 %v3234
      %4200 = vmatpush2.bf16.msra.mxu0 %v3233
      %4201 = vmatprep.mubr.bf16.mxu0 %v942
      %4202 = vmatmul.mubr.bf16.gmra.mxu0 %v935
      %v4203 = vpop.f32.mrf.mxu0
      %v4204 = vadd.f32 %v4163, %v4203
      %v4205 = vpop.f32.mrf.mxu0
      %v4206 = vadd.f32 %v4165, %v4205
      %v4207 = vpop.f32.mrf.mxu0
      %v4208 = vpop.f32.mrf.mxu0
      %4209 = vdwg.mxu0
      %4210 = vmatprep.subr.bf16.mxu0 %v2720
      %4211 = vmatpush1.bf16.msra.mxu0 %v2719
      %4212 = vmatprep.subr.bf16.mxu0 %v2716
      %4213 = vmatpush1.bf16.msra.mxu0 %v2715
      %4214 = vmatprep.subr.bf16.mxu0 %v2712
      %4215 = vmatpush1.bf16.msra.mxu0 %v2711
      %4216 = vmatprep.subr.bf16.mxu0 %v2708
      %4217 = vmatpush1.bf16.msra.mxu0 %v2707
      %4218 = vmatprep.subr.bf16.mxu0 %v2704
      %4219 = vmatpush1.bf16.msra.mxu0 %v2703
      %4220 = vmatprep.subr.bf16.mxu0 %v2700
      %4221 = vmatpush1.bf16.msra.mxu0 %v2699
      %4222 = vmatprep.subr.bf16.mxu0 %v2696
      %4223 = vmatpush1.bf16.msra.mxu0 %v2695
      %4224 = vmatprep.subr.bf16.mxu0 %v2692
      %4225 = vmatpush1.bf16.msra.mxu0 %v2691
      %4226 = vmatprep.subr.bf16.mxu0 %v2752
      %4227 = vmatpush2.bf16.msra.mxu0 %v2751
      %4228 = vmatprep.subr.bf16.mxu0 %v2748
      %4229 = vmatpush2.bf16.msra.mxu0 %v2747
      %4230 = vmatprep.subr.bf16.mxu0 %v2744
      %4231 = vmatpush2.bf16.msra.mxu0 %v2743
      %4232 = vmatprep.subr.bf16.mxu0 %v2740
      %4233 = vmatpush2.bf16.msra.mxu0 %v2739
      %4234 = vmatprep.subr.bf16.mxu0 %v2736
      %4235 = vmatpush2.bf16.msra.mxu0 %v2735
      %4236 = vmatprep.subr.bf16.mxu0 %v2732
      %4237 = vmatpush2.bf16.msra.mxu0 %v2731
      %4238 = vmatprep.subr.bf16.mxu0 %v2728
      %4239 = vmatpush2.bf16.msra.mxu0 %v2727
      %4240 = vmatprep.subr.bf16.mxu0 %v2724
      %4241 = vmatpush2.bf16.msra.mxu0 %v2723
      %4242 = vmatprep.mubr.bf16.mxu0 %v860
      %4243 = vmatmul.mubr.bf16.gmra.mxu0 %v846
      %v4244 = vpop.f32.mrf.mxu0
      %v4245 = vadd.f32 0.0, %v4244
      %v4246 = vpop.f32.mrf.mxu0
      %v4247 = vadd.f32 0.0, %v4246
      %v4248 = vpop.f32.mrf.mxu0
      %v4249 = vpop.f32.mrf.mxu0
      %4250 = vdwg.mxu0
      %4251 = vmatprep.subr.bf16.mxu0 %v2784
      %4252 = vmatpush1.bf16.msra.mxu0 %v2783
      %4253 = vmatprep.subr.bf16.mxu0 %v2780
      %4254 = vmatpush1.bf16.msra.mxu0 %v2779
      %4255 = vmatprep.subr.bf16.mxu0 %v2776
      %4256 = vmatpush1.bf16.msra.mxu0 %v2775
      %4257 = vmatprep.subr.bf16.mxu0 %v2772
      %4258 = vmatpush1.bf16.msra.mxu0 %v2771
      %4259 = vmatprep.subr.bf16.mxu0 %v2768
      %4260 = vmatpush1.bf16.msra.mxu0 %v2767
      %4261 = vmatprep.subr.bf16.mxu0 %v2764
      %4262 = vmatpush1.bf16.msra.mxu0 %v2763
      %4263 = vmatprep.subr.bf16.mxu0 %v2760
      %4264 = vmatpush1.bf16.msra.mxu0 %v2759
      %4265 = vmatprep.subr.bf16.mxu0 %v2756
      %4266 = vmatpush1.bf16.msra.mxu0 %v2755
      %4267 = vmatprep.subr.bf16.mxu0 %v2816
      %4268 = vmatpush2.bf16.msra.mxu0 %v2815
      %4269 = vmatprep.subr.bf16.mxu0 %v2812
      %4270 = vmatpush2.bf16.msra.mxu0 %v2811
      %4271 = vmatprep.subr.bf16.mxu0 %v2808
      %4272 = vmatpush2.bf16.msra.mxu0 %v2807
      %4273 = vmatprep.subr.bf16.mxu0 %v2804
      %4274 = vmatpush2.bf16.msra.mxu0 %v2803
      %4275 = vmatprep.subr.bf16.mxu0 %v2800
      %4276 = vmatpush2.bf16.msra.mxu0 %v2799
      %4277 = vmatprep.subr.bf16.mxu0 %v2796
      %4278 = vmatpush2.bf16.msra.mxu0 %v2795
      %4279 = vmatprep.subr.bf16.mxu0 %v2792
      %4280 = vmatpush2.bf16.msra.mxu0 %v2791
      %4281 = vmatprep.subr.bf16.mxu0 %v2788
      %4282 = vmatpush2.bf16.msra.mxu0 %v2787
      %4283 = vmatprep.mubr.bf16.mxu0 %v870
      %4284 = vmatmul.mubr.bf16.gmra.mxu0 %v868
      %v4285 = vpop.f32.mrf.mxu0
      %v4286 = vadd.f32 %v4245, %v4285
      %v4287 = vpop.f32.mrf.mxu0
      %v4288 = vadd.f32 %v4247, %v4287
      %v4289 = vpop.f32.mrf.mxu0
      %v4290 = vpop.f32.mrf.mxu0
      %4291 = vdwg.mxu0
      %4292 = vmatprep.subr.bf16.mxu0 %v2848
      %4293 = vmatpush1.bf16.msra.mxu0 %v2847
      %4294 = vmatprep.subr.bf16.mxu0 %v2844
      %4295 = vmatpush1.bf16.msra.mxu0 %v2843
      %4296 = vmatprep.subr.bf16.mxu0 %v2840
      %4297 = vmatpush1.bf16.msra.mxu0 %v2839
      %4298 = vmatprep.subr.bf16.mxu0 %v2836
      %4299 = vmatpush1.bf16.msra.mxu0 %v2835
      %4300 = vmatprep.subr.bf16.mxu0 %v2832
      %4301 = vmatpush1.bf16.msra.mxu0 %v2831
      %4302 = vmatprep.subr.bf16.mxu0 %v2828
      %4303 = vmatpush1.bf16.msra.mxu0 %v2827
      %4304 = vmatprep.subr.bf16.mxu0 %v2824
      %4305 = vmatpush1.bf16.msra.mxu0 %v2823
      %4306 = vmatprep.subr.bf16.mxu0 %v2820
      %4307 = vmatpush1.bf16.msra.mxu0 %v2819
      %4308 = vmatprep.subr.bf16.mxu0 %v2880
      %4309 = vmatpush2.bf16.msra.mxu0 %v2879
      %4310 = vmatprep.subr.bf16.mxu0 %v2876
      %4311 = vmatpush2.bf16.msra.mxu0 %v2875
      %4312 = vmatprep.subr.bf16.mxu0 %v2872
      %4313 = vmatpush2.bf16.msra.mxu0 %v2871
      %4314 = vmatprep.subr.bf16.mxu0 %v2868
      %4315 = vmatpush2.bf16.msra.mxu0 %v2867
      %4316 = vmatprep.subr.bf16.mxu0 %v2864
      %4317 = vmatpush2.bf16.msra.mxu0 %v2863
      %4318 = vmatprep.subr.bf16.mxu0 %v2860
      %4319 = vmatpush2.bf16.msra.mxu0 %v2859
      %4320 = vmatprep.subr.bf16.mxu0 %v2856
      %4321 = vmatpush2.bf16.msra.mxu0 %v2855
      %4322 = vmatprep.subr.bf16.mxu0 %v2852
      %4323 = vmatpush2.bf16.msra.mxu0 %v2851
      %4324 = vmatprep.mubr.bf16.mxu0 %v867
      %4325 = vmatmul.mubr.bf16.gmra.mxu0 %v853
      %v4326 = vpop.f32.mrf.mxu0
      %v4327 = vadd.f32 %v4286, %v4326
      %v4328 = vpop.f32.mrf.mxu0
      %v4329 = vadd.f32 %v4288, %v4328
      %v4330 = vpop.f32.mrf.mxu0
      %v4331 = vpop.f32.mrf.mxu0
      %4332 = vdwg.mxu0
      %4333 = vmatprep.subr.bf16.mxu0 %v2912
      %4334 = vmatpush1.bf16.msra.mxu0 %v2911
      %4335 = vmatprep.subr.bf16.mxu0 %v2908
      %4336 = vmatpush1.bf16.msra.mxu0 %v2907
      %4337 = vmatprep.subr.bf16.mxu0 %v2904
      %4338 = vmatpush1.bf16.msra.mxu0 %v2903
      %4339 = vmatprep.subr.bf16.mxu0 %v2900
      %4340 = vmatpush1.bf16.msra.mxu0 %v2899
      %4341 = vmatprep.subr.bf16.mxu0 %v2896
      %4342 = vmatpush1.bf16.msra.mxu0 %v2895
      %4343 = vmatprep.subr.bf16.mxu0 %v2892
      %4344 = vmatpush1.bf16.msra.mxu0 %v2891
      %4345 = vmatprep.subr.bf16.mxu0 %v2888
      %4346 = vmatpush1.bf16.msra.mxu0 %v2887
      %4347 = vmatprep.subr.bf16.mxu0 %v2884
      %4348 = vmatpush1.bf16.msra.mxu0 %v2883
      %4349 = vmatprep.subr.bf16.mxu0 %v2944
      %4350 = vmatpush2.bf16.msra.mxu0 %v2943
      %4351 = vmatprep.subr.bf16.mxu0 %v2940
      %4352 = vmatpush2.bf16.msra.mxu0 %v2939
      %4353 = vmatprep.subr.bf16.mxu0 %v2936
      %4354 = vmatpush2.bf16.msra.mxu0 %v2935
      %4355 = vmatprep.subr.bf16.mxu0 %v2932
      %4356 = vmatpush2.bf16.msra.mxu0 %v2931
      %4357 = vmatprep.subr.bf16.mxu0 %v2928
      %4358 = vmatpush2.bf16.msra.mxu0 %v2927
      %4359 = vmatprep.subr.bf16.mxu0 %v2924
      %4360 = vmatpush2.bf16.msra.mxu0 %v2923
      %4361 = vmatprep.subr.bf16.mxu0 %v2920
      %4362 = vmatpush2.bf16.msra.mxu0 %v2919
      %4363 = vmatprep.subr.bf16.mxu0 %v2916
      %4364 = vmatpush2.bf16.msra.mxu0 %v2915
      %4365 = vmatprep.mubr.bf16.mxu0 %v871
      %4366 = vmatmul.mubr.bf16.gmra.mxu0 %v869
      %v4367 = vpop.f32.mrf.mxu0
      %v4368 = vadd.f32 %v4327, %v4367
      %v4369 = vpop.f32.mrf.mxu0
      %v4370 = vadd.f32 %v4329, %v4369
      %v4371 = vpop.f32.mrf.mxu0
      %v4372 = vpop.f32.mrf.mxu0
      %4373 = vdwg.mxu0
      %4374 = vmatprep.subr.bf16.mxu0 %v2976
      %4375 = vmatpush1.bf16.msra.mxu0 %v2975
      %4376 = vmatprep.subr.bf16.mxu0 %v2972
      %4377 = vmatpush1.bf16.msra.mxu0 %v2971
      %4378 = vmatprep.subr.bf16.mxu0 %v2968
      %4379 = vmatpush1.bf16.msra.mxu0 %v2967
      %4380 = vmatprep.subr.bf16.mxu0 %v2964
      %4381 = vmatpush1.bf16.msra.mxu0 %v2963
      %4382 = vmatprep.subr.bf16.mxu0 %v2960
      %4383 = vmatpush1.bf16.msra.mxu0 %v2959
      %4384 = vmatprep.subr.bf16.mxu0 %v2956
      %4385 = vmatpush1.bf16.msra.mxu0 %v2955
      %4386 = vmatprep.subr.bf16.mxu0 %v2952
      %4387 = vmatpush1.bf16.msra.mxu0 %v2951
      %4388 = vmatprep.subr.bf16.mxu0 %v2948
      %4389 = vmatpush1.bf16.msra.mxu0 %v2947
      %4390 = vmatprep.subr.bf16.mxu0 %v3008
      %4391 = vmatpush2.bf16.msra.mxu0 %v3007
      %4392 = vmatprep.subr.bf16.mxu0 %v3004
      %4393 = vmatpush2.bf16.msra.mxu0 %v3003
      %4394 = vmatprep.subr.bf16.mxu0 %v3000
      %4395 = vmatpush2.bf16.msra.mxu0 %v2999
      %4396 = vmatprep.subr.bf16.mxu0 %v2996
      %4397 = vmatpush2.bf16.msra.mxu0 %v2995
      %4398 = vmatprep.subr.bf16.mxu0 %v2992
      %4399 = vmatpush2.bf16.msra.mxu0 %v2991
      %4400 = vmatprep.subr.bf16.mxu0 %v2988
      %4401 = vmatpush2.bf16.msra.mxu0 %v2987
      %4402 = vmatprep.subr.bf16.mxu0 %v2984
      %4403 = vmatpush2.bf16.msra.mxu0 %v2983
      %4404 = vmatprep.subr.bf16.mxu0 %v2980
      %4405 = vmatpush2.bf16.msra.mxu0 %v2979
      %4406 = vmatprep.mubr.bf16.mxu0 %v909
      %4407 = vmatmul.mubr.bf16.gmra.mxu0 %v895
      %v4408 = vpop.f32.mrf.mxu0
      %v4409 = vadd.f32 %v4368, %v4408
      %v4410 = vpop.f32.mrf.mxu0
      %v4411 = vadd.f32 %v4370, %v4410
      %v4412 = vpop.f32.mrf.mxu0
      %v4413 = vpop.f32.mrf.mxu0
      %4414 = vdwg.mxu0
      %4415 = vmatprep.subr.bf16.mxu0 %v3040
      %4416 = vmatpush1.bf16.msra.mxu0 %v3039
      %4417 = vmatprep.subr.bf16.mxu0 %v3036
      %4418 = vmatpush1.bf16.msra.mxu0 %v3035
      %4419 = vmatprep.subr.bf16.mxu0 %v3032
      %4420 = vmatpush1.bf16.msra.mxu0 %v3031
      %4421 = vmatprep.subr.bf16.mxu0 %v3028
      %4422 = vmatpush1.bf16.msra.mxu0 %v3027
      %4423 = vmatprep.subr.bf16.mxu0 %v3024
      %4424 = vmatpush1.bf16.msra.mxu0 %v3023
      %4425 = vmatprep.subr.bf16.mxu0 %v3020
      %4426 = vmatpush1.bf16.msra.mxu0 %v3019
      %4427 = vmatprep.subr.bf16.mxu0 %v3016
      %4428 = vmatpush1.bf16.msra.mxu0 %v3015
      %4429 = vmatprep.subr.bf16.mxu0 %v3012
      %4430 = vmatpush1.bf16.msra.mxu0 %v3011
      %4431 = vmatprep.subr.bf16.mxu0 %v3072
      %4432 = vmatpush2.bf16.msra.mxu0 %v3071
      %4433 = vmatprep.subr.bf16.mxu0 %v3068
      %4434 = vmatpush2.bf16.msra.mxu0 %v3067
      %4435 = vmatprep.subr.bf16.mxu0 %v3064
      %4436 = vmatpush2.bf16.msra.mxu0 %v3063
      %4437 = vmatprep.subr.bf16.mxu0 %v3060
      %4438 = vmatpush2.bf16.msra.mxu0 %v3059
      %4439 = vmatprep.subr.bf16.mxu0 %v3056
      %4440 = vmatpush2.bf16.msra.mxu0 %v3055
      %4441 = vmatprep.subr.bf16.mxu0 %v3052
      %4442 = vmatpush2.bf16.msra.mxu0 %v3051
      %4443 = vmatprep.subr.bf16.mxu0 %v3048
      %4444 = vmatpush2.bf16.msra.mxu0 %v3047
      %4445 = vmatprep.subr.bf16.mxu0 %v3044
      %4446 = vmatpush2.bf16.msra.mxu0 %v3043
      %4447 = vmatprep.mubr.bf16.mxu0 %v919
      %4448 = vmatmul.mubr.bf16.gmra.mxu0 %v917
      %v4449 = vpop.f32.mrf.mxu0
      %v4450 = vadd.f32 %v4409, %v4449
      %v4451 = vpop.f32.mrf.mxu0
      %v4452 = vadd.f32 %v4411, %v4451
      %v4453 = vpop.f32.mrf.mxu0
      %v4454 = vpop.f32.mrf.mxu0
      %4455 = vdwg.mxu0
      %4456 = vmatprep.subr.bf16.mxu0 %v3104
      %4457 = vmatpush1.bf16.msra.mxu0 %v3103
      %4458 = vmatprep.subr.bf16.mxu0 %v3100
      %4459 = vmatpush1.bf16.msra.mxu0 %v3099
      %4460 = vmatprep.subr.bf16.mxu0 %v3096
      %4461 = vmatpush1.bf16.msra.mxu0 %v3095
      %4462 = vmatprep.subr.bf16.mxu0 %v3092
      %4463 = vmatpush1.bf16.msra.mxu0 %v3091
      %4464 = vmatprep.subr.bf16.mxu0 %v3088
      %4465 = vmatpush1.bf16.msra.mxu0 %v3087
      %4466 = vmatprep.subr.bf16.mxu0 %v3084
      %4467 = vmatpush1.bf16.msra.mxu0 %v3083
      %4468 = vmatprep.subr.bf16.mxu0 %v3080
      %4469 = vmatpush1.bf16.msra.mxu0 %v3079
      %4470 = vmatprep.subr.bf16.mxu0 %v3076
      %4471 = vmatpush1.bf16.msra.mxu0 %v3075
      %4472 = vmatprep.subr.bf16.mxu0 %v3136
      %4473 = vmatpush2.bf16.msra.mxu0 %v3135
      %4474 = vmatprep.subr.bf16.mxu0 %v3132
      %4475 = vmatpush2.bf16.msra.mxu0 %v3131
      %4476 = vmatprep.subr.bf16.mxu0 %v3128
      %4477 = vmatpush2.bf16.msra.mxu0 %v3127
      %4478 = vmatprep.subr.bf16.mxu0 %v3124
      %4479 = vmatpush2.bf16.msra.mxu0 %v3123
      %4480 = vmatprep.subr.bf16.mxu0 %v3120
      %4481 = vmatpush2.bf16.msra.mxu0 %v3119
      %4482 = vmatprep.subr.bf16.mxu0 %v3116
      %4483 = vmatpush2.bf16.msra.mxu0 %v3115
      %4484 = vmatprep.subr.bf16.mxu0 %v3112
      %4485 = vmatpush2.bf16.msra.mxu0 %v3111
      %4486 = vmatprep.subr.bf16.mxu0 %v3108
      %4487 = vmatpush2.bf16.msra.mxu0 %v3107
      %4488 = vmatprep.mubr.bf16.mxu0 %v916
      %4489 = vmatmul.mubr.bf16.gmra.mxu0 %v902
      %v4490 = vpop.f32.mrf.mxu0
      %v4491 = vadd.f32 %v4450, %v4490
      %v4492 = vpop.f32.mrf.mxu0
      %v4493 = vadd.f32 %v4452, %v4492
      %v4494 = vpop.f32.mrf.mxu0
      %v4495 = vpop.f32.mrf.mxu0
      %4496 = vdwg.mxu0
      %4497 = vmatprep.subr.bf16.mxu0 %v3168
      %4498 = vmatpush1.bf16.msra.mxu0 %v3167
      %4499 = vmatprep.subr.bf16.mxu0 %v3164
      %4500 = vmatpush1.bf16.msra.mxu0 %v3163
      %4501 = vmatprep.subr.bf16.mxu0 %v3160
      %4502 = vmatpush1.bf16.msra.mxu0 %v3159
      %4503 = vmatprep.subr.bf16.mxu0 %v3156
      %4504 = vmatpush1.bf16.msra.mxu0 %v3155
      %4505 = vmatprep.subr.bf16.mxu0 %v3152
      %4506 = vmatpush1.bf16.msra.mxu0 %v3151
      %4507 = vmatprep.subr.bf16.mxu0 %v3148
      %4508 = vmatpush1.bf16.msra.mxu0 %v3147
      %4509 = vmatprep.subr.bf16.mxu0 %v3144
      %4510 = vmatpush1.bf16.msra.mxu0 %v3143
      %4511 = vmatprep.subr.bf16.mxu0 %v3140
      %4512 = vmatpush1.bf16.msra.mxu0 %v3139
      %4513 = vmatprep.subr.bf16.mxu0 %v3200
      %4514 = vmatpush2.bf16.msra.mxu0 %v3199
      %4515 = vmatprep.subr.bf16.mxu0 %v3196
      %4516 = vmatpush2.bf16.msra.mxu0 %v3195
      %4517 = vmatprep.subr.bf16.mxu0 %v3192
      %4518 = vmatpush2.bf16.msra.mxu0 %v3191
      %4519 = vmatprep.subr.bf16.mxu0 %v3188
      %4520 = vmatpush2.bf16.msra.mxu0 %v3187
      %4521 = vmatprep.subr.bf16.mxu0 %v3184
      %4522 = vmatpush2.bf16.msra.mxu0 %v3183
      %4523 = vmatprep.subr.bf16.mxu0 %v3180
      %4524 = vmatpush2.bf16.msra.mxu0 %v3179
      %4525 = vmatprep.subr.bf16.mxu0 %v3176
      %4526 = vmatpush2.bf16.msra.mxu0 %v3175
      %4527 = vmatprep.subr.bf16.mxu0 %v3172
      %4528 = vmatpush2.bf16.msra.mxu0 %v3171
      %4529 = vmatprep.mubr.bf16.mxu0 %v920
      %4530 = vmatmul.mubr.bf16.gmra.mxu0 %v918
      %v4531 = vpop.f32.mrf.mxu0
      %v4532 = vadd.f32 %v4491, %v4531
      %v4533 = vpop.f32.mrf.mxu0
      %v4534 = vadd.f32 %v4493, %v4533
      %v4535 = vpop.f32.mrf.mxu0
      %v4536 = vpop.f32.mrf.mxu0
      %4537 = vdwg.mxu0
      %4538 = vmatprep.subr.bf16.mxu0 %v3232
      %4539 = vmatpush1.bf16.msra.mxu0 %v3231
      %4540 = vmatprep.subr.bf16.mxu0 %v3228
      %4541 = vmatpush1.bf16.msra.mxu0 %v3227
      %4542 = vmatprep.subr.bf16.mxu0 %v3224
      %4543 = vmatpush1.bf16.msra.mxu0 %v3223
      %4544 = vmatprep.subr.bf16.mxu0 %v3220
      %4545 = vmatpush1.bf16.msra.mxu0 %v3219
      %4546 = vmatprep.subr.bf16.mxu0 %v3216
      %4547 = vmatpush1.bf16.msra.mxu0 %v3215
      %4548 = vmatprep.subr.bf16.mxu0 %v3212
      %4549 = vmatpush1.bf16.msra.mxu0 %v3211
      %4550 = vmatprep.subr.bf16.mxu0 %v3208
      %4551 = vmatpush1.bf16.msra.mxu0 %v3207
      %4552 = vmatprep.subr.bf16.mxu0 %v3204
      %4553 = vmatpush1.bf16.msra.mxu0 %v3203
      %4554 = vmatprep.subr.bf16.mxu0 %v3264
      %4555 = vmatpush2.bf16.msra.mxu0 %v3263
      %4556 = vmatprep.subr.bf16.mxu0 %v3260
      %4557 = vmatpush2.bf16.msra.mxu0 %v3259
      %4558 = vmatprep.subr.bf16.mxu0 %v3256
      %4559 = vmatpush2.bf16.msra.mxu0 %v3255
      %4560 = vmatprep.subr.bf16.mxu0 %v3252
      %4561 = vmatpush2.bf16.msra.mxu0 %v3251
      %4562 = vmatprep.subr.bf16.mxu0 %v3248
      %4563 = vmatpush2.bf16.msra.mxu0 %v3247
      %4564 = vmatprep.subr.bf16.mxu0 %v3244
      %4565 = vmatpush2.bf16.msra.mxu0 %v3243
      %4566 = vmatprep.subr.bf16.mxu0 %v3240
      %4567 = vmatpush2.bf16.msra.mxu0 %v3239
      %4568 = vmatprep.subr.bf16.mxu0 %v3236
      %4569 = vmatpush2.bf16.msra.mxu0 %v3235
      %4570 = vmatprep.mubr.bf16.mxu0 %v942
      %4571 = vmatmul.mubr.bf16.gmra.mxu0 %v935
      %v4572 = vpop.f32.mrf.mxu0
      %v4573 = vadd.f32 %v4532, %v4572
      %v4574 = vpop.f32.mrf.mxu0
      %v4575 = vadd.f32 %v4534, %v4574
      %v4576 = vpop.f32.mrf.mxu0
      %v4577 = vpop.f32.mrf.mxu0
      %4578 = vdwg.mxu0
      %v4583 = vcombine.low %v4204, %v4206
      %v4584 = vcombine.low %v4573, %v4575
      %v4586 = vunpack.c.l.s4 1983009808
      %v4587 = vunpack.c.0.s8 %v4586
      %v4588 = vlaneseq
      %v4589 = vshrl.u32 %v4588, 7
      %v4590 = vsub.s32 %v4587, %v4589
      %v4591 = vrot.slane %v4583, %v4590
      %v4593 = vunpack.c.l.s4 1983009808
      %v4594 = vunpack.c.0.s8 %v4593
      %v4595 = vlaneseq
      %v4596 = vshrl.u32 %v4595, 7
      %v4597 = vsub.s32 %v4594, %v4596
      %v4598 = vrot.slane %v4584, %v4597
      %v4599 = vcombine.low %v4591, %v4598
      %v4601 = vadd.f32 %v240, %v4599
      %4602 = vst [vmem:[#allocation2] sm:$0xff] %v4601
      %p4603 = scmp.eq.s32.totalorder %s16, 3
      // Predicated region
      $region45: #{_lambda_.7} parent=39 // pred_check
        %p4604 = pneg %p4603
      $region46: #{_lambda_.7} parent=39 // pred_check_branch
        %4606 = sbr.rel (%p4604) target = $region48
      $region47: #{_lambda_.7} parent=39 // pred_region
        %v4607 = vld [vmem:[#allocation2] sm:$0xff]
        %v4608 = vld [vmem:[%s2] sm:$0xf]
        %v4610 = vlaneseq
        %v4611 = vshrl.u32 %v4610, 7
        %v4612 = vsub.s32 0, %v4611
        %v4613 = vrot.slane %v4608, %v4612
        %v4614 = vlaneseq
        %v4615 = vshrl.u32 %v4614, 7
        %v4616 = vsub.s32 1, %v4615
        %v4617 = vrot.slane %v4608, %v4616
        %v4618 = vlaneseq
        %v4619 = vshrl.u32 %v4618, 7
        %v4620 = vsub.s32 2, %v4619
        %v4621 = vrot.slane %v4608, %v4620
        %v4622 = vlaneseq
        %v4623 = vshrl.u32 %v4622, 7
        %v4624 = vsub.s32 3, %v4623
        %v4625 = vrot.slane %v4608, %v4624
        %v4626 = vcombine.low %v4613, %v4617
        %v4627 = vcombine.low %v4621, %v4625
        %v4629 = vunpack.c.l.s4 1983009808
        %v4630 = vunpack.c.0.s8 %v4629
        %v4631 = vlaneseq
        %v4632 = vshrl.u32 %v4631, 7
        %v4633 = vsub.s32 %v4630, %v4632
        %v4634 = vrot.slane %v4626, %v4633
        %v4636 = vunpack.c.l.s4 1983009808
        %v4637 = vunpack.c.0.s8 %v4636
        %v4638 = vlaneseq
        %v4639 = vshrl.u32 %v4638, 7
        %v4640 = vsub.s32 %v4637, %v4639
        %v4641 = vrot.slane %v4627, %v4640
        %v4642 = vcombine.low %v4634, %v4641
        %v4644 = vadd.f32 %v4607, %v4642
        %v4645 = vmax.f32 %v4644, 0.0
        %v4647 = vcombine.high %v4645, %v4645
        %v4649 = vunpack.c.l.s4 1983009808
        %v4650 = vunpack.c.0.s8 %v4649
        %v4651 = vlaneseq
        %v4652 = vshrl.u32 %v4651, 7
        %v4653 = vsub.s32 %v4650, %v4652
        %v4654 = vrot.slane %v4645, %v4653
        %v4656 = vunpack.c.l.s4 1983009808
        %v4657 = vunpack.c.0.s8 %v4656
        %v4658 = vlaneseq
        %v4659 = vshrl.u32 %v4658, 7
        %v4660 = vsub.s32 %v4657, %v4659
        %v4661 = vrot.slane %v4647, %v4660
        %v4662 = vcombine.high %v4654, %v4654
        %v4663 = vcombine.high %v4661, %v4661
        %v4668 = vpack.c.bf16 %v4654, %v4654
        %v4669 = vpack.c.bf16 %v4662, %v4662
        %v4670 = vpack.c.bf16 %v4661, %v4661
        %v4671 = vpack.c.bf16 %v4663, %v4663
        %v4672 = vld [vmem:[%s3] sm:$0xf]
        %v4673 = vld [vmem:[%s3 + $0x4] sm:$0xf]
        %v4674 = vld [vmem:[%s3 + $0x8] sm:$0xf]
        %v4675 = vld [vmem:[%s3 + $0xc] sm:$0xf]
        %v4676 = vld [vmem:[%s3 + $0x10] sm:$0xf]
        %v4677 = vld [vmem:[%s3 + $0x14] sm:$0xf]
        %v4678 = vld [vmem:[%s3 + $0x18] sm:$0xf]
        %v4679 = vld [vmem:[%s3 + $0x1c] sm:$0xf]
        %v4680 = vld [vmem:[%s3 + $0x20] sm:$0xf]
        %v4681 = vld [vmem:[%s3 + $0x24] sm:$0xf]
        %v4682 = vld [vmem:[%s3 + $0x28] sm:$0xf]
        %v4683 = vld [vmem:[%s3 + $0x2c] sm:$0xf]
        %v4684 = vld [vmem:[%s3 + $0x30] sm:$0xf]
        %v4685 = vld [vmem:[%s3 + $0x34] sm:$0xf]
        %v4686 = vld [vmem:[%s3 + $0x38] sm:$0xf]
        %v4687 = vld [vmem:[%s3 + $0x3c] sm:$0xf]
        %v4688 = vld [vmem:[%s3 + $0x40] sm:$0xf]
        %v4689 = vld [vmem:[%s3 + $0x44] sm:$0xf]
        %v4690 = vld [vmem:[%s3 + $0x48] sm:$0xf]
        %v4691 = vld [vmem:[%s3 + $0x4c] sm:$0xf]
        %v4692 = vld [vmem:[%s3 + $0x50] sm:$0xf]
        %v4693 = vld [vmem:[%s3 + $0x54] sm:$0xf]
        %v4694 = vld [vmem:[%s3 + $0x58] sm:$0xf]
        %v4695 = vld [vmem:[%s3 + $0x5c] sm:$0xf]
        %v4696 = vld [vmem:[%s3 + $0x60] sm:$0xf]
        %v4697 = vld [vmem:[%s3 + $0x64] sm:$0xf]
        %v4698 = vld [vmem:[%s3 + $0x68] sm:$0xf]
        %v4699 = vld [vmem:[%s3 + $0x6c] sm:$0xf]
        %v4700 = vld [vmem:[%s3 + $0x70] sm:$0xf]
        %v4701 = vld [vmem:[%s3 + $0x74] sm:$0xf]
        %v4702 = vld [vmem:[%s3 + $0x78] sm:$0xf]
        %v4703 = vld [vmem:[%s3 + $0x7c] sm:$0xf]
        %v4704 = vld [vmem:[%s3 + $0x80] sm:$0xf]
        %v4705 = vld [vmem:[%s3 + $0x84] sm:$0xf]
        %v4706 = vld [vmem:[%s3 + $0x88] sm:$0xf]
        %v4707 = vld [vmem:[%s3 + $0x8c] sm:$0xf]
        %v4708 = vld [vmem:[%s3 + $0x90] sm:$0xf]
        %v4709 = vld [vmem:[%s3 + $0x94] sm:$0xf]
        %v4710 = vld [vmem:[%s3 + $0x98] sm:$0xf]
        %v4711 = vld [vmem:[%s3 + $0x9c] sm:$0xf]
        %v4712 = vld [vmem:[%s3 + $0xa0] sm:$0xf]
        %v4713 = vld [vmem:[%s3 + $0xa4] sm:$0xf]
        %v4714 = vld [vmem:[%s3 + $0xa8] sm:$0xf]
        %v4715 = vld [vmem:[%s3 + $0xac] sm:$0xf]
        %v4716 = vld [vmem:[%s3 + $0xb0] sm:$0xf]
        %v4717 = vld [vmem:[%s3 + $0xb4] sm:$0xf]
        %v4718 = vld [vmem:[%s3 + $0xb8] sm:$0xf]
        %v4719 = vld [vmem:[%s3 + $0xbc] sm:$0xf]
        %v4720 = vld [vmem:[%s3 + $0xc0] sm:$0xf]
        %v4721 = vld [vmem:[%s3 + $0xc4] sm:$0xf]
        %v4722 = vld [vmem:[%s3 + $0xc8] sm:$0xf]
        %v4723 = vld [vmem:[%s3 + $0xcc] sm:$0xf]
        %v4724 = vld [vmem:[%s3 + $0xd0] sm:$0xf]
        %v4725 = vld [vmem:[%s3 + $0xd4] sm:$0xf]
        %v4726 = vld [vmem:[%s3 + $0xd8] sm:$0xf]
        %v4727 = vld [vmem:[%s3 + $0xdc] sm:$0xf]
        %v4728 = vld [vmem:[%s3 + $0xe0] sm:$0xf]
        %v4729 = vld [vmem:[%s3 + $0xe4] sm:$0xf]
        %v4730 = vld [vmem:[%s3 + $0xe8] sm:$0xf]
        %v4731 = vld [vmem:[%s3 + $0xec] sm:$0xf]
        %v4732 = vld [vmem:[%s3 + $0xf0] sm:$0xf]
        %v4733 = vld [vmem:[%s3 + $0xf4] sm:$0xf]
        %v4734 = vld [vmem:[%s3 + $0xf8] sm:$0xf]
        %v4735 = vld [vmem:[%s3 + $0xfc] sm:$0xf]
        %v4736 = vld [vmem:[%s4] sm:$0x1]
        %v4738 = vlaneseq
        %v4739 = vshrl.u32 %v4738, 7
        %v4740 = vsub.s32 0, %v4739
        %v4741 = vrot.slane %v4736, %v4740
        %v4807 = vunpack.c.l.b16 %v4672
        %v4808 = vunpack.c.l.b16 %v4673
        %v4809 = vunpack.c.l.b16 %v4674
        %v4810 = vunpack.c.l.b16 %v4675
        %v4811 = vunpack.c.l.b16 %v4676
        %v4812 = vunpack.c.l.b16 %v4677
        %v4813 = vunpack.c.l.b16 %v4678
        %v4814 = vunpack.c.l.b16 %v4679
        %v4815 = vunpack.c.l.b16 %v4680
        %v4816 = vunpack.c.l.b16 %v4681
        %v4817 = vunpack.c.l.b16 %v4682
        %v4818 = vunpack.c.l.b16 %v4683
        %v4819 = vunpack.c.l.b16 %v4684
        %v4820 = vunpack.c.l.b16 %v4685
        %v4821 = vunpack.c.l.b16 %v4686
        %v4822 = vunpack.c.l.b16 %v4687
        %v4823 = vunpack.c.l.b16 %v4688
        %v4824 = vunpack.c.l.b16 %v4689
        %v4825 = vunpack.c.l.b16 %v4690
        %v4826 = vunpack.c.l.b16 %v4691
        %v4827 = vunpack.c.l.b16 %v4692
        %v4828 = vunpack.c.l.b16 %v4693
        %v4829 = vunpack.c.l.b16 %v4694
        %v4830 = vunpack.c.l.b16 %v4695
        %v4831 = vunpack.c.l.b16 %v4696
        %v4832 = vunpack.c.l.b16 %v4697
        %v4833 = vunpack.c.l.b16 %v4698
        %v4834 = vunpack.c.l.b16 %v4699
        %v4835 = vunpack.c.l.b16 %v4700
        %v4836 = vunpack.c.l.b16 %v4701
        %v4837 = vunpack.c.l.b16 %v4702
        %v4838 = vunpack.c.l.b16 %v4703
        %v4839 = vunpack.c.l.b16 %v4704
        %v4840 = vunpack.c.l.b16 %v4705
        %v4841 = vunpack.c.l.b16 %v4706
        %v4842 = vunpack.c.l.b16 %v4707
        %v4843 = vunpack.c.l.b16 %v4708
        %v4844 = vunpack.c.l.b16 %v4709
        %v4845 = vunpack.c.l.b16 %v4710
        %v4846 = vunpack.c.l.b16 %v4711
        %v4847 = vunpack.c.l.b16 %v4712
        %v4848 = vunpack.c.l.b16 %v4713
        %v4849 = vunpack.c.l.b16 %v4714
        %v4850 = vunpack.c.l.b16 %v4715
        %v4851 = vunpack.c.l.b16 %v4716
        %v4852 = vunpack.c.l.b16 %v4717
        %v4853 = vunpack.c.l.b16 %v4718
        %v4854 = vunpack.c.l.b16 %v4719
        %v4855 = vunpack.c.l.b16 %v4720
        %v4856 = vunpack.c.l.b16 %v4721
        %v4857 = vunpack.c.l.b16 %v4722
        %v4858 = vunpack.c.l.b16 %v4723
        %v4859 = vunpack.c.l.b16 %v4724
        %v4860 = vunpack.c.l.b16 %v4725
        %v4861 = vunpack.c.l.b16 %v4726
        %v4862 = vunpack.c.l.b16 %v4727
        %v4863 = vunpack.c.l.b16 %v4728
        %v4864 = vunpack.c.l.b16 %v4729
        %v4865 = vunpack.c.l.b16 %v4730
        %v4866 = vunpack.c.l.b16 %v4731
        %v4867 = vunpack.c.l.b16 %v4732
        %v4868 = vunpack.c.l.b16 %v4733
        %v4869 = vunpack.c.l.b16 %v4734
        %v4870 = vunpack.c.l.b16 %v4735
        %v4871 = vpack.c.b16 %v4808, %v4807
        %v4872 = vpack.c.b16 %v4810, %v4809
        %v4873 = vpack.c.b16 %v4812, %v4811
        %v4874 = vpack.c.b16 %v4814, %v4813
        %v4875 = vpack.c.b16 %v4816, %v4815
        %v4876 = vpack.c.b16 %v4818, %v4817
        %v4877 = vpack.c.b16 %v4820, %v4819
        %v4878 = vpack.c.b16 %v4822, %v4821
        %v4879 = vpack.c.b16 %v4824, %v4823
        %v4880 = vpack.c.b16 %v4826, %v4825
        %v4881 = vpack.c.b16 %v4828, %v4827
        %v4882 = vpack.c.b16 %v4830, %v4829
        %v4883 = vpack.c.b16 %v4832, %v4831
        %v4884 = vpack.c.b16 %v4834, %v4833
        %v4885 = vpack.c.b16 %v4836, %v4835
        %v4886 = vpack.c.b16 %v4838, %v4837
        %v4887 = vpack.c.b16 %v4840, %v4839
        %v4888 = vpack.c.b16 %v4842, %v4841
        %v4889 = vpack.c.b16 %v4844, %v4843
        %v4890 = vpack.c.b16 %v4846, %v4845
        %v4891 = vpack.c.b16 %v4848, %v4847
        %v4892 = vpack.c.b16 %v4850, %v4849
        %v4893 = vpack.c.b16 %v4852, %v4851
        %v4894 = vpack.c.b16 %v4854, %v4853
        %v4895 = vpack.c.b16 %v4856, %v4855
        %v4896 = vpack.c.b16 %v4858, %v4857
        %v4897 = vpack.c.b16 %v4860, %v4859
        %v4898 = vpack.c.b16 %v4862, %v4861
        %v4899 = vpack.c.b16 %v4864, %v4863
        %v4900 = vpack.c.b16 %v4866, %v4865
        %v4901 = vpack.c.b16 %v4868, %v4867
        %v4902 = vpack.c.b16 %v4870, %v4869
        %4935 = vmatprep.subr.bf16.mxu0 0
        %4936 = vmatpush1.bf16.msra.mxu0 %v4878
        %4937 = vmatprep.subr.bf16.mxu0 0
        %4938 = vmatpush1.bf16.msra.mxu0 %v4877
        %4939 = vmatprep.subr.bf16.mxu0 0
        %4940 = vmatpush1.bf16.msra.mxu0 %v4876
        %4941 = vmatprep.subr.bf16.mxu0 0
        %4942 = vmatpush1.bf16.msra.mxu0 %v4875
        %4943 = vmatprep.subr.bf16.mxu0 0
        %4944 = vmatpush1.bf16.msra.mxu0 %v4874
        %4945 = vmatprep.subr.bf16.mxu0 0
        %4946 = vmatpush1.bf16.msra.mxu0 %v4873
        %4947 = vmatprep.subr.bf16.mxu0 0
        %4948 = vmatpush1.bf16.msra.mxu0 %v4872
        %4949 = vmatprep.subr.bf16.mxu0 0
        %4950 = vmatpush1.bf16.msra.mxu0 %v4871
        %4951 = vmatprep.subr.bf16.mxu0 0
        %4952 = vmatpush2.bf16.msra.mxu0 %v4886
        %4953 = vmatprep.subr.bf16.mxu0 0
        %4954 = vmatpush2.bf16.msra.mxu0 %v4885
        %4955 = vmatprep.subr.bf16.mxu0 0
        %4956 = vmatpush2.bf16.msra.mxu0 %v4884
        %4957 = vmatprep.subr.bf16.mxu0 0
        %4958 = vmatpush2.bf16.msra.mxu0 %v4883
        %4959 = vmatprep.subr.bf16.mxu0 0
        %4960 = vmatpush2.bf16.msra.mxu0 %v4882
        %4961 = vmatprep.subr.bf16.mxu0 0
        %4962 = vmatpush2.bf16.msra.mxu0 %v4881
        %4963 = vmatprep.subr.bf16.mxu0 0
        %4964 = vmatpush2.bf16.msra.mxu0 %v4880
        %4965 = vmatprep.subr.bf16.mxu0 0
        %4966 = vmatpush2.bf16.msra.mxu0 %v4879
        %4967 = vmatprep.mubr.bf16.mxu0 %v4669
        %4968 = vmatmul.mubr.bf16.gmra.mxu0 %v4668
        %v4969 = vpop.f32.mrf.mxu0
        %v4970 = vadd.f32 %v4741, %v4969
        %v4971 = vpop.f32.mrf.mxu0
        %v4972 = vpop.f32.mrf.mxu0
        %v4973 = vpop.f32.mrf.mxu0
        %4974 = vdwg.mxu0
        %4975 = vmatprep.subr.bf16.mxu0 0
        %4976 = vmatpush1.bf16.msra.mxu0 %v4894
        %4977 = vmatprep.subr.bf16.mxu0 0
        %4978 = vmatpush1.bf16.msra.mxu0 %v4893
        %4979 = vmatprep.subr.bf16.mxu0 0
        %4980 = vmatpush1.bf16.msra.mxu0 %v4892
        %4981 = vmatprep.subr.bf16.mxu0 0
        %4982 = vmatpush1.bf16.msra.mxu0 %v4891
        %4983 = vmatprep.subr.bf16.mxu0 0
        %4984 = vmatpush1.bf16.msra.mxu0 %v4890
        %4985 = vmatprep.subr.bf16.mxu0 0
        %4986 = vmatpush1.bf16.msra.mxu0 %v4889
        %4987 = vmatprep.subr.bf16.mxu0 0
        %4988 = vmatpush1.bf16.msra.mxu0 %v4888
        %4989 = vmatprep.subr.bf16.mxu0 0
        %4990 = vmatpush1.bf16.msra.mxu0 %v4887
        %4991 = vmatprep.subr.bf16.mxu0 0
        %4992 = vmatpush2.bf16.msra.mxu0 %v4902
        %4993 = vmatprep.subr.bf16.mxu0 0
        %4994 = vmatpush2.bf16.msra.mxu0 %v4901
        %4995 = vmatprep.subr.bf16.mxu0 0
        %4996 = vmatpush2.bf16.msra.mxu0 %v4900
        %4997 = vmatprep.subr.bf16.mxu0 0
        %4998 = vmatpush2.bf16.msra.mxu0 %v4899
        %4999 = vmatprep.subr.bf16.mxu0 0
        %5000 = vmatpush2.bf16.msra.mxu0 %v4898
        %5001 = vmatprep.subr.bf16.mxu0 0
        %5002 = vmatpush2.bf16.msra.mxu0 %v4897
        %5003 = vmatprep.subr.bf16.mxu0 0
        %5004 = vmatpush2.bf16.msra.mxu0 %v4896
        %5005 = vmatprep.subr.bf16.mxu0 0
        %5006 = vmatpush2.bf16.msra.mxu0 %v4895
        %5007 = vmatprep.mubr.bf16.mxu0 %v4671
        %5008 = vmatmul.mubr.bf16.gmra.mxu0 %v4670
        %v5009 = vpop.f32.mrf.mxu0
        %v5010 = vadd.f32 %v4970, %v5009
        %v5011 = vpop.f32.mrf.mxu0
        %v5012 = vpop.f32.mrf.mxu0
        %v5013 = vpop.f32.mrf.mxu0
        %5014 = vdwg.mxu0
        %v5015 = vlaneseq
        %v5016 = vand.u32 %v5015, 127
        %vm5017 = vcmp.eq.s32.totalorder %v5016, 0
        %v5018 = vsel %vm5017, %v5010, 0.0
        %vm5019 = vcmask 1041408
        %v5020 = vsel %vm5019, %v5018, 0.0
        %5021 = vadd.xlane.f32.xlu0 %v5020
        %v5022 = vpop.xlane.xlu0 %5021
        %vm5023 = vcmp.ge.s32.totalorder %v5016, 1
        %vm5024 = vcmp.le.s32.totalorder %v5016, 6
        %vm5025 = vmand %vm5023, %vm5024
        %v5026 = vsel %vm5025, %v5010, 0.0
        %v5027 = vsel %vm5019, %v5026, 0.0
        %5028 = vadd.xlane.f32.xlu0 %v5027
        %v5029 = vpop.xlane.xlu0 %5028
        %v5030 = vmul.f32 %v5029, 0.16666667
        %v5031 = vadd.f32 %v5022, %v5010
        %v5032 = vsub.f32 %v5031, %v5030
        %5033 = vst [vmem:[%s5] sm:$0x3] %v5032
      $region48: #{_lambda_.7} parent=39 // pred_fallthru
        _
      // Predicated region
      $region49: #{_lambda_.7} parent=39 // pred_check
        %p5034 = pneg %p144
      $region50: #{_lambda_.7} parent=39 // pred_check_branch
        %5036 = sbr.rel (%p5034) target = $region52
      $region51: #{_lambda_.7} parent=39 // pred_region
        _
      $region52: #{_lambda_.7} parent=39 // pred_fallthru
        _
      // Predicated region
      $region53: #{_lambda_.7} parent=39 // pred_check
        %p5037 = pneg %p144
      $region54: #{_lambda_.7} parent=39 // pred_check_branch
        %5039 = sbr.rel (%p5037) target = $region56
      $region55: #{_lambda_.7} parent=39 // pred_region
        _
      $region56: #{_lambda_.7} parent=39 // pred_fallthru
        _
    $region40: #{_lambda_.7} parent=5 // pred_fallthru
      _
    %p5040 = scmp.le.s32.totalorder 2, %s11
    // Predicated region
    $region57: #{_lambda_.7} parent=5 // pred_check
      %p5041 = pneg %p5040
    $region58: #{_lambda_.7} parent=5 // pred_check_branch
      %5043 = sbr.rel (%p5041) target = $region60
    $region59: #{_lambda_.7} parent=5 // pred_region
      %s5044 = ssub.s32 %s11, 2
    $region60: #{_lambda_.7} parent=5 // pred_fallthru
      _
  $region6: #{_lambda_.7} parent=0 // loop_footer
    %s15 = sadd.s32 1, %s11
  $region7: #{_lambda_.7} parent=0 // loop_footer_branch
    %10 = sbr.rel target = $region3
  $region8: #{_lambda_.7} parent=0 // loop_exit
    _

</llo_original>
